<compile_context>
chip_gen: v5e
topology: v5e:2x2
jax: 0.10.0
libtpu: 0.0.40
codegen_flags: <defaults>
</compile_context>

<pallas_src>
import math

import jax
import jax.numpy as jnp
from jax.experimental import pallas as pl
from jax.experimental.pallas import tpu as pltpu

# ----------------------------- model hyper-parameters -----------------------------
K = 6
N_FEATURES = 4 ** K          # 4096   (model_size='linear')
N_HIDDEN = 256               # nhiddens = [256, 256]
N_LATENT = 64
BN_EPS = 1e-5
LEAKY_SLOPE = 0.01           # nn.LeakyReLU default negative_slope

# ----------------------------- kernel tiling parameters ---------------------------
# Largest tile = fewest grid steps; the kernel is overhead/DMA-bound so this is the
# top lever (per perf review).  Footprint stays far under vmem_limit_bytes below.
TILE = 4096                  # K-tile of we1 (pass 0) / N-tile of wout (pass 1)
N_TILES = N_FEATURES // TILE # 1

# static lane offsets inside the concatenated bias vector (all multiples of 128)
_B_E1 = 0
_B_E2 = _B_E1 + N_HIDDEN               # 256
_B_ML = _B_E2 + N_HIDDEN               # 512
_B_D1 = _B_ML + 2 * N_LATENT           # 640
_B_D2 = _B_D1 + N_HIDDEN               # 896
_B_TOT = _B_D2 + N_HIDDEN              # 1152


# ------------------------------- in-kernel helpers ---------------------------------
def _leaky_relu(x):
    return jnp.where(x >= 0, x, LEAKY_SLOPE * x)


def _softplus(x):
    # numerically-stable softplus: max(x,0) + log1p(exp(-|x|))
    return jnp.maximum(x, 0.0) + jnp.log1p(jnp.exp(-jnp.abs(x)))


# ---------------------------------- Pallas kernel ----------------------------------
def vae_kernel(
    x_ref,       # (B, TILE)              bf16  pass-0 K-tile of the input
    eps_ref,     # (B, N_LATENT)          f32   reparameterization noise
    we1_ref,     # (TILE, 256)            bf16  pass-0 K-tile of encoder layer 1
    we2_ref,     # (256, 256)             bf16  encoder layer 2 (enc-BN1 folded in)
    wmuls_ref,   # (256, 128)             bf16  [mu | logsigma] heads (enc-BN2 folded in)
    wd1_ref,     # (64, 256)              bf16  decoder layer 1
    wd2_ref,     # (256, 256)             bf16  decoder layer 2 (dec-BN1 folded in)
    wout_ref,    # (256, TILE)            bf16  pass-1 N-tile of output layer (dec-BN2 folded)
    bias_ref,    # (1, 1152)              f32   concatenated small biases
    bout_ref,    # (1, TILE)              f32   pass-1 N-tile of the output bias
    # outputs
    out_ref,     # (B, TILE)              f32   pass-1 N-tile of the reconstruction
    muls_ref,    # (B, 128)               f32   packed [mu | softplus(logsigma)]
    # scratch
    acc1_ref,    # (B, 256) f32           encoder layer-1 accumulator
    a4_ref,      # (B, 256) f32           final decoder activation (kept across passes)
):
    p = pl.program_id(0)      # 0 = encoder/trunk pass, 1 = output pass
    j = pl.program_id(1)      # tile index within the pass
    nj = pl.num_programs(1)

    # ---------------- pass 0: accumulate encoder layer 1 over K tiles ---------------
    # NOTE: out_ref keeps block index (0, 0) for the whole grid and is only written in
    # pass 1; correctness relies on Pallas deferring output writeback until the output
    # block index changes / the grid ends (it never flushes the untouched pass-0 state).
    @pl.when(p == 0)
    def _():
        @pl.when(j == 0)
        def _():
            acc1_ref[...] = jnp.zeros_like(acc1_ref)

        acc1_ref[...] += jnp.dot(
            x_ref[...], we1_ref[...], preferred_element_type=jnp.float32)

        # ------------- last K tile: run the (tiny) rest of the network -------------
        @pl.when(j == nj - 1)
        def _():
            be1   = bias_ref[:, _B_E1:_B_E2]
            be2   = bias_ref[:, _B_E2:_B_ML]
            bmuls = bias_ref[:, _B_ML:_B_D1]
            bd1   = bias_ref[:, _B_D1:_B_D2]
            bd2   = bias_ref[:, _B_D2:_B_TOT]

            # dropout layers are identity in eval mode; the eval BatchNorms are
            # folded into the following Linear weights, so a1..a4 below are the
            # pre-BN activations of the original network.
            a1 = _leaky_relu(acc1_ref[...] + be1)
            a2 = _leaky_relu(
                jnp.dot(a1.astype(jnp.bfloat16), we2_ref[...],
                        preferred_element_type=jnp.float32) + be2)

            muls = jnp.dot(a2.astype(jnp.bfloat16), wmuls_ref[...],
                           preferred_element_type=jnp.float32) + bmuls
            mu = muls[:, :N_LATENT]
            logsigma = _softplus(muls[:, N_LATENT:])
            latent = mu + eps_ref[...] * jnp.exp(0.5 * logsigma)

            a3 = _leaky_relu(
                jnp.dot(latent.astype(jnp.bfloat16), wd1_ref[...],
                        preferred_element_type=jnp.float32) + bd1)
            a4 = _leaky_relu(
                jnp.dot(a3.astype(jnp.bfloat16), wd2_ref[...],
                        preferred_element_type=jnp.float32) + bd2)

            a4_ref[...] = a4
            # lane-dense packed latent-stat output (split in the wrapper)
            muls_ref[:, :N_LATENT] = mu
            muls_ref[:, N_LATENT:] = logsigma

    # ---------------- pass 1: one lane-dense N tile of the reconstruction -----------
    @pl.when(p == 1)
    def _():
        out_ref[...] = (
            jnp.dot(a4_ref[...].astype(jnp.bfloat16), wout_ref[...],
                    preferred_element_type=jnp.float32)
            + bout_ref[...])


# ------------------------------------ wrapper ---------------------------------------
def _ktile_index(p, j):
    # pass 0: follow the K tiles; pass 1: stay on the last tile (avoids re-DMA)
    return j * (1 - p) + (N_TILES - 1) * p


def vae_forward(x, eps, kp):
    B, F = x.shape
    assert F == N_FEATURES and B % 8 == 0

    # x is consumed in bf16 by the MXU anyway; pass it in bf16 to halve its DMA.
    x = x.astype(jnp.bfloat16)

    grid = (2, N_TILES)

    in_specs = [
        pl.BlockSpec((B, TILE),               lambda p, j: (0, _ktile_index(p, j))),  # x
        pl.BlockSpec((B, N_LATENT),           lambda p, j: (0, 0)),                   # eps
        pl.BlockSpec((TILE, N_HIDDEN),        lambda p, j: (_ktile_index(p, j), 0)),  # we1
        pl.BlockSpec((N_HIDDEN, N_HIDDEN),    lambda p, j: (0, 0)),                   # we2
        pl.BlockSpec((N_HIDDEN, 2 * N_LATENT), lambda p, j: (0, 0)),                  # wmuls
        pl.BlockSpec((N_LATENT, N_HIDDEN),    lambda p, j: (0, 0)),                   # wd1
        pl.BlockSpec((N_HIDDEN, N_HIDDEN),    lambda p, j: (0, 0)),                   # wd2
        pl.BlockSpec((N_HIDDEN, TILE),        lambda p, j: (0, j * p)),               # wout
        pl.BlockSpec((1, _B_TOT),             lambda p, j: (0, 0)),                   # bias
        pl.BlockSpec((1, TILE),               lambda p, j: (0, j * p)),               # bout
    ]
    out_specs = (
        pl.BlockSpec((B, TILE),               lambda p, j: (0, j * p)),               # recon
        pl.BlockSpec((B, 2 * N_LATENT),       lambda p, j: (0, 0)),                   # mu|ls
    )
    out_shape = (
        jax.ShapeDtypeStruct((B, N_FEATURES), jnp.float32),
        jax.ShapeDtypeStruct((B, 2 * N_LATENT), jnp.float32),
    )

    out, muls = pl.pallas_call(
        vae_kernel,
        out_shape=out_shape,
        grid_spec=pltpu.PrefetchScalarGridSpec(
            num_scalar_prefetch=0,
            grid=grid,
            in_specs=in_specs,
            out_specs=out_specs,
            scratch_shapes=[
                pltpu.VMEM((B, N_HIDDEN), jnp.float32),   # encoder layer-1 accumulator
                pltpu.VMEM((B, N_HIDDEN), jnp.float32),   # final decoder activation
            ],
        ),
        compiler_params=pltpu.CompilerParams(
            dimension_semantics=("arbitrary", "arbitrary"),
            vmem_limit_bytes=32 * 1024 * 1024,            # footprint ~9 MiB double-buffered
        ),
    )(x, eps, kp["we1"], kp["we2"], kp["wmuls"], kp["wd1"], kp["wd2"],
      kp["wout"], kp["bias"], kp["bout"])

    mu = muls[:, :N_LATENT]
    logsigma = muls[:, N_LATENT:]
    return out, mu, logsigma


# ---------------------- deterministic PyTorch-style parameters ----------------------
def init_linear(key, nin, nout):
    # PyTorch nn.Linear default init: U(-1/sqrt(nin), 1/sqrt(nin)) for W and b.
    # W is stored as (nin, nout) so the kernel computes x @ W, identical to
    # PyTorch's x @ W_pt.T with W_pt of shape (nout, nin).
    kw, kb = jax.random.split(key)
    bound = 1.0 / math.sqrt(nin)
    w = jax.random.uniform(kw, (nin, nout), jnp.float32, -bound, bound)
    b = jax.random.uniform(kb, (1, nout), jnp.float32, -bound, bound)
    return w, b


def init_bn(key, n):
    # PyTorch BatchNorm1d defaults are gamma=1, beta=0, running_mean=0, running_var=1;
    # mildly perturb them so the eval-mode BN folding is actually exercised.
    k0, k1, k2, k3 = jax.random.split(key, 4)
    gamma = 1.0 + 0.1 * jax.random.uniform(k0, (1, n), jnp.float32, -1.0, 1.0)
    beta = 0.1 * jax.random.uniform(k1, (1, n), jnp.float32, -1.0, 1.0)
    rmean = 0.1 * jax.random.uniform(k2, (1, n), jnp.float32, -1.0, 1.0)
    rvar = 1.0 + 0.1 * jax.random.uniform(k3, (1, n), jnp.float32, -1.0, 1.0)
    return gamma, beta, rmean, rvar


def build_raw_params(key):
    ks = jax.random.split(key, 11)
    p = {}
    p["we1"], p["be1"] = init_linear(ks[0], N_FEATURES, N_HIDDEN)
    p["bn_e1"] = init_bn(ks[1], N_HIDDEN)
    p["we2"], p["be2"] = init_linear(ks[2], N_HIDDEN, N_HIDDEN)
    p["bn_e2"] = init_bn(ks[3], N_HIDDEN)
    p["wmu"], p["bmu"] = init_linear(ks[4], N_HIDDEN, N_LATENT)
    p["wls"], p["bls"] = init_linear(ks[5], N_HIDDEN, N_LATENT)
    p["wd1"], p["bd1"] = init_linear(ks[6], N_LATENT, N_HIDDEN)
    p["bn_d1"] = init_bn(ks[7], N_HIDDEN)
    p["wd2"], p["bd2"] = init_linear(ks[8], N_HIDDEN, N_HIDDEN)
    p["bn_d2"] = init_bn(ks[9], N_HIDDEN)
    p["wout"], p["bout"] = init_linear(ks[10], N_HIDDEN, N_FEATURES)
    return p


def _fold_bn_into_next(w_next, b_next, bn):
    # eval-mode BN is affine: BN(v) = v*scale + shift.  Folding it into the next
    # Linear:  BN(v) @ W + b = v @ (scale[:,None]*W) + (shift @ W + b)
    gamma, beta, rmean, rvar = bn
    scale = gamma * jax.lax.rsqrt(rvar + BN_EPS)          # (1, n)
    shift = beta - rmean * scale                          # (1, n)
    return scale.reshape(-1, 1) * w_next, shift @ w_next + b_next


def prepare_kernel_params(raw):
    we2f, be2f = _fold_bn_into_next(raw["we2"], raw["be2"], raw["bn_e1"])
    wmuf, bmuf = _fold_bn_into_next(raw["wmu"], raw["bmu"], raw["bn_e2"])
    wlsf, blsf = _fold_bn_into_next(raw["wls"], raw["bls"], raw["bn_e2"])
    wd2f, bd2f = _fold_bn_into_next(raw["wd2"], raw["bd2"], raw["bn_d1"])
    woutf, boutf = _fold_bn_into_next(raw["wout"], raw["bout"], raw["bn_d2"])

    wmuls = jnp.concatenate([wmuf, wlsf], axis=1)                          # (256, 128)
    bmuls = jnp.concatenate([bmuf, blsf], axis=1)                          # (1, 128)
    bias = jnp.concatenate([raw["be1"], be2f, bmuls, raw["bd1"], bd2f], axis=1)  # (1,1152)

    # All weights stored in bf16 (f32 MXU accumulation in the kernel); biases stay f32
    # and are added after accumulation.
    return dict(
        we1=raw["we1"].astype(jnp.bfloat16),     # 4096x256
        we2=we2f.astype(jnp.bfloat16),
        wmuls=wmuls.astype(jnp.bfloat16),
        wd1=raw["wd1"].astype(jnp.bfloat16),
        wd2=wd2f.astype(jnp.bfloat16),
        wout=woutf.astype(jnp.bfloat16),         # 256x4096
        bias=bias, bout=boutf)


# --------------------------------- references ---------------------------------------
def vae_reference_f32(x, eps, raw):
    """Exact eval-mode forward of the PyTorch module, in float32 (unfolded BN)."""
    hi = jax.lax.Precision.HIGHEST

    def lrelu(v):
        return jnp.where(v >= 0, v, LEAKY_SLOPE * v)

    def bn(v, p):
        g, b, rm, rv = p
        return (v - rm) / jnp.sqrt(rv + BN_EPS) * g + b

    h = bn(lrelu(jnp.dot(x, raw["we1"], precision=hi) + raw["be1"]), raw["bn_e1"])
    h = bn(lrelu(jnp.dot(h, raw["we2"], precision=hi) + raw["be2"]), raw["bn_e2"])
    mu = jnp.dot(h, raw["wmu"], precision=hi) + raw["bmu"]
    logsigma = jax.nn.softplus(jnp.dot(h, raw["wls"], precision=hi) + raw["bls"])
    latent = mu + eps * jnp.exp(logsigma / 2)
    d = bn(lrelu(jnp.dot(latent, raw["wd1"], precision=hi) + raw["bd1"]), raw["bn_d1"])
    d = bn(lrelu(jnp.dot(d, raw["wd2"], precision=hi) + raw["bd2"]), raw["bn_d2"])
    out = jnp.dot(d, raw["wout"], precision=hi) + raw["bout"]
    return out, mu, logsigma


def vae_reference_folded(x, eps, kp):
    """Mirror of the kernel math (folded BN, bf16 weights/activations) in plain JAX."""
    def lrelu(v):
        return jnp.where(v >= 0, v, LEAKY_SLOPE * v)

    b = kp["bias"]
    be1, be2, bmuls = b[:, _B_E1:_B_E2], b[:, _B_E2:_B_ML], b[:, _B_ML:_B_D1]
    bd1, bd2 = b[:, _B_D1:_B_D2], b[:, _B_D2:_B_TOT]

    a1 = lrelu(jnp.dot(x.astype(jnp.bfloat16), kp["we1"],
                       preferred_element_type=jnp.float32) + be1)
    a2 = lrelu(jnp.dot(a1.astype(jnp.bfloat16), kp["we2"],
                       preferred_element_type=jnp.float32) + be2)
    muls = jnp.dot(a2.astype(jnp.bfloat16), kp["wmuls"],
                   preferred_element_type=jnp.float32) + bmuls
    mu = muls[:, :N_LATENT]
    logsigma = jax.nn.softplus(muls[:, N_LATENT:])
    latent = mu + eps * jnp.exp(0.5 * logsigma)
    a3 = lrelu(jnp.dot(latent.astype(jnp.bfloat16), kp["wd1"],
                       preferred_element_type=jnp.float32) + bd1)
    a4 = lrelu(jnp.dot(a3.astype(jnp.bfloat16), kp["wd2"],
                       preferred_element_type=jnp.float32) + bd2)
    out = jnp.dot(a4.astype(jnp.bfloat16), kp["wout"],
                  preferred_element_type=jnp.float32) + kp["bout"]
    return out, mu, logsigma


# ------------------------------------- main ------------------------------------------
if __name__ == "__main__":
    root = jax.random.PRNGKey(0)
    k_x, k_eps, k_params = jax.random.split(root, 3)

    B = 8  # small, sublane-aligned batch
    x = jax.random.normal(k_x, (B, N_FEATURES), jnp.float32)
    eps = jax.random.normal(k_eps, (B, N_LATENT), jnp.float32)   # reparameterize noise

    raw = build_raw_params(k_params)
    kp = prepare_kernel_params(raw)

    out, mu, logsigma = vae_forward(x, eps, kp)
    jax.block_until_ready((out, mu, logsigma))

    # tight check: same folded/bf16 math in plain JAX (validates the kernel itself)
    f_out, f_mu, f_ls = vae_reference_folded(x, eps, kp)
    assert jnp.allclose(out, f_out, rtol=5e-3, atol=5e-3), "folded: recon mismatch"
    assert jnp.allclose(mu, f_mu, rtol=5e-3, atol=5e-3), "folded: mu mismatch"
    assert jnp.allclose(logsigma, f_ls, rtol=5e-3, atol=5e-3), "folded: logsigma mismatch"

    # semantic check: exact f32 eval-mode forward of the PyTorch module
    # (tolerance covers bf16 storage of all weights, bf16 MXU activations and the
    #  bf16 input cast; measured rms error is ~1e-3)
    r_out, r_mu, r_ls = vae_reference_f32(x, eps, raw)
    assert jnp.allclose(out, r_out, rtol=2e-2, atol=1e-2), "f32: recon mismatch"
    assert jnp.allclose(mu, r_mu, rtol=2e-2, atol=1e-2), "f32: mu mismatch"
    assert jnp.allclose(logsigma, r_ls, rtol=2e-2, atol=1e-2), "f32: logsigma mismatch"

    print("KERNEL_OK")
</pallas_src>

<mosaic_0001>
module attributes {stable_mosaic.version = 11 : i64} {
  func.func @vae_kernel(%arg0: i32, %arg1: i32, %arg2: memref<8x4096xbf16, #tpu.memory_space<vmem>>, %arg3: memref<8x64xf32, #tpu.memory_space<vmem>>, %arg4: memref<4096x256xbf16, #tpu.memory_space<vmem>>, %arg5: memref<256x256xbf16, #tpu.memory_space<vmem>>, %arg6: memref<256x128xbf16, #tpu.memory_space<vmem>>, %arg7: memref<64x256xbf16, #tpu.memory_space<vmem>>, %arg8: memref<256x256xbf16, #tpu.memory_space<vmem>>, %arg9: memref<256x4096xbf16, #tpu.memory_space<vmem>>, %arg10: memref<1x1152xf32, #tpu.memory_space<vmem>>, %arg11: memref<1x4096xf32, #tpu.memory_space<vmem>>, %arg12: memref<8x4096xf32, #tpu.memory_space<vmem>>, %arg13: memref<8x128xf32, #tpu.memory_space<vmem>>, %arg14: memref<8x256xf32, #tpu.memory_space<vmem>>, %arg15: memref<8x256xf32, #tpu.memory_space<vmem>>) attributes {dimension_semantics = [#tpu.dimension_semantics<arbitrary>, #tpu.dimension_semantics<arbitrary>], iteration_bounds = array<i64: 2, 1>, scalar_prefetch = 0 : i64, scratch_operands = 2 : i64, tpu.core_type = #tpu.core_type<tc>, window_params = [{transform_indices = @transform_0, window_bounds = array<i64: 8, 4096>}, {pipeline_mode = #tpu.pipeline_mode<synchronous>, transform_indices = @transform_1, window_bounds = array<i64: 8, 64>}, {transform_indices = @transform_2, window_bounds = array<i64: 4096, 256>}, {pipeline_mode = #tpu.pipeline_mode<synchronous>, transform_indices = @transform_3, window_bounds = array<i64: 256, 256>}, {pipeline_mode = #tpu.pipeline_mode<synchronous>, transform_indices = @transform_4, window_bounds = array<i64: 256, 128>}, {pipeline_mode = #tpu.pipeline_mode<synchronous>, transform_indices = @transform_5, window_bounds = array<i64: 64, 256>}, {pipeline_mode = #tpu.pipeline_mode<synchronous>, transform_indices = @transform_6, window_bounds = array<i64: 256, 256>}, {transform_indices = @transform_7, window_bounds = array<i64: 256, 4096>}, {pipeline_mode = #tpu.pipeline_mode<synchronous>, transform_indices = @transform_8, window_bounds = array<i64: 1, 1152>}, {transform_indices = @transform_9, window_bounds = array<i64: 1, 4096>}, {transform_indices = @transform_10, window_bounds = array<i64: 8, 4096>}, {pipeline_mode = #tpu.pipeline_mode<synchronous>, transform_indices = @transform_11, window_bounds = array<i64: 8, 128>}]} {
    %c0_i32 = arith.constant 0 : i32
    %0 = arith.cmpi eq, %arg0, %c0_i32 : i32
    %1 = arith.extui %0 : i1 to i32
    %c0_i32_0 = arith.constant 0 : i32
    %2 = arith.cmpi ne, %1, %c0_i32_0 : i32
    scf.if %2 {
      %c0_i32_2 = arith.constant 0 : i32
      %6 = arith.cmpi eq, %arg1, %c0_i32_2 : i32
      %7 = arith.extui %6 : i1 to i32
      %c0_i32_3 = arith.constant 0 : i32
      %8 = arith.cmpi ne, %7, %c0_i32_3 : i32
      scf.if %8 {
        %cst_13 = arith.constant 0.000000e+00 : f32
        %18 = vector.broadcast %cst_13 : f32 to vector<8x256xf32>
        %c0_14 = arith.constant 0 : index
        %c0_15 = arith.constant 0 : index
        %19 = vector.load %arg14[%c0_14, %c0_15] : memref<8x256xf32, #tpu.memory_space<vmem>>, vector<8x256xf32>
        tpu.vector_store %arg14[%c0_14, %c0_15], %18 {strides = array<i32>} : memref<8x256xf32, #tpu.memory_space<vmem>>, vector<8x256xf32>,
      } else {
      }
      %c0 = arith.constant 0 : index
      %c0_4 = arith.constant 0 : index
      %9 = vector.load %arg14[%c0, %c0_4] : memref<8x256xf32, #tpu.memory_space<vmem>>, vector<8x256xf32>
      %c0_5 = arith.constant 0 : index
      %c0_6 = arith.constant 0 : index
      %10 = vector.load %arg2[%c0_5, %c0_6] : memref<8x4096xbf16, #tpu.memory_space<vmem>>, vector<8x4096xbf16>
      %c0_7 = arith.constant 0 : index
      %c0_8 = arith.constant 0 : index
      %11 = vector.load %arg4[%c0_7, %c0_8] : memref<4096x256xbf16, #tpu.memory_space<vmem>>, vector<4096x256xbf16>
      %cst = arith.constant dense<0.000000e+00> : vector<8x256xf32>
      %12 = tpu.matmul %10, %11, %cst {dimension_numbers = #tpu.dot_dimension_numbers<[1], [0], [0], [1], [0, 0, 1, 1], [], []>} : vector<8x4096xbf16>, vector<4096x256xbf16>, vector<8x256xf32> -> vector<8x256xf32>
      %13 = arith.addf %9, %12 : vector<8x256xf32>
      %c0_9 = arith.constant 0 : index
      %c0_10 = arith.constant 0 : index
      %14 = vector.load %arg14[%c0_9, %c0_10] : memref<8x256xf32, #tpu.memory_space<vmem>>, vector<8x256xf32>
      tpu.vector_store %arg14[%c0_9, %c0_10], %13 {strides = array<i32>} : memref<8x256xf32, #tpu.memory_space<vmem>>, vector<8x256xf32>,
      %c0_i32_11 = arith.constant 0 : i32
      %15 = arith.cmpi eq, %arg1, %c0_i32_11 : i32
      %16 = arith.extui %15 : i1 to i32
      %c0_i32_12 = arith.constant 0 : i32
      %17 = arith.cmpi ne, %16, %c0_i32_12 : i32
      scf.if %17 {
        %c0_13 = arith.constant 0 : index
        %c0_14 = arith.constant 0 : index
        %18 = vector.load %arg10[%c0_13, %c0_14] : memref<1x1152xf32, #tpu.memory_space<vmem>>, vector<1x256xf32>
        %c0_15 = arith.constant 0 : index
        %c256 = arith.constant 256 : index
        %19 = vector.load %arg10[%c0_15, %c256] : memref<1x1152xf32, #tpu.memory_space<vmem>>, vector<1x256xf32>
        %c0_16 = arith.constant 0 : index
        %c512 = arith.constant 512 : index
        %20 = vector.load %arg10[%c0_16, %c512] : memref<1x1152xf32, #tpu.memory_space<vmem>>, vector<1x128xf32>
        %c0_17 = arith.constant 0 : index
        %c640 = arith.constant 640 : index
        %21 = vector.load %arg10[%c0_17, %c640] : memref<1x1152xf32, #tpu.memory_space<vmem>>, vector<1x256xf32>
        %c0_18 = arith.constant 0 : index
        %c896 = arith.constant 896 : index
        %22 = vector.load %arg10[%c0_18, %c896] : memref<1x1152xf32, #tpu.memory_space<vmem>>, vector<1x256xf32>
        %c0_19 = arith.constant 0 : index
        %c0_20 = arith.constant 0 : index
        %23 = vector.load %arg14[%c0_19, %c0_20] : memref<8x256xf32, #tpu.memory_space<vmem>>, vector<8x256xf32>
        %24 = vector.broadcast %18 : vector<1x256xf32> to vector<8x256xf32>
        %25 = arith.addf %23, %24 : vector<8x256xf32>
        %cst_21 = arith.constant 0.000000e+00 : f32
        %26 = vector.broadcast %cst_21 : f32 to vector<8x256xf32>
        %27 = arith.cmpf oge, %25, %26 : vector<8x256xf32>
        %cst_22 = arith.constant 0.00999999977 : f32
        %28 = vector.broadcast %cst_22 : f32 to vector<8x256xf32>
        %29 = arith.mulf %28, %25 : vector<8x256xf32>
        %30 = arith.select %27, %25, %29 : vector<8x256xi1>, vector<8x256xf32>
        %31 = arith.truncf %30 : vector<8x256xf32> to vector<8x256xbf16>
        %c0_23 = arith.constant 0 : index
        %c0_24 = arith.constant 0 : index
        %32 = vector.load %arg5[%c0_23, %c0_24] : memref<256x256xbf16, #tpu.memory_space<vmem>>, vector<256x256xbf16>
        %cst_25 = arith.constant dense<0.000000e+00> : vector<8x256xf32>
        %33 = tpu.matmul %31, %32, %cst_25 {dimension_numbers = #tpu.dot_dimension_numbers<[1], [0], [0], [1], [0, 0, 1, 1], [], []>} : vector<8x256xbf16>, vector<256x256xbf16>, vector<8x256xf32> -> vector<8x256xf32>
        %34 = vector.broadcast %19 : vector<1x256xf32> to vector<8x256xf32>
        %35 = arith.addf %33, %34 : vector<8x256xf32>
        %cst_26 = arith.constant 0.000000e+00 : f32
        %36 = vector.broadcast %cst_26 : f32 to vector<8x256xf32>
        %37 = arith.cmpf oge, %35, %36 : vector<8x256xf32>
        %cst_27 = arith.constant 0.00999999977 : f32
        %38 = vector.broadcast %cst_27 : f32 to vector<8x256xf32>
        %39 = arith.mulf %38, %35 : vector<8x256xf32>
        %40 = arith.select %37, %35, %39 : vector<8x256xi1>, vector<8x256xf32>
        %41 = arith.truncf %40 : vector<8x256xf32> to vector<8x256xbf16>
        %c0_28 = arith.constant 0 : index
        %c0_29 = arith.constant 0 : index
        %42 = vector.load %arg6[%c0_28, %c0_29] : memref<256x128xbf16, #tpu.memory_space<vmem>>, vector<256x128xbf16>
        %cst_30 = arith.constant dense<0.000000e+00> : vector<8x128xf32>
        %43 = tpu.matmul %41, %42, %cst_30 {dimension_numbers = #tpu.dot_dimension_numbers<[1], [0], [0], [1], [0, 0, 1, 1], [], []>} : vector<8x256xbf16>, vector<256x128xbf16>, vector<8x128xf32> -> vector<8x128xf32>
        %44 = vector.broadcast %20 : vector<1x128xf32> to vector<8x128xf32>
        %45 = arith.addf %43, %44 : vector<8x128xf32>
        %46 = vector.extract_strided_slice %45 {offsets = [0, 0], sizes = [8, 64], strides = [1, 1]} : vector<8x128xf32> to vector<8x64xf32>
        %47 = vector.extract_strided_slice %45 {offsets = [0, 64], sizes = [8, 64], strides = [1, 1]} : vector<8x128xf32> to vector<8x64xf32>
        %cst_31 = arith.constant 0.000000e+00 : f32
        %48 = vector.broadcast %cst_31 : f32 to vector<8x64xf32>
        %49 = arith.maximumf %47, %48 : vector<8x64xf32>
        %50 = math.absf %47 : vector<8x64xf32>
        %cst_32 = arith.constant 0.000000e+00 : f32
        %51 = vector.broadcast %cst_32 : f32 to vector<8x64xf32>
        %52 = arith.subf %51, %50 : vector<8x64xf32>
        %53 = math.exp %52 : vector<8x64xf32>
        %54 = math.log1p %53 : vector<8x64xf32>
        %55 = arith.addf %49, %54 : vector<8x64xf32>
        %c0_33 = arith.constant 0 : index
        %c0_34 = arith.constant 0 : index
        %56 = vector.load %arg3[%c0_33, %c0_34] : memref<8x64xf32, #tpu.memory_space<vmem>>, vector<8x64xf32>
        %cst_35 = arith.constant 5.000000e-01 : f32
        %57 = vector.broadcast %cst_35 : f32 to vector<8x64xf32>
        %58 = arith.mulf %57, %55 : vector<8x64xf32>
        %59 = math.exp %58 : vector<8x64xf32>
        %60 = arith.mulf %56, %59 : vector<8x64xf32>
        %61 = arith.addf %46, %60 : vector<8x64xf32>
        %62 = arith.truncf %61 : vector<8x64xf32> to vector<8x64xbf16>
        %c0_36 = arith.constant 0 : index
        %c0_37 = arith.constant 0 : index
        %63 = vector.load %arg7[%c0_36, %c0_37] : memref<64x256xbf16, #tpu.memory_space<vmem>>, vector<64x256xbf16>
        %cst_38 = arith.constant dense<0.000000e+00> : vector<8x256xf32>
        %64 = tpu.matmul %62, %63, %cst_38 {dimension_numbers = #tpu.dot_dimension_numbers<[1], [0], [0], [1], [0, 0, 1, 1], [], []>} : vector<8x64xbf16>, vector<64x256xbf16>, vector<8x256xf32> -> vector<8x256xf32>
        %65 = vector.broadcast %21 : vector<1x256xf32> to vector<8x256xf32>
        %66 = arith.addf %64, %65 : vector<8x256xf32>
        %cst_39 = arith.constant 0.000000e+00 : f32
        %67 = vector.broadcast %cst_39 : f32 to vector<8x256xf32>
        %68 = arith.cmpf oge, %66, %67 : vector<8x256xf32>
        %cst_40 = arith.constant 0.00999999977 : f32
        %69 = vector.broadcast %cst_40 : f32 to vector<8x256xf32>
        %70 = arith.mulf %69, %66 : vector<8x256xf32>
        %71 = arith.select %68, %66, %70 : vector<8x256xi1>, vector<8x256xf32>
        %72 = arith.truncf %71 : vector<8x256xf32> to vector<8x256xbf16>
        %c0_41 = arith.constant 0 : index
        %c0_42 = arith.constant 0 : index
        %73 = vector.load %arg8[%c0_41, %c0_42] : memref<256x256xbf16, #tpu.memory_space<vmem>>, vector<256x256xbf16>
        %cst_43 = arith.constant dense<0.000000e+00> : vector<8x256xf32>
        %74 = tpu.matmul %72, %73, %cst_43 {dimension_numbers = #tpu.dot_dimension_numbers<[1], [0], [0], [1], [0, 0, 1, 1], [], []>} : vector<8x256xbf16>, vector<256x256xbf16>, vector<8x256xf32> -> vector<8x256xf32>
        %75 = vector.broadcast %22 : vector<1x256xf32> to vector<8x256xf32>
        %76 = arith.addf %74, %75 : vector<8x256xf32>
        %cst_44 = arith.constant 0.000000e+00 : f32
        %77 = vector.broadcast %cst_44 : f32 to vector<8x256xf32>
        %78 = arith.cmpf oge, %76, %77 : vector<8x256xf32>
        %cst_45 = arith.constant 0.00999999977 : f32
        %79 = vector.broadcast %cst_45 : f32 to vector<8x256xf32>
        %80 = arith.mulf %79, %76 : vector<8x256xf32>
        %81 = arith.select %78, %76, %80 : vector<8x256xi1>, vector<8x256xf32>
        %c0_46 = arith.constant 0 : index
        %c0_47 = arith.constant 0 : index
        %82 = vector.load %arg15[%c0_46, %c0_47] : memref<8x256xf32, #tpu.memory_space<vmem>>, vector<8x256xf32>
        tpu.vector_store %arg15[%c0_46, %c0_47], %81 {strides = array<i32>} : memref<8x256xf32, #tpu.memory_space<vmem>>, vector<8x256xf32>,
        %c0_48 = arith.constant 0 : index
        %c0_49 = arith.constant 0 : index
        %83 = vector.load %arg13[%c0_48, %c0_49] : memref<8x128xf32, #tpu.memory_space<vmem>>, vector<8x64xf32>
        tpu.vector_store %arg13[%c0_48, %c0_49], %46 {strides = array<i32>} : memref<8x128xf32, #tpu.memory_space<vmem>>, vector<8x64xf32>,
        %c0_50 = arith.constant 0 : index
        %c64 = arith.constant 64 : index
        %84 = vector.load %arg13[%c0_50, %c64] : memref<8x128xf32, #tpu.memory_space<vmem>>, vector<8x64xf32>
        tpu.vector_store %arg13[%c0_50, %c64], %55 {strides = array<i32>} : memref<8x128xf32, #tpu.memory_space<vmem>>, vector<8x64xf32>,
      } else {
      }
    } else {
    }
    %c1_i32 = arith.constant 1 : i32
    %3 = arith.cmpi eq, %arg0, %c1_i32 : i32
    %4 = arith.extui %3 : i1 to i32
    %c0_i32_1 = arith.constant 0 : i32
    %5 = arith.cmpi ne, %4, %c0_i32_1 : i32
    scf.if %5 {
      %c0 = arith.constant 0 : index
      %c0_2 = arith.constant 0 : index
      %6 = vector.load %arg15[%c0, %c0_2] : memref<8x256xf32, #tpu.memory_space<vmem>>, vector<8x256xf32>
      %7 = arith.truncf %6 : vector<8x256xf32> to vector<8x256xbf16>
      %c0_3 = arith.constant 0 : index
      %c0_4 = arith.constant 0 : index
      %8 = vector.load %arg9[%c0_3, %c0_4] : memref<256x4096xbf16, #tpu.memory_space<vmem>>, vector<256x4096xbf16>
      %cst = arith.constant dense<0.000000e+00> : vector<8x4096xf32>
      %9 = tpu.matmul %7, %8, %cst {dimension_numbers = #tpu.dot_dimension_numbers<[1], [0], [0], [1], [0, 0, 1, 1], [], []>} : vector<8x256xbf16>, vector<256x4096xbf16>, vector<8x4096xf32> -> vector<8x4096xf32>
      %c0_5 = arith.constant 0 : index
      %c0_6 = arith.constant 0 : index
      %10 = vector.load %arg11[%c0_5, %c0_6] : memref<1x4096xf32, #tpu.memory_space<vmem>>, vector<1x4096xf32>
      %11 = vector.broadcast %10 : vector<1x4096xf32> to vector<8x4096xf32>
      %12 = arith.addf %9, %11 : vector<8x4096xf32>
      %c0_7 = arith.constant 0 : index
      %c0_8 = arith.constant 0 : index
      %13 = vector.load %arg12[%c0_7, %c0_8] : memref<8x4096xf32, #tpu.memory_space<vmem>>, vector<8x4096xf32>
      tpu.vector_store %arg12[%c0_7, %c0_8], %12 {strides = array<i32>} : memref<8x4096xf32, #tpu.memory_space<vmem>>, vector<8x4096xf32>,
    } else {
    }
    return
  }
  func.func @transform_0(%arg0: i32, %arg1: i32) -> (i32, i32) {
    %c1_i32 = arith.constant 1 : i32
    %0 = arith.subi %c1_i32, %arg0 : i32
    %1 = arith.muli %arg1, %0 : i32
    %c0_i32 = arith.constant 0 : i32
    %2 = arith.muli %c0_i32, %arg0 : i32
    %3 = arith.addi %1, %2 : i32
    %c0_i32_0 = arith.constant 0 : i32
    %c0_i32_1 = arith.constant 0 : i32
    return %c0_i32_0, %3 : i32, i32
  }
  func.func @transform_1(%arg0: i32, %arg1: i32) -> (i32, i32) {
    %c0_i32 = arith.constant 0 : i32
    %c0_i32_0 = arith.constant 0 : i32
    %c0_i32_1 = arith.constant 0 : i32
    return %c0_i32, %c0_i32_0 : i32, i32
  }
  func.func @transform_2(%arg0: i32, %arg1: i32) -> (i32, i32) {
    %c1_i32 = arith.constant 1 : i32
    %0 = arith.subi %c1_i32, %arg0 : i32
    %1 = arith.muli %arg1, %0 : i32
    %c0_i32 = arith.constant 0 : i32
    %2 = arith.muli %c0_i32, %arg0 : i32
    %3 = arith.addi %1, %2 : i32
    %c0_i32_0 = arith.constant 0 : i32
    %c0_i32_1 = arith.constant 0 : i32
    return %3, %c0_i32_0 : i32, i32
  }
  func.func @transform_3(%arg0: i32, %arg1: i32) -> (i32, i32) {
    %c0_i32 = arith.constant 0 : i32
    %c0_i32_0 = arith.constant 0 : i32
    %c0_i32_1 = arith.constant 0 : i32
    return %c0_i32, %c0_i32_0 : i32, i32
  }
  func.func @transform_4(%arg0: i32, %arg1: i32) -> (i32, i32) {
    %c0_i32 = arith.constant 0 : i32
    %c0_i32_0 = arith.constant 0 : i32
    %c0_i32_1 = arith.constant 0 : i32
    return %c0_i32, %c0_i32_0 : i32, i32
  }
  func.func @transform_5(%arg0: i32, %arg1: i32) -> (i32, i32) {
    %c0_i32 = arith.constant 0 : i32
    %c0_i32_0 = arith.constant 0 : i32
    %c0_i32_1 = arith.constant 0 : i32
    return %c0_i32, %c0_i32_0 : i32, i32
  }
  func.func @transform_6(%arg0: i32, %arg1: i32) -> (i32, i32) {
    %c0_i32 = arith.constant 0 : i32
    %c0_i32_0 = arith.constant 0 : i32
    %c0_i32_1 = arith.constant 0 : i32
    return %c0_i32, %c0_i32_0 : i32, i32
  }
  func.func @transform_7(%arg0: i32, %arg1: i32) -> (i32, i32) {
    %0 = arith.muli %arg1, %arg0 : i32
    %c0_i32 = arith.constant 0 : i32
    %c0_i32_0 = arith.constant 0 : i32
    return %c0_i32, %0 : i32, i32
  }
  func.func @transform_8(%arg0: i32, %arg1: i32) -> (i32, i32) {
    %c0_i32 = arith.constant 0 : i32
    %c0_i32_0 = arith.constant 0 : i32
    %c0_i32_1 = arith.constant 0 : i32
    return %c0_i32, %c0_i32_0 : i32, i32
  }
  func.func @transform_9(%arg0: i32, %arg1: i32) -> (i32, i32) {
    %0 = arith.muli %arg1, %arg0 : i32
    %c0_i32 = arith.constant 0 : i32
    %c0_i32_0 = arith.constant 0 : i32
    return %c0_i32, %0 : i32, i32
  }
  func.func @transform_10(%arg0: i32, %arg1: i32) -> (i32, i32) {
    %0 = arith.muli %arg1, %arg0 : i32
    %c0_i32 = arith.constant 0 : i32
    %c0_i32_0 = arith.constant 0 : i32
    return %c0_i32, %0 : i32, i32
  }
  func.func @transform_11(%arg0: i32, %arg1: i32) -> (i32, i32) {
    %c0_i32 = arith.constant 0 : i32
    %c0_i32_0 = arith.constant 0 : i32
    %c0_i32_1 = arith.constant 0 : i32
    return %c0_i32, %c0_i32_0 : i32, i32
  }
}

</mosaic_0001>

<llo_original>
// kernel: tpu_custom_call.1
$region0: #{tpu_custom_call.1}
  #allocation0 [shape = 'u32[]', space=smem, size = 0x4, offset = 0x4, fixed_abs, tag = 'smem constant byte address 0x4 - core index']
  #allocation1 [shape = 'u32[72,128]{1,0:T(1,128)}', space=vmem, size = 0x9000, scoped, tag = 'internal scratch']
  #allocation2 [shape = 'f32[8,256]{1,0:T(8,128)}', space=vmem, size = 0x2000, scoped, tag = 'scratch operand']
  #allocation3 [shape = 'f32[8,256]{1,0:T(8,128)}', space=vmem, size = 0x2000, scoped, tag = 'scratch operand']
  %s0 = inlined_call_operand.hbm [shape: bf16[8,4096], index: 0, kind: input, shape index: {}]
  %s1 = inlined_call_operand.hbm [shape: f32[8,64], index: 1, kind: input, shape index: {}]
  %s2 = inlined_call_operand.hbm [shape: bf16[4096,256], index: 2, kind: input, shape index: {}]
  %s3 = inlined_call_operand.hbm [shape: bf16[256,256], index: 3, kind: input, shape index: {}]
  %s4 = inlined_call_operand.hbm [shape: bf16[256,128], index: 4, kind: input, shape index: {}]
  %s5 = inlined_call_operand.hbm [shape: bf16[64,256], index: 5, kind: input, shape index: {}]
  %s6 = inlined_call_operand.hbm [shape: bf16[256,256], index: 6, kind: input, shape index: {}]
  %s7 = inlined_call_operand.hbm [shape: bf16[256,4096], index: 7, kind: input, shape index: {}]
  %s8 = inlined_call_operand.hbm [shape: f32[1,1152], index: 8, kind: input, shape index: {}]
  %s9 = inlined_call_operand.hbm [shape: f32[1,4096], index: 9, kind: input, shape index: {}]
  %s10 = inlined_call_operand.hbm [shape: f32[8,4096], index: 10, kind: output, shape index: {0}]
  %s11 = inlined_call_operand.hbm [shape: f32[8,128], index: 11, kind: output, shape index: {1}]
  %12 = xla_tuple %s10, %s11
  %s13 = sld [smem:[#allocation0]]
  $region137: #{tpu_custom_call.1} parent=0
    _
  %s15 = ssub.s32 1, %s13
  %s16 = scalar_select 0, %s15, %s13
  $region1: #{tpu_custom_call.1} parent=0
    #allocation4 [shape = 'u8[131072]{0}', space=vmem, size = 0x20000, scoped, tag = 'input window, operand 0']
    #allocation5 [shape = 's32[2]{0}', space=sflag, size = 0x8, scoped, tag = 'scoped memory for tpu_custom_call.1']
    #allocation6 [shape = 's32[2]{0}', space=sflag, size = 0x8, scoped, tag = 'scoped memory for tpu_custom_call.1']
    #allocation7 [shape = 'u8[4096]{0}', space=vmem, size = 0x1000, scoped, tag = 'input window, operand 1, single buffered']
    #allocation8 [shape = 's32[1]{0}', space=sflag, size = 0x4, scoped, tag = 'scoped memory for tpu_custom_call.1']
    #allocation9 [shape = 'u8[4194304]{0}', space=vmem, size = 0x400000, scoped, tag = 'input window, operand 2']
    #allocation10 [shape = 'u8[131072]{0}', space=vmem, size = 0x20000, scoped, tag = 'input window, operand 3, single buffered']
    #allocation11 [shape = 'u8[65536]{0}', space=vmem, size = 0x10000, scoped, tag = 'input window, operand 4, single buffered']
    #allocation12 [shape = 's32[1]{0}', space=sflag, size = 0x4, scoped, tag = 'scoped memory for tpu_custom_call.1']
    #allocation13 [shape = 'u8[32768]{0}', space=vmem, size = 0x8000, scoped, tag = 'input window, operand 5, single buffered']
    #allocation14 [shape = 'u8[131072]{0}', space=vmem, size = 0x20000, scoped, tag = 'input window, operand 6, single buffered']
    #allocation15 [shape = 's32[1]{0}', space=sflag, size = 0x4, scoped, tag = 'scoped memory for tpu_custom_call.1']
    #allocation16 [shape = 'u8[4194304]{0}', space=vmem, size = 0x400000, scoped, tag = 'input window, operand 7']
    #allocation17 [shape = 'u8[4608]{0}', space=vmem, size = 0x1400, scoped, tag = 'input window, operand 8, single buffered']
    #allocation18 [shape = 'u8[32768]{0}', space=vmem, size = 0x8000, scoped, tag = 'input window, operand 9']
    #allocation19 [shape = 'u8[262144]{0}', space=vmem, size = 0x40000, scoped, tag = 'output window, operand 0']
    #allocation20 [shape = 'u8[4096]{0}', space=vmem, size = 0x1000, scoped, tag = 'output window, operand 1, single buffered']
    #allocation21 [shape = 's32[1]{0}', space=sflag, size = 0x4, scoped, tag = 'scoped memory for tpu_custom_call.1']
    %17 = vsyncpa [#allocation5], 0
    %s18 = scalar_lea.sflag [#allocation5], 1
    %19 = vsyncpa %s18, 0
    %20 = vsyncpa [#allocation8], 0
    %21 = vsyncpa [#allocation12], 0
    %22 = vsyncpa [#allocation15], 0
    %23 = vsyncpa [#allocation6], 0
    %s24 = scalar_lea.sflag [#allocation6], 1
    %25 = vsyncpa %s24, 0
    %26 = vsyncpa [#allocation21], 0
    loop: start=0, step=1, limit=4
    $region2: #{tpu_custom_call.1} parent=1 // loop_pre_header
      _
    $region3: #{tpu_custom_call.1} parent=1 // loop_header
      %s28 = sphi 0, %s32
      %p29 = scmp.ge.s32.totalorder %s28, 4
      %s35 = sphi 0, %s47
      %s36 = sphi 0, %s43
      %s37 = sphi 0, %s35
      %s38 = sphi 0, %s36
      %s39 = sphi 0, %s37
      %s40 = sphi 0, %s38
      %s54 = sphi 0, %s56
      %s57 = sphi 0, %s54
      %s58 = sphi 0, %s57
      %s74 = sphi 0, %s58
      %s78 = sphi 0, %s78
      %s80 = sphi 0, %s78
      %s81 = sphi 0, %s80
      %s95 = sphi 0, %s81
      %s105 = sphi 0, %s107
      %s108 = sphi 0, %s105
      %s109 = sphi 0, %s108
      %s125 = sphi 0, %s109
      %s129 = sphi 0, %s129
      %s131 = sphi 0, %s129
      %s132 = sphi 0, %s131
      %s146 = sphi 0, %s132
      %s150 = sphi 0, %s150
      %s152 = sphi 0, %s150
      %s153 = sphi 0, %s152
      %s167 = sphi 0, %s153
      %s171 = sphi 0, %s171
      %s173 = sphi 0, %s171
      %s174 = sphi 0, %s173
      %s188 = sphi 0, %s174
      %s192 = sphi 0, %s192
      %s194 = sphi 0, %s192
      %s195 = sphi 0, %s194
      %s209 = sphi 0, %s195
      %s217 = sphi 0, %s219
      %s220 = sphi 0, %s217
      %s221 = sphi 0, %s220
      %s237 = sphi 0, %s221
      %s241 = sphi 0, %s241
      %s243 = sphi 0, %s241
      %s244 = sphi 0, %s243
      %s258 = sphi 0, %s244
      %s266 = sphi 0, %s268
      %s269 = sphi 0, %s266
      %s270 = sphi 0, %s269
      %s286 = sphi 0, %s270
      %s294 = sphi 0, %s296
      %s297 = sphi 0, %s294
      %s298 = sphi 0, %s297
      %s314 = sphi 0, %s298
      %s318 = sphi 0, %s318
      %s320 = sphi 0, %s318
      %s321 = sphi 0, %s320
      %s335 = sphi 0, %s321
    $region4: #{tpu_custom_call.1} parent=1 // loop_header_branch
      %31 = sbr.rel (%p29) target = $region8
    $region5: #{tpu_custom_call.1} parent=1 // loop_body
      %s33 = ssub.s32 %s28, 1
      %s34 = ssub.s32 %s28, 2
      %s41 = sadd.s32 1, %s36
      %p42 = scmp.ge.s32.totalorder %s41, 1
      %s43 = scalar_select %p42, 0, %s41
      %s44 = sadd.s32 1, %s35
      %s45 = scalar_select %p42, %s44, %s35
      %p46 = scmp.ge.s32.totalorder %s45, 2
      %s47 = scalar_select %p46, 0, %s45
      %s48 = ssub.s32 1, %s35
      %s49 = smul.u32 %s36, %s48
      %s50 = ssub.s32 1, %s47
      %s51 = smul.u32 %s43, %s50
      %s52 = ssub.s32 %s49, %s51
      %p53 = scmp.eq.s32.totalorder %s52, 0
      %s55 = sadd.s32 %s54, 1
      %s56 = scalar_select %p53, %s54, %s55
      %p59 = pneg %p53
      %p60 = scmp.eq.s32.totalorder %s28, 1
      %p61 = por %p59, %p60
      %p62 = scmp.ne.s32.totalorder %s54, %s57
      %p63 = scmp.eq.s32.totalorder %s28, 0
      %p64 = por %p62, %p63
      %p65 = scmp.ne.s32.totalorder %s54, %s57
      %p66 = scmp.eq.s32.totalorder %s33, 1
      %p67 = por %p65, %p66
      %p68 = scmp.ne.s32.totalorder %s57, %s58
      %p69 = scmp.eq.s32.totalorder %s33, 0
      %p70 = por %p68, %p69
      %p71 = scmp.ne.s32.totalorder %s57, %s58
      %p72 = scmp.eq.s32.totalorder %s34, 1
      %p73 = por %p71, %p72
      %p75 = scmp.ne.s32.totalorder %s58, %s74
      %p76 = scmp.eq.s32.totalorder %s34, 0
      %p77 = por %p75, %p76
      %s79 = sadd.s32 %s78, 1
      %p82 = scmp.eq.s32.totalorder %s28, 1
      %p83 = scmp.ne.s32.totalorder %s78, %s80
      %p84 = scmp.eq.s32.totalorder %s28, 0
      %p85 = por %p83, %p84
      %p86 = scmp.ne.s32.totalorder %s78, %s80
      %p87 = scmp.eq.s32.totalorder %s33, 1
      %p88 = por %p86, %p87
      %p89 = scmp.ne.s32.totalorder %s80, %s81
      %p90 = scmp.eq.s32.totalorder %s33, 0
      %p91 = por %p89, %p90
      %p92 = scmp.ne.s32.totalorder %s80, %s81
      %p93 = scmp.eq.s32.totalorder %s34, 1
      %p94 = por %p92, %p93
      %p96 = scmp.ne.s32.totalorder %s81, %s95
      %p97 = scmp.eq.s32.totalorder %s34, 0
      %p98 = por %p96, %p97
      %s99 = ssub.s32 1, %s35
      %s100 = smul.u32 %s36, %s99
      %s101 = ssub.s32 1, %s47
      %s102 = smul.u32 %s43, %s101
      %s103 = ssub.s32 %s100, %s102
      %p104 = scmp.eq.s32.totalorder %s103, 0
      %s106 = sadd.s32 %s105, 1
      %s107 = scalar_select %p104, %s105, %s106
      %p110 = pneg %p104
      %p111 = scmp.eq.s32.totalorder %s28, 1
      %p112 = por %p110, %p111
      %p113 = scmp.ne.s32.totalorder %s105, %s108
      %p114 = scmp.eq.s32.totalorder %s28, 0
      %p115 = por %p113, %p114
      %p116 = scmp.ne.s32.totalorder %s105, %s108
      %p117 = scmp.eq.s32.totalorder %s33, 1
      %p118 = por %p116, %p117
      %p119 = scmp.ne.s32.totalorder %s108, %s109
      %p120 = scmp.eq.s32.totalorder %s33, 0
      %p121 = por %p119, %p120
      %p122 = scmp.ne.s32.totalorder %s108, %s109
      %p123 = scmp.eq.s32.totalorder %s34, 1
      %p124 = por %p122, %p123
      %p126 = scmp.ne.s32.totalorder %s109, %s125
      %p127 = scmp.eq.s32.totalorder %s34, 0
      %p128 = por %p126, %p127
      %s130 = sadd.s32 %s129, 1
      %p133 = scmp.eq.s32.totalorder %s28, 1
      %p134 = scmp.ne.s32.totalorder %s129, %s131
      %p135 = scmp.eq.s32.totalorder %s28, 0
      %p136 = por %p134, %p135
      %p137 = scmp.ne.s32.totalorder %s129, %s131
      %p138 = scmp.eq.s32.totalorder %s33, 1
      %p139 = por %p137, %p138
      %p140 = scmp.ne.s32.totalorder %s131, %s132
      %p141 = scmp.eq.s32.totalorder %s33, 0
      %p142 = por %p140, %p141
      %p143 = scmp.ne.s32.totalorder %s131, %s132
      %p144 = scmp.eq.s32.totalorder %s34, 1
      %p145 = por %p143, %p144
      %p147 = scmp.ne.s32.totalorder %s132, %s146
      %p148 = scmp.eq.s32.totalorder %s34, 0
      %p149 = por %p147, %p148
      %s151 = sadd.s32 %s150, 1
      %p154 = scmp.eq.s32.totalorder %s28, 1
      %p155 = scmp.ne.s32.totalorder %s150, %s152
      %p156 = scmp.eq.s32.totalorder %s28, 0
      %p157 = por %p155, %p156
      %p158 = scmp.ne.s32.totalorder %s150, %s152
      %p159 = scmp.eq.s32.totalorder %s33, 1
      %p160 = por %p158, %p159
      %p161 = scmp.ne.s32.totalorder %s152, %s153
      %p162 = scmp.eq.s32.totalorder %s33, 0
      %p163 = por %p161, %p162
      %p164 = scmp.ne.s32.totalorder %s152, %s153
      %p165 = scmp.eq.s32.totalorder %s34, 1
      %p166 = por %p164, %p165
      %p168 = scmp.ne.s32.totalorder %s153, %s167
      %p169 = scmp.eq.s32.totalorder %s34, 0
      %p170 = por %p168, %p169
      %s172 = sadd.s32 %s171, 1
      %p175 = scmp.eq.s32.totalorder %s28, 1
      %p176 = scmp.ne.s32.totalorder %s171, %s173
      %p177 = scmp.eq.s32.totalorder %s28, 0
      %p178 = por %p176, %p177
      %p179 = scmp.ne.s32.totalorder %s171, %s173
      %p180 = scmp.eq.s32.totalorder %s33, 1
      %p181 = por %p179, %p180
      %p182 = scmp.ne.s32.totalorder %s173, %s174
      %p183 = scmp.eq.s32.totalorder %s33, 0
      %p184 = por %p182, %p183
      %p185 = scmp.ne.s32.totalorder %s173, %s174
      %p186 = scmp.eq.s32.totalorder %s34, 1
      %p187 = por %p185, %p186
      %p189 = scmp.ne.s32.totalorder %s174, %s188
      %p190 = scmp.eq.s32.totalorder %s34, 0
      %p191 = por %p189, %p190
      %s193 = sadd.s32 %s192, 1
      %p196 = scmp.eq.s32.totalorder %s28, 1
      %p197 = scmp.ne.s32.totalorder %s192, %s194
      %p198 = scmp.eq.s32.totalorder %s28, 0
      %p199 = por %p197, %p198
      %p200 = scmp.ne.s32.totalorder %s192, %s194
      %p201 = scmp.eq.s32.totalorder %s33, 1
      %p202 = por %p200, %p201
      %p203 = scmp.ne.s32.totalorder %s194, %s195
      %p204 = scmp.eq.s32.totalorder %s33, 0
      %p205 = por %p203, %p204
      %p206 = scmp.ne.s32.totalorder %s194, %s195
      %p207 = scmp.eq.s32.totalorder %s34, 1
      %p208 = por %p206, %p207
      %p210 = scmp.ne.s32.totalorder %s195, %s209
      %p211 = scmp.eq.s32.totalorder %s34, 0
      %p212 = por %p210, %p211
      %s213 = smul.u32 %s36, %s35
      %s214 = smul.u32 %s43, %s47
      %s215 = ssub.s32 %s213, %s214
      %p216 = scmp.eq.s32.totalorder %s215, 0
      %s218 = sadd.s32 %s217, 1
      %s219 = scalar_select %p216, %s217, %s218
      %p222 = pneg %p216
      %p223 = scmp.eq.s32.totalorder %s28, 1
      %p224 = por %p222, %p223
      %p225 = scmp.ne.s32.totalorder %s217, %s220
      %p226 = scmp.eq.s32.totalorder %s28, 0
      %p227 = por %p225, %p226
      %p228 = scmp.ne.s32.totalorder %s217, %s220
      %p229 = scmp.eq.s32.totalorder %s33, 1
      %p230 = por %p228, %p229
      %p231 = scmp.ne.s32.totalorder %s220, %s221
      %p232 = scmp.eq.s32.totalorder %s33, 0
      %p233 = por %p231, %p232
      %p234 = scmp.ne.s32.totalorder %s220, %s221
      %p235 = scmp.eq.s32.totalorder %s34, 1
      %p236 = por %p234, %p235
      %p238 = scmp.ne.s32.totalorder %s221, %s237
      %p239 = scmp.eq.s32.totalorder %s34, 0
      %p240 = por %p238, %p239
      %s242 = sadd.s32 %s241, 1
      %p245 = scmp.eq.s32.totalorder %s28, 1
      %p246 = scmp.ne.s32.totalorder %s241, %s243
      %p247 = scmp.eq.s32.totalorder %s28, 0
      %p248 = por %p246, %p247
      %p249 = scmp.ne.s32.totalorder %s241, %s243
      %p250 = scmp.eq.s32.totalorder %s33, 1
      %p251 = por %p249, %p250
      %p252 = scmp.ne.s32.totalorder %s243, %s244
      %p253 = scmp.eq.s32.totalorder %s33, 0
      %p254 = por %p252, %p253
      %p255 = scmp.ne.s32.totalorder %s243, %s244
      %p256 = scmp.eq.s32.totalorder %s34, 1
      %p257 = por %p255, %p256
      %p259 = scmp.ne.s32.totalorder %s244, %s258
      %p260 = scmp.eq.s32.totalorder %s34, 0
      %p261 = por %p259, %p260
      %s262 = smul.u32 %s36, %s35
      %s263 = smul.u32 %s43, %s47
      %s264 = ssub.s32 %s262, %s263
      %p265 = scmp.eq.s32.totalorder %s264, 0
      %s267 = sadd.s32 %s266, 1
      %s268 = scalar_select %p265, %s266, %s267
      %p271 = pneg %p265
      %p272 = scmp.eq.s32.totalorder %s28, 1
      %p273 = por %p271, %p272
      %p274 = scmp.ne.s32.totalorder %s266, %s269
      %p275 = scmp.eq.s32.totalorder %s28, 0
      %p276 = por %p274, %p275
      %p277 = scmp.ne.s32.totalorder %s266, %s269
      %p278 = scmp.eq.s32.totalorder %s33, 1
      %p279 = por %p277, %p278
      %p280 = scmp.ne.s32.totalorder %s269, %s270
      %p281 = scmp.eq.s32.totalorder %s33, 0
      %p282 = por %p280, %p281
      %p283 = scmp.ne.s32.totalorder %s269, %s270
      %p284 = scmp.eq.s32.totalorder %s34, 1
      %p285 = por %p283, %p284
      %p287 = scmp.ne.s32.totalorder %s270, %s286
      %p288 = scmp.eq.s32.totalorder %s34, 0
      %p289 = por %p287, %p288
      %s290 = smul.u32 %s36, %s35
      %s291 = smul.u32 %s43, %s47
      %s292 = ssub.s32 %s290, %s291
      %p293 = scmp.eq.s32.totalorder %s292, 0
      %s295 = sadd.s32 %s294, 1
      %s296 = scalar_select %p293, %s294, %s295
      %p299 = pneg %p293
      %p300 = scmp.eq.s32.totalorder %s28, 1
      %p301 = por %p299, %p300
      %p302 = scmp.ne.s32.totalorder %s294, %s297
      %p303 = scmp.eq.s32.totalorder %s28, 0
      %p304 = por %p302, %p303
      %p305 = scmp.ne.s32.totalorder %s294, %s297
      %p306 = scmp.eq.s32.totalorder %s33, 1
      %p307 = por %p305, %p306
      %p308 = scmp.ne.s32.totalorder %s297, %s298
      %p309 = scmp.eq.s32.totalorder %s33, 0
      %p310 = por %p308, %p309
      %p311 = scmp.ne.s32.totalorder %s297, %s298
      %p312 = scmp.eq.s32.totalorder %s34, 1
      %p313 = por %p311, %p312
      %p315 = scmp.ne.s32.totalorder %s298, %s314
      %p316 = scmp.eq.s32.totalorder %s34, 0
      %p317 = por %p315, %p316
      %s319 = sadd.s32 %s318, 1
      %p322 = scmp.eq.s32.totalorder %s28, 1
      %p323 = scmp.ne.s32.totalorder %s318, %s320
      %p324 = scmp.eq.s32.totalorder %s28, 0
      %p325 = por %p323, %p324
      %p326 = scmp.ne.s32.totalorder %s318, %s320
      %p327 = scmp.eq.s32.totalorder %s33, 1
      %p328 = por %p326, %p327
      %p329 = scmp.ne.s32.totalorder %s320, %s321
      %p330 = scmp.eq.s32.totalorder %s33, 0
      %p331 = por %p329, %p330
      %p332 = scmp.ne.s32.totalorder %s320, %s321
      %p333 = scmp.eq.s32.totalorder %s34, 1
      %p334 = por %p332, %p333
      %p336 = scmp.ne.s32.totalorder %s321, %s335
      %p337 = scmp.eq.s32.totalorder %s34, 0
      %p338 = por %p336, %p337
      %p339 = scmp.le.s32.totalorder 1, %s28
      %p340 = scmp.lt.s32.totalorder %s28, 3
      %p341 = pnand %p339, %p340
      %p342 = pneg %p341
      // Predicated region
      $region9: #{tpu_custom_call.1} parent=5 // pred_check
        _
      $region10: #{tpu_custom_call.1} parent=5 // pred_check_branch
        %344 = sbr.rel (%p341) target = $region12
      $region11: #{tpu_custom_call.1} parent=5 // pred_region
        %s345 = ssub.s32 %s28, 1
        // Predicated region
        $region13: #{tpu_custom_call.1} parent=11 // pred_check
          %p346 = pneg %p91
        $region14: #{tpu_custom_call.1} parent=11 // pred_check_branch
          %348 = sbr.rel (%p346) target = $region16
        $region15: #{tpu_custom_call.1} parent=11 // pred_region
          %350 = vsyncadd [#allocation8], 0
          %s352 = sshll.u32 %s1, 4
          %s353 = int_to_ptr.hbm [resolvable:$true] %s352
          %s354 = sshll.u32 [#allocation7], 4
          %s355 = int_to_ptr.vmem [resolvable:$true] %s354
          %357 = dma.hbm_to_vmem [thread:$0]  %s353, 128, %s355, [#allocation8]
        $region16: #{tpu_custom_call.1} parent=11 // pred_fallthru
          _
        // Predicated region
        $region17: #{tpu_custom_call.1} parent=11 // pred_check
          %p358 = pneg %p142
        $region18: #{tpu_custom_call.1} parent=11 // pred_check_branch
          %360 = sbr.rel (%p358) target = $region20
        $region19: #{tpu_custom_call.1} parent=11 // pred_region
          %362 = vsyncadd [#allocation8], 0
          %s363 = sshll.u32 %s3, 4
          %s364 = int_to_ptr.hbm [resolvable:$true] %s363
          %s365 = sshll.u32 [#allocation10], 4
          %s366 = int_to_ptr.vmem [resolvable:$true] %s365
          %371 = dma.hbm_to_vmem [thread:$0]  %s364, 4096, %s366, [#allocation8], 128, 128, 8
        $region20: #{tpu_custom_call.1} parent=11 // pred_fallthru
          _
        // Predicated region
        $region21: #{tpu_custom_call.1} parent=11 // pred_check
          %p372 = pneg %p163
        $region22: #{tpu_custom_call.1} parent=11 // pred_check_branch
          %374 = sbr.rel (%p372) target = $region24
        $region23: #{tpu_custom_call.1} parent=11 // pred_region
          %376 = vsyncadd [#allocation12], 0
          %s377 = sshll.u32 %s4, 4
          %s378 = int_to_ptr.hbm [resolvable:$true] %s377
          %s379 = sshll.u32 [#allocation11], 4
          %s380 = int_to_ptr.vmem [resolvable:$true] %s379
          %385 = dma.hbm_to_vmem [thread:$0]  %s378, 2048, %s380, [#allocation12], 64, 64, 4
        $region24: #{tpu_custom_call.1} parent=11 // pred_fallthru
          _
        // Predicated region
        $region25: #{tpu_custom_call.1} parent=11 // pred_check
          %p386 = pneg %p184
        $region26: #{tpu_custom_call.1} parent=11 // pred_check_branch
          %388 = sbr.rel (%p386) target = $region28
        $region27: #{tpu_custom_call.1} parent=11 // pred_region
          %390 = vsyncadd [#allocation12], 0
          %s391 = sshll.u32 %s5, 4
          %s392 = int_to_ptr.hbm [resolvable:$true] %s391
          %s393 = sshll.u32 [#allocation13], 4
          %s394 = int_to_ptr.vmem [resolvable:$true] %s393
          %399 = dma.hbm_to_vmem [thread:$0]  %s392, 1024, %s394, [#allocation12], 128, 128, 8
        $region28: #{tpu_custom_call.1} parent=11 // pred_fallthru
          _
        // Predicated region
        $region29: #{tpu_custom_call.1} parent=11 // pred_check
          %p400 = pneg %p205
        $region30: #{tpu_custom_call.1} parent=11 // pred_check_branch
          %402 = sbr.rel (%p400) target = $region32
        $region31: #{tpu_custom_call.1} parent=11 // pred_region
          %404 = vsyncadd [#allocation15], 0
          %s405 = sshll.u32 %s6, 4
          %s406 = int_to_ptr.hbm [resolvable:$true] %s405
          %s407 = sshll.u32 [#allocation14], 4
          %s408 = int_to_ptr.vmem [resolvable:$true] %s407
          %413 = dma.hbm_to_vmem [thread:$0]  %s406, 4096, %s408, [#allocation15], 128, 128, 8
        $region32: #{tpu_custom_call.1} parent=11 // pred_fallthru
          _
        // Predicated region
        $region33: #{tpu_custom_call.1} parent=11 // pred_check
          %p414 = pneg %p254
        $region34: #{tpu_custom_call.1} parent=11 // pred_check_branch
          %416 = sbr.rel (%p414) target = $region36
        $region35: #{tpu_custom_call.1} parent=11 // pred_region
          %418 = vsyncadd [#allocation8], 0
          %s420 = sshll.u32 %s8, 4
          %s421 = int_to_ptr.hbm [resolvable:$true] %s420
          %s422 = sshll.u32 [#allocation17], 4
          %s423 = int_to_ptr.vmem [resolvable:$true] %s422
          %425 = dma.hbm_to_vmem [thread:$0]  %s421, 144, %s423, [#allocation8]
        $region36: #{tpu_custom_call.1} parent=11 // pred_fallthru
          _
      $region12: #{tpu_custom_call.1} parent=5 // pred_fallthru
        _
      %p426 = scmp.lt.s32.totalorder %s28, 2
      // Predicated region
      $region37: #{tpu_custom_call.1} parent=5 // pred_check
        %p427 = pneg %p426
      $region38: #{tpu_custom_call.1} parent=5 // pred_check_branch
        %429 = sbr.rel (%p427) target = $region40
      $region39: #{tpu_custom_call.1} parent=5 // pred_region
        // Predicated region
        $region41: #{tpu_custom_call.1} parent=39 // pred_check
          %p430 = pneg %p64
        $region42: #{tpu_custom_call.1} parent=39 // pred_check_branch
          %432 = sbr.rel (%p430) target = $region44
        $region43: #{tpu_custom_call.1} parent=39 // pred_region
          %s433 = sand.u32 %s28, 1
          %s434 = scalar_lea.sflag [#allocation5], %s433
          %s435 = sand.u32 %s54, 1
          %s436 = smul.addr %s435, 128
          %s437 = scalar_lea.vmem [#allocation4], %s436
          %s438 = ssub.s32 1, %s35
          %s439 = smul.u32 %s36, %s438
          %s440 = smul.u32 32, %s439
          %442 = vsyncadd %s434, 0
          %s443 = smul.addr %s440, 4
          %s444 = scalar_lea.hbm %s0, %s443
          %s446 = sshll.u32 %s444, 4
          %s447 = int_to_ptr.hbm [resolvable:$true] %s446
          %s448 = sshll.u32 %s437, 4
          %s449 = int_to_ptr.vmem [resolvable:$true] %s448
          %451 = dma.hbm_to_vmem [thread:$0]  %s447, 2048, %s449, %s434
        $region44: #{tpu_custom_call.1} parent=39 // pred_fallthru
          _
        // Predicated region
        $region45: #{tpu_custom_call.1} parent=39 // pred_check
          %p452 = pneg %p115
        $region46: #{tpu_custom_call.1} parent=39 // pred_check_branch
          %454 = sbr.rel (%p452) target = $region48
        $region47: #{tpu_custom_call.1} parent=39 // pred_region
          %s455 = sand.u32 %s28, 1
          %s456 = scalar_lea.sflag [#allocation5], %s455
          %s457 = sand.u32 %s105, 1
          %s458 = smul.addr %s457, 4096
          %s459 = scalar_lea.vmem [#allocation9], %s458
          %s460 = ssub.s32 1, %s35
          %s461 = smul.u32 %s36, %s460
          %s462 = smul.u32 512, %s461
          %464 = vsyncadd %s456, 0
          %s465 = smul.addr %s462, 2
          %s466 = smul.addr %s465, 4
          %s467 = scalar_lea.hbm %s2, %s466
          %s468 = sshll.u32 %s467, 4
          %s469 = int_to_ptr.hbm [resolvable:$true] %s468
          %s470 = sshll.u32 %s459, 4
          %s471 = int_to_ptr.vmem [resolvable:$true] %s470
          %476 = dma.hbm_to_vmem [thread:$0]  %s469, 65536, %s471, %s456, 128, 128, 8
        $region48: #{tpu_custom_call.1} parent=39 // pred_fallthru
          _
        // Predicated region
        $region49: #{tpu_custom_call.1} parent=39 // pred_check
          %p477 = pneg %p227
        $region50: #{tpu_custom_call.1} parent=39 // pred_check_branch
          %479 = sbr.rel (%p477) target = $region52
        $region51: #{tpu_custom_call.1} parent=39 // pred_region
          %s480 = sand.u32 %s28, 1
          %s481 = scalar_lea.sflag [#allocation5], %s480
          %s482 = sand.u32 %s217, 1
          %s483 = smul.addr %s482, 4096
          %s484 = scalar_lea.vmem [#allocation16], %s483
          %s485 = smul.u32 %s36, %s35
          %s486 = smul.u32 32, %s485
          %488 = vsyncadd %s481, 0
          %s489 = smul.addr %s486, 4
          %s490 = scalar_lea.hbm %s7, %s489
          %s491 = sshll.u32 %s490, 4
          %s492 = int_to_ptr.hbm [resolvable:$true] %s491
          %s493 = sshll.u32 %s484, 4
          %s494 = int_to_ptr.vmem [resolvable:$true] %s493
          %499 = dma.hbm_to_vmem [thread:$0]  %s492, 65536, %s494, %s481, 2048, 2048, 128
        $region52: #{tpu_custom_call.1} parent=39 // pred_fallthru
          _
        // Predicated region
        $region53: #{tpu_custom_call.1} parent=39 // pred_check
          %p500 = pneg %p276
        $region54: #{tpu_custom_call.1} parent=39 // pred_check_branch
          %502 = sbr.rel (%p500) target = $region56
        $region55: #{tpu_custom_call.1} parent=39 // pred_region
          %s503 = sand.u32 %s28, 1
          %s504 = scalar_lea.sflag [#allocation5], %s503
          %s505 = sand.u32 %s266, 1
          %s506 = smul.addr %s505, 32
          %s507 = scalar_lea.vmem [#allocation18], %s506
          %s508 = smul.u32 %s36, %s35
          %s509 = smul.u32 32, %s508
          %511 = vsyncadd %s504, 0
          %s512 = scalar_lea.hbm %s9, %s509
          %s514 = sshll.u32 %s512, 4
          %s515 = int_to_ptr.hbm [resolvable:$true] %s514
          %s516 = sshll.u32 %s507, 4
          %s517 = int_to_ptr.vmem [resolvable:$true] %s516
          %519 = dma.hbm_to_vmem [thread:$0]  %s515, 512, %s517, %s504
        $region56: #{tpu_custom_call.1} parent=39 // pred_fallthru
          _
      $region40: #{tpu_custom_call.1} parent=5 // pred_fallthru
        _
      %p520 = scmp.le.s32.totalorder 1, %s28
      %p521 = scmp.lt.s32.totalorder %s28, 3
      %p522 = pnand %p520, %p521
      %p523 = pneg %p522
      // Predicated region
      $region57: #{tpu_custom_call.1} parent=5 // pred_check
        _
      $region58: #{tpu_custom_call.1} parent=5 // pred_check_branch
        %525 = sbr.rel (%p522) target = $region60
      $region59: #{tpu_custom_call.1} parent=5 // pred_region
        %s526 = ssub.s32 %s28, 1
        %s527 = sand.u32 %s33, 1
        %s528 = scalar_lea.sflag [#allocation5], %s527
        %s529 = sand.u32 %s57, 1
        %s530 = smul.addr %s529, 128
        %s531 = scalar_lea.vmem [#allocation4], %s530
        // Predicated region
        $region61: #{tpu_custom_call.1} parent=59 // pred_check
          %p532 = pneg %p70
        $region62: #{tpu_custom_call.1} parent=59 // pred_check_branch
          %534 = sbr.rel (%p532) target = $region64
        $region63: #{tpu_custom_call.1} parent=59 // pred_region
          %536 = dma.done %s528, 2048
        $region64: #{tpu_custom_call.1} parent=59 // pred_fallthru
          _
        // Predicated region
        $region65: #{tpu_custom_call.1} parent=59 // pred_check
          %p537 = pneg %p91
        $region66: #{tpu_custom_call.1} parent=59 // pred_check_branch
          %539 = sbr.rel (%p537) target = $region68
        $region67: #{tpu_custom_call.1} parent=59 // pred_region
          %541 = dma.done [#allocation8], 128
        $region68: #{tpu_custom_call.1} parent=59 // pred_fallthru
          _
        %s542 = sand.u32 %s33, 1
        %s543 = scalar_lea.sflag [#allocation5], %s542
        %s544 = sand.u32 %s108, 1
        %s545 = smul.addr %s544, 4096
        %s546 = scalar_lea.vmem [#allocation9], %s545
        // Predicated region
        $region69: #{tpu_custom_call.1} parent=59 // pred_check
          %p547 = pneg %p121
        $region70: #{tpu_custom_call.1} parent=59 // pred_check_branch
          %549 = sbr.rel (%p547) target = $region72
        $region71: #{tpu_custom_call.1} parent=59 // pred_region
          %551 = dma.done %s543, 65536
        $region72: #{tpu_custom_call.1} parent=59 // pred_fallthru
          _
        // Predicated region
        $region73: #{tpu_custom_call.1} parent=59 // pred_check
          %p552 = pneg %p142
        $region74: #{tpu_custom_call.1} parent=59 // pred_check_branch
          %554 = sbr.rel (%p552) target = $region76
        $region75: #{tpu_custom_call.1} parent=59 // pred_region
          %556 = dma.done [#allocation8], 4096
        $region76: #{tpu_custom_call.1} parent=59 // pred_fallthru
          _
        // Predicated region
        $region77: #{tpu_custom_call.1} parent=59 // pred_check
          %p557 = pneg %p163
        $region78: #{tpu_custom_call.1} parent=59 // pred_check_branch
          %559 = sbr.rel (%p557) target = $region80
        $region79: #{tpu_custom_call.1} parent=59 // pred_region
          %561 = dma.done [#allocation12], 2048
        $region80: #{tpu_custom_call.1} parent=59 // pred_fallthru
          _
        // Predicated region
        $region81: #{tpu_custom_call.1} parent=59 // pred_check
          %p562 = pneg %p184
        $region82: #{tpu_custom_call.1} parent=59 // pred_check_branch
          %564 = sbr.rel (%p562) target = $region84
        $region83: #{tpu_custom_call.1} parent=59 // pred_region
          %566 = dma.done [#allocation12], 1024
        $region84: #{tpu_custom_call.1} parent=59 // pred_fallthru
          _
        // Predicated region
        $region85: #{tpu_custom_call.1} parent=59 // pred_check
          %p567 = pneg %p205
        $region86: #{tpu_custom_call.1} parent=59 // pred_check_branch
          %569 = sbr.rel (%p567) target = $region88
        $region87: #{tpu_custom_call.1} parent=59 // pred_region
          %571 = dma.done [#allocation15], 4096
        $region88: #{tpu_custom_call.1} parent=59 // pred_fallthru
          _
        %s572 = sand.u32 %s33, 1
        %s573 = scalar_lea.sflag [#allocation5], %s572
        %s574 = sand.u32 %s220, 1
        %s575 = smul.addr %s574, 4096
        %s576 = scalar_lea.vmem [#allocation16], %s575
        // Predicated region
        $region89: #{tpu_custom_call.1} parent=59 // pred_check
          %p577 = pneg %p233
        $region90: #{tpu_custom_call.1} parent=59 // pred_check_branch
          %579 = sbr.rel (%p577) target = $region92
        $region91: #{tpu_custom_call.1} parent=59 // pred_region
          %581 = dma.done %s573, 65536
        $region92: #{tpu_custom_call.1} parent=59 // pred_fallthru
          _
        // Predicated region
        $region93: #{tpu_custom_call.1} parent=59 // pred_check
          %p582 = pneg %p254
        $region94: #{tpu_custom_call.1} parent=59 // pred_check_branch
          %584 = sbr.rel (%p582) target = $region96
        $region95: #{tpu_custom_call.1} parent=59 // pred_region
          %586 = dma.done [#allocation8], 144
        $region96: #{tpu_custom_call.1} parent=59 // pred_fallthru
          _
        %s587 = sand.u32 %s33, 1
        %s588 = scalar_lea.sflag [#allocation5], %s587
        %s589 = sand.u32 %s269, 1
        %s590 = smul.addr %s589, 32
        %s591 = scalar_lea.vmem [#allocation18], %s590
        // Predicated region
        $region97: #{tpu_custom_call.1} parent=59 // pred_check
          %p592 = pneg %p282
        $region98: #{tpu_custom_call.1} parent=59 // pred_check_branch
          %594 = sbr.rel (%p592) target = $region100
        $region99: #{tpu_custom_call.1} parent=59 // pred_region
          %596 = dma.done %s588, 512
        $region100: #{tpu_custom_call.1} parent=59 // pred_fallthru
          _
        %s597 = sand.u32 %s33, 1
        %s598 = scalar_lea.sflag [#allocation5], %s597
        %s599 = sand.u32 %s57, 1
        %s600 = smul.addr %s599, 128
        %s601 = scalar_lea.vmem [#allocation4], %s600
        %p602 = pneg %p70
        %p603 = pneg %p67
        %p604 = pneg %p91
        %p605 = pneg %p88
        %s606 = sand.u32 %s33, 1
        %s607 = scalar_lea.sflag [#allocation5], %s606
        %s608 = sand.u32 %s108, 1
        %s609 = smul.addr %s608, 4096
        %s610 = scalar_lea.vmem [#allocation9], %s609
        %p611 = pneg %p121
        %p612 = pneg %p118
        %p613 = pneg %p142
        %p614 = pneg %p139
        %p615 = pneg %p163
        %p616 = pneg %p160
        %p617 = pneg %p184
        %p618 = pneg %p181
        %p619 = pneg %p205
        %p620 = pneg %p202
        %s621 = sand.u32 %s33, 1
        %s622 = scalar_lea.sflag [#allocation5], %s621
        %s623 = sand.u32 %s220, 1
        %s624 = smul.addr %s623, 4096
        %s625 = scalar_lea.vmem [#allocation16], %s624
        %p626 = pneg %p233
        %p627 = pneg %p230
        %p628 = pneg %p254
        %p629 = pneg %p251
        %s630 = sand.u32 %s33, 1
        %s631 = scalar_lea.sflag [#allocation5], %s630
        %s632 = sand.u32 %s269, 1
        %s633 = smul.addr %s632, 32
        %s634 = scalar_lea.vmem [#allocation18], %s633
        %p635 = pneg %p282
        %p636 = pneg %p279
        %p637 = pneg %p310
        %p638 = pneg %p307
        %s639 = sand.u32 %s297, 1
        %s640 = scalar_lea.sflag [#allocation6], %s639
        %s641 = sand.u32 %s297, 1
        %s642 = smul.addr %s641, 256
        %s643 = scalar_lea.vmem [#allocation19], %s642
        %p644 = pneg %p331
        %p645 = pneg %p328
        %s646 = ssub.s32 1, %s37
        %s647 = smul.u32 %s38, %s646
        %s648 = smul.u32 32, %s647
        %s649 = ssub.s32 1, %s37
        %s650 = smul.u32 %s38, %s649
        %s651 = smul.u32 512, %s650
        %s652 = smul.u32 %s38, %s37
        %s653 = smul.u32 32, %s652
        %s654 = smul.u32 %s38, %s37
        %s655 = smul.u32 32, %s654
        %s656 = smul.u32 %s38, %s37
        %s657 = smul.u32 32, %s656
        %p659 = scmp.eq.s32.totalorder %s37, 0
        // Predicated region
        $region101: #{tpu_custom_call.1} parent=59 // pred_check
          %p660 = pneg %p659
        $region102: #{tpu_custom_call.1} parent=59 // pred_check_branch
          %662 = sbr.rel (%p660) target = $region104
        $region103: #{tpu_custom_call.1} parent=59 // pred_region
          %p663 = scmp.eq.s32.totalorder %s38, 0
          // Predicated region
          $region105: #{tpu_custom_call.1} parent=103 // pred_check
            %p664 = pneg %p663
          $region106: #{tpu_custom_call.1} parent=103 // pred_check_branch
            %666 = sbr.rel (%p664) target = $region108
          $region107: #{tpu_custom_call.1} parent=103 // pred_region
            %667 = vst [vmem:[#allocation2] sm:$0xff] 0.0
            %668 = vst [vmem:[#allocation2 + $0x8] sm:$0xff] 0.0
          $region108: #{tpu_custom_call.1} parent=103 // pred_fallthru
            _
          %v669 = vld [vmem:[#allocation2] sm:$0xff]
          %v670 = vld [vmem:[#allocation2 + $0x8] sm:$0xff]
          %v671 = vld [vmem:[%s531] sm:$0xff]
          %v672 = vld [vmem:[%s531 + $0x8] sm:$0xff]
          %v673 = vld [vmem:[%s531 + $0x10] sm:$0xff]
          %v674 = vld [vmem:[%s531 + $0x18] sm:$0xff]
          %v675 = vld [vmem:[%s531 + $0x20] sm:$0xff]
          %v676 = vld [vmem:[%s531 + $0x28] sm:$0xff]
          %v677 = vld [vmem:[%s531 + $0x30] sm:$0xff]
          %v678 = vld [vmem:[%s531 + $0x38] sm:$0xff]
          %v679 = vld [vmem:[%s531 + $0x40] sm:$0xff]
          %v680 = vld [vmem:[%s531 + $0x48] sm:$0xff]
          %v681 = vld [vmem:[%s531 + $0x50] sm:$0xff]
          %v682 = vld [vmem:[%s531 + $0x58] sm:$0xff]
          %v683 = vld [vmem:[%s531 + $0x60] sm:$0xff]
          %v684 = vld [vmem:[%s531 + $0x68] sm:$0xff]
          %v685 = vld [vmem:[%s531 + $0x70] sm:$0xff]
          %v686 = vld [vmem:[%s531 + $0x78] sm:$0xff]
          %v687 = vld [vmem:[%s546] sm:$0xff]
          %v688 = vld [vmem:[%s546 + $0x8] sm:$0xff]
          %v689 = vld [vmem:[%s546 + $0x10] sm:$0xff]
          %v690 = vld [vmem:[%s546 + $0x18] sm:$0xff]
          %v691 = vld [vmem:[%s546 + $0x20] sm:$0xff]
          %v692 = vld [vmem:[%s546 + $0x28] sm:$0xff]
          %v693 = vld [vmem:[%s546 + $0x30] sm:$0xff]
          %v694 = vld [vmem:[%s546 + $0x38] sm:$0xff]
          %v695 = vld [vmem:[%s546 + $0x40] sm:$0xff]
          %v696 = vld [vmem:[%s546 + $0x48] sm:$0xff]
          %v697 = vld [vmem:[%s546 + $0x50] sm:$0xff]
          %v698 = vld [vmem:[%s546 + $0x58] sm:$0xff]
          %v699 = vld [vmem:[%s546 + $0x60] sm:$0xff]
          %v700 = vld [vmem:[%s546 + $0x68] sm:$0xff]
          %v701 = vld [vmem:[%s546 + $0x70] sm:$0xff]
          %v702 = vld [vmem:[%s546 + $0x78] sm:$0xff]
          %v703 = vld [vmem:[%s546 + $0x80] sm:$0xff]
          %v704 = vld [vmem:[%s546 + $0x88] sm:$0xff]
          %v705 = vld [vmem:[%s546 + $0x90] sm:$0xff]
          %v706 = vld [vmem:[%s546 + $0x98] sm:$0xff]
          %v707 = vld [vmem:[%s546 + $0xa0] sm:$0xff]
          %v708 = vld [vmem:[%s546 + $0xa8] sm:$0xff]
          %v709 = vld [vmem:[%s546 + $0xb0] sm:$0xff]
          %v710 = vld [vmem:[%s546 + $0xb8] sm:$0xff]
          %v711 = vld [vmem:[%s546 + $0xc0] sm:$0xff]
          %v712 = vld [vmem:[%s546 + $0xc8] sm:$0xff]
          %v713 = vld [vmem:[%s546 + $0xd0] sm:$0xff]
          %v714 = vld [vmem:[%s546 + $0xd8] sm:$0xff]
          %v715 = vld [vmem:[%s546 + $0xe0] sm:$0xff]
          %v716 = vld [vmem:[%s546 + $0xe8] sm:$0xff]
          %v717 = vld [vmem:[%s546 + $0xf0] sm:$0xff]
          %v718 = vld [vmem:[%s546 + $0xf8] sm:$0xff]
          %v719 = vld [vmem:[%s546 + $0x100] sm:$0xff]
          %v720 = vld [vmem:[%s546 + $0x108] sm:$0xff]
          %v721 = vld [vmem:[%s546 + $0x110] sm:$0xff]
          %v722 = vld [vmem:[%s546 + $0x118] sm:$0xff]
          %v723 = vld [vmem:[%s546 + $0x120] sm:$0xff]
          %v724 = vld [vmem:[%s546 + $0x128] sm:$0xff]
          %v725 = vld [vmem:[%s546 + $0x130] sm:$0xff]
          %v726 = vld [vmem:[%s546 + $0x138] sm:$0xff]
          %v727 = vld [vmem:[%s546 + $0x140] sm:$0xff]
          %v728 = vld [vmem:[%s546 + $0x148] sm:$0xff]
          %v729 = vld [vmem:[%s546 + $0x150] sm:$0xff]
          %v730 = vld [vmem:[%s546 + $0x158] sm:$0xff]
          %v731 = vld [vmem:[%s546 + $0x160] sm:$0xff]
          %v732 = vld [vmem:[%s546 + $0x168] sm:$0xff]
          %v733 = vld [vmem:[%s546 + $0x170] sm:$0xff]
          %v734 = vld [vmem:[%s546 + $0x178] sm:$0xff]
          %v735 = vld [vmem:[%s546 + $0x180] sm:$0xff]
          %v736 = vld [vmem:[%s546 + $0x188] sm:$0xff]
          %v737 = vld [vmem:[%s546 + $0x190] sm:$0xff]
          %v738 = vld [vmem:[%s546 + $0x198] sm:$0xff]
          %v739 = vld [vmem:[%s546 + $0x1a0] sm:$0xff]
          %v740 = vld [vmem:[%s546 + $0x1a8] sm:$0xff]
          %v741 = vld [vmem:[%s546 + $0x1b0] sm:$0xff]
          %v742 = vld [vmem:[%s546 + $0x1b8] sm:$0xff]
          %v743 = vld [vmem:[%s546 + $0x1c0] sm:$0xff]
          %v744 = vld [vmem:[%s546 + $0x1c8] sm:$0xff]
          %v745 = vld [vmem:[%s546 + $0x1d0] sm:$0xff]
          %v746 = vld [vmem:[%s546 + $0x1d8] sm:$0xff]
          %v747 = vld [vmem:[%s546 + $0x1e0] sm:$0xff]
          %v748 = vld [vmem:[%s546 + $0x1e8] sm:$0xff]
          %v749 = vld [vmem:[%s546 + $0x1f0] sm:$0xff]
          %v750 = vld [vmem:[%s546 + $0x1f8] sm:$0xff]
          %v751 = vld [vmem:[%s546 + $0x200] sm:$0xff]
          %v752 = vld [vmem:[%s546 + $0x208] sm:$0xff]
          %v753 = vld [vmem:[%s546 + $0x210] sm:$0xff]
          %v754 = vld [vmem:[%s546 + $0x218] sm:$0xff]
          %v755 = vld [vmem:[%s546 + $0x220] sm:$0xff]
          %v756 = vld [vmem:[%s546 + $0x228] sm:$0xff]
          %v757 = vld [vmem:[%s546 + $0x230] sm:$0xff]
          %v758 = vld [vmem:[%s546 + $0x238] sm:$0xff]
          %v759 = vld [vmem:[%s546 + $0x240] sm:$0xff]
          %v760 = vld [vmem:[%s546 + $0x248] sm:$0xff]
          %v761 = vld [vmem:[%s546 + $0x250] sm:$0xff]
          %v762 = vld [vmem:[%s546 + $0x258] sm:$0xff]
          %v763 = vld [vmem:[%s546 + $0x260] sm:$0xff]
          %v764 = vld [vmem:[%s546 + $0x268] sm:$0xff]
          %v765 = vld [vmem:[%s546 + $0x270] sm:$0xff]
          %v766 = vld [vmem:[%s546 + $0x278] sm:$0xff]
          %v767 = vld [vmem:[%s546 + $0x280] sm:$0xff]
          %v768 = vld [vmem:[%s546 + $0x288] sm:$0xff]
          %v769 = vld [vmem:[%s546 + $0x290] sm:$0xff]
          %v770 = vld [vmem:[%s546 + $0x298] sm:$0xff]
          %v771 = vld [vmem:[%s546 + $0x2a0] sm:$0xff]
          %v772 = vld [vmem:[%s546 + $0x2a8] sm:$0xff]
          %v773 = vld [vmem:[%s546 + $0x2b0] sm:$0xff]
          %v774 = vld [vmem:[%s546 + $0x2b8] sm:$0xff]
          %v775 = vld [vmem:[%s546 + $0x2c0] sm:$0xff]
          %v776 = vld [vmem:[%s546 + $0x2c8] sm:$0xff]
          %v777 = vld [vmem:[%s546 + $0x2d0] sm:$0xff]
          %v778 = vld [vmem:[%s546 + $0x2d8] sm:$0xff]
          %v779 = vld [vmem:[%s546 + $0x2e0] sm:$0xff]
          %v780 = vld [vmem:[%s546 + $0x2e8] sm:$0xff]
          %v781 = vld [vmem:[%s546 + $0x2f0] sm:$0xff]
          %v782 = vld [vmem:[%s546 + $0x2f8] sm:$0xff]
          %v783 = vld [vmem:[%s546 + $0x300] sm:$0xff]
          %v784 = vld [vmem:[%s546 + $0x308] sm:$0xff]
          %v785 = vld [vmem:[%s546 + $0x310] sm:$0xff]
          %v786 = vld [vmem:[%s546 + $0x318] sm:$0xff]
          %v787 = vld [vmem:[%s546 + $0x320] sm:$0xff]
          %v788 = vld [vmem:[%s546 + $0x328] sm:$0xff]
          %v789 = vld [vmem:[%s546 + $0x330] sm:$0xff]
          %v790 = vld [vmem:[%s546 + $0x338] sm:$0xff]
          %v791 = vld [vmem:[%s546 + $0x340] sm:$0xff]
          %v792 = vld [vmem:[%s546 + $0x348] sm:$0xff]
          %v793 = vld [vmem:[%s546 + $0x350] sm:$0xff]
          %v794 = vld [vmem:[%s546 + $0x358] sm:$0xff]
          %v795 = vld [vmem:[%s546 + $0x360] sm:$0xff]
          %v796 = vld [vmem:[%s546 + $0x368] sm:$0xff]
          %v797 = vld [vmem:[%s546 + $0x370] sm:$0xff]
          %v798 = vld [vmem:[%s546 + $0x378] sm:$0xff]
          %v799 = vld [vmem:[%s546 + $0x380] sm:$0xff]
          %v800 = vld [vmem:[%s546 + $0x388] sm:$0xff]
          %v801 = vld [vmem:[%s546 + $0x390] sm:$0xff]
          %v802 = vld [vmem:[%s546 + $0x398] sm:$0xff]
          %v803 = vld [vmem:[%s546 + $0x3a0] sm:$0xff]
          %v804 = vld [vmem:[%s546 + $0x3a8] sm:$0xff]
          %v805 = vld [vmem:[%s546 + $0x3b0] sm:$0xff]
          %v806 = vld [vmem:[%s546 + $0x3b8] sm:$0xff]
          %v807 = vld [vmem:[%s546 + $0x3c0] sm:$0xff]
          %v808 = vld [vmem:[%s546 + $0x3c8] sm:$0xff]
          %v809 = vld [vmem:[%s546 + $0x3d0] sm:$0xff]
          %v810 = vld [vmem:[%s546 + $0x3d8] sm:$0xff]
          %v811 = vld [vmem:[%s546 + $0x3e0] sm:$0xff]
          %v812 = vld [vmem:[%s546 + $0x3e8] sm:$0xff]
          %v813 = vld [vmem:[%s546 + $0x3f0] sm:$0xff]
          %v814 = vld [vmem:[%s546 + $0x3f8] sm:$0xff]
          %v815 = vld [vmem:[%s546 + $0x400] sm:$0xff]
          %v816 = vld [vmem:[%s546 + $0x408] sm:$0xff]
          %v817 = vld [vmem:[%s546 + $0x410] sm:$0xff]
          %v818 = vld [vmem:[%s546 + $0x418] sm:$0xff]
          %v819 = vld [vmem:[%s546 + $0x420] sm:$0xff]
          %v820 = vld [vmem:[%s546 + $0x428] sm:$0xff]
          %v821 = vld [vmem:[%s546 + $0x430] sm:$0xff]
          %v822 = vld [vmem:[%s546 + $0x438] sm:$0xff]
          %v823 = vld [vmem:[%s546 + $0x440] sm:$0xff]
          %v824 = vld [vmem:[%s546 + $0x448] sm:$0xff]
          %v825 = vld [vmem:[%s546 + $0x450] sm:$0xff]
          %v826 = vld [vmem:[%s546 + $0x458] sm:$0xff]
          %v827 = vld [vmem:[%s546 + $0x460] sm:$0xff]
          %v828 = vld [vmem:[%s546 + $0x468] sm:$0xff]
          %v829 = vld [vmem:[%s546 + $0x470] sm:$0xff]
          %v830 = vld [vmem:[%s546 + $0x478] sm:$0xff]
          %v831 = vld [vmem:[%s546 + $0x480] sm:$0xff]
          %v832 = vld [vmem:[%s546 + $0x488] sm:$0xff]
          %v833 = vld [vmem:[%s546 + $0x490] sm:$0xff]
          %v834 = vld [vmem:[%s546 + $0x498] sm:$0xff]
          %v835 = vld [vmem:[%s546 + $0x4a0] sm:$0xff]
          %v836 = vld [vmem:[%s546 + $0x4a8] sm:$0xff]
          %v837 = vld [vmem:[%s546 + $0x4b0] sm:$0xff]
          %v838 = vld [vmem:[%s546 + $0x4b8] sm:$0xff]
          %v839 = vld [vmem:[%s546 + $0x4c0] sm:$0xff]
          %v840 = vld [vmem:[%s546 + $0x4c8] sm:$0xff]
          %v841 = vld [vmem:[%s546 + $0x4d0] sm:$0xff]
          %v842 = vld [vmem:[%s546 + $0x4d8] sm:$0xff]
          %v843 = vld [vmem:[%s546 + $0x4e0] sm:$0xff]
          %v844 = vld [vmem:[%s546 + $0x4e8] sm:$0xff]
          %v845 = vld [vmem:[%s546 + $0x4f0] sm:$0xff]
          %v846 = vld [vmem:[%s546 + $0x4f8] sm:$0xff]
          %v847 = vld [vmem:[%s546 + $0x500] sm:$0xff]
          %v848 = vld [vmem:[%s546 + $0x508] sm:$0xff]
          %v849 = vld [vmem:[%s546 + $0x510] sm:$0xff]
          %v850 = vld [vmem:[%s546 + $0x518] sm:$0xff]
          %v851 = vld [vmem:[%s546 + $0x520] sm:$0xff]
          %v852 = vld [vmem:[%s546 + $0x528] sm:$0xff]
          %v853 = vld [vmem:[%s546 + $0x530] sm:$0xff]
          %v854 = vld [vmem:[%s546 + $0x538] sm:$0xff]
          %v855 = vld [vmem:[%s546 + $0x540] sm:$0xff]
          %v856 = vld [vmem:[%s546 + $0x548] sm:$0xff]
          %v857 = vld [vmem:[%s546 + $0x550] sm:$0xff]
          %v858 = vld [vmem:[%s546 + $0x558] sm:$0xff]
          %v859 = vld [vmem:[%s546 + $0x560] sm:$0xff]
          %v860 = vld [vmem:[%s546 + $0x568] sm:$0xff]
          %v861 = vld [vmem:[%s546 + $0x570] sm:$0xff]
          %v862 = vld [vmem:[%s546 + $0x578] sm:$0xff]
          %v863 = vld [vmem:[%s546 + $0x580] sm:$0xff]
          %v864 = vld [vmem:[%s546 + $0x588] sm:$0xff]
          %v865 = vld [vmem:[%s546 + $0x590] sm:$0xff]
          %v866 = vld [vmem:[%s546 + $0x598] sm:$0xff]
          %v867 = vld [vmem:[%s546 + $0x5a0] sm:$0xff]
          %v868 = vld [vmem:[%s546 + $0x5a8] sm:$0xff]
          %v869 = vld [vmem:[%s546 + $0x5b0] sm:$0xff]
          %v870 = vld [vmem:[%s546 + $0x5b8] sm:$0xff]
          %v871 = vld [vmem:[%s546 + $0x5c0] sm:$0xff]
          %v872 = vld [vmem:[%s546 + $0x5c8] sm:$0xff]
          %v873 = vld [vmem:[%s546 + $0x5d0] sm:$0xff]
          %v874 = vld [vmem:[%s546 + $0x5d8] sm:$0xff]
          %v875 = vld [vmem:[%s546 + $0x5e0] sm:$0xff]
          %v876 = vld [vmem:[%s546 + $0x5e8] sm:$0xff]
          %v877 = vld [vmem:[%s546 + $0x5f0] sm:$0xff]
          %v878 = vld [vmem:[%s546 + $0x5f8] sm:$0xff]
          %v879 = vld [vmem:[%s546 + $0x600] sm:$0xff]
          %v880 = vld [vmem:[%s546 + $0x608] sm:$0xff]
          %v881 = vld [vmem:[%s546 + $0x610] sm:$0xff]
          %v882 = vld [vmem:[%s546 + $0x618] sm:$0xff]
          %v883 = vld [vmem:[%s546 + $0x620] sm:$0xff]
          %v884 = vld [vmem:[%s546 + $0x628] sm:$0xff]
          %v885 = vld [vmem:[%s546 + $0x630] sm:$0xff]
          %v886 = vld [vmem:[%s546 + $0x638] sm:$0xff]
          %v887 = vld [vmem:[%s546 + $0x640] sm:$0xff]
          %v888 = vld [vmem:[%s546 + $0x648] sm:$0xff]
          %v889 = vld [vmem:[%s546 + $0x650] sm:$0xff]
          %v890 = vld [vmem:[%s546 + $0x658] sm:$0xff]
          %v891 = vld [vmem:[%s546 + $0x660] sm:$0xff]
          %v892 = vld [vmem:[%s546 + $0x668] sm:$0xff]
          %v893 = vld [vmem:[%s546 + $0x670] sm:$0xff]
          %v894 = vld [vmem:[%s546 + $0x678] sm:$0xff]
          %v895 = vld [vmem:[%s546 + $0x680] sm:$0xff]
          %v896 = vld [vmem:[%s546 + $0x688] sm:$0xff]
          %v897 = vld [vmem:[%s546 + $0x690] sm:$0xff]
          %v898 = vld [vmem:[%s546 + $0x698] sm:$0xff]
          %v899 = vld [vmem:[%s546 + $0x6a0] sm:$0xff]
          %v900 = vld [vmem:[%s546 + $0x6a8] sm:$0xff]
          %v901 = vld [vmem:[%s546 + $0x6b0] sm:$0xff]
          %v902 = vld [vmem:[%s546 + $0x6b8] sm:$0xff]
          %v903 = vld [vmem:[%s546 + $0x6c0] sm:$0xff]
          %v904 = vld [vmem:[%s546 + $0x6c8] sm:$0xff]
          %v905 = vld [vmem:[%s546 + $0x6d0] sm:$0xff]
          %v906 = vld [vmem:[%s546 + $0x6d8] sm:$0xff]
          %v907 = vld [vmem:[%s546 + $0x6e0] sm:$0xff]
          %v908 = vld [vmem:[%s546 + $0x6e8] sm:$0xff]
          %v909 = vld [vmem:[%s546 + $0x6f0] sm:$0xff]
          %v910 = vld [vmem:[%s546 + $0x6f8] sm:$0xff]
          %v911 = vld [vmem:[%s546 + $0x700] sm:$0xff]
          %v912 = vld [vmem:[%s546 + $0x708] sm:$0xff]
          %v913 = vld [vmem:[%s546 + $0x710] sm:$0xff]
          %v914 = vld [vmem:[%s546 + $0x718] sm:$0xff]
          %v915 = vld [vmem:[%s546 + $0x720] sm:$0xff]
          %v916 = vld [vmem:[%s546 + $0x728] sm:$0xff]
          %v917 = vld [vmem:[%s546 + $0x730] sm:$0xff]
          %v918 = vld [vmem:[%s546 + $0x738] sm:$0xff]
          %v919 = vld [vmem:[%s546 + $0x740] sm:$0xff]
          %v920 = vld [vmem:[%s546 + $0x748] sm:$0xff]
          %v921 = vld [vmem:[%s546 + $0x750] sm:$0xff]
          %v922 = vld [vmem:[%s546 + $0x758] sm:$0xff]
          %v923 = vld [vmem:[%s546 + $0x760] sm:$0xff]
          %v924 = vld [vmem:[%s546 + $0x768] sm:$0xff]
          %v925 = vld [vmem:[%s546 + $0x770] sm:$0xff]
          %v926 = vld [vmem:[%s546 + $0x778] sm:$0xff]
          %v927 = vld [vmem:[%s546 + $0x780] sm:$0xff]
          %v928 = vld [vmem:[%s546 + $0x788] sm:$0xff]
          %v929 = vld [vmem:[%s546 + $0x790] sm:$0xff]
          %v930 = vld [vmem:[%s546 + $0x798] sm:$0xff]
          %v931 = vld [vmem:[%s546 + $0x7a0] sm:$0xff]
          %v932 = vld [vmem:[%s546 + $0x7a8] sm:$0xff]
          %v933 = vld [vmem:[%s546 + $0x7b0] sm:$0xff]
          %v934 = vld [vmem:[%s546 + $0x7b8] sm:$0xff]
          %v935 = vld [vmem:[%s546 + $0x7c0] sm:$0xff]
          %v936 = vld [vmem:[%s546 + $0x7c8] sm:$0xff]
          %v937 = vld [vmem:[%s546 + $0x7d0] sm:$0xff]
          %v938 = vld [vmem:[%s546 + $0x7d8] sm:$0xff]
          %v939 = vld [vmem:[%s546 + $0x7e0] sm:$0xff]
          %v940 = vld [vmem:[%s546 + $0x7e8] sm:$0xff]
          %v941 = vld [vmem:[%s546 + $0x7f0] sm:$0xff]
          %v942 = vld [vmem:[%s546 + $0x7f8] sm:$0xff]
          %v943 = vld [vmem:[%s546 + $0x800] sm:$0xff]
          %v944 = vld [vmem:[%s546 + $0x808] sm:$0xff]
          %v945 = vld [vmem:[%s546 + $0x810] sm:$0xff]
          %v946 = vld [vmem:[%s546 + $0x818] sm:$0xff]
          %v947 = vld [vmem:[%s546 + $0x820] sm:$0xff]
          %v948 = vld [vmem:[%s546 + $0x828] sm:$0xff]
          %v949 = vld [vmem:[%s546 + $0x830] sm:$0xff]
          %v950 = vld [vmem:[%s546 + $0x838] sm:$0xff]
          %v951 = vld [vmem:[%s546 + $0x840] sm:$0xff]
          %v952 = vld [vmem:[%s546 + $0x848] sm:$0xff]
          %v953 = vld [vmem:[%s546 + $0x850] sm:$0xff]
          %v954 = vld [vmem:[%s546 + $0x858] sm:$0xff]
          %v955 = vld [vmem:[%s546 + $0x860] sm:$0xff]
          %v956 = vld [vmem:[%s546 + $0x868] sm:$0xff]
          %v957 = vld [vmem:[%s546 + $0x870] sm:$0xff]
          %v958 = vld [vmem:[%s546 + $0x878] sm:$0xff]
          %v959 = vld [vmem:[%s546 + $0x880] sm:$0xff]
          %v960 = vld [vmem:[%s546 + $0x888] sm:$0xff]
          %v961 = vld [vmem:[%s546 + $0x890] sm:$0xff]
          %v962 = vld [vmem:[%s546 + $0x898] sm:$0xff]
          %v963 = vld [vmem:[%s546 + $0x8a0] sm:$0xff]
          %v964 = vld [vmem:[%s546 + $0x8a8] sm:$0xff]
          %v965 = vld [vmem:[%s546 + $0x8b0] sm:$0xff]
          %v966 = vld [vmem:[%s546 + $0x8b8] sm:$0xff]
          %v967 = vld [vmem:[%s546 + $0x8c0] sm:$0xff]
          %v968 = vld [vmem:[%s546 + $0x8c8] sm:$0xff]
          %v969 = vld [vmem:[%s546 + $0x8d0] sm:$0xff]
          %v970 = vld [vmem:[%s546 + $0x8d8] sm:$0xff]
          %v971 = vld [vmem:[%s546 + $0x8e0] sm:$0xff]
          %v972 = vld [vmem:[%s546 + $0x8e8] sm:$0xff]
          %v973 = vld [vmem:[%s546 + $0x8f0] sm:$0xff]
          %v974 = vld [vmem:[%s546 + $0x8f8] sm:$0xff]
          %v975 = vld [vmem:[%s546 + $0x900] sm:$0xff]
          %v976 = vld [vmem:[%s546 + $0x908] sm:$0xff]
          %v977 = vld [vmem:[%s546 + $0x910] sm:$0xff]
          %v978 = vld [vmem:[%s546 + $0x918] sm:$0xff]
          %v979 = vld [vmem:[%s546 + $0x920] sm:$0xff]
          %v980 = vld [vmem:[%s546 + $0x928] sm:$0xff]
          %v981 = vld [vmem:[%s546 + $0x930] sm:$0xff]
          %v982 = vld [vmem:[%s546 + $0x938] sm:$0xff]
          %v983 = vld [vmem:[%s546 + $0x940] sm:$0xff]
          %v984 = vld [vmem:[%s546 + $0x948] sm:$0xff]
          %v985 = vld [vmem:[%s546 + $0x950] sm:$0xff]
          %v986 = vld [vmem:[%s546 + $0x958] sm:$0xff]
          %v987 = vld [vmem:[%s546 + $0x960] sm:$0xff]
          %v988 = vld [vmem:[%s546 + $0x968] sm:$0xff]
          %v989 = vld [vmem:[%s546 + $0x970] sm:$0xff]
          %v990 = vld [vmem:[%s546 + $0x978] sm:$0xff]
          %v991 = vld [vmem:[%s546 + $0x980] sm:$0xff]
          %v992 = vld [vmem:[%s546 + $0x988] sm:$0xff]
          %v993 = vld [vmem:[%s546 + $0x990] sm:$0xff]
          %v994 = vld [vmem:[%s546 + $0x998] sm:$0xff]
          %v995 = vld [vmem:[%s546 + $0x9a0] sm:$0xff]
          %v996 = vld [vmem:[%s546 + $0x9a8] sm:$0xff]
          %v997 = vld [vmem:[%s546 + $0x9b0] sm:$0xff]
          %v998 = vld [vmem:[%s546 + $0x9b8] sm:$0xff]
          %v999 = vld [vmem:[%s546 + $0x9c0] sm:$0xff]
          %v1000 = vld [vmem:[%s546 + $0x9c8] sm:$0xff]
          %v1001 = vld [vmem:[%s546 + $0x9d0] sm:$0xff]
          %v1002 = vld [vmem:[%s546 + $0x9d8] sm:$0xff]
          %v1003 = vld [vmem:[%s546 + $0x9e0] sm:$0xff]
          %v1004 = vld [vmem:[%s546 + $0x9e8] sm:$0xff]
          %v1005 = vld [vmem:[%s546 + $0x9f0] sm:$0xff]
          %v1006 = vld [vmem:[%s546 + $0x9f8] sm:$0xff]
          %v1007 = vld [vmem:[%s546 + $0xa00] sm:$0xff]
          %v1008 = vld [vmem:[%s546 + $0xa08] sm:$0xff]
          %v1009 = vld [vmem:[%s546 + $0xa10] sm:$0xff]
          %v1010 = vld [vmem:[%s546 + $0xa18] sm:$0xff]
          %v1011 = vld [vmem:[%s546 + $0xa20] sm:$0xff]
          %v1012 = vld [vmem:[%s546 + $0xa28] sm:$0xff]
          %v1013 = vld [vmem:[%s546 + $0xa30] sm:$0xff]
          %v1014 = vld [vmem:[%s546 + $0xa38] sm:$0xff]
          %v1015 = vld [vmem:[%s546 + $0xa40] sm:$0xff]
          %v1016 = vld [vmem:[%s546 + $0xa48] sm:$0xff]
          %v1017 = vld [vmem:[%s546 + $0xa50] sm:$0xff]
          %v1018 = vld [vmem:[%s546 + $0xa58] sm:$0xff]
          %v1019 = vld [vmem:[%s546 + $0xa60] sm:$0xff]
          %v1020 = vld [vmem:[%s546 + $0xa68] sm:$0xff]
          %v1021 = vld [vmem:[%s546 + $0xa70] sm:$0xff]
          %v1022 = vld [vmem:[%s546 + $0xa78] sm:$0xff]
          %v1023 = vld [vmem:[%s546 + $0xa80] sm:$0xff]
          %v1024 = vld [vmem:[%s546 + $0xa88] sm:$0xff]
          %v1025 = vld [vmem:[%s546 + $0xa90] sm:$0xff]
          %v1026 = vld [vmem:[%s546 + $0xa98] sm:$0xff]
          %v1027 = vld [vmem:[%s546 + $0xaa0] sm:$0xff]
          %v1028 = vld [vmem:[%s546 + $0xaa8] sm:$0xff]
          %v1029 = vld [vmem:[%s546 + $0xab0] sm:$0xff]
          %v1030 = vld [vmem:[%s546 + $0xab8] sm:$0xff]
          %v1031 = vld [vmem:[%s546 + $0xac0] sm:$0xff]
          %v1032 = vld [vmem:[%s546 + $0xac8] sm:$0xff]
          %v1033 = vld [vmem:[%s546 + $0xad0] sm:$0xff]
          %v1034 = vld [vmem:[%s546 + $0xad8] sm:$0xff]
          %v1035 = vld [vmem:[%s546 + $0xae0] sm:$0xff]
          %v1036 = vld [vmem:[%s546 + $0xae8] sm:$0xff]
          %v1037 = vld [vmem:[%s546 + $0xaf0] sm:$0xff]
          %v1038 = vld [vmem:[%s546 + $0xaf8] sm:$0xff]
          %v1039 = vld [vmem:[%s546 + $0xb00] sm:$0xff]
          %v1040 = vld [vmem:[%s546 + $0xb08] sm:$0xff]
          %v1041 = vld [vmem:[%s546 + $0xb10] sm:$0xff]
          %v1042 = vld [vmem:[%s546 + $0xb18] sm:$0xff]
          %v1043 = vld [vmem:[%s546 + $0xb20] sm:$0xff]
          %v1044 = vld [vmem:[%s546 + $0xb28] sm:$0xff]
          %v1045 = vld [vmem:[%s546 + $0xb30] sm:$0xff]
          %v1046 = vld [vmem:[%s546 + $0xb38] sm:$0xff]
          %v1047 = vld [vmem:[%s546 + $0xb40] sm:$0xff]
          %v1048 = vld [vmem:[%s546 + $0xb48] sm:$0xff]
          %v1049 = vld [vmem:[%s546 + $0xb50] sm:$0xff]
          %v1050 = vld [vmem:[%s546 + $0xb58] sm:$0xff]
          %v1051 = vld [vmem:[%s546 + $0xb60] sm:$0xff]
          %v1052 = vld [vmem:[%s546 + $0xb68] sm:$0xff]
          %v1053 = vld [vmem:[%s546 + $0xb70] sm:$0xff]
          %v1054 = vld [vmem:[%s546 + $0xb78] sm:$0xff]
          %v1055 = vld [vmem:[%s546 + $0xb80] sm:$0xff]
          %v1056 = vld [vmem:[%s546 + $0xb88] sm:$0xff]
          %v1057 = vld [vmem:[%s546 + $0xb90] sm:$0xff]
          %v1058 = vld [vmem:[%s546 + $0xb98] sm:$0xff]
          %v1059 = vld [vmem:[%s546 + $0xba0] sm:$0xff]
          %v1060 = vld [vmem:[%s546 + $0xba8] sm:$0xff]
          %v1061 = vld [vmem:[%s546 + $0xbb0] sm:$0xff]
          %v1062 = vld [vmem:[%s546 + $0xbb8] sm:$0xff]
          %v1063 = vld [vmem:[%s546 + $0xbc0] sm:$0xff]
          %v1064 = vld [vmem:[%s546 + $0xbc8] sm:$0xff]
          %v1065 = vld [vmem:[%s546 + $0xbd0] sm:$0xff]
          %v1066 = vld [vmem:[%s546 + $0xbd8] sm:$0xff]
          %v1067 = vld [vmem:[%s546 + $0xbe0] sm:$0xff]
          %v1068 = vld [vmem:[%s546 + $0xbe8] sm:$0xff]
          %v1069 = vld [vmem:[%s546 + $0xbf0] sm:$0xff]
          %v1070 = vld [vmem:[%s546 + $0xbf8] sm:$0xff]
          %v1071 = vld [vmem:[%s546 + $0xc00] sm:$0xff]
          %v1072 = vld [vmem:[%s546 + $0xc08] sm:$0xff]
          %v1073 = vld [vmem:[%s546 + $0xc10] sm:$0xff]
          %v1074 = vld [vmem:[%s546 + $0xc18] sm:$0xff]
          %v1075 = vld [vmem:[%s546 + $0xc20] sm:$0xff]
          %v1076 = vld [vmem:[%s546 + $0xc28] sm:$0xff]
          %v1077 = vld [vmem:[%s546 + $0xc30] sm:$0xff]
          %v1078 = vld [vmem:[%s546 + $0xc38] sm:$0xff]
          %v1079 = vld [vmem:[%s546 + $0xc40] sm:$0xff]
          %v1080 = vld [vmem:[%s546 + $0xc48] sm:$0xff]
          %v1081 = vld [vmem:[%s546 + $0xc50] sm:$0xff]
          %v1082 = vld [vmem:[%s546 + $0xc58] sm:$0xff]
          %v1083 = vld [vmem:[%s546 + $0xc60] sm:$0xff]
          %v1084 = vld [vmem:[%s546 + $0xc68] sm:$0xff]
          %v1085 = vld [vmem:[%s546 + $0xc70] sm:$0xff]
          %v1086 = vld [vmem:[%s546 + $0xc78] sm:$0xff]
          %v1087 = vld [vmem:[%s546 + $0xc80] sm:$0xff]
          %v1088 = vld [vmem:[%s546 + $0xc88] sm:$0xff]
          %v1089 = vld [vmem:[%s546 + $0xc90] sm:$0xff]
          %v1090 = vld [vmem:[%s546 + $0xc98] sm:$0xff]
          %v1091 = vld [vmem:[%s546 + $0xca0] sm:$0xff]
          %v1092 = vld [vmem:[%s546 + $0xca8] sm:$0xff]
          %v1093 = vld [vmem:[%s546 + $0xcb0] sm:$0xff]
          %v1094 = vld [vmem:[%s546 + $0xcb8] sm:$0xff]
          %v1095 = vld [vmem:[%s546 + $0xcc0] sm:$0xff]
          %v1096 = vld [vmem:[%s546 + $0xcc8] sm:$0xff]
          %v1097 = vld [vmem:[%s546 + $0xcd0] sm:$0xff]
          %v1098 = vld [vmem:[%s546 + $0xcd8] sm:$0xff]
          %v1099 = vld [vmem:[%s546 + $0xce0] sm:$0xff]
          %v1100 = vld [vmem:[%s546 + $0xce8] sm:$0xff]
          %v1101 = vld [vmem:[%s546 + $0xcf0] sm:$0xff]
          %v1102 = vld [vmem:[%s546 + $0xcf8] sm:$0xff]
          %v1103 = vld [vmem:[%s546 + $0xd00] sm:$0xff]
          %v1104 = vld [vmem:[%s546 + $0xd08] sm:$0xff]
          %v1105 = vld [vmem:[%s546 + $0xd10] sm:$0xff]
          %v1106 = vld [vmem:[%s546 + $0xd18] sm:$0xff]
          %v1107 = vld [vmem:[%s546 + $0xd20] sm:$0xff]
          %v1108 = vld [vmem:[%s546 + $0xd28] sm:$0xff]
          %v1109 = vld [vmem:[%s546 + $0xd30] sm:$0xff]
          %v1110 = vld [vmem:[%s546 + $0xd38] sm:$0xff]
          %v1111 = vld [vmem:[%s546 + $0xd40] sm:$0xff]
          %v1112 = vld [vmem:[%s546 + $0xd48] sm:$0xff]
          %v1113 = vld [vmem:[%s546 + $0xd50] sm:$0xff]
          %v1114 = vld [vmem:[%s546 + $0xd58] sm:$0xff]
          %v1115 = vld [vmem:[%s546 + $0xd60] sm:$0xff]
          %v1116 = vld [vmem:[%s546 + $0xd68] sm:$0xff]
          %v1117 = vld [vmem:[%s546 + $0xd70] sm:$0xff]
          %v1118 = vld [vmem:[%s546 + $0xd78] sm:$0xff]
          %v1119 = vld [vmem:[%s546 + $0xd80] sm:$0xff]
          %v1120 = vld [vmem:[%s546 + $0xd88] sm:$0xff]
          %v1121 = vld [vmem:[%s546 + $0xd90] sm:$0xff]
          %v1122 = vld [vmem:[%s546 + $0xd98] sm:$0xff]
          %v1123 = vld [vmem:[%s546 + $0xda0] sm:$0xff]
          %v1124 = vld [vmem:[%s546 + $0xda8] sm:$0xff]
          %v1125 = vld [vmem:[%s546 + $0xdb0] sm:$0xff]
          %v1126 = vld [vmem:[%s546 + $0xdb8] sm:$0xff]
          %v1127 = vld [vmem:[%s546 + $0xdc0] sm:$0xff]
          %v1128 = vld [vmem:[%s546 + $0xdc8] sm:$0xff]
          %v1129 = vld [vmem:[%s546 + $0xdd0] sm:$0xff]
          %v1130 = vld [vmem:[%s546 + $0xdd8] sm:$0xff]
          %v1131 = vld [vmem:[%s546 + $0xde0] sm:$0xff]
          %v1132 = vld [vmem:[%s546 + $0xde8] sm:$0xff]
          %v1133 = vld [vmem:[%s546 + $0xdf0] sm:$0xff]
          %v1134 = vld [vmem:[%s546 + $0xdf8] sm:$0xff]
          %v1135 = vld [vmem:[%s546 + $0xe00] sm:$0xff]
          %v1136 = vld [vmem:[%s546 + $0xe08] sm:$0xff]
          %v1137 = vld [vmem:[%s546 + $0xe10] sm:$0xff]
          %v1138 = vld [vmem:[%s546 + $0xe18] sm:$0xff]
          %v1139 = vld [vmem:[%s546 + $0xe20] sm:$0xff]
          %v1140 = vld [vmem:[%s546 + $0xe28] sm:$0xff]
          %v1141 = vld [vmem:[%s546 + $0xe30] sm:$0xff]
          %v1142 = vld [vmem:[%s546 + $0xe38] sm:$0xff]
          %v1143 = vld [vmem:[%s546 + $0xe40] sm:$0xff]
          %v1144 = vld [vmem:[%s546 + $0xe48] sm:$0xff]
          %v1145 = vld [vmem:[%s546 + $0xe50] sm:$0xff]
          %v1146 = vld [vmem:[%s546 + $0xe58] sm:$0xff]
          %v1147 = vld [vmem:[%s546 + $0xe60] sm:$0xff]
          %v1148 = vld [vmem:[%s546 + $0xe68] sm:$0xff]
          %v1149 = vld [vmem:[%s546 + $0xe70] sm:$0xff]
          %v1150 = vld [vmem:[%s546 + $0xe78] sm:$0xff]
          %v1151 = vld [vmem:[%s546 + $0xe80] sm:$0xff]
          %v1152 = vld [vmem:[%s546 + $0xe88] sm:$0xff]
          %v1153 = vld [vmem:[%s546 + $0xe90] sm:$0xff]
          %v1154 = vld [vmem:[%s546 + $0xe98] sm:$0xff]
          %v1155 = vld [vmem:[%s546 + $0xea0] sm:$0xff]
          %v1156 = vld [vmem:[%s546 + $0xea8] sm:$0xff]
          %v1157 = vld [vmem:[%s546 + $0xeb0] sm:$0xff]
          %v1158 = vld [vmem:[%s546 + $0xeb8] sm:$0xff]
          %v1159 = vld [vmem:[%s546 + $0xec0] sm:$0xff]
          %v1160 = vld [vmem:[%s546 + $0xec8] sm:$0xff]
          %v1161 = vld [vmem:[%s546 + $0xed0] sm:$0xff]
          %v1162 = vld [vmem:[%s546 + $0xed8] sm:$0xff]
          %v1163 = vld [vmem:[%s546 + $0xee0] sm:$0xff]
          %v1164 = vld [vmem:[%s546 + $0xee8] sm:$0xff]
          %v1165 = vld [vmem:[%s546 + $0xef0] sm:$0xff]
          %v1166 = vld [vmem:[%s546 + $0xef8] sm:$0xff]
          %v1167 = vld [vmem:[%s546 + $0xf00] sm:$0xff]
          %v1168 = vld [vmem:[%s546 + $0xf08] sm:$0xff]
          %v1169 = vld [vmem:[%s546 + $0xf10] sm:$0xff]
          %v1170 = vld [vmem:[%s546 + $0xf18] sm:$0xff]
          %v1171 = vld [vmem:[%s546 + $0xf20] sm:$0xff]
          %v1172 = vld [vmem:[%s546 + $0xf28] sm:$0xff]
          %v1173 = vld [vmem:[%s546 + $0xf30] sm:$0xff]
          %v1174 = vld [vmem:[%s546 + $0xf38] sm:$0xff]
          %v1175 = vld [vmem:[%s546 + $0xf40] sm:$0xff]
          %v1176 = vld [vmem:[%s546 + $0xf48] sm:$0xff]
          %v1177 = vld [vmem:[%s546 + $0xf50] sm:$0xff]
          %v1178 = vld [vmem:[%s546 + $0xf58] sm:$0xff]
          %v1179 = vld [vmem:[%s546 + $0xf60] sm:$0xff]
          %v1180 = vld [vmem:[%s546 + $0xf68] sm:$0xff]
          %v1181 = vld [vmem:[%s546 + $0xf70] sm:$0xff]
          %v1182 = vld [vmem:[%s546 + $0xf78] sm:$0xff]
          %v1183 = vld [vmem:[%s546 + $0xf80] sm:$0xff]
          %v1184 = vld [vmem:[%s546 + $0xf88] sm:$0xff]
          %v1185 = vld [vmem:[%s546 + $0xf90] sm:$0xff]
          %v1186 = vld [vmem:[%s546 + $0xf98] sm:$0xff]
          %v1187 = vld [vmem:[%s546 + $0xfa0] sm:$0xff]
          %v1188 = vld [vmem:[%s546 + $0xfa8] sm:$0xff]
          %v1189 = vld [vmem:[%s546 + $0xfb0] sm:$0xff]
          %v1190 = vld [vmem:[%s546 + $0xfb8] sm:$0xff]
          %v1191 = vld [vmem:[%s546 + $0xfc0] sm:$0xff]
          %v1192 = vld [vmem:[%s546 + $0xfc8] sm:$0xff]
          %v1193 = vld [vmem:[%s546 + $0xfd0] sm:$0xff]
          %v1194 = vld [vmem:[%s546 + $0xfd8] sm:$0xff]
          %v1195 = vld [vmem:[%s546 + $0xfe0] sm:$0xff]
          %v1196 = vld [vmem:[%s546 + $0xfe8] sm:$0xff]
          %v1197 = vld [vmem:[%s546 + $0xff0] sm:$0xff]
          %v1198 = vld [vmem:[%s546 + $0xff8] sm:$0xff]
          %v1215 = vunpack.c.l.b16 %v671
          %v1216 = vunpack.c.h.b16 %v671
          %v1217 = vunpack.c.l.b16 %v672
          %v1218 = vunpack.c.h.b16 %v672
          %v1219 = vunpack.c.l.b16 %v673
          %v1220 = vunpack.c.h.b16 %v673
          %v1221 = vunpack.c.l.b16 %v674
          %v1222 = vunpack.c.h.b16 %v674
          %v1223 = vunpack.c.l.b16 %v675
          %v1224 = vunpack.c.h.b16 %v675
          %v1225 = vunpack.c.l.b16 %v676
          %v1226 = vunpack.c.h.b16 %v676
          %v1227 = vunpack.c.l.b16 %v677
          %v1228 = vunpack.c.h.b16 %v677
          %v1229 = vunpack.c.l.b16 %v678
          %v1230 = vunpack.c.h.b16 %v678
          %v1231 = vunpack.c.l.b16 %v679
          %v1232 = vunpack.c.h.b16 %v679
          %v1233 = vunpack.c.l.b16 %v680
          %v1234 = vunpack.c.h.b16 %v680
          %v1235 = vunpack.c.l.b16 %v681
          %v1236 = vunpack.c.h.b16 %v681
          %v1237 = vunpack.c.l.b16 %v682
          %v1238 = vunpack.c.h.b16 %v682
          %v1239 = vunpack.c.l.b16 %v683
          %v1240 = vunpack.c.h.b16 %v683
          %v1241 = vunpack.c.l.b16 %v684
          %v1242 = vunpack.c.h.b16 %v684
          %v1243 = vunpack.c.l.b16 %v685
          %v1244 = vunpack.c.h.b16 %v685
          %v1245 = vunpack.c.l.b16 %v686
          %v1246 = vunpack.c.h.b16 %v686
          %v1247 = vpack.c.b16 %v1215, %v1215
          %v1248 = vpack.c.b16 %v1216, %v1216
          %v1249 = vpack.c.b16 %v1217, %v1217
          %v1250 = vpack.c.b16 %v1218, %v1218
          %v1251 = vpack.c.b16 %v1219, %v1219
          %v1252 = vpack.c.b16 %v1220, %v1220
          %v1253 = vpack.c.b16 %v1221, %v1221
          %v1254 = vpack.c.b16 %v1222, %v1222
          %v1255 = vpack.c.b16 %v1223, %v1223
          %v1256 = vpack.c.b16 %v1224, %v1224
          %v1257 = vpack.c.b16 %v1225, %v1225
          %v1258 = vpack.c.b16 %v1226, %v1226
          %v1259 = vpack.c.b16 %v1227, %v1227
          %v1260 = vpack.c.b16 %v1228, %v1228
          %v1261 = vpack.c.b16 %v1229, %v1229
          %v1262 = vpack.c.b16 %v1230, %v1230
          %v1263 = vpack.c.b16 %v1231, %v1231
          %v1264 = vpack.c.b16 %v1232, %v1232
          %v1265 = vpack.c.b16 %v1233, %v1233
          %v1266 = vpack.c.b16 %v1234, %v1234
          %v1267 = vpack.c.b16 %v1235, %v1235
          %v1268 = vpack.c.b16 %v1236, %v1236
          %v1269 = vpack.c.b16 %v1237, %v1237
          %v1270 = vpack.c.b16 %v1238, %v1238
          %v1271 = vpack.c.b16 %v1239, %v1239
          %v1272 = vpack.c.b16 %v1240, %v1240
          %v1273 = vpack.c.b16 %v1241, %v1241
          %v1274 = vpack.c.b16 %v1242, %v1242
          %v1275 = vpack.c.b16 %v1243, %v1243
          %v1276 = vpack.c.b16 %v1244, %v1244
          %v1277 = vpack.c.b16 %v1245, %v1245
          %v1278 = vpack.c.b16 %v1246, %v1246
          %v1823 = vunpack.c.l.b16 %v687
          %v1824 = vunpack.c.h.b16 %v687
          %v1825 = vunpack.c.l.b16 %v688
          %v1826 = vunpack.c.h.b16 %v688
          %v1827 = vunpack.c.l.b16 %v689
          %v1828 = vunpack.c.h.b16 %v689
          %v1829 = vunpack.c.l.b16 %v690
          %v1830 = vunpack.c.h.b16 %v690
          %v1831 = vunpack.c.l.b16 %v691
          %v1832 = vunpack.c.h.b16 %v691
          %v1833 = vunpack.c.l.b16 %v692
          %v1834 = vunpack.c.h.b16 %v692
          %v1835 = vunpack.c.l.b16 %v693
          %v1836 = vunpack.c.h.b16 %v693
          %v1837 = vunpack.c.l.b16 %v694
          %v1838 = vunpack.c.h.b16 %v694
          %v1839 = vunpack.c.l.b16 %v695
          %v1840 = vunpack.c.h.b16 %v695
          %v1841 = vunpack.c.l.b16 %v696
          %v1842 = vunpack.c.h.b16 %v696
          %v1843 = vunpack.c.l.b16 %v697
          %v1844 = vunpack.c.h.b16 %v697
          %v1845 = vunpack.c.l.b16 %v698
          %v1846 = vunpack.c.h.b16 %v698
          %v1847 = vunpack.c.l.b16 %v699
          %v1848 = vunpack.c.h.b16 %v699
          %v1849 = vunpack.c.l.b16 %v700
          %v1850 = vunpack.c.h.b16 %v700
          %v1851 = vunpack.c.l.b16 %v701
          %v1852 = vunpack.c.h.b16 %v701
          %v1853 = vunpack.c.l.b16 %v702
          %v1854 = vunpack.c.h.b16 %v702
          %v1855 = vunpack.c.l.b16 %v703
          %v1856 = vunpack.c.h.b16 %v703
          %v1857 = vunpack.c.l.b16 %v704
          %v1858 = vunpack.c.h.b16 %v704
          %v1859 = vunpack.c.l.b16 %v705
          %v1860 = vunpack.c.h.b16 %v705
          %v1861 = vunpack.c.l.b16 %v706
          %v1862 = vunpack.c.h.b16 %v706
          %v1863 = vunpack.c.l.b16 %v707
          %v1864 = vunpack.c.h.b16 %v707
          %v1865 = vunpack.c.l.b16 %v708
          %v1866 = vunpack.c.h.b16 %v708
          %v1867 = vunpack.c.l.b16 %v709
          %v1868 = vunpack.c.h.b16 %v709
          %v1869 = vunpack.c.l.b16 %v710
          %v1870 = vunpack.c.h.b16 %v710
          %v1871 = vunpack.c.l.b16 %v711
          %v1872 = vunpack.c.h.b16 %v711
          %v1873 = vunpack.c.l.b16 %v712
          %v1874 = vunpack.c.h.b16 %v712
          %v1875 = vunpack.c.l.b16 %v713
          %v1876 = vunpack.c.h.b16 %v713
          %v1877 = vunpack.c.l.b16 %v714
          %v1878 = vunpack.c.h.b16 %v714
          %v1879 = vunpack.c.l.b16 %v715
          %v1880 = vunpack.c.h.b16 %v715
          %v1881 = vunpack.c.l.b16 %v716
          %v1882 = vunpack.c.h.b16 %v716
          %v1883 = vunpack.c.l.b16 %v717
          %v1884 = vunpack.c.h.b16 %v717
          %v1885 = vunpack.c.l.b16 %v718
          %v1886 = vunpack.c.h.b16 %v718
          %v1887 = vunpack.c.l.b16 %v719
          %v1888 = vunpack.c.h.b16 %v719
          %v1889 = vunpack.c.l.b16 %v720
          %v1890 = vunpack.c.h.b16 %v720
          %v1891 = vunpack.c.l.b16 %v721
          %v1892 = vunpack.c.h.b16 %v721
          %v1893 = vunpack.c.l.b16 %v722
          %v1894 = vunpack.c.h.b16 %v722
          %v1895 = vunpack.c.l.b16 %v723
          %v1896 = vunpack.c.h.b16 %v723
          %v1897 = vunpack.c.l.b16 %v724
          %v1898 = vunpack.c.h.b16 %v724
          %v1899 = vunpack.c.l.b16 %v725
          %v1900 = vunpack.c.h.b16 %v725
          %v1901 = vunpack.c.l.b16 %v726
          %v1902 = vunpack.c.h.b16 %v726
          %v1903 = vunpack.c.l.b16 %v727
          %v1904 = vunpack.c.h.b16 %v727
          %v1905 = vunpack.c.l.b16 %v728
          %v1906 = vunpack.c.h.b16 %v728
          %v1907 = vunpack.c.l.b16 %v729
          %v1908 = vunpack.c.h.b16 %v729
          %v1909 = vunpack.c.l.b16 %v730
          %v1910 = vunpack.c.h.b16 %v730
          %v1911 = vunpack.c.l.b16 %v731
          %v1912 = vunpack.c.h.b16 %v731
          %v1913 = vunpack.c.l.b16 %v732
          %v1914 = vunpack.c.h.b16 %v732
          %v1915 = vunpack.c.l.b16 %v733
          %v1916 = vunpack.c.h.b16 %v733
          %v1917 = vunpack.c.l.b16 %v734
          %v1918 = vunpack.c.h.b16 %v734
          %v1919 = vunpack.c.l.b16 %v735
          %v1920 = vunpack.c.h.b16 %v735
          %v1921 = vunpack.c.l.b16 %v736
          %v1922 = vunpack.c.h.b16 %v736
          %v1923 = vunpack.c.l.b16 %v737
          %v1924 = vunpack.c.h.b16 %v737
          %v1925 = vunpack.c.l.b16 %v738
          %v1926 = vunpack.c.h.b16 %v738
          %v1927 = vunpack.c.l.b16 %v739
          %v1928 = vunpack.c.h.b16 %v739
          %v1929 = vunpack.c.l.b16 %v740
          %v1930 = vunpack.c.h.b16 %v740
          %v1931 = vunpack.c.l.b16 %v741
          %v1932 = vunpack.c.h.b16 %v741
          %v1933 = vunpack.c.l.b16 %v742
          %v1934 = vunpack.c.h.b16 %v742
          %v1935 = vunpack.c.l.b16 %v743
          %v1936 = vunpack.c.h.b16 %v743
          %v1937 = vunpack.c.l.b16 %v744
          %v1938 = vunpack.c.h.b16 %v744
          %v1939 = vunpack.c.l.b16 %v745
          %v1940 = vunpack.c.h.b16 %v745
          %v1941 = vunpack.c.l.b16 %v746
          %v1942 = vunpack.c.h.b16 %v746
          %v1943 = vunpack.c.l.b16 %v747
          %v1944 = vunpack.c.h.b16 %v747
          %v1945 = vunpack.c.l.b16 %v748
          %v1946 = vunpack.c.h.b16 %v748
          %v1947 = vunpack.c.l.b16 %v749
          %v1948 = vunpack.c.h.b16 %v749
          %v1949 = vunpack.c.l.b16 %v750
          %v1950 = vunpack.c.h.b16 %v750
          %v1951 = vunpack.c.l.b16 %v751
          %v1952 = vunpack.c.h.b16 %v751
          %v1953 = vunpack.c.l.b16 %v752
          %v1954 = vunpack.c.h.b16 %v752
          %v1955 = vunpack.c.l.b16 %v753
          %v1956 = vunpack.c.h.b16 %v753
          %v1957 = vunpack.c.l.b16 %v754
          %v1958 = vunpack.c.h.b16 %v754
          %v1959 = vunpack.c.l.b16 %v755
          %v1960 = vunpack.c.h.b16 %v755
          %v1961 = vunpack.c.l.b16 %v756
          %v1962 = vunpack.c.h.b16 %v756
          %v1963 = vunpack.c.l.b16 %v757
          %v1964 = vunpack.c.h.b16 %v757
          %v1965 = vunpack.c.l.b16 %v758
          %v1966 = vunpack.c.h.b16 %v758
          %v1967 = vunpack.c.l.b16 %v759
          %v1968 = vunpack.c.h.b16 %v759
          %v1969 = vunpack.c.l.b16 %v760
          %v1970 = vunpack.c.h.b16 %v760
          %v1971 = vunpack.c.l.b16 %v761
          %v1972 = vunpack.c.h.b16 %v761
          %v1973 = vunpack.c.l.b16 %v762
          %v1974 = vunpack.c.h.b16 %v762
          %v1975 = vunpack.c.l.b16 %v763
          %v1976 = vunpack.c.h.b16 %v763
          %v1977 = vunpack.c.l.b16 %v764
          %v1978 = vunpack.c.h.b16 %v764
          %v1979 = vunpack.c.l.b16 %v765
          %v1980 = vunpack.c.h.b16 %v765
          %v1981 = vunpack.c.l.b16 %v766
          %v1982 = vunpack.c.h.b16 %v766
          %v1983 = vunpack.c.l.b16 %v767
          %v1984 = vunpack.c.h.b16 %v767
          %v1985 = vunpack.c.l.b16 %v768
          %v1986 = vunpack.c.h.b16 %v768
          %v1987 = vunpack.c.l.b16 %v769
          %v1988 = vunpack.c.h.b16 %v769
          %v1989 = vunpack.c.l.b16 %v770
          %v1990 = vunpack.c.h.b16 %v770
          %v1991 = vunpack.c.l.b16 %v771
          %v1992 = vunpack.c.h.b16 %v771
          %v1993 = vunpack.c.l.b16 %v772
          %v1994 = vunpack.c.h.b16 %v772
          %v1995 = vunpack.c.l.b16 %v773
          %v1996 = vunpack.c.h.b16 %v773
          %v1997 = vunpack.c.l.b16 %v774
          %v1998 = vunpack.c.h.b16 %v774
          %v1999 = vunpack.c.l.b16 %v775
          %v2000 = vunpack.c.h.b16 %v775
          %v2001 = vunpack.c.l.b16 %v776
          %v2002 = vunpack.c.h.b16 %v776
          %v2003 = vunpack.c.l.b16 %v777
          %v2004 = vunpack.c.h.b16 %v777
          %v2005 = vunpack.c.l.b16 %v778
          %v2006 = vunpack.c.h.b16 %v778
          %v2007 = vunpack.c.l.b16 %v779
          %v2008 = vunpack.c.h.b16 %v779
          %v2009 = vunpack.c.l.b16 %v780
          %v2010 = vunpack.c.h.b16 %v780
          %v2011 = vunpack.c.l.b16 %v781
          %v2012 = vunpack.c.h.b16 %v781
          %v2013 = vunpack.c.l.b16 %v782
          %v2014 = vunpack.c.h.b16 %v782
          %v2015 = vunpack.c.l.b16 %v783
          %v2016 = vunpack.c.h.b16 %v783
          %v2017 = vunpack.c.l.b16 %v784
          %v2018 = vunpack.c.h.b16 %v784
          %v2019 = vunpack.c.l.b16 %v785
          %v2020 = vunpack.c.h.b16 %v785
          %v2021 = vunpack.c.l.b16 %v786
          %v2022 = vunpack.c.h.b16 %v786
          %v2023 = vunpack.c.l.b16 %v787
          %v2024 = vunpack.c.h.b16 %v787
          %v2025 = vunpack.c.l.b16 %v788
          %v2026 = vunpack.c.h.b16 %v788
          %v2027 = vunpack.c.l.b16 %v789
          %v2028 = vunpack.c.h.b16 %v789
          %v2029 = vunpack.c.l.b16 %v790
          %v2030 = vunpack.c.h.b16 %v790
          %v2031 = vunpack.c.l.b16 %v791
          %v2032 = vunpack.c.h.b16 %v791
          %v2033 = vunpack.c.l.b16 %v792
          %v2034 = vunpack.c.h.b16 %v792
          %v2035 = vunpack.c.l.b16 %v793
          %v2036 = vunpack.c.h.b16 %v793
          %v2037 = vunpack.c.l.b16 %v794
          %v2038 = vunpack.c.h.b16 %v794
          %v2039 = vunpack.c.l.b16 %v795
          %v2040 = vunpack.c.h.b16 %v795
          %v2041 = vunpack.c.l.b16 %v796
          %v2042 = vunpack.c.h.b16 %v796
          %v2043 = vunpack.c.l.b16 %v797
          %v2044 = vunpack.c.h.b16 %v797
          %v2045 = vunpack.c.l.b16 %v798
          %v2046 = vunpack.c.h.b16 %v798
          %v2047 = vunpack.c.l.b16 %v799
          %v2048 = vunpack.c.h.b16 %v799
          %v2049 = vunpack.c.l.b16 %v800
          %v2050 = vunpack.c.h.b16 %v800
          %v2051 = vunpack.c.l.b16 %v801
          %v2052 = vunpack.c.h.b16 %v801
          %v2053 = vunpack.c.l.b16 %v802
          %v2054 = vunpack.c.h.b16 %v802
          %v2055 = vunpack.c.l.b16 %v803
          %v2056 = vunpack.c.h.b16 %v803
          %v2057 = vunpack.c.l.b16 %v804
          %v2058 = vunpack.c.h.b16 %v804
          %v2059 = vunpack.c.l.b16 %v805
          %v2060 = vunpack.c.h.b16 %v805
          %v2061 = vunpack.c.l.b16 %v806
          %v2062 = vunpack.c.h.b16 %v806
          %v2063 = vunpack.c.l.b16 %v807
          %v2064 = vunpack.c.h.b16 %v807
          %v2065 = vunpack.c.l.b16 %v808
          %v2066 = vunpack.c.h.b16 %v808
          %v2067 = vunpack.c.l.b16 %v809
          %v2068 = vunpack.c.h.b16 %v809
          %v2069 = vunpack.c.l.b16 %v810
          %v2070 = vunpack.c.h.b16 %v810
          %v2071 = vunpack.c.l.b16 %v811
          %v2072 = vunpack.c.h.b16 %v811
          %v2073 = vunpack.c.l.b16 %v812
          %v2074 = vunpack.c.h.b16 %v812
          %v2075 = vunpack.c.l.b16 %v813
          %v2076 = vunpack.c.h.b16 %v813
          %v2077 = vunpack.c.l.b16 %v814
          %v2078 = vunpack.c.h.b16 %v814
          %v2079 = vunpack.c.l.b16 %v815
          %v2080 = vunpack.c.h.b16 %v815
          %v2081 = vunpack.c.l.b16 %v816
          %v2082 = vunpack.c.h.b16 %v816
          %v2083 = vunpack.c.l.b16 %v817
          %v2084 = vunpack.c.h.b16 %v817
          %v2085 = vunpack.c.l.b16 %v818
          %v2086 = vunpack.c.h.b16 %v818
          %v2087 = vunpack.c.l.b16 %v819
          %v2088 = vunpack.c.h.b16 %v819
          %v2089 = vunpack.c.l.b16 %v820
          %v2090 = vunpack.c.h.b16 %v820
          %v2091 = vunpack.c.l.b16 %v821
          %v2092 = vunpack.c.h.b16 %v821
          %v2093 = vunpack.c.l.b16 %v822
          %v2094 = vunpack.c.h.b16 %v822
          %v2095 = vunpack.c.l.b16 %v823
          %v2096 = vunpack.c.h.b16 %v823
          %v2097 = vunpack.c.l.b16 %v824
          %v2098 = vunpack.c.h.b16 %v824
          %v2099 = vunpack.c.l.b16 %v825
          %v2100 = vunpack.c.h.b16 %v825
          %v2101 = vunpack.c.l.b16 %v826
          %v2102 = vunpack.c.h.b16 %v826
          %v2103 = vunpack.c.l.b16 %v827
          %v2104 = vunpack.c.h.b16 %v827
          %v2105 = vunpack.c.l.b16 %v828
          %v2106 = vunpack.c.h.b16 %v828
          %v2107 = vunpack.c.l.b16 %v829
          %v2108 = vunpack.c.h.b16 %v829
          %v2109 = vunpack.c.l.b16 %v830
          %v2110 = vunpack.c.h.b16 %v830
          %v2111 = vunpack.c.l.b16 %v831
          %v2112 = vunpack.c.h.b16 %v831
          %v2113 = vunpack.c.l.b16 %v832
          %v2114 = vunpack.c.h.b16 %v832
          %v2115 = vunpack.c.l.b16 %v833
          %v2116 = vunpack.c.h.b16 %v833
          %v2117 = vunpack.c.l.b16 %v834
          %v2118 = vunpack.c.h.b16 %v834
          %v2119 = vunpack.c.l.b16 %v835
          %v2120 = vunpack.c.h.b16 %v835
          %v2121 = vunpack.c.l.b16 %v836
          %v2122 = vunpack.c.h.b16 %v836
          %v2123 = vunpack.c.l.b16 %v837
          %v2124 = vunpack.c.h.b16 %v837
          %v2125 = vunpack.c.l.b16 %v838
          %v2126 = vunpack.c.h.b16 %v838
          %v2127 = vunpack.c.l.b16 %v839
          %v2128 = vunpack.c.h.b16 %v839
          %v2129 = vunpack.c.l.b16 %v840
          %v2130 = vunpack.c.h.b16 %v840
          %v2131 = vunpack.c.l.b16 %v841
          %v2132 = vunpack.c.h.b16 %v841
          %v2133 = vunpack.c.l.b16 %v842
          %v2134 = vunpack.c.h.b16 %v842
          %v2135 = vunpack.c.l.b16 %v843
          %v2136 = vunpack.c.h.b16 %v843
          %v2137 = vunpack.c.l.b16 %v844
          %v2138 = vunpack.c.h.b16 %v844
          %v2139 = vunpack.c.l.b16 %v845
          %v2140 = vunpack.c.h.b16 %v845
          %v2141 = vunpack.c.l.b16 %v846
          %v2142 = vunpack.c.h.b16 %v846
          %v2143 = vunpack.c.l.b16 %v847
          %v2144 = vunpack.c.h.b16 %v847
          %v2145 = vunpack.c.l.b16 %v848
          %v2146 = vunpack.c.h.b16 %v848
          %v2147 = vunpack.c.l.b16 %v849
          %v2148 = vunpack.c.h.b16 %v849
          %v2149 = vunpack.c.l.b16 %v850
          %v2150 = vunpack.c.h.b16 %v850
          %v2151 = vunpack.c.l.b16 %v851
          %v2152 = vunpack.c.h.b16 %v851
          %v2153 = vunpack.c.l.b16 %v852
          %v2154 = vunpack.c.h.b16 %v852
          %v2155 = vunpack.c.l.b16 %v853
          %v2156 = vunpack.c.h.b16 %v853
          %v2157 = vunpack.c.l.b16 %v854
          %v2158 = vunpack.c.h.b16 %v854
          %v2159 = vunpack.c.l.b16 %v855
          %v2160 = vunpack.c.h.b16 %v855
          %v2161 = vunpack.c.l.b16 %v856
          %v2162 = vunpack.c.h.b16 %v856
          %v2163 = vunpack.c.l.b16 %v857
          %v2164 = vunpack.c.h.b16 %v857
          %v2165 = vunpack.c.l.b16 %v858
          %v2166 = vunpack.c.h.b16 %v858
          %v2167 = vunpack.c.l.b16 %v859
          %v2168 = vunpack.c.h.b16 %v859
          %v2169 = vunpack.c.l.b16 %v860
          %v2170 = vunpack.c.h.b16 %v860
          %v2171 = vunpack.c.l.b16 %v861
          %v2172 = vunpack.c.h.b16 %v861
          %v2173 = vunpack.c.l.b16 %v862
          %v2174 = vunpack.c.h.b16 %v862
          %v2175 = vunpack.c.l.b16 %v863
          %v2176 = vunpack.c.h.b16 %v863
          %v2177 = vunpack.c.l.b16 %v864
          %v2178 = vunpack.c.h.b16 %v864
          %v2179 = vunpack.c.l.b16 %v865
          %v2180 = vunpack.c.h.b16 %v865
          %v2181 = vunpack.c.l.b16 %v866
          %v2182 = vunpack.c.h.b16 %v866
          %v2183 = vunpack.c.l.b16 %v867
          %v2184 = vunpack.c.h.b16 %v867
          %v2185 = vunpack.c.l.b16 %v868
          %v2186 = vunpack.c.h.b16 %v868
          %v2187 = vunpack.c.l.b16 %v869
          %v2188 = vunpack.c.h.b16 %v869
          %v2189 = vunpack.c.l.b16 %v870
          %v2190 = vunpack.c.h.b16 %v870
          %v2191 = vunpack.c.l.b16 %v871
          %v2192 = vunpack.c.h.b16 %v871
          %v2193 = vunpack.c.l.b16 %v872
          %v2194 = vunpack.c.h.b16 %v872
          %v2195 = vunpack.c.l.b16 %v873
          %v2196 = vunpack.c.h.b16 %v873
          %v2197 = vunpack.c.l.b16 %v874
          %v2198 = vunpack.c.h.b16 %v874
          %v2199 = vunpack.c.l.b16 %v875
          %v2200 = vunpack.c.h.b16 %v875
          %v2201 = vunpack.c.l.b16 %v876
          %v2202 = vunpack.c.h.b16 %v876
          %v2203 = vunpack.c.l.b16 %v877
          %v2204 = vunpack.c.h.b16 %v877
          %v2205 = vunpack.c.l.b16 %v878
          %v2206 = vunpack.c.h.b16 %v878
          %v2207 = vunpack.c.l.b16 %v879
          %v2208 = vunpack.c.h.b16 %v879
          %v2209 = vunpack.c.l.b16 %v880
          %v2210 = vunpack.c.h.b16 %v880
          %v2211 = vunpack.c.l.b16 %v881
          %v2212 = vunpack.c.h.b16 %v881
          %v2213 = vunpack.c.l.b16 %v882
          %v2214 = vunpack.c.h.b16 %v882
          %v2215 = vunpack.c.l.b16 %v883
          %v2216 = vunpack.c.h.b16 %v883
          %v2217 = vunpack.c.l.b16 %v884
          %v2218 = vunpack.c.h.b16 %v884
          %v2219 = vunpack.c.l.b16 %v885
          %v2220 = vunpack.c.h.b16 %v885
          %v2221 = vunpack.c.l.b16 %v886
          %v2222 = vunpack.c.h.b16 %v886
          %v2223 = vunpack.c.l.b16 %v887
          %v2224 = vunpack.c.h.b16 %v887
          %v2225 = vunpack.c.l.b16 %v888
          %v2226 = vunpack.c.h.b16 %v888
          %v2227 = vunpack.c.l.b16 %v889
          %v2228 = vunpack.c.h.b16 %v889
          %v2229 = vunpack.c.l.b16 %v890
          %v2230 = vunpack.c.h.b16 %v890
          %v2231 = vunpack.c.l.b16 %v891
          %v2232 = vunpack.c.h.b16 %v891
          %v2233 = vunpack.c.l.b16 %v892
          %v2234 = vunpack.c.h.b16 %v892
          %v2235 = vunpack.c.l.b16 %v893
          %v2236 = vunpack.c.h.b16 %v893
          %v2237 = vunpack.c.l.b16 %v894
          %v2238 = vunpack.c.h.b16 %v894
          %v2239 = vunpack.c.l.b16 %v895
          %v2240 = vunpack.c.h.b16 %v895
          %v2241 = vunpack.c.l.b16 %v896
          %v2242 = vunpack.c.h.b16 %v896
          %v2243 = vunpack.c.l.b16 %v897
          %v2244 = vunpack.c.h.b16 %v897
          %v2245 = vunpack.c.l.b16 %v898
          %v2246 = vunpack.c.h.b16 %v898
          %v2247 = vunpack.c.l.b16 %v899
          %v2248 = vunpack.c.h.b16 %v899
          %v2249 = vunpack.c.l.b16 %v900
          %v2250 = vunpack.c.h.b16 %v900
          %v2251 = vunpack.c.l.b16 %v901
          %v2252 = vunpack.c.h.b16 %v901
          %v2253 = vunpack.c.l.b16 %v902
          %v2254 = vunpack.c.h.b16 %v902
          %v2255 = vunpack.c.l.b16 %v903
          %v2256 = vunpack.c.h.b16 %v903
          %v2257 = vunpack.c.l.b16 %v904
          %v2258 = vunpack.c.h.b16 %v904
          %v2259 = vunpack.c.l.b16 %v905
          %v2260 = vunpack.c.h.b16 %v905
          %v2261 = vunpack.c.l.b16 %v906
          %v2262 = vunpack.c.h.b16 %v906
          %v2263 = vunpack.c.l.b16 %v907
          %v2264 = vunpack.c.h.b16 %v907
          %v2265 = vunpack.c.l.b16 %v908
          %v2266 = vunpack.c.h.b16 %v908
          %v2267 = vunpack.c.l.b16 %v909
          %v2268 = vunpack.c.h.b16 %v909
          %v2269 = vunpack.c.l.b16 %v910
          %v2270 = vunpack.c.h.b16 %v910
          %v2271 = vunpack.c.l.b16 %v911
          %v2272 = vunpack.c.h.b16 %v911
          %v2273 = vunpack.c.l.b16 %v912
          %v2274 = vunpack.c.h.b16 %v912
          %v2275 = vunpack.c.l.b16 %v913
          %v2276 = vunpack.c.h.b16 %v913
          %v2277 = vunpack.c.l.b16 %v914
          %v2278 = vunpack.c.h.b16 %v914
          %v2279 = vunpack.c.l.b16 %v915
          %v2280 = vunpack.c.h.b16 %v915
          %v2281 = vunpack.c.l.b16 %v916
          %v2282 = vunpack.c.h.b16 %v916
          %v2283 = vunpack.c.l.b16 %v917
          %v2284 = vunpack.c.h.b16 %v917
          %v2285 = vunpack.c.l.b16 %v918
          %v2286 = vunpack.c.h.b16 %v918
          %v2287 = vunpack.c.l.b16 %v919
          %v2288 = vunpack.c.h.b16 %v919
          %v2289 = vunpack.c.l.b16 %v920
          %v2290 = vunpack.c.h.b16 %v920
          %v2291 = vunpack.c.l.b16 %v921
          %v2292 = vunpack.c.h.b16 %v921
          %v2293 = vunpack.c.l.b16 %v922
          %v2294 = vunpack.c.h.b16 %v922
          %v2295 = vunpack.c.l.b16 %v923
          %v2296 = vunpack.c.h.b16 %v923
          %v2297 = vunpack.c.l.b16 %v924
          %v2298 = vunpack.c.h.b16 %v924
          %v2299 = vunpack.c.l.b16 %v925
          %v2300 = vunpack.c.h.b16 %v925
          %v2301 = vunpack.c.l.b16 %v926
          %v2302 = vunpack.c.h.b16 %v926
          %v2303 = vunpack.c.l.b16 %v927
          %v2304 = vunpack.c.h.b16 %v927
          %v2305 = vunpack.c.l.b16 %v928
          %v2306 = vunpack.c.h.b16 %v928
          %v2307 = vunpack.c.l.b16 %v929
          %v2308 = vunpack.c.h.b16 %v929
          %v2309 = vunpack.c.l.b16 %v930
          %v2310 = vunpack.c.h.b16 %v930
          %v2311 = vunpack.c.l.b16 %v931
          %v2312 = vunpack.c.h.b16 %v931
          %v2313 = vunpack.c.l.b16 %v932
          %v2314 = vunpack.c.h.b16 %v932
          %v2315 = vunpack.c.l.b16 %v933
          %v2316 = vunpack.c.h.b16 %v933
          %v2317 = vunpack.c.l.b16 %v934
          %v2318 = vunpack.c.h.b16 %v934
          %v2319 = vunpack.c.l.b16 %v935
          %v2320 = vunpack.c.h.b16 %v935
          %v2321 = vunpack.c.l.b16 %v936
          %v2322 = vunpack.c.h.b16 %v936
          %v2323 = vunpack.c.l.b16 %v937
          %v2324 = vunpack.c.h.b16 %v937
          %v2325 = vunpack.c.l.b16 %v938
          %v2326 = vunpack.c.h.b16 %v938
          %v2327 = vunpack.c.l.b16 %v939
          %v2328 = vunpack.c.h.b16 %v939
          %v2329 = vunpack.c.l.b16 %v940
          %v2330 = vunpack.c.h.b16 %v940
          %v2331 = vunpack.c.l.b16 %v941
          %v2332 = vunpack.c.h.b16 %v941
          %v2333 = vunpack.c.l.b16 %v942
          %v2334 = vunpack.c.h.b16 %v942
          %v2335 = vunpack.c.l.b16 %v943
          %v2336 = vunpack.c.h.b16 %v943
          %v2337 = vunpack.c.l.b16 %v944
          %v2338 = vunpack.c.h.b16 %v944
          %v2339 = vunpack.c.l.b16 %v945
          %v2340 = vunpack.c.h.b16 %v945
          %v2341 = vunpack.c.l.b16 %v946
          %v2342 = vunpack.c.h.b16 %v946
          %v2343 = vunpack.c.l.b16 %v947
          %v2344 = vunpack.c.h.b16 %v947
          %v2345 = vunpack.c.l.b16 %v948
          %v2346 = vunpack.c.h.b16 %v948
          %v2347 = vunpack.c.l.b16 %v949
          %v2348 = vunpack.c.h.b16 %v949
          %v2349 = vunpack.c.l.b16 %v950
          %v2350 = vunpack.c.h.b16 %v950
          %v2351 = vunpack.c.l.b16 %v951
          %v2352 = vunpack.c.h.b16 %v951
          %v2353 = vunpack.c.l.b16 %v952
          %v2354 = vunpack.c.h.b16 %v952
          %v2355 = vunpack.c.l.b16 %v953
          %v2356 = vunpack.c.h.b16 %v953
          %v2357 = vunpack.c.l.b16 %v954
          %v2358 = vunpack.c.h.b16 %v954
          %v2359 = vunpack.c.l.b16 %v955
          %v2360 = vunpack.c.h.b16 %v955
          %v2361 = vunpack.c.l.b16 %v956
          %v2362 = vunpack.c.h.b16 %v956
          %v2363 = vunpack.c.l.b16 %v957
          %v2364 = vunpack.c.h.b16 %v957
          %v2365 = vunpack.c.l.b16 %v958
          %v2366 = vunpack.c.h.b16 %v958
          %v2367 = vunpack.c.l.b16 %v959
          %v2368 = vunpack.c.h.b16 %v959
          %v2369 = vunpack.c.l.b16 %v960
          %v2370 = vunpack.c.h.b16 %v960
          %v2371 = vunpack.c.l.b16 %v961
          %v2372 = vunpack.c.h.b16 %v961
          %v2373 = vunpack.c.l.b16 %v962
          %v2374 = vunpack.c.h.b16 %v962
          %v2375 = vunpack.c.l.b16 %v963
          %v2376 = vunpack.c.h.b16 %v963
          %v2377 = vunpack.c.l.b16 %v964
          %v2378 = vunpack.c.h.b16 %v964
          %v2379 = vunpack.c.l.b16 %v965
          %v2380 = vunpack.c.h.b16 %v965
          %v2381 = vunpack.c.l.b16 %v966
          %v2382 = vunpack.c.h.b16 %v966
          %v2383 = vunpack.c.l.b16 %v967
          %v2384 = vunpack.c.h.b16 %v967
          %v2385 = vunpack.c.l.b16 %v968
          %v2386 = vunpack.c.h.b16 %v968
          %v2387 = vunpack.c.l.b16 %v969
          %v2388 = vunpack.c.h.b16 %v969
          %v2389 = vunpack.c.l.b16 %v970
          %v2390 = vunpack.c.h.b16 %v970
          %v2391 = vunpack.c.l.b16 %v971
          %v2392 = vunpack.c.h.b16 %v971
          %v2393 = vunpack.c.l.b16 %v972
          %v2394 = vunpack.c.h.b16 %v972
          %v2395 = vunpack.c.l.b16 %v973
          %v2396 = vunpack.c.h.b16 %v973
          %v2397 = vunpack.c.l.b16 %v974
          %v2398 = vunpack.c.h.b16 %v974
          %v2399 = vunpack.c.l.b16 %v975
          %v2400 = vunpack.c.h.b16 %v975
          %v2401 = vunpack.c.l.b16 %v976
          %v2402 = vunpack.c.h.b16 %v976
          %v2403 = vunpack.c.l.b16 %v977
          %v2404 = vunpack.c.h.b16 %v977
          %v2405 = vunpack.c.l.b16 %v978
          %v2406 = vunpack.c.h.b16 %v978
          %v2407 = vunpack.c.l.b16 %v979
          %v2408 = vunpack.c.h.b16 %v979
          %v2409 = vunpack.c.l.b16 %v980
          %v2410 = vunpack.c.h.b16 %v980
          %v2411 = vunpack.c.l.b16 %v981
          %v2412 = vunpack.c.h.b16 %v981
          %v2413 = vunpack.c.l.b16 %v982
          %v2414 = vunpack.c.h.b16 %v982
          %v2415 = vunpack.c.l.b16 %v983
          %v2416 = vunpack.c.h.b16 %v983
          %v2417 = vunpack.c.l.b16 %v984
          %v2418 = vunpack.c.h.b16 %v984
          %v2419 = vunpack.c.l.b16 %v985
          %v2420 = vunpack.c.h.b16 %v985
          %v2421 = vunpack.c.l.b16 %v986
          %v2422 = vunpack.c.h.b16 %v986
          %v2423 = vunpack.c.l.b16 %v987
          %v2424 = vunpack.c.h.b16 %v987
          %v2425 = vunpack.c.l.b16 %v988
          %v2426 = vunpack.c.h.b16 %v988
          %v2427 = vunpack.c.l.b16 %v989
          %v2428 = vunpack.c.h.b16 %v989
          %v2429 = vunpack.c.l.b16 %v990
          %v2430 = vunpack.c.h.b16 %v990
          %v2431 = vunpack.c.l.b16 %v991
          %v2432 = vunpack.c.h.b16 %v991
          %v2433 = vunpack.c.l.b16 %v992
          %v2434 = vunpack.c.h.b16 %v992
          %v2435 = vunpack.c.l.b16 %v993
          %v2436 = vunpack.c.h.b16 %v993
          %v2437 = vunpack.c.l.b16 %v994
          %v2438 = vunpack.c.h.b16 %v994
          %v2439 = vunpack.c.l.b16 %v995
          %v2440 = vunpack.c.h.b16 %v995
          %v2441 = vunpack.c.l.b16 %v996
          %v2442 = vunpack.c.h.b16 %v996
          %v2443 = vunpack.c.l.b16 %v997
          %v2444 = vunpack.c.h.b16 %v997
          %v2445 = vunpack.c.l.b16 %v998
          %v2446 = vunpack.c.h.b16 %v998
          %v2447 = vunpack.c.l.b16 %v999
          %v2448 = vunpack.c.h.b16 %v999
          %v2449 = vunpack.c.l.b16 %v1000
          %v2450 = vunpack.c.h.b16 %v1000
          %v2451 = vunpack.c.l.b16 %v1001
          %v2452 = vunpack.c.h.b16 %v1001
          %v2453 = vunpack.c.l.b16 %v1002
          %v2454 = vunpack.c.h.b16 %v1002
          %v2455 = vunpack.c.l.b16 %v1003
          %v2456 = vunpack.c.h.b16 %v1003
          %v2457 = vunpack.c.l.b16 %v1004
          %v2458 = vunpack.c.h.b16 %v1004
          %v2459 = vunpack.c.l.b16 %v1005
          %v2460 = vunpack.c.h.b16 %v1005
          %v2461 = vunpack.c.l.b16 %v1006
          %v2462 = vunpack.c.h.b16 %v1006
          %v2463 = vunpack.c.l.b16 %v1007
          %v2464 = vunpack.c.h.b16 %v1007
          %v2465 = vunpack.c.l.b16 %v1008
          %v2466 = vunpack.c.h.b16 %v1008
          %v2467 = vunpack.c.l.b16 %v1009
          %v2468 = vunpack.c.h.b16 %v1009
          %v2469 = vunpack.c.l.b16 %v1010
          %v2470 = vunpack.c.h.b16 %v1010
          %v2471 = vunpack.c.l.b16 %v1011
          %v2472 = vunpack.c.h.b16 %v1011
          %v2473 = vunpack.c.l.b16 %v1012
          %v2474 = vunpack.c.h.b16 %v1012
          %v2475 = vunpack.c.l.b16 %v1013
          %v2476 = vunpack.c.h.b16 %v1013
          %v2477 = vunpack.c.l.b16 %v1014
          %v2478 = vunpack.c.h.b16 %v1014
          %v2479 = vunpack.c.l.b16 %v1015
          %v2480 = vunpack.c.h.b16 %v1015
          %v2481 = vunpack.c.l.b16 %v1016
          %v2482 = vunpack.c.h.b16 %v1016
          %v2483 = vunpack.c.l.b16 %v1017
          %v2484 = vunpack.c.h.b16 %v1017
          %v2485 = vunpack.c.l.b16 %v1018
          %v2486 = vunpack.c.h.b16 %v1018
          %v2487 = vunpack.c.l.b16 %v1019
          %v2488 = vunpack.c.h.b16 %v1019
          %v2489 = vunpack.c.l.b16 %v1020
          %v2490 = vunpack.c.h.b16 %v1020
          %v2491 = vunpack.c.l.b16 %v1021
          %v2492 = vunpack.c.h.b16 %v1021
          %v2493 = vunpack.c.l.b16 %v1022
          %v2494 = vunpack.c.h.b16 %v1022
          %v2495 = vunpack.c.l.b16 %v1023
          %v2496 = vunpack.c.h.b16 %v1023
          %v2497 = vunpack.c.l.b16 %v1024
          %v2498 = vunpack.c.h.b16 %v1024
          %v2499 = vunpack.c.l.b16 %v1025
          %v2500 = vunpack.c.h.b16 %v1025
          %v2501 = vunpack.c.l.b16 %v1026
          %v2502 = vunpack.c.h.b16 %v1026
          %v2503 = vunpack.c.l.b16 %v1027
          %v2504 = vunpack.c.h.b16 %v1027
          %v2505 = vunpack.c.l.b16 %v1028
          %v2506 = vunpack.c.h.b16 %v1028
          %v2507 = vunpack.c.l.b16 %v1029
          %v2508 = vunpack.c.h.b16 %v1029
          %v2509 = vunpack.c.l.b16 %v1030
          %v2510 = vunpack.c.h.b16 %v1030
          %v2511 = vunpack.c.l.b16 %v1031
          %v2512 = vunpack.c.h.b16 %v1031
          %v2513 = vunpack.c.l.b16 %v1032
          %v2514 = vunpack.c.h.b16 %v1032
          %v2515 = vunpack.c.l.b16 %v1033
          %v2516 = vunpack.c.h.b16 %v1033
          %v2517 = vunpack.c.l.b16 %v1034
          %v2518 = vunpack.c.h.b16 %v1034
          %v2519 = vunpack.c.l.b16 %v1035
          %v2520 = vunpack.c.h.b16 %v1035
          %v2521 = vunpack.c.l.b16 %v1036
          %v2522 = vunpack.c.h.b16 %v1036
          %v2523 = vunpack.c.l.b16 %v1037
          %v2524 = vunpack.c.h.b16 %v1037
          %v2525 = vunpack.c.l.b16 %v1038
          %v2526 = vunpack.c.h.b16 %v1038
          %v2527 = vunpack.c.l.b16 %v1039
          %v2528 = vunpack.c.h.b16 %v1039
          %v2529 = vunpack.c.l.b16 %v1040
          %v2530 = vunpack.c.h.b16 %v1040
          %v2531 = vunpack.c.l.b16 %v1041
          %v2532 = vunpack.c.h.b16 %v1041
          %v2533 = vunpack.c.l.b16 %v1042
          %v2534 = vunpack.c.h.b16 %v1042
          %v2535 = vunpack.c.l.b16 %v1043
          %v2536 = vunpack.c.h.b16 %v1043
          %v2537 = vunpack.c.l.b16 %v1044
          %v2538 = vunpack.c.h.b16 %v1044
          %v2539 = vunpack.c.l.b16 %v1045
          %v2540 = vunpack.c.h.b16 %v1045
          %v2541 = vunpack.c.l.b16 %v1046
          %v2542 = vunpack.c.h.b16 %v1046
          %v2543 = vunpack.c.l.b16 %v1047
          %v2544 = vunpack.c.h.b16 %v1047
          %v2545 = vunpack.c.l.b16 %v1048
          %v2546 = vunpack.c.h.b16 %v1048
          %v2547 = vunpack.c.l.b16 %v1049
          %v2548 = vunpack.c.h.b16 %v1049
          %v2549 = vunpack.c.l.b16 %v1050
          %v2550 = vunpack.c.h.b16 %v1050
          %v2551 = vunpack.c.l.b16 %v1051
          %v2552 = vunpack.c.h.b16 %v1051
          %v2553 = vunpack.c.l.b16 %v1052
          %v2554 = vunpack.c.h.b16 %v1052
          %v2555 = vunpack.c.l.b16 %v1053
          %v2556 = vunpack.c.h.b16 %v1053
          %v2557 = vunpack.c.l.b16 %v1054
          %v2558 = vunpack.c.h.b16 %v1054
          %v2559 = vunpack.c.l.b16 %v1055
          %v2560 = vunpack.c.h.b16 %v1055
          %v2561 = vunpack.c.l.b16 %v1056
          %v2562 = vunpack.c.h.b16 %v1056
          %v2563 = vunpack.c.l.b16 %v1057
          %v2564 = vunpack.c.h.b16 %v1057
          %v2565 = vunpack.c.l.b16 %v1058
          %v2566 = vunpack.c.h.b16 %v1058
          %v2567 = vunpack.c.l.b16 %v1059
          %v2568 = vunpack.c.h.b16 %v1059
          %v2569 = vunpack.c.l.b16 %v1060
          %v2570 = vunpack.c.h.b16 %v1060
          %v2571 = vunpack.c.l.b16 %v1061
          %v2572 = vunpack.c.h.b16 %v1061
          %v2573 = vunpack.c.l.b16 %v1062
          %v2574 = vunpack.c.h.b16 %v1062
          %v2575 = vunpack.c.l.b16 %v1063
          %v2576 = vunpack.c.h.b16 %v1063
          %v2577 = vunpack.c.l.b16 %v1064
          %v2578 = vunpack.c.h.b16 %v1064
          %v2579 = vunpack.c.l.b16 %v1065
          %v2580 = vunpack.c.h.b16 %v1065
          %v2581 = vunpack.c.l.b16 %v1066
          %v2582 = vunpack.c.h.b16 %v1066
          %v2583 = vunpack.c.l.b16 %v1067
          %v2584 = vunpack.c.h.b16 %v1067
          %v2585 = vunpack.c.l.b16 %v1068
          %v2586 = vunpack.c.h.b16 %v1068
          %v2587 = vunpack.c.l.b16 %v1069
          %v2588 = vunpack.c.h.b16 %v1069
          %v2589 = vunpack.c.l.b16 %v1070
          %v2590 = vunpack.c.h.b16 %v1070
          %v2591 = vunpack.c.l.b16 %v1071
          %v2592 = vunpack.c.h.b16 %v1071
          %v2593 = vunpack.c.l.b16 %v1072
          %v2594 = vunpack.c.h.b16 %v1072
          %v2595 = vunpack.c.l.b16 %v1073
          %v2596 = vunpack.c.h.b16 %v1073
          %v2597 = vunpack.c.l.b16 %v1074
          %v2598 = vunpack.c.h.b16 %v1074
          %v2599 = vunpack.c.l.b16 %v1075
          %v2600 = vunpack.c.h.b16 %v1075
          %v2601 = vunpack.c.l.b16 %v1076
          %v2602 = vunpack.c.h.b16 %v1076
          %v2603 = vunpack.c.l.b16 %v1077
          %v2604 = vunpack.c.h.b16 %v1077
          %v2605 = vunpack.c.l.b16 %v1078
          %v2606 = vunpack.c.h.b16 %v1078
          %v2607 = vunpack.c.l.b16 %v1079
          %v2608 = vunpack.c.h.b16 %v1079
          %v2609 = vunpack.c.l.b16 %v1080
          %v2610 = vunpack.c.h.b16 %v1080
          %v2611 = vunpack.c.l.b16 %v1081
          %v2612 = vunpack.c.h.b16 %v1081
          %v2613 = vunpack.c.l.b16 %v1082
          %v2614 = vunpack.c.h.b16 %v1082
          %v2615 = vunpack.c.l.b16 %v1083
          %v2616 = vunpack.c.h.b16 %v1083
          %v2617 = vunpack.c.l.b16 %v1084
          %v2618 = vunpack.c.h.b16 %v1084
          %v2619 = vunpack.c.l.b16 %v1085
          %v2620 = vunpack.c.h.b16 %v1085
          %v2621 = vunpack.c.l.b16 %v1086
          %v2622 = vunpack.c.h.b16 %v1086
          %v2623 = vunpack.c.l.b16 %v1087
          %v2624 = vunpack.c.h.b16 %v1087
          %v2625 = vunpack.c.l.b16 %v1088
          %v2626 = vunpack.c.h.b16 %v1088
          %v2627 = vunpack.c.l.b16 %v1089
          %v2628 = vunpack.c.h.b16 %v1089
          %v2629 = vunpack.c.l.b16 %v1090
          %v2630 = vunpack.c.h.b16 %v1090
          %v2631 = vunpack.c.l.b16 %v1091
          %v2632 = vunpack.c.h.b16 %v1091
          %v2633 = vunpack.c.l.b16 %v1092
          %v2634 = vunpack.c.h.b16 %v1092
          %v2635 = vunpack.c.l.b16 %v1093
          %v2636 = vunpack.c.h.b16 %v1093
          %v2637 = vunpack.c.l.b16 %v1094
          %v2638 = vunpack.c.h.b16 %v1094
          %v2639 = vunpack.c.l.b16 %v1095
          %v2640 = vunpack.c.h.b16 %v1095
          %v2641 = vunpack.c.l.b16 %v1096
          %v2642 = vunpack.c.h.b16 %v1096
          %v2643 = vunpack.c.l.b16 %v1097
          %v2644 = vunpack.c.h.b16 %v1097
          %v2645 = vunpack.c.l.b16 %v1098
          %v2646 = vunpack.c.h.b16 %v1098
          %v2647 = vunpack.c.l.b16 %v1099
          %v2648 = vunpack.c.h.b16 %v1099
          %v2649 = vunpack.c.l.b16 %v1100
          %v2650 = vunpack.c.h.b16 %v1100
          %v2651 = vunpack.c.l.b16 %v1101
          %v2652 = vunpack.c.h.b16 %v1101
          %v2653 = vunpack.c.l.b16 %v1102
          %v2654 = vunpack.c.h.b16 %v1102
          %v2655 = vunpack.c.l.b16 %v1103
          %v2656 = vunpack.c.h.b16 %v1103
          %v2657 = vunpack.c.l.b16 %v1104
          %v2658 = vunpack.c.h.b16 %v1104
          %v2659 = vunpack.c.l.b16 %v1105
          %v2660 = vunpack.c.h.b16 %v1105
          %v2661 = vunpack.c.l.b16 %v1106
          %v2662 = vunpack.c.h.b16 %v1106
          %v2663 = vunpack.c.l.b16 %v1107
          %v2664 = vunpack.c.h.b16 %v1107
          %v2665 = vunpack.c.l.b16 %v1108
          %v2666 = vunpack.c.h.b16 %v1108
          %v2667 = vunpack.c.l.b16 %v1109
          %v2668 = vunpack.c.h.b16 %v1109
          %v2669 = vunpack.c.l.b16 %v1110
          %v2670 = vunpack.c.h.b16 %v1110
          %v2671 = vunpack.c.l.b16 %v1111
          %v2672 = vunpack.c.h.b16 %v1111
          %v2673 = vunpack.c.l.b16 %v1112
          %v2674 = vunpack.c.h.b16 %v1112
          %v2675 = vunpack.c.l.b16 %v1113
          %v2676 = vunpack.c.h.b16 %v1113
          %v2677 = vunpack.c.l.b16 %v1114
          %v2678 = vunpack.c.h.b16 %v1114
          %v2679 = vunpack.c.l.b16 %v1115
          %v2680 = vunpack.c.h.b16 %v1115
          %v2681 = vunpack.c.l.b16 %v1116
          %v2682 = vunpack.c.h.b16 %v1116
          %v2683 = vunpack.c.l.b16 %v1117
          %v2684 = vunpack.c.h.b16 %v1117
          %v2685 = vunpack.c.l.b16 %v1118
          %v2686 = vunpack.c.h.b16 %v1118
          %v2687 = vunpack.c.l.b16 %v1119
          %v2688 = vunpack.c.h.b16 %v1119
          %v2689 = vunpack.c.l.b16 %v1120
          %v2690 = vunpack.c.h.b16 %v1120
          %v2691 = vunpack.c.l.b16 %v1121
          %v2692 = vunpack.c.h.b16 %v1121
          %v2693 = vunpack.c.l.b16 %v1122
          %v2694 = vunpack.c.h.b16 %v1122
          %v2695 = vunpack.c.l.b16 %v1123
          %v2696 = vunpack.c.h.b16 %v1123
          %v2697 = vunpack.c.l.b16 %v1124
          %v2698 = vunpack.c.h.b16 %v1124
          %v2699 = vunpack.c.l.b16 %v1125
          %v2700 = vunpack.c.h.b16 %v1125
          %v2701 = vunpack.c.l.b16 %v1126
          %v2702 = vunpack.c.h.b16 %v1126
          %v2703 = vunpack.c.l.b16 %v1127
          %v2704 = vunpack.c.h.b16 %v1127
          %v2705 = vunpack.c.l.b16 %v1128
          %v2706 = vunpack.c.h.b16 %v1128
          %v2707 = vunpack.c.l.b16 %v1129
          %v2708 = vunpack.c.h.b16 %v1129
          %v2709 = vunpack.c.l.b16 %v1130
          %v2710 = vunpack.c.h.b16 %v1130
          %v2711 = vunpack.c.l.b16 %v1131
          %v2712 = vunpack.c.h.b16 %v1131
          %v2713 = vunpack.c.l.b16 %v1132
          %v2714 = vunpack.c.h.b16 %v1132
          %v2715 = vunpack.c.l.b16 %v1133
          %v2716 = vunpack.c.h.b16 %v1133
          %v2717 = vunpack.c.l.b16 %v1134
          %v2718 = vunpack.c.h.b16 %v1134
          %v2719 = vunpack.c.l.b16 %v1135
          %v2720 = vunpack.c.h.b16 %v1135
          %v2721 = vunpack.c.l.b16 %v1136
          %v2722 = vunpack.c.h.b16 %v1136
          %v2723 = vunpack.c.l.b16 %v1137
          %v2724 = vunpack.c.h.b16 %v1137
          %v2725 = vunpack.c.l.b16 %v1138
          %v2726 = vunpack.c.h.b16 %v1138
          %v2727 = vunpack.c.l.b16 %v1139
          %v2728 = vunpack.c.h.b16 %v1139
          %v2729 = vunpack.c.l.b16 %v1140
          %v2730 = vunpack.c.h.b16 %v1140
          %v2731 = vunpack.c.l.b16 %v1141
          %v2732 = vunpack.c.h.b16 %v1141
          %v2733 = vunpack.c.l.b16 %v1142
          %v2734 = vunpack.c.h.b16 %v1142
          %v2735 = vunpack.c.l.b16 %v1143
          %v2736 = vunpack.c.h.b16 %v1143
          %v2737 = vunpack.c.l.b16 %v1144
          %v2738 = vunpack.c.h.b16 %v1144
          %v2739 = vunpack.c.l.b16 %v1145
          %v2740 = vunpack.c.h.b16 %v1145
          %v2741 = vunpack.c.l.b16 %v1146
          %v2742 = vunpack.c.h.b16 %v1146
          %v2743 = vunpack.c.l.b16 %v1147
          %v2744 = vunpack.c.h.b16 %v1147
          %v2745 = vunpack.c.l.b16 %v1148
          %v2746 = vunpack.c.h.b16 %v1148
          %v2747 = vunpack.c.l.b16 %v1149
          %v2748 = vunpack.c.h.b16 %v1149
          %v2749 = vunpack.c.l.b16 %v1150
          %v2750 = vunpack.c.h.b16 %v1150
          %v2751 = vunpack.c.l.b16 %v1151
          %v2752 = vunpack.c.h.b16 %v1151
          %v2753 = vunpack.c.l.b16 %v1152
          %v2754 = vunpack.c.h.b16 %v1152
          %v2755 = vunpack.c.l.b16 %v1153
          %v2756 = vunpack.c.h.b16 %v1153
          %v2757 = vunpack.c.l.b16 %v1154
          %v2758 = vunpack.c.h.b16 %v1154
          %v2759 = vunpack.c.l.b16 %v1155
          %v2760 = vunpack.c.h.b16 %v1155
          %v2761 = vunpack.c.l.b16 %v1156
          %v2762 = vunpack.c.h.b16 %v1156
          %v2763 = vunpack.c.l.b16 %v1157
          %v2764 = vunpack.c.h.b16 %v1157
          %v2765 = vunpack.c.l.b16 %v1158
          %v2766 = vunpack.c.h.b16 %v1158
          %v2767 = vunpack.c.l.b16 %v1159
          %v2768 = vunpack.c.h.b16 %v1159
          %v2769 = vunpack.c.l.b16 %v1160
          %v2770 = vunpack.c.h.b16 %v1160
          %v2771 = vunpack.c.l.b16 %v1161
          %v2772 = vunpack.c.h.b16 %v1161
          %v2773 = vunpack.c.l.b16 %v1162
          %v2774 = vunpack.c.h.b16 %v1162
          %v2775 = vunpack.c.l.b16 %v1163
          %v2776 = vunpack.c.h.b16 %v1163
          %v2777 = vunpack.c.l.b16 %v1164
          %v2778 = vunpack.c.h.b16 %v1164
          %v2779 = vunpack.c.l.b16 %v1165
          %v2780 = vunpack.c.h.b16 %v1165
          %v2781 = vunpack.c.l.b16 %v1166
          %v2782 = vunpack.c.h.b16 %v1166
          %v2783 = vunpack.c.l.b16 %v1167
          %v2784 = vunpack.c.h.b16 %v1167
          %v2785 = vunpack.c.l.b16 %v1168
          %v2786 = vunpack.c.h.b16 %v1168
          %v2787 = vunpack.c.l.b16 %v1169
          %v2788 = vunpack.c.h.b16 %v1169
          %v2789 = vunpack.c.l.b16 %v1170
          %v2790 = vunpack.c.h.b16 %v1170
          %v2791 = vunpack.c.l.b16 %v1171
          %v2792 = vunpack.c.h.b16 %v1171
          %v2793 = vunpack.c.l.b16 %v1172
          %v2794 = vunpack.c.h.b16 %v1172
          %v2795 = vunpack.c.l.b16 %v1173
          %v2796 = vunpack.c.h.b16 %v1173
          %v2797 = vunpack.c.l.b16 %v1174
          %v2798 = vunpack.c.h.b16 %v1174
          %v2799 = vunpack.c.l.b16 %v1175
          %v2800 = vunpack.c.h.b16 %v1175
          %v2801 = vunpack.c.l.b16 %v1176
          %v2802 = vunpack.c.h.b16 %v1176
          %v2803 = vunpack.c.l.b16 %v1177
          %v2804 = vunpack.c.h.b16 %v1177
          %v2805 = vunpack.c.l.b16 %v1178
          %v2806 = vunpack.c.h.b16 %v1178
          %v2807 = vunpack.c.l.b16 %v1179
          %v2808 = vunpack.c.h.b16 %v1179
          %v2809 = vunpack.c.l.b16 %v1180
          %v2810 = vunpack.c.h.b16 %v1180
          %v2811 = vunpack.c.l.b16 %v1181
          %v2812 = vunpack.c.h.b16 %v1181
          %v2813 = vunpack.c.l.b16 %v1182
          %v2814 = vunpack.c.h.b16 %v1182
          %v2815 = vunpack.c.l.b16 %v1183
          %v2816 = vunpack.c.h.b16 %v1183
          %v2817 = vunpack.c.l.b16 %v1184
          %v2818 = vunpack.c.h.b16 %v1184
          %v2819 = vunpack.c.l.b16 %v1185
          %v2820 = vunpack.c.h.b16 %v1185
          %v2821 = vunpack.c.l.b16 %v1186
          %v2822 = vunpack.c.h.b16 %v1186
          %v2823 = vunpack.c.l.b16 %v1187
          %v2824 = vunpack.c.h.b16 %v1187
          %v2825 = vunpack.c.l.b16 %v1188
          %v2826 = vunpack.c.h.b16 %v1188
          %v2827 = vunpack.c.l.b16 %v1189
          %v2828 = vunpack.c.h.b16 %v1189
          %v2829 = vunpack.c.l.b16 %v1190
          %v2830 = vunpack.c.h.b16 %v1190
          %v2831 = vunpack.c.l.b16 %v1191
          %v2832 = vunpack.c.h.b16 %v1191
          %v2833 = vunpack.c.l.b16 %v1192
          %v2834 = vunpack.c.h.b16 %v1192
          %v2835 = vunpack.c.l.b16 %v1193
          %v2836 = vunpack.c.h.b16 %v1193
          %v2837 = vunpack.c.l.b16 %v1194
          %v2838 = vunpack.c.h.b16 %v1194
          %v2839 = vunpack.c.l.b16 %v1195
          %v2840 = vunpack.c.h.b16 %v1195
          %v2841 = vunpack.c.l.b16 %v1196
          %v2842 = vunpack.c.h.b16 %v1196
          %v2843 = vunpack.c.l.b16 %v1197
          %v2844 = vunpack.c.h.b16 %v1197
          %v2845 = vunpack.c.l.b16 %v1198
          %v2846 = vunpack.c.h.b16 %v1198
          %v2847 = vpack.c.b16 %v1825, %v1823
          %v2848 = vpack.c.b16 %v1826, %v1824
          %v2849 = vpack.c.b16 %v1829, %v1827
          %v2850 = vpack.c.b16 %v1830, %v1828
          %v2851 = vpack.c.b16 %v1833, %v1831
          %v2852 = vpack.c.b16 %v1834, %v1832
          %v2853 = vpack.c.b16 %v1837, %v1835
          %v2854 = vpack.c.b16 %v1838, %v1836
          %v2855 = vpack.c.b16 %v1841, %v1839
          %v2856 = vpack.c.b16 %v1842, %v1840
          %v2857 = vpack.c.b16 %v1845, %v1843
          %v2858 = vpack.c.b16 %v1846, %v1844
          %v2859 = vpack.c.b16 %v1849, %v1847
          %v2860 = vpack.c.b16 %v1850, %v1848
          %v2861 = vpack.c.b16 %v1853, %v1851
          %v2862 = vpack.c.b16 %v1854, %v1852
          %v2863 = vpack.c.b16 %v1857, %v1855
          %v2864 = vpack.c.b16 %v1858, %v1856
          %v2865 = vpack.c.b16 %v1861, %v1859
          %v2866 = vpack.c.b16 %v1862, %v1860
          %v2867 = vpack.c.b16 %v1865, %v1863
          %v2868 = vpack.c.b16 %v1866, %v1864
          %v2869 = vpack.c.b16 %v1869, %v1867
          %v2870 = vpack.c.b16 %v1870, %v1868
          %v2871 = vpack.c.b16 %v1873, %v1871
          %v2872 = vpack.c.b16 %v1874, %v1872
          %v2873 = vpack.c.b16 %v1877, %v1875
          %v2874 = vpack.c.b16 %v1878, %v1876
          %v2875 = vpack.c.b16 %v1881, %v1879
          %v2876 = vpack.c.b16 %v1882, %v1880
          %v2877 = vpack.c.b16 %v1885, %v1883
          %v2878 = vpack.c.b16 %v1886, %v1884
          %v2879 = vpack.c.b16 %v1889, %v1887
          %v2880 = vpack.c.b16 %v1890, %v1888
          %v2881 = vpack.c.b16 %v1893, %v1891
          %v2882 = vpack.c.b16 %v1894, %v1892
          %v2883 = vpack.c.b16 %v1897, %v1895
          %v2884 = vpack.c.b16 %v1898, %v1896
          %v2885 = vpack.c.b16 %v1901, %v1899
          %v2886 = vpack.c.b16 %v1902, %v1900
          %v2887 = vpack.c.b16 %v1905, %v1903
          %v2888 = vpack.c.b16 %v1906, %v1904
          %v2889 = vpack.c.b16 %v1909, %v1907
          %v2890 = vpack.c.b16 %v1910, %v1908
          %v2891 = vpack.c.b16 %v1913, %v1911
          %v2892 = vpack.c.b16 %v1914, %v1912
          %v2893 = vpack.c.b16 %v1917, %v1915
          %v2894 = vpack.c.b16 %v1918, %v1916
          %v2895 = vpack.c.b16 %v1921, %v1919
          %v2896 = vpack.c.b16 %v1922, %v1920
          %v2897 = vpack.c.b16 %v1925, %v1923
          %v2898 = vpack.c.b16 %v1926, %v1924
          %v2899 = vpack.c.b16 %v1929, %v1927
          %v2900 = vpack.c.b16 %v1930, %v1928
          %v2901 = vpack.c.b16 %v1933, %v1931
          %v2902 = vpack.c.b16 %v1934, %v1932
          %v2903 = vpack.c.b16 %v1937, %v1935
          %v2904 = vpack.c.b16 %v1938, %v1936
          %v2905 = vpack.c.b16 %v1941, %v1939
          %v2906 = vpack.c.b16 %v1942, %v1940
          %v2907 = vpack.c.b16 %v1945, %v1943
          %v2908 = vpack.c.b16 %v1946, %v1944
          %v2909 = vpack.c.b16 %v1949, %v1947
          %v2910 = vpack.c.b16 %v1950, %v1948
          %v2911 = vpack.c.b16 %v1953, %v1951
          %v2912 = vpack.c.b16 %v1954, %v1952
          %v2913 = vpack.c.b16 %v1957, %v1955
          %v2914 = vpack.c.b16 %v1958, %v1956
          %v2915 = vpack.c.b16 %v1961, %v1959
          %v2916 = vpack.c.b16 %v1962, %v1960
          %v2917 = vpack.c.b16 %v1965, %v1963
          %v2918 = vpack.c.b16 %v1966, %v1964
          %v2919 = vpack.c.b16 %v1969, %v1967
          %v2920 = vpack.c.b16 %v1970, %v1968
          %v2921 = vpack.c.b16 %v1973, %v1971
          %v2922 = vpack.c.b16 %v1974, %v1972
          %v2923 = vpack.c.b16 %v1977, %v1975
          %v2924 = vpack.c.b16 %v1978, %v1976
          %v2925 = vpack.c.b16 %v1981, %v1979
          %v2926 = vpack.c.b16 %v1982, %v1980
          %v2927 = vpack.c.b16 %v1985, %v1983
          %v2928 = vpack.c.b16 %v1986, %v1984
          %v2929 = vpack.c.b16 %v1989, %v1987
          %v2930 = vpack.c.b16 %v1990, %v1988
          %v2931 = vpack.c.b16 %v1993, %v1991
          %v2932 = vpack.c.b16 %v1994, %v1992
          %v2933 = vpack.c.b16 %v1997, %v1995
          %v2934 = vpack.c.b16 %v1998, %v1996
          %v2935 = vpack.c.b16 %v2001, %v1999
          %v2936 = vpack.c.b16 %v2002, %v2000
          %v2937 = vpack.c.b16 %v2005, %v2003
          %v2938 = vpack.c.b16 %v2006, %v2004
          %v2939 = vpack.c.b16 %v2009, %v2007
          %v2940 = vpack.c.b16 %v2010, %v2008
          %v2941 = vpack.c.b16 %v2013, %v2011
          %v2942 = vpack.c.b16 %v2014, %v2012
          %v2943 = vpack.c.b16 %v2017, %v2015
          %v2944 = vpack.c.b16 %v2018, %v2016
          %v2945 = vpack.c.b16 %v2021, %v2019
          %v2946 = vpack.c.b16 %v2022, %v2020
          %v2947 = vpack.c.b16 %v2025, %v2023
          %v2948 = vpack.c.b16 %v2026, %v2024
          %v2949 = vpack.c.b16 %v2029, %v2027
          %v2950 = vpack.c.b16 %v2030, %v2028
          %v2951 = vpack.c.b16 %v2033, %v2031
          %v2952 = vpack.c.b16 %v2034, %v2032
          %v2953 = vpack.c.b16 %v2037, %v2035
          %v2954 = vpack.c.b16 %v2038, %v2036
          %v2955 = vpack.c.b16 %v2041, %v2039
          %v2956 = vpack.c.b16 %v2042, %v2040
          %v2957 = vpack.c.b16 %v2045, %v2043
          %v2958 = vpack.c.b16 %v2046, %v2044
          %v2959 = vpack.c.b16 %v2049, %v2047
          %v2960 = vpack.c.b16 %v2050, %v2048
          %v2961 = vpack.c.b16 %v2053, %v2051
          %v2962 = vpack.c.b16 %v2054, %v2052
          %v2963 = vpack.c.b16 %v2057, %v2055
          %v2964 = vpack.c.b16 %v2058, %v2056
          %v2965 = vpack.c.b16 %v2061, %v2059
          %v2966 = vpack.c.b16 %v2062, %v2060
          %v2967 = vpack.c.b16 %v2065, %v2063
          %v2968 = vpack.c.b16 %v2066, %v2064
          %v2969 = vpack.c.b16 %v2069, %v2067
          %v2970 = vpack.c.b16 %v2070, %v2068
          %v2971 = vpack.c.b16 %v2073, %v2071
          %v2972 = vpack.c.b16 %v2074, %v2072
          %v2973 = vpack.c.b16 %v2077, %v2075
          %v2974 = vpack.c.b16 %v2078, %v2076
          %v2975 = vpack.c.b16 %v2081, %v2079
          %v2976 = vpack.c.b16 %v2082, %v2080
          %v2977 = vpack.c.b16 %v2085, %v2083
          %v2978 = vpack.c.b16 %v2086, %v2084
          %v2979 = vpack.c.b16 %v2089, %v2087
          %v2980 = vpack.c.b16 %v2090, %v2088
          %v2981 = vpack.c.b16 %v2093, %v2091
          %v2982 = vpack.c.b16 %v2094, %v2092
          %v2983 = vpack.c.b16 %v2097, %v2095
          %v2984 = vpack.c.b16 %v2098, %v2096
          %v2985 = vpack.c.b16 %v2101, %v2099
          %v2986 = vpack.c.b16 %v2102, %v2100
          %v2987 = vpack.c.b16 %v2105, %v2103
          %v2988 = vpack.c.b16 %v2106, %v2104
          %v2989 = vpack.c.b16 %v2109, %v2107
          %v2990 = vpack.c.b16 %v2110, %v2108
          %v2991 = vpack.c.b16 %v2113, %v2111
          %v2992 = vpack.c.b16 %v2114, %v2112
          %v2993 = vpack.c.b16 %v2117, %v2115
          %v2994 = vpack.c.b16 %v2118, %v2116
          %v2995 = vpack.c.b16 %v2121, %v2119
          %v2996 = vpack.c.b16 %v2122, %v2120
          %v2997 = vpack.c.b16 %v2125, %v2123
          %v2998 = vpack.c.b16 %v2126, %v2124
          %v2999 = vpack.c.b16 %v2129, %v2127
          %v3000 = vpack.c.b16 %v2130, %v2128
          %v3001 = vpack.c.b16 %v2133, %v2131
          %v3002 = vpack.c.b16 %v2134, %v2132
          %v3003 = vpack.c.b16 %v2137, %v2135
          %v3004 = vpack.c.b16 %v2138, %v2136
          %v3005 = vpack.c.b16 %v2141, %v2139
          %v3006 = vpack.c.b16 %v2142, %v2140
          %v3007 = vpack.c.b16 %v2145, %v2143
          %v3008 = vpack.c.b16 %v2146, %v2144
          %v3009 = vpack.c.b16 %v2149, %v2147
          %v3010 = vpack.c.b16 %v2150, %v2148
          %v3011 = vpack.c.b16 %v2153, %v2151
          %v3012 = vpack.c.b16 %v2154, %v2152
          %v3013 = vpack.c.b16 %v2157, %v2155
          %v3014 = vpack.c.b16 %v2158, %v2156
          %v3015 = vpack.c.b16 %v2161, %v2159
          %v3016 = vpack.c.b16 %v2162, %v2160
          %v3017 = vpack.c.b16 %v2165, %v2163
          %v3018 = vpack.c.b16 %v2166, %v2164
          %v3019 = vpack.c.b16 %v2169, %v2167
          %v3020 = vpack.c.b16 %v2170, %v2168
          %v3021 = vpack.c.b16 %v2173, %v2171
          %v3022 = vpack.c.b16 %v2174, %v2172
          %v3023 = vpack.c.b16 %v2177, %v2175
          %v3024 = vpack.c.b16 %v2178, %v2176
          %v3025 = vpack.c.b16 %v2181, %v2179
          %v3026 = vpack.c.b16 %v2182, %v2180
          %v3027 = vpack.c.b16 %v2185, %v2183
          %v3028 = vpack.c.b16 %v2186, %v2184
          %v3029 = vpack.c.b16 %v2189, %v2187
          %v3030 = vpack.c.b16 %v2190, %v2188
          %v3031 = vpack.c.b16 %v2193, %v2191
          %v3032 = vpack.c.b16 %v2194, %v2192
          %v3033 = vpack.c.b16 %v2197, %v2195
          %v3034 = vpack.c.b16 %v2198, %v2196
          %v3035 = vpack.c.b16 %v2201, %v2199
          %v3036 = vpack.c.b16 %v2202, %v2200
          %v3037 = vpack.c.b16 %v2205, %v2203
          %v3038 = vpack.c.b16 %v2206, %v2204
          %v3039 = vpack.c.b16 %v2209, %v2207
          %v3040 = vpack.c.b16 %v2210, %v2208
          %v3041 = vpack.c.b16 %v2213, %v2211
          %v3042 = vpack.c.b16 %v2214, %v2212
          %v3043 = vpack.c.b16 %v2217, %v2215
          %v3044 = vpack.c.b16 %v2218, %v2216
          %v3045 = vpack.c.b16 %v2221, %v2219
          %v3046 = vpack.c.b16 %v2222, %v2220
          %v3047 = vpack.c.b16 %v2225, %v2223
          %v3048 = vpack.c.b16 %v2226, %v2224
          %v3049 = vpack.c.b16 %v2229, %v2227
          %v3050 = vpack.c.b16 %v2230, %v2228
          %v3051 = vpack.c.b16 %v2233, %v2231
          %v3052 = vpack.c.b16 %v2234, %v2232
          %v3053 = vpack.c.b16 %v2237, %v2235
          %v3054 = vpack.c.b16 %v2238, %v2236
          %v3055 = vpack.c.b16 %v2241, %v2239
          %v3056 = vpack.c.b16 %v2242, %v2240
          %v3057 = vpack.c.b16 %v2245, %v2243
          %v3058 = vpack.c.b16 %v2246, %v2244
          %v3059 = vpack.c.b16 %v2249, %v2247
          %v3060 = vpack.c.b16 %v2250, %v2248
          %v3061 = vpack.c.b16 %v2253, %v2251
          %v3062 = vpack.c.b16 %v2254, %v2252
          %v3063 = vpack.c.b16 %v2257, %v2255
          %v3064 = vpack.c.b16 %v2258, %v2256
          %v3065 = vpack.c.b16 %v2261, %v2259
          %v3066 = vpack.c.b16 %v2262, %v2260
          %v3067 = vpack.c.b16 %v2265, %v2263
          %v3068 = vpack.c.b16 %v2266, %v2264
          %v3069 = vpack.c.b16 %v2269, %v2267
          %v3070 = vpack.c.b16 %v2270, %v2268
          %v3071 = vpack.c.b16 %v2273, %v2271
          %v3072 = vpack.c.b16 %v2274, %v2272
          %v3073 = vpack.c.b16 %v2277, %v2275
          %v3074 = vpack.c.b16 %v2278, %v2276
          %v3075 = vpack.c.b16 %v2281, %v2279
          %v3076 = vpack.c.b16 %v2282, %v2280
          %v3077 = vpack.c.b16 %v2285, %v2283
          %v3078 = vpack.c.b16 %v2286, %v2284
          %v3079 = vpack.c.b16 %v2289, %v2287
          %v3080 = vpack.c.b16 %v2290, %v2288
          %v3081 = vpack.c.b16 %v2293, %v2291
          %v3082 = vpack.c.b16 %v2294, %v2292
          %v3083 = vpack.c.b16 %v2297, %v2295
          %v3084 = vpack.c.b16 %v2298, %v2296
          %v3085 = vpack.c.b16 %v2301, %v2299
          %v3086 = vpack.c.b16 %v2302, %v2300
          %v3087 = vpack.c.b16 %v2305, %v2303
          %v3088 = vpack.c.b16 %v2306, %v2304
          %v3089 = vpack.c.b16 %v2309, %v2307
          %v3090 = vpack.c.b16 %v2310, %v2308
          %v3091 = vpack.c.b16 %v2313, %v2311
          %v3092 = vpack.c.b16 %v2314, %v2312
          %v3093 = vpack.c.b16 %v2317, %v2315
          %v3094 = vpack.c.b16 %v2318, %v2316
          %v3095 = vpack.c.b16 %v2321, %v2319
          %v3096 = vpack.c.b16 %v2322, %v2320
          %v3097 = vpack.c.b16 %v2325, %v2323
          %v3098 = vpack.c.b16 %v2326, %v2324
          %v3099 = vpack.c.b16 %v2329, %v2327
          %v3100 = vpack.c.b16 %v2330, %v2328
          %v3101 = vpack.c.b16 %v2333, %v2331
          %v3102 = vpack.c.b16 %v2334, %v2332
          %v3103 = vpack.c.b16 %v2337, %v2335
          %v3104 = vpack.c.b16 %v2338, %v2336
          %v3105 = vpack.c.b16 %v2341, %v2339
          %v3106 = vpack.c.b16 %v2342, %v2340
          %v3107 = vpack.c.b16 %v2345, %v2343
          %v3108 = vpack.c.b16 %v2346, %v2344
          %v3109 = vpack.c.b16 %v2349, %v2347
          %v3110 = vpack.c.b16 %v2350, %v2348
          %v3111 = vpack.c.b16 %v2353, %v2351
          %v3112 = vpack.c.b16 %v2354, %v2352
          %v3113 = vpack.c.b16 %v2357, %v2355
          %v3114 = vpack.c.b16 %v2358, %v2356
          %v3115 = vpack.c.b16 %v2361, %v2359
          %v3116 = vpack.c.b16 %v2362, %v2360
          %v3117 = vpack.c.b16 %v2365, %v2363
          %v3118 = vpack.c.b16 %v2366, %v2364
          %v3119 = vpack.c.b16 %v2369, %v2367
          %v3120 = vpack.c.b16 %v2370, %v2368
          %v3121 = vpack.c.b16 %v2373, %v2371
          %v3122 = vpack.c.b16 %v2374, %v2372
          %v3123 = vpack.c.b16 %v2377, %v2375
          %v3124 = vpack.c.b16 %v2378, %v2376
          %v3125 = vpack.c.b16 %v2381, %v2379
          %v3126 = vpack.c.b16 %v2382, %v2380
          %v3127 = vpack.c.b16 %v2385, %v2383
          %v3128 = vpack.c.b16 %v2386, %v2384
          %v3129 = vpack.c.b16 %v2389, %v2387
          %v3130 = vpack.c.b16 %v2390, %v2388
          %v3131 = vpack.c.b16 %v2393, %v2391
          %v3132 = vpack.c.b16 %v2394, %v2392
          %v3133 = vpack.c.b16 %v2397, %v2395
          %v3134 = vpack.c.b16 %v2398, %v2396
          %v3135 = vpack.c.b16 %v2401, %v2399
          %v3136 = vpack.c.b16 %v2402, %v2400
          %v3137 = vpack.c.b16 %v2405, %v2403
          %v3138 = vpack.c.b16 %v2406, %v2404
          %v3139 = vpack.c.b16 %v2409, %v2407
          %v3140 = vpack.c.b16 %v2410, %v2408
          %v3141 = vpack.c.b16 %v2413, %v2411
          %v3142 = vpack.c.b16 %v2414, %v2412
          %v3143 = vpack.c.b16 %v2417, %v2415
          %v3144 = vpack.c.b16 %v2418, %v2416
          %v3145 = vpack.c.b16 %v2421, %v2419
          %v3146 = vpack.c.b16 %v2422, %v2420
          %v3147 = vpack.c.b16 %v2425, %v2423
          %v3148 = vpack.c.b16 %v2426, %v2424
          %v3149 = vpack.c.b16 %v2429, %v2427
          %v3150 = vpack.c.b16 %v2430, %v2428
          %v3151 = vpack.c.b16 %v2433, %v2431
          %v3152 = vpack.c.b16 %v2434, %v2432
          %v3153 = vpack.c.b16 %v2437, %v2435
          %v3154 = vpack.c.b16 %v2438, %v2436
          %v3155 = vpack.c.b16 %v2441, %v2439
          %v3156 = vpack.c.b16 %v2442, %v2440
          %v3157 = vpack.c.b16 %v2445, %v2443
          %v3158 = vpack.c.b16 %v2446, %v2444
          %v3159 = vpack.c.b16 %v2449, %v2447
          %v3160 = vpack.c.b16 %v2450, %v2448
          %v3161 = vpack.c.b16 %v2453, %v2451
          %v3162 = vpack.c.b16 %v2454, %v2452
          %v3163 = vpack.c.b16 %v2457, %v2455
          %v3164 = vpack.c.b16 %v2458, %v2456
          %v3165 = vpack.c.b16 %v2461, %v2459
          %v3166 = vpack.c.b16 %v2462, %v2460
          %v3167 = vpack.c.b16 %v2465, %v2463
          %v3168 = vpack.c.b16 %v2466, %v2464
          %v3169 = vpack.c.b16 %v2469, %v2467
          %v3170 = vpack.c.b16 %v2470, %v2468
          %v3171 = vpack.c.b16 %v2473, %v2471
          %v3172 = vpack.c.b16 %v2474, %v2472
          %v3173 = vpack.c.b16 %v2477, %v2475
          %v3174 = vpack.c.b16 %v2478, %v2476
          %v3175 = vpack.c.b16 %v2481, %v2479
          %v3176 = vpack.c.b16 %v2482, %v2480
          %v3177 = vpack.c.b16 %v2485, %v2483
          %v3178 = vpack.c.b16 %v2486, %v2484
          %v3179 = vpack.c.b16 %v2489, %v2487
          %v3180 = vpack.c.b16 %v2490, %v2488
          %v3181 = vpack.c.b16 %v2493, %v2491
          %v3182 = vpack.c.b16 %v2494, %v2492
          %v3183 = vpack.c.b16 %v2497, %v2495
          %v3184 = vpack.c.b16 %v2498, %v2496
          %v3185 = vpack.c.b16 %v2501, %v2499
          %v3186 = vpack.c.b16 %v2502, %v2500
          %v3187 = vpack.c.b16 %v2505, %v2503
          %v3188 = vpack.c.b16 %v2506, %v2504
          %v3189 = vpack.c.b16 %v2509, %v2507
          %v3190 = vpack.c.b16 %v2510, %v2508
          %v3191 = vpack.c.b16 %v2513, %v2511
          %v3192 = vpack.c.b16 %v2514, %v2512
          %v3193 = vpack.c.b16 %v2517, %v2515
          %v3194 = vpack.c.b16 %v2518, %v2516
          %v3195 = vpack.c.b16 %v2521, %v2519
          %v3196 = vpack.c.b16 %v2522, %v2520
          %v3197 = vpack.c.b16 %v2525, %v2523
          %v3198 = vpack.c.b16 %v2526, %v2524
          %v3199 = vpack.c.b16 %v2529, %v2527
          %v3200 = vpack.c.b16 %v2530, %v2528
          %v3201 = vpack.c.b16 %v2533, %v2531
          %v3202 = vpack.c.b16 %v2534, %v2532
          %v3203 = vpack.c.b16 %v2537, %v2535
          %v3204 = vpack.c.b16 %v2538, %v2536
          %v3205 = vpack.c.b16 %v2541, %v2539
          %v3206 = vpack.c.b16 %v2542, %v2540
          %v3207 = vpack.c.b16 %v2545, %v2543
          %v3208 = vpack.c.b16 %v2546, %v2544
          %v3209 = vpack.c.b16 %v2549, %v2547
          %v3210 = vpack.c.b16 %v2550, %v2548
          %v3211 = vpack.c.b16 %v2553, %v2551
          %v3212 = vpack.c.b16 %v2554, %v2552
          %v3213 = vpack.c.b16 %v2557, %v2555
          %v3214 = vpack.c.b16 %v2558, %v2556
          %v3215 = vpack.c.b16 %v2561, %v2559
          %v3216 = vpack.c.b16 %v2562, %v2560
          %v3217 = vpack.c.b16 %v2565, %v2563
          %v3218 = vpack.c.b16 %v2566, %v2564
          %v3219 = vpack.c.b16 %v2569, %v2567
          %v3220 = vpack.c.b16 %v2570, %v2568
          %v3221 = vpack.c.b16 %v2573, %v2571
          %v3222 = vpack.c.b16 %v2574, %v2572
          %v3223 = vpack.c.b16 %v2577, %v2575
          %v3224 = vpack.c.b16 %v2578, %v2576
          %v3225 = vpack.c.b16 %v2581, %v2579
          %v3226 = vpack.c.b16 %v2582, %v2580
          %v3227 = vpack.c.b16 %v2585, %v2583
          %v3228 = vpack.c.b16 %v2586, %v2584
          %v3229 = vpack.c.b16 %v2589, %v2587
          %v3230 = vpack.c.b16 %v2590, %v2588
          %v3231 = vpack.c.b16 %v2593, %v2591
          %v3232 = vpack.c.b16 %v2594, %v2592
          %v3233 = vpack.c.b16 %v2597, %v2595
          %v3234 = vpack.c.b16 %v2598, %v2596
          %v3235 = vpack.c.b16 %v2601, %v2599
          %v3236 = vpack.c.b16 %v2602, %v2600
          %v3237 = vpack.c.b16 %v2605, %v2603
          %v3238 = vpack.c.b16 %v2606, %v2604
          %v3239 = vpack.c.b16 %v2609, %v2607
          %v3240 = vpack.c.b16 %v2610, %v2608
          %v3241 = vpack.c.b16 %v2613, %v2611
          %v3242 = vpack.c.b16 %v2614, %v2612
          %v3243 = vpack.c.b16 %v2617, %v2615
          %v3244 = vpack.c.b16 %v2618, %v2616
          %v3245 = vpack.c.b16 %v2621, %v2619
          %v3246 = vpack.c.b16 %v2622, %v2620
          %v3247 = vpack.c.b16 %v2625, %v2623
          %v3248 = vpack.c.b16 %v2626, %v2624
          %v3249 = vpack.c.b16 %v2629, %v2627
          %v3250 = vpack.c.b16 %v2630, %v2628
          %v3251 = vpack.c.b16 %v2633, %v2631
          %v3252 = vpack.c.b16 %v2634, %v2632
          %v3253 = vpack.c.b16 %v2637, %v2635
          %v3254 = vpack.c.b16 %v2638, %v2636
          %v3255 = vpack.c.b16 %v2641, %v2639
          %v3256 = vpack.c.b16 %v2642, %v2640
          %v3257 = vpack.c.b16 %v2645, %v2643
          %v3258 = vpack.c.b16 %v2646, %v2644
          %v3259 = vpack.c.b16 %v2649, %v2647
          %v3260 = vpack.c.b16 %v2650, %v2648
          %v3261 = vpack.c.b16 %v2653, %v2651
          %v3262 = vpack.c.b16 %v2654, %v2652
          %v3263 = vpack.c.b16 %v2657, %v2655
          %v3264 = vpack.c.b16 %v2658, %v2656
          %v3265 = vpack.c.b16 %v2661, %v2659
          %v3266 = vpack.c.b16 %v2662, %v2660
          %v3267 = vpack.c.b16 %v2665, %v2663
          %v3268 = vpack.c.b16 %v2666, %v2664
          %v3269 = vpack.c.b16 %v2669, %v2667
          %v3270 = vpack.c.b16 %v2670, %v2668
          %v3271 = vpack.c.b16 %v2673, %v2671
          %v3272 = vpack.c.b16 %v2674, %v2672
          %v3273 = vpack.c.b16 %v2677, %v2675
          %v3274 = vpack.c.b16 %v2678, %v2676
          %v3275 = vpack.c.b16 %v2681, %v2679
          %v3276 = vpack.c.b16 %v2682, %v2680
          %v3277 = vpack.c.b16 %v2685, %v2683
          %v3278 = vpack.c.b16 %v2686, %v2684
          %v3279 = vpack.c.b16 %v2689, %v2687
          %v3280 = vpack.c.b16 %v2690, %v2688
          %v3281 = vpack.c.b16 %v2693, %v2691
          %v3282 = vpack.c.b16 %v2694, %v2692
          %v3283 = vpack.c.b16 %v2697, %v2695
          %v3284 = vpack.c.b16 %v2698, %v2696
          %v3285 = vpack.c.b16 %v2701, %v2699
          %v3286 = vpack.c.b16 %v2702, %v2700
          %v3287 = vpack.c.b16 %v2705, %v2703
          %v3288 = vpack.c.b16 %v2706, %v2704
          %v3289 = vpack.c.b16 %v2709, %v2707
          %v3290 = vpack.c.b16 %v2710, %v2708
          %v3291 = vpack.c.b16 %v2713, %v2711
          %v3292 = vpack.c.b16 %v2714, %v2712
          %v3293 = vpack.c.b16 %v2717, %v2715
          %v3294 = vpack.c.b16 %v2718, %v2716
          %v3295 = vpack.c.b16 %v2721, %v2719
          %v3296 = vpack.c.b16 %v2722, %v2720
          %v3297 = vpack.c.b16 %v2725, %v2723
          %v3298 = vpack.c.b16 %v2726, %v2724
          %v3299 = vpack.c.b16 %v2729, %v2727
          %v3300 = vpack.c.b16 %v2730, %v2728
          %v3301 = vpack.c.b16 %v2733, %v2731
          %v3302 = vpack.c.b16 %v2734, %v2732
          %v3303 = vpack.c.b16 %v2737, %v2735
          %v3304 = vpack.c.b16 %v2738, %v2736
          %v3305 = vpack.c.b16 %v2741, %v2739
          %v3306 = vpack.c.b16 %v2742, %v2740
          %v3307 = vpack.c.b16 %v2745, %v2743
          %v3308 = vpack.c.b16 %v2746, %v2744
          %v3309 = vpack.c.b16 %v2749, %v2747
          %v3310 = vpack.c.b16 %v2750, %v2748
          %v3311 = vpack.c.b16 %v2753, %v2751
          %v3312 = vpack.c.b16 %v2754, %v2752
          %v3313 = vpack.c.b16 %v2757, %v2755
          %v3314 = vpack.c.b16 %v2758, %v2756
          %v3315 = vpack.c.b16 %v2761, %v2759
          %v3316 = vpack.c.b16 %v2762, %v2760
          %v3317 = vpack.c.b16 %v2765, %v2763
          %v3318 = vpack.c.b16 %v2766, %v2764
          %v3319 = vpack.c.b16 %v2769, %v2767
          %v3320 = vpack.c.b16 %v2770, %v2768
          %v3321 = vpack.c.b16 %v2773, %v2771
          %v3322 = vpack.c.b16 %v2774, %v2772
          %v3323 = vpack.c.b16 %v2777, %v2775
          %v3324 = vpack.c.b16 %v2778, %v2776
          %v3325 = vpack.c.b16 %v2781, %v2779
          %v3326 = vpack.c.b16 %v2782, %v2780
          %v3327 = vpack.c.b16 %v2785, %v2783
          %v3328 = vpack.c.b16 %v2786, %v2784
          %v3329 = vpack.c.b16 %v2789, %v2787
          %v3330 = vpack.c.b16 %v2790, %v2788
          %v3331 = vpack.c.b16 %v2793, %v2791
          %v3332 = vpack.c.b16 %v2794, %v2792
          %v3333 = vpack.c.b16 %v2797, %v2795
          %v3334 = vpack.c.b16 %v2798, %v2796
          %v3335 = vpack.c.b16 %v2801, %v2799
          %v3336 = vpack.c.b16 %v2802, %v2800
          %v3337 = vpack.c.b16 %v2805, %v2803
          %v3338 = vpack.c.b16 %v2806, %v2804
          %v3339 = vpack.c.b16 %v2809, %v2807
          %v3340 = vpack.c.b16 %v2810, %v2808
          %v3341 = vpack.c.b16 %v2813, %v2811
          %v3342 = vpack.c.b16 %v2814, %v2812
          %v3343 = vpack.c.b16 %v2817, %v2815
          %v3344 = vpack.c.b16 %v2818, %v2816
          %v3345 = vpack.c.b16 %v2821, %v2819
          %v3346 = vpack.c.b16 %v2822, %v2820
          %v3347 = vpack.c.b16 %v2825, %v2823
          %v3348 = vpack.c.b16 %v2826, %v2824
          %v3349 = vpack.c.b16 %v2829, %v2827
          %v3350 = vpack.c.b16 %v2830, %v2828
          %v3351 = vpack.c.b16 %v2833, %v2831
          %v3352 = vpack.c.b16 %v2834, %v2832
          %v3353 = vpack.c.b16 %v2837, %v2835
          %v3354 = vpack.c.b16 %v2838, %v2836
          %v3355 = vpack.c.b16 %v2841, %v2839
          %v3356 = vpack.c.b16 %v2842, %v2840
          %v3357 = vpack.c.b16 %v2845, %v2843
          %v3358 = vpack.c.b16 %v2846, %v2844
          %3871 = vmatpush.bf16.msra.mxu0 %v2861
          %3872 = vmatpush.bf16.msra.mxu0 %v2859
          %3873 = vmatpush.bf16.msra.mxu0 %v2857
          %3874 = vmatpush.bf16.msra.mxu0 %v2855
          %3875 = vmatpush.bf16.msra.mxu0 %v2853
          %3876 = vmatpush.bf16.msra.mxu0 %v2851
          %3877 = vmatpush.bf16.msra.mxu0 %v2849
          %3878 = vmatpush.bf16.msra.mxu0 %v2847
          %3879 = vmatmul.bf16.gmra.mxu0 %v1247
          %v3880 = vpop.f32.mrf.mxu0
          %v3881 = vadd.f32 0.0, %v3880
          %v3882 = vpop.f32.mrf.mxu0
          %3883 = vdwg.mxu0
          %3884 = vmatpush.bf16.msra.mxu0 %v2877
          %3885 = vmatpush.bf16.msra.mxu0 %v2875
          %3886 = vmatpush.bf16.msra.mxu0 %v2873
          %3887 = vmatpush.bf16.msra.mxu0 %v2871
          %3888 = vmatpush.bf16.msra.mxu0 %v2869
          %3889 = vmatpush.bf16.msra.mxu0 %v2867
          %3890 = vmatpush.bf16.msra.mxu0 %v2865
          %3891 = vmatpush.bf16.msra.mxu0 %v2863
          %3892 = vmatmul.bf16.gmra.mxu0 %v1248
          %v3893 = vpop.f32.mrf.mxu0
          %v3894 = vadd.f32 %v3881, %v3893
          %v3895 = vpop.f32.mrf.mxu0
          %3896 = vdwg.mxu0
          %3897 = vmatpush.bf16.msra.mxu0 %v2893
          %3898 = vmatpush.bf16.msra.mxu0 %v2891
          %3899 = vmatpush.bf16.msra.mxu0 %v2889
          %3900 = vmatpush.bf16.msra.mxu0 %v2887
          %3901 = vmatpush.bf16.msra.mxu0 %v2885
          %3902 = vmatpush.bf16.msra.mxu0 %v2883
          %3903 = vmatpush.bf16.msra.mxu0 %v2881
          %3904 = vmatpush.bf16.msra.mxu0 %v2879
          %3905 = vmatmul.bf16.gmra.mxu0 %v1249
          %v3906 = vpop.f32.mrf.mxu0
          %v3907 = vadd.f32 %v3894, %v3906
          %v3908 = vpop.f32.mrf.mxu0
          %3909 = vdwg.mxu0
          %3910 = vmatpush.bf16.msra.mxu0 %v2909
          %3911 = vmatpush.bf16.msra.mxu0 %v2907
          %3912 = vmatpush.bf16.msra.mxu0 %v2905
          %3913 = vmatpush.bf16.msra.mxu0 %v2903
          %3914 = vmatpush.bf16.msra.mxu0 %v2901
          %3915 = vmatpush.bf16.msra.mxu0 %v2899
          %3916 = vmatpush.bf16.msra.mxu0 %v2897
          %3917 = vmatpush.bf16.msra.mxu0 %v2895
          %3918 = vmatmul.bf16.gmra.mxu0 %v1250
          %v3919 = vpop.f32.mrf.mxu0
          %v3920 = vadd.f32 %v3907, %v3919
          %v3921 = vpop.f32.mrf.mxu0
          %3922 = vdwg.mxu0
          %3923 = vmatpush.bf16.msra.mxu0 %v2925
          %3924 = vmatpush.bf16.msra.mxu0 %v2923
          %3925 = vmatpush.bf16.msra.mxu0 %v2921
          %3926 = vmatpush.bf16.msra.mxu0 %v2919
          %3927 = vmatpush.bf16.msra.mxu0 %v2917
          %3928 = vmatpush.bf16.msra.mxu0 %v2915
          %3929 = vmatpush.bf16.msra.mxu0 %v2913
          %3930 = vmatpush.bf16.msra.mxu0 %v2911
          %3931 = vmatmul.bf16.gmra.mxu0 %v1251
          %v3932 = vpop.f32.mrf.mxu0
          %v3933 = vadd.f32 %v3920, %v3932
          %v3934 = vpop.f32.mrf.mxu0
          %3935 = vdwg.mxu0
          %3936 = vmatpush.bf16.msra.mxu0 %v2941
          %3937 = vmatpush.bf16.msra.mxu0 %v2939
          %3938 = vmatpush.bf16.msra.mxu0 %v2937
          %3939 = vmatpush.bf16.msra.mxu0 %v2935
          %3940 = vmatpush.bf16.msra.mxu0 %v2933
          %3941 = vmatpush.bf16.msra.mxu0 %v2931
          %3942 = vmatpush.bf16.msra.mxu0 %v2929
          %3943 = vmatpush.bf16.msra.mxu0 %v2927
          %3944 = vmatmul.bf16.gmra.mxu0 %v1252
          %v3945 = vpop.f32.mrf.mxu0
          %v3946 = vadd.f32 %v3933, %v3945
          %v3947 = vpop.f32.mrf.mxu0
          %3948 = vdwg.mxu0
          %3949 = vmatpush.bf16.msra.mxu0 %v2957
          %3950 = vmatpush.bf16.msra.mxu0 %v2955
          %3951 = vmatpush.bf16.msra.mxu0 %v2953
          %3952 = vmatpush.bf16.msra.mxu0 %v2951
          %3953 = vmatpush.bf16.msra.mxu0 %v2949
          %3954 = vmatpush.bf16.msra.mxu0 %v2947
          %3955 = vmatpush.bf16.msra.mxu0 %v2945
          %3956 = vmatpush.bf16.msra.mxu0 %v2943
          %3957 = vmatmul.bf16.gmra.mxu0 %v1253
          %v3958 = vpop.f32.mrf.mxu0
          %v3959 = vadd.f32 %v3946, %v3958
          %v3960 = vpop.f32.mrf.mxu0
          %3961 = vdwg.mxu0
          %3962 = vmatpush.bf16.msra.mxu0 %v2973
          %3963 = vmatpush.bf16.msra.mxu0 %v2971
          %3964 = vmatpush.bf16.msra.mxu0 %v2969
          %3965 = vmatpush.bf16.msra.mxu0 %v2967
          %3966 = vmatpush.bf16.msra.mxu0 %v2965
          %3967 = vmatpush.bf16.msra.mxu0 %v2963
          %3968 = vmatpush.bf16.msra.mxu0 %v2961
          %3969 = vmatpush.bf16.msra.mxu0 %v2959
          %3970 = vmatmul.bf16.gmra.mxu0 %v1254
          %v3971 = vpop.f32.mrf.mxu0
          %v3972 = vadd.f32 %v3959, %v3971
          %v3973 = vpop.f32.mrf.mxu0
          %3974 = vdwg.mxu0
          %3975 = vmatpush.bf16.msra.mxu0 %v2989
          %3976 = vmatpush.bf16.msra.mxu0 %v2987
          %3977 = vmatpush.bf16.msra.mxu0 %v2985
          %3978 = vmatpush.bf16.msra.mxu0 %v2983
          %3979 = vmatpush.bf16.msra.mxu0 %v2981
          %3980 = vmatpush.bf16.msra.mxu0 %v2979
          %3981 = vmatpush.bf16.msra.mxu0 %v2977
          %3982 = vmatpush.bf16.msra.mxu0 %v2975
          %3983 = vmatmul.bf16.gmra.mxu0 %v1255
          %v3984 = vpop.f32.mrf.mxu0
          %v3985 = vadd.f32 %v3972, %v3984
          %v3986 = vpop.f32.mrf.mxu0
          %3987 = vdwg.mxu0
          %3988 = vmatpush.bf16.msra.mxu0 %v3005
          %3989 = vmatpush.bf16.msra.mxu0 %v3003
          %3990 = vmatpush.bf16.msra.mxu0 %v3001
          %3991 = vmatpush.bf16.msra.mxu0 %v2999
          %3992 = vmatpush.bf16.msra.mxu0 %v2997
          %3993 = vmatpush.bf16.msra.mxu0 %v2995
          %3994 = vmatpush.bf16.msra.mxu0 %v2993
          %3995 = vmatpush.bf16.msra.mxu0 %v2991
          %3996 = vmatmul.bf16.gmra.mxu0 %v1256
          %v3997 = vpop.f32.mrf.mxu0
          %v3998 = vadd.f32 %v3985, %v3997
          %v3999 = vpop.f32.mrf.mxu0
          %4000 = vdwg.mxu0
          %4001 = vmatpush.bf16.msra.mxu0 %v3021
          %4002 = vmatpush.bf16.msra.mxu0 %v3019
          %4003 = vmatpush.bf16.msra.mxu0 %v3017
          %4004 = vmatpush.bf16.msra.mxu0 %v3015
          %4005 = vmatpush.bf16.msra.mxu0 %v3013
          %4006 = vmatpush.bf16.msra.mxu0 %v3011
          %4007 = vmatpush.bf16.msra.mxu0 %v3009
          %4008 = vmatpush.bf16.msra.mxu0 %v3007
          %4009 = vmatmul.bf16.gmra.mxu0 %v1257
          %v4010 = vpop.f32.mrf.mxu0
          %v4011 = vadd.f32 %v3998, %v4010
          %v4012 = vpop.f32.mrf.mxu0
          %4013 = vdwg.mxu0
          %4014 = vmatpush.bf16.msra.mxu0 %v3037
          %4015 = vmatpush.bf16.msra.mxu0 %v3035
          %4016 = vmatpush.bf16.msra.mxu0 %v3033
          %4017 = vmatpush.bf16.msra.mxu0 %v3031
          %4018 = vmatpush.bf16.msra.mxu0 %v3029
          %4019 = vmatpush.bf16.msra.mxu0 %v3027
          %4020 = vmatpush.bf16.msra.mxu0 %v3025
          %4021 = vmatpush.bf16.msra.mxu0 %v3023
          %4022 = vmatmul.bf16.gmra.mxu0 %v1258
          %v4023 = vpop.f32.mrf.mxu0
          %v4024 = vadd.f32 %v4011, %v4023
          %v4025 = vpop.f32.mrf.mxu0
          %4026 = vdwg.mxu0
          %4027 = vmatpush.bf16.msra.mxu0 %v3053
          %4028 = vmatpush.bf16.msra.mxu0 %v3051
          %4029 = vmatpush.bf16.msra.mxu0 %v3049
          %4030 = vmatpush.bf16.msra.mxu0 %v3047
          %4031 = vmatpush.bf16.msra.mxu0 %v3045
          %4032 = vmatpush.bf16.msra.mxu0 %v3043
          %4033 = vmatpush.bf16.msra.mxu0 %v3041
          %4034 = vmatpush.bf16.msra.mxu0 %v3039
          %4035 = vmatmul.bf16.gmra.mxu0 %v1259
          %v4036 = vpop.f32.mrf.mxu0
          %v4037 = vadd.f32 %v4024, %v4036
          %v4038 = vpop.f32.mrf.mxu0
          %4039 = vdwg.mxu0
          %4040 = vmatpush.bf16.msra.mxu0 %v3069
          %4041 = vmatpush.bf16.msra.mxu0 %v3067
          %4042 = vmatpush.bf16.msra.mxu0 %v3065
          %4043 = vmatpush.bf16.msra.mxu0 %v3063
          %4044 = vmatpush.bf16.msra.mxu0 %v3061
          %4045 = vmatpush.bf16.msra.mxu0 %v3059
          %4046 = vmatpush.bf16.msra.mxu0 %v3057
          %4047 = vmatpush.bf16.msra.mxu0 %v3055
          %4048 = vmatmul.bf16.gmra.mxu0 %v1260
          %v4049 = vpop.f32.mrf.mxu0
          %v4050 = vadd.f32 %v4037, %v4049
          %v4051 = vpop.f32.mrf.mxu0
          %4052 = vdwg.mxu0
          %4053 = vmatpush.bf16.msra.mxu0 %v3085
          %4054 = vmatpush.bf16.msra.mxu0 %v3083
          %4055 = vmatpush.bf16.msra.mxu0 %v3081
          %4056 = vmatpush.bf16.msra.mxu0 %v3079
          %4057 = vmatpush.bf16.msra.mxu0 %v3077
          %4058 = vmatpush.bf16.msra.mxu0 %v3075
          %4059 = vmatpush.bf16.msra.mxu0 %v3073
          %4060 = vmatpush.bf16.msra.mxu0 %v3071
          %4061 = vmatmul.bf16.gmra.mxu0 %v1261
          %v4062 = vpop.f32.mrf.mxu0
          %v4063 = vadd.f32 %v4050, %v4062
          %v4064 = vpop.f32.mrf.mxu0
          %4065 = vdwg.mxu0
          %4066 = vmatpush.bf16.msra.mxu0 %v3101
          %4067 = vmatpush.bf16.msra.mxu0 %v3099
          %4068 = vmatpush.bf16.msra.mxu0 %v3097
          %4069 = vmatpush.bf16.msra.mxu0 %v3095
          %4070 = vmatpush.bf16.msra.mxu0 %v3093
          %4071 = vmatpush.bf16.msra.mxu0 %v3091
          %4072 = vmatpush.bf16.msra.mxu0 %v3089
          %4073 = vmatpush.bf16.msra.mxu0 %v3087
          %4074 = vmatmul.bf16.gmra.mxu0 %v1262
          %v4075 = vpop.f32.mrf.mxu0
          %v4076 = vadd.f32 %v4063, %v4075
          %v4077 = vpop.f32.mrf.mxu0
          %4078 = vdwg.mxu0
          %4079 = vmatpush.bf16.msra.mxu0 %v3117
          %4080 = vmatpush.bf16.msra.mxu0 %v3115
          %4081 = vmatpush.bf16.msra.mxu0 %v3113
          %4082 = vmatpush.bf16.msra.mxu0 %v3111
          %4083 = vmatpush.bf16.msra.mxu0 %v3109
          %4084 = vmatpush.bf16.msra.mxu0 %v3107
          %4085 = vmatpush.bf16.msra.mxu0 %v3105
          %4086 = vmatpush.bf16.msra.mxu0 %v3103
          %4087 = vmatmul.bf16.gmra.mxu0 %v1263
          %v4088 = vpop.f32.mrf.mxu0
          %v4089 = vadd.f32 %v4076, %v4088
          %v4090 = vpop.f32.mrf.mxu0
          %4091 = vdwg.mxu0
          %4092 = vmatpush.bf16.msra.mxu0 %v3133
          %4093 = vmatpush.bf16.msra.mxu0 %v3131
          %4094 = vmatpush.bf16.msra.mxu0 %v3129
          %4095 = vmatpush.bf16.msra.mxu0 %v3127
          %4096 = vmatpush.bf16.msra.mxu0 %v3125
          %4097 = vmatpush.bf16.msra.mxu0 %v3123
          %4098 = vmatpush.bf16.msra.mxu0 %v3121
          %4099 = vmatpush.bf16.msra.mxu0 %v3119
          %4100 = vmatmul.bf16.gmra.mxu0 %v1264
          %v4101 = vpop.f32.mrf.mxu0
          %v4102 = vadd.f32 %v4089, %v4101
          %v4103 = vpop.f32.mrf.mxu0
          %4104 = vdwg.mxu0
          %4105 = vmatpush.bf16.msra.mxu0 %v3149
          %4106 = vmatpush.bf16.msra.mxu0 %v3147
          %4107 = vmatpush.bf16.msra.mxu0 %v3145
          %4108 = vmatpush.bf16.msra.mxu0 %v3143
          %4109 = vmatpush.bf16.msra.mxu0 %v3141
          %4110 = vmatpush.bf16.msra.mxu0 %v3139
          %4111 = vmatpush.bf16.msra.mxu0 %v3137
          %4112 = vmatpush.bf16.msra.mxu0 %v3135
          %4113 = vmatmul.bf16.gmra.mxu0 %v1265
          %v4114 = vpop.f32.mrf.mxu0
          %v4115 = vadd.f32 %v4102, %v4114
          %v4116 = vpop.f32.mrf.mxu0
          %4117 = vdwg.mxu0
          %4118 = vmatpush.bf16.msra.mxu0 %v3165
          %4119 = vmatpush.bf16.msra.mxu0 %v3163
          %4120 = vmatpush.bf16.msra.mxu0 %v3161
          %4121 = vmatpush.bf16.msra.mxu0 %v3159
          %4122 = vmatpush.bf16.msra.mxu0 %v3157
          %4123 = vmatpush.bf16.msra.mxu0 %v3155
          %4124 = vmatpush.bf16.msra.mxu0 %v3153
          %4125 = vmatpush.bf16.msra.mxu0 %v3151
          %4126 = vmatmul.bf16.gmra.mxu0 %v1266
          %v4127 = vpop.f32.mrf.mxu0
          %v4128 = vadd.f32 %v4115, %v4127
          %v4129 = vpop.f32.mrf.mxu0
          %4130 = vdwg.mxu0
          %4131 = vmatpush.bf16.msra.mxu0 %v3181
          %4132 = vmatpush.bf16.msra.mxu0 %v3179
          %4133 = vmatpush.bf16.msra.mxu0 %v3177
          %4134 = vmatpush.bf16.msra.mxu0 %v3175
          %4135 = vmatpush.bf16.msra.mxu0 %v3173
          %4136 = vmatpush.bf16.msra.mxu0 %v3171
          %4137 = vmatpush.bf16.msra.mxu0 %v3169
          %4138 = vmatpush.bf16.msra.mxu0 %v3167
          %4139 = vmatmul.bf16.gmra.mxu0 %v1267
          %v4140 = vpop.f32.mrf.mxu0
          %v4141 = vadd.f32 %v4128, %v4140
          %v4142 = vpop.f32.mrf.mxu0
          %4143 = vdwg.mxu0
          %4144 = vmatpush.bf16.msra.mxu0 %v3197
          %4145 = vmatpush.bf16.msra.mxu0 %v3195
          %4146 = vmatpush.bf16.msra.mxu0 %v3193
          %4147 = vmatpush.bf16.msra.mxu0 %v3191
          %4148 = vmatpush.bf16.msra.mxu0 %v3189
          %4149 = vmatpush.bf16.msra.mxu0 %v3187
          %4150 = vmatpush.bf16.msra.mxu0 %v3185
          %4151 = vmatpush.bf16.msra.mxu0 %v3183
          %4152 = vmatmul.bf16.gmra.mxu0 %v1268
          %v4153 = vpop.f32.mrf.mxu0
          %v4154 = vadd.f32 %v4141, %v4153
          %v4155 = vpop.f32.mrf.mxu0
          %4156 = vdwg.mxu0
          %4157 = vmatpush.bf16.msra.mxu0 %v3213
          %4158 = vmatpush.bf16.msra.mxu0 %v3211
          %4159 = vmatpush.bf16.msra.mxu0 %v3209
          %4160 = vmatpush.bf16.msra.mxu0 %v3207
          %4161 = vmatpush.bf16.msra.mxu0 %v3205
          %4162 = vmatpush.bf16.msra.mxu0 %v3203
          %4163 = vmatpush.bf16.msra.mxu0 %v3201
          %4164 = vmatpush.bf16.msra.mxu0 %v3199
          %4165 = vmatmul.bf16.gmra.mxu0 %v1269
          %v4166 = vpop.f32.mrf.mxu0
          %v4167 = vadd.f32 %v4154, %v4166
          %v4168 = vpop.f32.mrf.mxu0
          %4169 = vdwg.mxu0
          %4170 = vmatpush.bf16.msra.mxu0 %v3229
          %4171 = vmatpush.bf16.msra.mxu0 %v3227
          %4172 = vmatpush.bf16.msra.mxu0 %v3225
          %4173 = vmatpush.bf16.msra.mxu0 %v3223
          %4174 = vmatpush.bf16.msra.mxu0 %v3221
          %4175 = vmatpush.bf16.msra.mxu0 %v3219
          %4176 = vmatpush.bf16.msra.mxu0 %v3217
          %4177 = vmatpush.bf16.msra.mxu0 %v3215
          %4178 = vmatmul.bf16.gmra.mxu0 %v1270
          %v4179 = vpop.f32.mrf.mxu0
          %v4180 = vadd.f32 %v4167, %v4179
          %v4181 = vpop.f32.mrf.mxu0
          %4182 = vdwg.mxu0
          %4183 = vmatpush.bf16.msra.mxu0 %v3245
          %4184 = vmatpush.bf16.msra.mxu0 %v3243
          %4185 = vmatpush.bf16.msra.mxu0 %v3241
          %4186 = vmatpush.bf16.msra.mxu0 %v3239
          %4187 = vmatpush.bf16.msra.mxu0 %v3237
          %4188 = vmatpush.bf16.msra.mxu0 %v3235
          %4189 = vmatpush.bf16.msra.mxu0 %v3233
          %4190 = vmatpush.bf16.msra.mxu0 %v3231
          %4191 = vmatmul.bf16.gmra.mxu0 %v1271
          %v4192 = vpop.f32.mrf.mxu0
          %v4193 = vadd.f32 %v4180, %v4192
          %v4194 = vpop.f32.mrf.mxu0
          %4195 = vdwg.mxu0
          %4196 = vmatpush.bf16.msra.mxu0 %v3261
          %4197 = vmatpush.bf16.msra.mxu0 %v3259
          %4198 = vmatpush.bf16.msra.mxu0 %v3257
          %4199 = vmatpush.bf16.msra.mxu0 %v3255
          %4200 = vmatpush.bf16.msra.mxu0 %v3253
          %4201 = vmatpush.bf16.msra.mxu0 %v3251
          %4202 = vmatpush.bf16.msra.mxu0 %v3249
          %4203 = vmatpush.bf16.msra.mxu0 %v3247
          %4204 = vmatmul.bf16.gmra.mxu0 %v1272
          %v4205 = vpop.f32.mrf.mxu0
          %v4206 = vadd.f32 %v4193, %v4205
          %v4207 = vpop.f32.mrf.mxu0
          %4208 = vdwg.mxu0
          %4209 = vmatpush.bf16.msra.mxu0 %v3277
          %4210 = vmatpush.bf16.msra.mxu0 %v3275
          %4211 = vmatpush.bf16.msra.mxu0 %v3273
          %4212 = vmatpush.bf16.msra.mxu0 %v3271
          %4213 = vmatpush.bf16.msra.mxu0 %v3269
          %4214 = vmatpush.bf16.msra.mxu0 %v3267
          %4215 = vmatpush.bf16.msra.mxu0 %v3265
          %4216 = vmatpush.bf16.msra.mxu0 %v3263
          %4217 = vmatmul.bf16.gmra.mxu0 %v1273
          %v4218 = vpop.f32.mrf.mxu0
          %v4219 = vadd.f32 %v4206, %v4218
          %v4220 = vpop.f32.mrf.mxu0
          %4221 = vdwg.mxu0
          %4222 = vmatpush.bf16.msra.mxu0 %v3293
          %4223 = vmatpush.bf16.msra.mxu0 %v3291
          %4224 = vmatpush.bf16.msra.mxu0 %v3289
          %4225 = vmatpush.bf16.msra.mxu0 %v3287
          %4226 = vmatpush.bf16.msra.mxu0 %v3285
          %4227 = vmatpush.bf16.msra.mxu0 %v3283
          %4228 = vmatpush.bf16.msra.mxu0 %v3281
          %4229 = vmatpush.bf16.msra.mxu0 %v3279
          %4230 = vmatmul.bf16.gmra.mxu0 %v1274
          %v4231 = vpop.f32.mrf.mxu0
          %v4232 = vadd.f32 %v4219, %v4231
          %v4233 = vpop.f32.mrf.mxu0
          %4234 = vdwg.mxu0
          %4235 = vmatpush.bf16.msra.mxu0 %v3309
          %4236 = vmatpush.bf16.msra.mxu0 %v3307
          %4237 = vmatpush.bf16.msra.mxu0 %v3305
          %4238 = vmatpush.bf16.msra.mxu0 %v3303
          %4239 = vmatpush.bf16.msra.mxu0 %v3301
          %4240 = vmatpush.bf16.msra.mxu0 %v3299
          %4241 = vmatpush.bf16.msra.mxu0 %v3297
          %4242 = vmatpush.bf16.msra.mxu0 %v3295
          %4243 = vmatmul.bf16.gmra.mxu0 %v1275
          %v4244 = vpop.f32.mrf.mxu0
          %v4245 = vadd.f32 %v4232, %v4244
          %v4246 = vpop.f32.mrf.mxu0
          %4247 = vdwg.mxu0
          %4248 = vmatpush.bf16.msra.mxu0 %v3325
          %4249 = vmatpush.bf16.msra.mxu0 %v3323
          %4250 = vmatpush.bf16.msra.mxu0 %v3321
          %4251 = vmatpush.bf16.msra.mxu0 %v3319
          %4252 = vmatpush.bf16.msra.mxu0 %v3317
          %4253 = vmatpush.bf16.msra.mxu0 %v3315
          %4254 = vmatpush.bf16.msra.mxu0 %v3313
          %4255 = vmatpush.bf16.msra.mxu0 %v3311
          %4256 = vmatmul.bf16.gmra.mxu0 %v1276
          %v4257 = vpop.f32.mrf.mxu0
          %v4258 = vadd.f32 %v4245, %v4257
          %v4259 = vpop.f32.mrf.mxu0
          %4260 = vdwg.mxu0
          %4261 = vmatpush.bf16.msra.mxu0 %v3341
          %4262 = vmatpush.bf16.msra.mxu0 %v3339
          %4263 = vmatpush.bf16.msra.mxu0 %v3337
          %4264 = vmatpush.bf16.msra.mxu0 %v3335
          %4265 = vmatpush.bf16.msra.mxu0 %v3333
          %4266 = vmatpush.bf16.msra.mxu0 %v3331
          %4267 = vmatpush.bf16.msra.mxu0 %v3329
          %4268 = vmatpush.bf16.msra.mxu0 %v3327
          %4269 = vmatmul.bf16.gmra.mxu0 %v1277
          %v4270 = vpop.f32.mrf.mxu0
          %v4271 = vadd.f32 %v4258, %v4270
          %v4272 = vpop.f32.mrf.mxu0
          %4273 = vdwg.mxu0
          %4274 = vmatpush.bf16.msra.mxu0 %v3357
          %4275 = vmatpush.bf16.msra.mxu0 %v3355
          %4276 = vmatpush.bf16.msra.mxu0 %v3353
          %4277 = vmatpush.bf16.msra.mxu0 %v3351
          %4278 = vmatpush.bf16.msra.mxu0 %v3349
          %4279 = vmatpush.bf16.msra.mxu0 %v3347
          %4280 = vmatpush.bf16.msra.mxu0 %v3345
          %4281 = vmatpush.bf16.msra.mxu0 %v3343
          %4282 = vmatmul.bf16.gmra.mxu0 %v1278
          %v4283 = vpop.f32.mrf.mxu0
          %v4284 = vadd.f32 %v4271, %v4283
          %v4285 = vpop.f32.mrf.mxu0
          %4286 = vdwg.mxu0
          %4287 = vmatpush.bf16.msra.mxu0 %v2862
          %4288 = vmatpush.bf16.msra.mxu0 %v2860
          %4289 = vmatpush.bf16.msra.mxu0 %v2858
          %4290 = vmatpush.bf16.msra.mxu0 %v2856
          %4291 = vmatpush.bf16.msra.mxu0 %v2854
          %4292 = vmatpush.bf16.msra.mxu0 %v2852
          %4293 = vmatpush.bf16.msra.mxu0 %v2850
          %4294 = vmatpush.bf16.msra.mxu0 %v2848
          %4295 = vmatmul.bf16.gmra.mxu0 %v1247
          %v4296 = vpop.f32.mrf.mxu0
          %v4297 = vadd.f32 0.0, %v4296
          %v4298 = vpop.f32.mrf.mxu0
          %4299 = vdwg.mxu0
          %4300 = vmatpush.bf16.msra.mxu0 %v2878
          %4301 = vmatpush.bf16.msra.mxu0 %v2876
          %4302 = vmatpush.bf16.msra.mxu0 %v2874
          %4303 = vmatpush.bf16.msra.mxu0 %v2872
          %4304 = vmatpush.bf16.msra.mxu0 %v2870
          %4305 = vmatpush.bf16.msra.mxu0 %v2868
          %4306 = vmatpush.bf16.msra.mxu0 %v2866
          %4307 = vmatpush.bf16.msra.mxu0 %v2864
          %4308 = vmatmul.bf16.gmra.mxu0 %v1248
          %v4309 = vpop.f32.mrf.mxu0
          %v4310 = vadd.f32 %v4297, %v4309
          %v4311 = vpop.f32.mrf.mxu0
          %4312 = vdwg.mxu0
          %4313 = vmatpush.bf16.msra.mxu0 %v2894
          %4314 = vmatpush.bf16.msra.mxu0 %v2892
          %4315 = vmatpush.bf16.msra.mxu0 %v2890
          %4316 = vmatpush.bf16.msra.mxu0 %v2888
          %4317 = vmatpush.bf16.msra.mxu0 %v2886
          %4318 = vmatpush.bf16.msra.mxu0 %v2884
          %4319 = vmatpush.bf16.msra.mxu0 %v2882
          %4320 = vmatpush.bf16.msra.mxu0 %v2880
          %4321 = vmatmul.bf16.gmra.mxu0 %v1249
          %v4322 = vpop.f32.mrf.mxu0
          %v4323 = vadd.f32 %v4310, %v4322
          %v4324 = vpop.f32.mrf.mxu0
          %4325 = vdwg.mxu0
          %4326 = vmatpush.bf16.msra.mxu0 %v2910
          %4327 = vmatpush.bf16.msra.mxu0 %v2908
          %4328 = vmatpush.bf16.msra.mxu0 %v2906
          %4329 = vmatpush.bf16.msra.mxu0 %v2904
          %4330 = vmatpush.bf16.msra.mxu0 %v2902
          %4331 = vmatpush.bf16.msra.mxu0 %v2900
          %4332 = vmatpush.bf16.msra.mxu0 %v2898
          %4333 = vmatpush.bf16.msra.mxu0 %v2896
          %4334 = vmatmul.bf16.gmra.mxu0 %v1250
          %v4335 = vpop.f32.mrf.mxu0
          %v4336 = vadd.f32 %v4323, %v4335
          %v4337 = vpop.f32.mrf.mxu0
          %4338 = vdwg.mxu0
          %4339 = vmatpush.bf16.msra.mxu0 %v2926
          %4340 = vmatpush.bf16.msra.mxu0 %v2924
          %4341 = vmatpush.bf16.msra.mxu0 %v2922
          %4342 = vmatpush.bf16.msra.mxu0 %v2920
          %4343 = vmatpush.bf16.msra.mxu0 %v2918
          %4344 = vmatpush.bf16.msra.mxu0 %v2916
          %4345 = vmatpush.bf16.msra.mxu0 %v2914
          %4346 = vmatpush.bf16.msra.mxu0 %v2912
          %4347 = vmatmul.bf16.gmra.mxu0 %v1251
          %v4348 = vpop.f32.mrf.mxu0
          %v4349 = vadd.f32 %v4336, %v4348
          %v4350 = vpop.f32.mrf.mxu0
          %4351 = vdwg.mxu0
          %4352 = vmatpush.bf16.msra.mxu0 %v2942
          %4353 = vmatpush.bf16.msra.mxu0 %v2940
          %4354 = vmatpush.bf16.msra.mxu0 %v2938
          %4355 = vmatpush.bf16.msra.mxu0 %v2936
          %4356 = vmatpush.bf16.msra.mxu0 %v2934
          %4357 = vmatpush.bf16.msra.mxu0 %v2932
          %4358 = vmatpush.bf16.msra.mxu0 %v2930
          %4359 = vmatpush.bf16.msra.mxu0 %v2928
          %4360 = vmatmul.bf16.gmra.mxu0 %v1252
          %v4361 = vpop.f32.mrf.mxu0
          %v4362 = vadd.f32 %v4349, %v4361
          %v4363 = vpop.f32.mrf.mxu0
          %4364 = vdwg.mxu0
          %4365 = vmatpush.bf16.msra.mxu0 %v2958
          %4366 = vmatpush.bf16.msra.mxu0 %v2956
          %4367 = vmatpush.bf16.msra.mxu0 %v2954
          %4368 = vmatpush.bf16.msra.mxu0 %v2952
          %4369 = vmatpush.bf16.msra.mxu0 %v2950
          %4370 = vmatpush.bf16.msra.mxu0 %v2948
          %4371 = vmatpush.bf16.msra.mxu0 %v2946
          %4372 = vmatpush.bf16.msra.mxu0 %v2944
          %4373 = vmatmul.bf16.gmra.mxu0 %v1253
          %v4374 = vpop.f32.mrf.mxu0
          %v4375 = vadd.f32 %v4362, %v4374
          %v4376 = vpop.f32.mrf.mxu0
          %4377 = vdwg.mxu0
          %4378 = vmatpush.bf16.msra.mxu0 %v2974
          %4379 = vmatpush.bf16.msra.mxu0 %v2972
          %4380 = vmatpush.bf16.msra.mxu0 %v2970
          %4381 = vmatpush.bf16.msra.mxu0 %v2968
          %4382 = vmatpush.bf16.msra.mxu0 %v2966
          %4383 = vmatpush.bf16.msra.mxu0 %v2964
          %4384 = vmatpush.bf16.msra.mxu0 %v2962
          %4385 = vmatpush.bf16.msra.mxu0 %v2960
          %4386 = vmatmul.bf16.gmra.mxu0 %v1254
          %v4387 = vpop.f32.mrf.mxu0
          %v4388 = vadd.f32 %v4375, %v4387
          %v4389 = vpop.f32.mrf.mxu0
          %4390 = vdwg.mxu0
          %4391 = vmatpush.bf16.msra.mxu0 %v2990
          %4392 = vmatpush.bf16.msra.mxu0 %v2988
          %4393 = vmatpush.bf16.msra.mxu0 %v2986
          %4394 = vmatpush.bf16.msra.mxu0 %v2984
          %4395 = vmatpush.bf16.msra.mxu0 %v2982
          %4396 = vmatpush.bf16.msra.mxu0 %v2980
          %4397 = vmatpush.bf16.msra.mxu0 %v2978
          %4398 = vmatpush.bf16.msra.mxu0 %v2976
          %4399 = vmatmul.bf16.gmra.mxu0 %v1255
          %v4400 = vpop.f32.mrf.mxu0
          %v4401 = vadd.f32 %v4388, %v4400
          %v4402 = vpop.f32.mrf.mxu0
          %4403 = vdwg.mxu0
          %4404 = vmatpush.bf16.msra.mxu0 %v3006
          %4405 = vmatpush.bf16.msra.mxu0 %v3004
          %4406 = vmatpush.bf16.msra.mxu0 %v3002
          %4407 = vmatpush.bf16.msra.mxu0 %v3000
          %4408 = vmatpush.bf16.msra.mxu0 %v2998
          %4409 = vmatpush.bf16.msra.mxu0 %v2996
          %4410 = vmatpush.bf16.msra.mxu0 %v2994
          %4411 = vmatpush.bf16.msra.mxu0 %v2992
          %4412 = vmatmul.bf16.gmra.mxu0 %v1256
          %v4413 = vpop.f32.mrf.mxu0
          %v4414 = vadd.f32 %v4401, %v4413
          %v4415 = vpop.f32.mrf.mxu0
          %4416 = vdwg.mxu0
          %4417 = vmatpush.bf16.msra.mxu0 %v3022
          %4418 = vmatpush.bf16.msra.mxu0 %v3020
          %4419 = vmatpush.bf16.msra.mxu0 %v3018
          %4420 = vmatpush.bf16.msra.mxu0 %v3016
          %4421 = vmatpush.bf16.msra.mxu0 %v3014
          %4422 = vmatpush.bf16.msra.mxu0 %v3012
          %4423 = vmatpush.bf16.msra.mxu0 %v3010
          %4424 = vmatpush.bf16.msra.mxu0 %v3008
          %4425 = vmatmul.bf16.gmra.mxu0 %v1257
          %v4426 = vpop.f32.mrf.mxu0
          %v4427 = vadd.f32 %v4414, %v4426
          %v4428 = vpop.f32.mrf.mxu0
          %4429 = vdwg.mxu0
          %4430 = vmatpush.bf16.msra.mxu0 %v3038
          %4431 = vmatpush.bf16.msra.mxu0 %v3036
          %4432 = vmatpush.bf16.msra.mxu0 %v3034
          %4433 = vmatpush.bf16.msra.mxu0 %v3032
          %4434 = vmatpush.bf16.msra.mxu0 %v3030
          %4435 = vmatpush.bf16.msra.mxu0 %v3028
          %4436 = vmatpush.bf16.msra.mxu0 %v3026
          %4437 = vmatpush.bf16.msra.mxu0 %v3024
          %4438 = vmatmul.bf16.gmra.mxu0 %v1258
          %v4439 = vpop.f32.mrf.mxu0
          %v4440 = vadd.f32 %v4427, %v4439
          %v4441 = vpop.f32.mrf.mxu0
          %4442 = vdwg.mxu0
          %4443 = vmatpush.bf16.msra.mxu0 %v3054
          %4444 = vmatpush.bf16.msra.mxu0 %v3052
          %4445 = vmatpush.bf16.msra.mxu0 %v3050
          %4446 = vmatpush.bf16.msra.mxu0 %v3048
          %4447 = vmatpush.bf16.msra.mxu0 %v3046
          %4448 = vmatpush.bf16.msra.mxu0 %v3044
          %4449 = vmatpush.bf16.msra.mxu0 %v3042
          %4450 = vmatpush.bf16.msra.mxu0 %v3040
          %4451 = vmatmul.bf16.gmra.mxu0 %v1259
          %v4452 = vpop.f32.mrf.mxu0
          %v4453 = vadd.f32 %v4440, %v4452
          %v4454 = vpop.f32.mrf.mxu0
          %4455 = vdwg.mxu0
          %4456 = vmatpush.bf16.msra.mxu0 %v3070
          %4457 = vmatpush.bf16.msra.mxu0 %v3068
          %4458 = vmatpush.bf16.msra.mxu0 %v3066
          %4459 = vmatpush.bf16.msra.mxu0 %v3064
          %4460 = vmatpush.bf16.msra.mxu0 %v3062
          %4461 = vmatpush.bf16.msra.mxu0 %v3060
          %4462 = vmatpush.bf16.msra.mxu0 %v3058
          %4463 = vmatpush.bf16.msra.mxu0 %v3056
          %4464 = vmatmul.bf16.gmra.mxu0 %v1260
          %v4465 = vpop.f32.mrf.mxu0
          %v4466 = vadd.f32 %v4453, %v4465
          %v4467 = vpop.f32.mrf.mxu0
          %4468 = vdwg.mxu0
          %4469 = vmatpush.bf16.msra.mxu0 %v3086
          %4470 = vmatpush.bf16.msra.mxu0 %v3084
          %4471 = vmatpush.bf16.msra.mxu0 %v3082
          %4472 = vmatpush.bf16.msra.mxu0 %v3080
          %4473 = vmatpush.bf16.msra.mxu0 %v3078
          %4474 = vmatpush.bf16.msra.mxu0 %v3076
          %4475 = vmatpush.bf16.msra.mxu0 %v3074
          %4476 = vmatpush.bf16.msra.mxu0 %v3072
          %4477 = vmatmul.bf16.gmra.mxu0 %v1261
          %v4478 = vpop.f32.mrf.mxu0
          %v4479 = vadd.f32 %v4466, %v4478
          %v4480 = vpop.f32.mrf.mxu0
          %4481 = vdwg.mxu0
          %4482 = vmatpush.bf16.msra.mxu0 %v3102
          %4483 = vmatpush.bf16.msra.mxu0 %v3100
          %4484 = vmatpush.bf16.msra.mxu0 %v3098
          %4485 = vmatpush.bf16.msra.mxu0 %v3096
          %4486 = vmatpush.bf16.msra.mxu0 %v3094
          %4487 = vmatpush.bf16.msra.mxu0 %v3092
          %4488 = vmatpush.bf16.msra.mxu0 %v3090
          %4489 = vmatpush.bf16.msra.mxu0 %v3088
          %4490 = vmatmul.bf16.gmra.mxu0 %v1262
          %v4491 = vpop.f32.mrf.mxu0
          %v4492 = vadd.f32 %v4479, %v4491
          %v4493 = vpop.f32.mrf.mxu0
          %4494 = vdwg.mxu0
          %4495 = vmatpush.bf16.msra.mxu0 %v3118
          %4496 = vmatpush.bf16.msra.mxu0 %v3116
          %4497 = vmatpush.bf16.msra.mxu0 %v3114
          %4498 = vmatpush.bf16.msra.mxu0 %v3112
          %4499 = vmatpush.bf16.msra.mxu0 %v3110
          %4500 = vmatpush.bf16.msra.mxu0 %v3108
          %4501 = vmatpush.bf16.msra.mxu0 %v3106
          %4502 = vmatpush.bf16.msra.mxu0 %v3104
          %4503 = vmatmul.bf16.gmra.mxu0 %v1263
          %v4504 = vpop.f32.mrf.mxu0
          %v4505 = vadd.f32 %v4492, %v4504
          %v4506 = vpop.f32.mrf.mxu0
          %4507 = vdwg.mxu0
          %4508 = vmatpush.bf16.msra.mxu0 %v3134
          %4509 = vmatpush.bf16.msra.mxu0 %v3132
          %4510 = vmatpush.bf16.msra.mxu0 %v3130
          %4511 = vmatpush.bf16.msra.mxu0 %v3128
          %4512 = vmatpush.bf16.msra.mxu0 %v3126
          %4513 = vmatpush.bf16.msra.mxu0 %v3124
          %4514 = vmatpush.bf16.msra.mxu0 %v3122
          %4515 = vmatpush.bf16.msra.mxu0 %v3120
          %4516 = vmatmul.bf16.gmra.mxu0 %v1264
          %v4517 = vpop.f32.mrf.mxu0
          %v4518 = vadd.f32 %v4505, %v4517
          %v4519 = vpop.f32.mrf.mxu0
          %4520 = vdwg.mxu0
          %4521 = vmatpush.bf16.msra.mxu0 %v3150
          %4522 = vmatpush.bf16.msra.mxu0 %v3148
          %4523 = vmatpush.bf16.msra.mxu0 %v3146
          %4524 = vmatpush.bf16.msra.mxu0 %v3144
          %4525 = vmatpush.bf16.msra.mxu0 %v3142
          %4526 = vmatpush.bf16.msra.mxu0 %v3140
          %4527 = vmatpush.bf16.msra.mxu0 %v3138
          %4528 = vmatpush.bf16.msra.mxu0 %v3136
          %4529 = vmatmul.bf16.gmra.mxu0 %v1265
          %v4530 = vpop.f32.mrf.mxu0
          %v4531 = vadd.f32 %v4518, %v4530
          %v4532 = vpop.f32.mrf.mxu0
          %4533 = vdwg.mxu0
          %4534 = vmatpush.bf16.msra.mxu0 %v3166
          %4535 = vmatpush.bf16.msra.mxu0 %v3164
          %4536 = vmatpush.bf16.msra.mxu0 %v3162
          %4537 = vmatpush.bf16.msra.mxu0 %v3160
          %4538 = vmatpush.bf16.msra.mxu0 %v3158
          %4539 = vmatpush.bf16.msra.mxu0 %v3156
          %4540 = vmatpush.bf16.msra.mxu0 %v3154
          %4541 = vmatpush.bf16.msra.mxu0 %v3152
          %4542 = vmatmul.bf16.gmra.mxu0 %v1266
          %v4543 = vpop.f32.mrf.mxu0
          %v4544 = vadd.f32 %v4531, %v4543
          %v4545 = vpop.f32.mrf.mxu0
          %4546 = vdwg.mxu0
          %4547 = vmatpush.bf16.msra.mxu0 %v3182
          %4548 = vmatpush.bf16.msra.mxu0 %v3180
          %4549 = vmatpush.bf16.msra.mxu0 %v3178
          %4550 = vmatpush.bf16.msra.mxu0 %v3176
          %4551 = vmatpush.bf16.msra.mxu0 %v3174
          %4552 = vmatpush.bf16.msra.mxu0 %v3172
          %4553 = vmatpush.bf16.msra.mxu0 %v3170
          %4554 = vmatpush.bf16.msra.mxu0 %v3168
          %4555 = vmatmul.bf16.gmra.mxu0 %v1267
          %v4556 = vpop.f32.mrf.mxu0
          %v4557 = vadd.f32 %v4544, %v4556
          %v4558 = vpop.f32.mrf.mxu0
          %4559 = vdwg.mxu0
          %4560 = vmatpush.bf16.msra.mxu0 %v3198
          %4561 = vmatpush.bf16.msra.mxu0 %v3196
          %4562 = vmatpush.bf16.msra.mxu0 %v3194
          %4563 = vmatpush.bf16.msra.mxu0 %v3192
          %4564 = vmatpush.bf16.msra.mxu0 %v3190
          %4565 = vmatpush.bf16.msra.mxu0 %v3188
          %4566 = vmatpush.bf16.msra.mxu0 %v3186
          %4567 = vmatpush.bf16.msra.mxu0 %v3184
          %4568 = vmatmul.bf16.gmra.mxu0 %v1268
          %v4569 = vpop.f32.mrf.mxu0
          %v4570 = vadd.f32 %v4557, %v4569
          %v4571 = vpop.f32.mrf.mxu0
          %4572 = vdwg.mxu0
          %4573 = vmatpush.bf16.msra.mxu0 %v3214
          %4574 = vmatpush.bf16.msra.mxu0 %v3212
          %4575 = vmatpush.bf16.msra.mxu0 %v3210
          %4576 = vmatpush.bf16.msra.mxu0 %v3208
          %4577 = vmatpush.bf16.msra.mxu0 %v3206
          %4578 = vmatpush.bf16.msra.mxu0 %v3204
          %4579 = vmatpush.bf16.msra.mxu0 %v3202
          %4580 = vmatpush.bf16.msra.mxu0 %v3200
          %4581 = vmatmul.bf16.gmra.mxu0 %v1269
          %v4582 = vpop.f32.mrf.mxu0
          %v4583 = vadd.f32 %v4570, %v4582
          %v4584 = vpop.f32.mrf.mxu0
          %4585 = vdwg.mxu0
          %4586 = vmatpush.bf16.msra.mxu0 %v3230
          %4587 = vmatpush.bf16.msra.mxu0 %v3228
          %4588 = vmatpush.bf16.msra.mxu0 %v3226
          %4589 = vmatpush.bf16.msra.mxu0 %v3224
          %4590 = vmatpush.bf16.msra.mxu0 %v3222
          %4591 = vmatpush.bf16.msra.mxu0 %v3220
          %4592 = vmatpush.bf16.msra.mxu0 %v3218
          %4593 = vmatpush.bf16.msra.mxu0 %v3216
          %4594 = vmatmul.bf16.gmra.mxu0 %v1270
          %v4595 = vpop.f32.mrf.mxu0
          %v4596 = vadd.f32 %v4583, %v4595
          %v4597 = vpop.f32.mrf.mxu0
          %4598 = vdwg.mxu0
          %4599 = vmatpush.bf16.msra.mxu0 %v3246
          %4600 = vmatpush.bf16.msra.mxu0 %v3244
          %4601 = vmatpush.bf16.msra.mxu0 %v3242
          %4602 = vmatpush.bf16.msra.mxu0 %v3240
          %4603 = vmatpush.bf16.msra.mxu0 %v3238
          %4604 = vmatpush.bf16.msra.mxu0 %v3236
          %4605 = vmatpush.bf16.msra.mxu0 %v3234
          %4606 = vmatpush.bf16.msra.mxu0 %v3232
          %4607 = vmatmul.bf16.gmra.mxu0 %v1271
          %v4608 = vpop.f32.mrf.mxu0
          %v4609 = vadd.f32 %v4596, %v4608
          %v4610 = vpop.f32.mrf.mxu0
          %4611 = vdwg.mxu0
          %4612 = vmatpush.bf16.msra.mxu0 %v3262
          %4613 = vmatpush.bf16.msra.mxu0 %v3260
          %4614 = vmatpush.bf16.msra.mxu0 %v3258
          %4615 = vmatpush.bf16.msra.mxu0 %v3256
          %4616 = vmatpush.bf16.msra.mxu0 %v3254
          %4617 = vmatpush.bf16.msra.mxu0 %v3252
          %4618 = vmatpush.bf16.msra.mxu0 %v3250
          %4619 = vmatpush.bf16.msra.mxu0 %v3248
          %4620 = vmatmul.bf16.gmra.mxu0 %v1272
          %v4621 = vpop.f32.mrf.mxu0
          %v4622 = vadd.f32 %v4609, %v4621
          %v4623 = vpop.f32.mrf.mxu0
          %4624 = vdwg.mxu0
          %4625 = vmatpush.bf16.msra.mxu0 %v3278
          %4626 = vmatpush.bf16.msra.mxu0 %v3276
          %4627 = vmatpush.bf16.msra.mxu0 %v3274
          %4628 = vmatpush.bf16.msra.mxu0 %v3272
          %4629 = vmatpush.bf16.msra.mxu0 %v3270
          %4630 = vmatpush.bf16.msra.mxu0 %v3268
          %4631 = vmatpush.bf16.msra.mxu0 %v3266
          %4632 = vmatpush.bf16.msra.mxu0 %v3264
          %4633 = vmatmul.bf16.gmra.mxu0 %v1273
          %v4634 = vpop.f32.mrf.mxu0
          %v4635 = vadd.f32 %v4622, %v4634
          %v4636 = vpop.f32.mrf.mxu0
          %4637 = vdwg.mxu0
          %4638 = vmatpush.bf16.msra.mxu0 %v3294
          %4639 = vmatpush.bf16.msra.mxu0 %v3292
          %4640 = vmatpush.bf16.msra.mxu0 %v3290
          %4641 = vmatpush.bf16.msra.mxu0 %v3288
          %4642 = vmatpush.bf16.msra.mxu0 %v3286
          %4643 = vmatpush.bf16.msra.mxu0 %v3284
          %4644 = vmatpush.bf16.msra.mxu0 %v3282
          %4645 = vmatpush.bf16.msra.mxu0 %v3280
          %4646 = vmatmul.bf16.gmra.mxu0 %v1274
          %v4647 = vpop.f32.mrf.mxu0
          %v4648 = vadd.f32 %v4635, %v4647
          %v4649 = vpop.f32.mrf.mxu0
          %4650 = vdwg.mxu0
          %4651 = vmatpush.bf16.msra.mxu0 %v3310
          %4652 = vmatpush.bf16.msra.mxu0 %v3308
          %4653 = vmatpush.bf16.msra.mxu0 %v3306
          %4654 = vmatpush.bf16.msra.mxu0 %v3304
          %4655 = vmatpush.bf16.msra.mxu0 %v3302
          %4656 = vmatpush.bf16.msra.mxu0 %v3300
          %4657 = vmatpush.bf16.msra.mxu0 %v3298
          %4658 = vmatpush.bf16.msra.mxu0 %v3296
          %4659 = vmatmul.bf16.gmra.mxu0 %v1275
          %v4660 = vpop.f32.mrf.mxu0
          %v4661 = vadd.f32 %v4648, %v4660
          %v4662 = vpop.f32.mrf.mxu0
          %4663 = vdwg.mxu0
          %4664 = vmatpush.bf16.msra.mxu0 %v3326
          %4665 = vmatpush.bf16.msra.mxu0 %v3324
          %4666 = vmatpush.bf16.msra.mxu0 %v3322
          %4667 = vmatpush.bf16.msra.mxu0 %v3320
          %4668 = vmatpush.bf16.msra.mxu0 %v3318
          %4669 = vmatpush.bf16.msra.mxu0 %v3316
          %4670 = vmatpush.bf16.msra.mxu0 %v3314
          %4671 = vmatpush.bf16.msra.mxu0 %v3312
          %4672 = vmatmul.bf16.gmra.mxu0 %v1276
          %v4673 = vpop.f32.mrf.mxu0
          %v4674 = vadd.f32 %v4661, %v4673
          %v4675 = vpop.f32.mrf.mxu0
          %4676 = vdwg.mxu0
          %4677 = vmatpush.bf16.msra.mxu0 %v3342
          %4678 = vmatpush.bf16.msra.mxu0 %v3340
          %4679 = vmatpush.bf16.msra.mxu0 %v3338
          %4680 = vmatpush.bf16.msra.mxu0 %v3336
          %4681 = vmatpush.bf16.msra.mxu0 %v3334
          %4682 = vmatpush.bf16.msra.mxu0 %v3332
          %4683 = vmatpush.bf16.msra.mxu0 %v3330
          %4684 = vmatpush.bf16.msra.mxu0 %v3328
          %4685 = vmatmul.bf16.gmra.mxu0 %v1277
          %v4686 = vpop.f32.mrf.mxu0
          %v4687 = vadd.f32 %v4674, %v4686
          %v4688 = vpop.f32.mrf.mxu0
          %4689 = vdwg.mxu0
          %4690 = vmatpush.bf16.msra.mxu0 %v3358
          %4691 = vmatpush.bf16.msra.mxu0 %v3356
          %4692 = vmatpush.bf16.msra.mxu0 %v3354
          %4693 = vmatpush.bf16.msra.mxu0 %v3352
          %4694 = vmatpush.bf16.msra.mxu0 %v3350
          %4695 = vmatpush.bf16.msra.mxu0 %v3348
          %4696 = vmatpush.bf16.msra.mxu0 %v3346
          %4697 = vmatpush.bf16.msra.mxu0 %v3344
          %4698 = vmatmul.bf16.gmra.mxu0 %v1278
          %v4699 = vpop.f32.mrf.mxu0
          %v4700 = vadd.f32 %v4687, %v4699
          %v4701 = vpop.f32.mrf.mxu0
          %4702 = vdwg.mxu0
          %v4703 = vadd.f32 %v669, %v4284
          %v4704 = vadd.f32 %v670, %v4700
          %4705 = vst [vmem:[#allocation2] sm:$0xff] %v4703
          %4706 = vst [vmem:[#allocation2 + $0x8] sm:$0xff] %v4704
          // Predicated region
          $region109: #{tpu_custom_call.1} parent=103 // pred_check
            %p4707 = pneg %p663
          $region110: #{tpu_custom_call.1} parent=103 // pred_check_branch
            %4709 = sbr.rel (%p4707) target = $region112
          $region111: #{tpu_custom_call.1} parent=103 // pred_region
            %v4710 = vld [vmem:[#allocation17] sm:$0x3]
            %v4711 = vld [vmem:[#allocation17 + $0x2] sm:$0x3]
            %v4712 = vld [vmem:[#allocation17 + $0x4] sm:$0x1]
            %v4713 = vld [vmem:[#allocation17 + $0x5] sm:$0x3]
            %v4714 = vld [vmem:[#allocation17 + $0x7] sm:$0x3]
            %v4715 = vld [vmem:[#allocation2] sm:$0xff]
            %v4716 = vld [vmem:[#allocation2 + $0x8] sm:$0xff]
            %v4718 = vperm.slane %v4710, 0
            %v4719 = vperm.slane %v4710, 1
            %v4722 = vadd.f32 %v4715, %v4718
            %v4723 = vadd.f32 %v4716, %v4719
            %vm4724 = vcmp.ge.f32.partialorder %v4722, 0.0
            %vm4725 = vcmp.ge.f32.partialorder %v4723, 0.0
            %v4726 = vmul.f32 %v4722, 0.01
            %v4727 = vmul.f32 %v4723, 0.01
            %v4728 = vsel %vm4724, %v4722, %v4726
            %v4729 = vsel %vm4725, %v4723, %v4727
            %v4730 = vpack.c.bf16 %v4728, %v4728
            %v4731 = vpack.c.bf16 %v4729, %v4729
            %v4732 = vld [vmem:[#allocation10] sm:$0xff]
            %v4733 = vld [vmem:[#allocation10 + $0x8] sm:$0xff]
            %v4734 = vld [vmem:[#allocation10 + $0x10] sm:$0xff]
            %v4735 = vld [vmem:[#allocation10 + $0x18] sm:$0xff]
            %v4736 = vld [vmem:[#allocation10 + $0x20] sm:$0xff]
            %v4737 = vld [vmem:[#allocation10 + $0x28] sm:$0xff]
            %v4738 = vld [vmem:[#allocation10 + $0x30] sm:$0xff]
            %v4739 = vld [vmem:[#allocation10 + $0x38] sm:$0xff]
            %v4740 = vld [vmem:[#allocation10 + $0x40] sm:$0xff]
            %v4741 = vld [vmem:[#allocation10 + $0x48] sm:$0xff]
            %v4742 = vld [vmem:[#allocation10 + $0x50] sm:$0xff]
            %v4743 = vld [vmem:[#allocation10 + $0x58] sm:$0xff]
            %v4744 = vld [vmem:[#allocation10 + $0x60] sm:$0xff]
            %v4745 = vld [vmem:[#allocation10 + $0x68] sm:$0xff]
            %v4746 = vld [vmem:[#allocation10 + $0x70] sm:$0xff]
            %v4747 = vld [vmem:[#allocation10 + $0x78] sm:$0xff]
            %v4748 = vld [vmem:[#allocation10 + $0x80] sm:$0xff]
            %v4749 = vld [vmem:[#allocation10 + $0x88] sm:$0xff]
            %v4750 = vld [vmem:[#allocation10 + $0x90] sm:$0xff]
            %v4751 = vld [vmem:[#allocation10 + $0x98] sm:$0xff]
            %v4752 = vld [vmem:[#allocation10 + $0xa0] sm:$0xff]
            %v4753 = vld [vmem:[#allocation10 + $0xa8] sm:$0xff]
            %v4754 = vld [vmem:[#allocation10 + $0xb0] sm:$0xff]
            %v4755 = vld [vmem:[#allocation10 + $0xb8] sm:$0xff]
            %v4756 = vld [vmem:[#allocation10 + $0xc0] sm:$0xff]
            %v4757 = vld [vmem:[#allocation10 + $0xc8] sm:$0xff]
            %v4758 = vld [vmem:[#allocation10 + $0xd0] sm:$0xff]
            %v4759 = vld [vmem:[#allocation10 + $0xd8] sm:$0xff]
            %v4760 = vld [vmem:[#allocation10 + $0xe0] sm:$0xff]
            %v4761 = vld [vmem:[#allocation10 + $0xe8] sm:$0xff]
            %v4762 = vld [vmem:[#allocation10 + $0xf0] sm:$0xff]
            %v4763 = vld [vmem:[#allocation10 + $0xf8] sm:$0xff]
            %v4765 = vperm.slane %v4711, 0
            %v4766 = vperm.slane %v4711, 1
            %v4801 = vunpack.c.l.b16 %v4732
            %v4802 = vunpack.c.h.b16 %v4732
            %v4803 = vunpack.c.l.b16 %v4733
            %v4804 = vunpack.c.h.b16 %v4733
            %v4805 = vunpack.c.l.b16 %v4734
            %v4806 = vunpack.c.h.b16 %v4734
            %v4807 = vunpack.c.l.b16 %v4735
            %v4808 = vunpack.c.h.b16 %v4735
            %v4809 = vunpack.c.l.b16 %v4736
            %v4810 = vunpack.c.h.b16 %v4736
            %v4811 = vunpack.c.l.b16 %v4737
            %v4812 = vunpack.c.h.b16 %v4737
            %v4813 = vunpack.c.l.b16 %v4738
            %v4814 = vunpack.c.h.b16 %v4738
            %v4815 = vunpack.c.l.b16 %v4739
            %v4816 = vunpack.c.h.b16 %v4739
            %v4817 = vunpack.c.l.b16 %v4740
            %v4818 = vunpack.c.h.b16 %v4740
            %v4819 = vunpack.c.l.b16 %v4741
            %v4820 = vunpack.c.h.b16 %v4741
            %v4821 = vunpack.c.l.b16 %v4742
            %v4822 = vunpack.c.h.b16 %v4742
            %v4823 = vunpack.c.l.b16 %v4743
            %v4824 = vunpack.c.h.b16 %v4743
            %v4825 = vunpack.c.l.b16 %v4744
            %v4826 = vunpack.c.h.b16 %v4744
            %v4827 = vunpack.c.l.b16 %v4745
            %v4828 = vunpack.c.h.b16 %v4745
            %v4829 = vunpack.c.l.b16 %v4746
            %v4830 = vunpack.c.h.b16 %v4746
            %v4831 = vunpack.c.l.b16 %v4747
            %v4832 = vunpack.c.h.b16 %v4747
            %v4833 = vunpack.c.l.b16 %v4748
            %v4834 = vunpack.c.h.b16 %v4748
            %v4835 = vunpack.c.l.b16 %v4749
            %v4836 = vunpack.c.h.b16 %v4749
            %v4837 = vunpack.c.l.b16 %v4750
            %v4838 = vunpack.c.h.b16 %v4750
            %v4839 = vunpack.c.l.b16 %v4751
            %v4840 = vunpack.c.h.b16 %v4751
            %v4841 = vunpack.c.l.b16 %v4752
            %v4842 = vunpack.c.h.b16 %v4752
            %v4843 = vunpack.c.l.b16 %v4753
            %v4844 = vunpack.c.h.b16 %v4753
            %v4845 = vunpack.c.l.b16 %v4754
            %v4846 = vunpack.c.h.b16 %v4754
            %v4847 = vunpack.c.l.b16 %v4755
            %v4848 = vunpack.c.h.b16 %v4755
            %v4849 = vunpack.c.l.b16 %v4756
            %v4850 = vunpack.c.h.b16 %v4756
            %v4851 = vunpack.c.l.b16 %v4757
            %v4852 = vunpack.c.h.b16 %v4757
            %v4853 = vunpack.c.l.b16 %v4758
            %v4854 = vunpack.c.h.b16 %v4758
            %v4855 = vunpack.c.l.b16 %v4759
            %v4856 = vunpack.c.h.b16 %v4759
            %v4857 = vunpack.c.l.b16 %v4760
            %v4858 = vunpack.c.h.b16 %v4760
            %v4859 = vunpack.c.l.b16 %v4761
            %v4860 = vunpack.c.h.b16 %v4761
            %v4861 = vunpack.c.l.b16 %v4762
            %v4862 = vunpack.c.h.b16 %v4762
            %v4863 = vunpack.c.l.b16 %v4763
            %v4864 = vunpack.c.h.b16 %v4763
            %v4865 = vpack.c.b16 %v4803, %v4801
            %v4866 = vpack.c.b16 %v4804, %v4802
            %v4867 = vpack.c.b16 %v4807, %v4805
            %v4868 = vpack.c.b16 %v4808, %v4806
            %v4869 = vpack.c.b16 %v4811, %v4809
            %v4870 = vpack.c.b16 %v4812, %v4810
            %v4871 = vpack.c.b16 %v4815, %v4813
            %v4872 = vpack.c.b16 %v4816, %v4814
            %v4873 = vpack.c.b16 %v4819, %v4817
            %v4874 = vpack.c.b16 %v4820, %v4818
            %v4875 = vpack.c.b16 %v4823, %v4821
            %v4876 = vpack.c.b16 %v4824, %v4822
            %v4877 = vpack.c.b16 %v4827, %v4825
            %v4878 = vpack.c.b16 %v4828, %v4826
            %v4879 = vpack.c.b16 %v4831, %v4829
            %v4880 = vpack.c.b16 %v4832, %v4830
            %v4881 = vpack.c.b16 %v4835, %v4833
            %v4882 = vpack.c.b16 %v4836, %v4834
            %v4883 = vpack.c.b16 %v4839, %v4837
            %v4884 = vpack.c.b16 %v4840, %v4838
            %v4885 = vpack.c.b16 %v4843, %v4841
            %v4886 = vpack.c.b16 %v4844, %v4842
            %v4887 = vpack.c.b16 %v4847, %v4845
            %v4888 = vpack.c.b16 %v4848, %v4846
            %v4889 = vpack.c.b16 %v4851, %v4849
            %v4890 = vpack.c.b16 %v4852, %v4850
            %v4891 = vpack.c.b16 %v4855, %v4853
            %v4892 = vpack.c.b16 %v4856, %v4854
            %v4893 = vpack.c.b16 %v4859, %v4857
            %v4894 = vpack.c.b16 %v4860, %v4858
            %v4895 = vpack.c.b16 %v4863, %v4861
            %v4896 = vpack.c.b16 %v4864, %v4862
            %4929 = vmatpush.bf16.msra.mxu0 %v4879
            %4930 = vmatpush.bf16.msra.mxu0 %v4877
            %4931 = vmatpush.bf16.msra.mxu0 %v4875
            %4932 = vmatpush.bf16.msra.mxu0 %v4873
            %4933 = vmatpush.bf16.msra.mxu0 %v4871
            %4934 = vmatpush.bf16.msra.mxu0 %v4869
            %4935 = vmatpush.bf16.msra.mxu0 %v4867
            %4936 = vmatpush.bf16.msra.mxu0 %v4865
            %4937 = vmatmul.bf16.gmra.mxu0 %v4730
            %v4938 = vpop.f32.mrf.mxu0
            %v4939 = vadd.f32 %v4765, %v4938
            %v4940 = vpop.f32.mrf.mxu0
            %4941 = vdwg.mxu0
            %4942 = vmatpush.bf16.msra.mxu0 %v4895
            %4943 = vmatpush.bf16.msra.mxu0 %v4893
            %4944 = vmatpush.bf16.msra.mxu0 %v4891
            %4945 = vmatpush.bf16.msra.mxu0 %v4889
            %4946 = vmatpush.bf16.msra.mxu0 %v4887
            %4947 = vmatpush.bf16.msra.mxu0 %v4885
            %4948 = vmatpush.bf16.msra.mxu0 %v4883
            %4949 = vmatpush.bf16.msra.mxu0 %v4881
            %4950 = vmatmul.bf16.gmra.mxu0 %v4731
            %v4951 = vpop.f32.mrf.mxu0
            %v4952 = vadd.f32 %v4939, %v4951
            %v4953 = vpop.f32.mrf.mxu0
            %4954 = vdwg.mxu0
            %4955 = vmatpush.bf16.msra.mxu0 %v4880
            %4956 = vmatpush.bf16.msra.mxu0 %v4878
            %4957 = vmatpush.bf16.msra.mxu0 %v4876
            %4958 = vmatpush.bf16.msra.mxu0 %v4874
            %4959 = vmatpush.bf16.msra.mxu0 %v4872
            %4960 = vmatpush.bf16.msra.mxu0 %v4870
            %4961 = vmatpush.bf16.msra.mxu0 %v4868
            %4962 = vmatpush.bf16.msra.mxu0 %v4866
            %4963 = vmatmul.bf16.gmra.mxu0 %v4730
            %v4964 = vpop.f32.mrf.mxu0
            %v4965 = vadd.f32 %v4766, %v4964
            %v4966 = vpop.f32.mrf.mxu0
            %4967 = vdwg.mxu0
            %4968 = vmatpush.bf16.msra.mxu0 %v4896
            %4969 = vmatpush.bf16.msra.mxu0 %v4894
            %4970 = vmatpush.bf16.msra.mxu0 %v4892
            %4971 = vmatpush.bf16.msra.mxu0 %v4890
            %4972 = vmatpush.bf16.msra.mxu0 %v4888
            %4973 = vmatpush.bf16.msra.mxu0 %v4886
            %4974 = vmatpush.bf16.msra.mxu0 %v4884
            %4975 = vmatpush.bf16.msra.mxu0 %v4882
            %4976 = vmatmul.bf16.gmra.mxu0 %v4731
            %v4977 = vpop.f32.mrf.mxu0
            %v4978 = vadd.f32 %v4965, %v4977
            %v4979 = vpop.f32.mrf.mxu0
            %4980 = vdwg.mxu0
            %vm4981 = vcmp.ge.f32.partialorder %v4952, 0.0
            %vm4982 = vcmp.ge.f32.partialorder %v4978, 0.0
            %v4983 = vmul.f32 %v4952, 0.01
            %v4984 = vmul.f32 %v4978, 0.01
            %v4985 = vsel %vm4981, %v4952, %v4983
            %v4986 = vsel %vm4982, %v4978, %v4984
            %v4987 = vpack.c.bf16 %v4985, %v4985
            %v4988 = vpack.c.bf16 %v4986, %v4986
            %v4989 = vld [vmem:[#allocation11] sm:$0xf]
            %v4990 = vld [vmem:[#allocation11 + $0x4] sm:$0xf]
            %v4991 = vld [vmem:[#allocation11 + $0x8] sm:$0xf]
            %v4992 = vld [vmem:[#allocation11 + $0xc] sm:$0xf]
            %v4993 = vld [vmem:[#allocation11 + $0x10] sm:$0xf]
            %v4994 = vld [vmem:[#allocation11 + $0x14] sm:$0xf]
            %v4995 = vld [vmem:[#allocation11 + $0x18] sm:$0xf]
            %v4996 = vld [vmem:[#allocation11 + $0x1c] sm:$0xf]
            %v4997 = vld [vmem:[#allocation11 + $0x20] sm:$0xf]
            %v4998 = vld [vmem:[#allocation11 + $0x24] sm:$0xf]
            %v4999 = vld [vmem:[#allocation11 + $0x28] sm:$0xf]
            %v5000 = vld [vmem:[#allocation11 + $0x2c] sm:$0xf]
            %v5001 = vld [vmem:[#allocation11 + $0x30] sm:$0xf]
            %v5002 = vld [vmem:[#allocation11 + $0x34] sm:$0xf]
            %v5003 = vld [vmem:[#allocation11 + $0x38] sm:$0xf]
            %v5004 = vld [vmem:[#allocation11 + $0x3c] sm:$0xf]
            %v5005 = vld [vmem:[#allocation11 + $0x40] sm:$0xf]
            %v5006 = vld [vmem:[#allocation11 + $0x44] sm:$0xf]
            %v5007 = vld [vmem:[#allocation11 + $0x48] sm:$0xf]
            %v5008 = vld [vmem:[#allocation11 + $0x4c] sm:$0xf]
            %v5009 = vld [vmem:[#allocation11 + $0x50] sm:$0xf]
            %v5010 = vld [vmem:[#allocation11 + $0x54] sm:$0xf]
            %v5011 = vld [vmem:[#allocation11 + $0x58] sm:$0xf]
            %v5012 = vld [vmem:[#allocation11 + $0x5c] sm:$0xf]
            %v5013 = vld [vmem:[#allocation11 + $0x60] sm:$0xf]
            %v5014 = vld [vmem:[#allocation11 + $0x64] sm:$0xf]
            %v5015 = vld [vmem:[#allocation11 + $0x68] sm:$0xf]
            %v5016 = vld [vmem:[#allocation11 + $0x6c] sm:$0xf]
            %v5017 = vld [vmem:[#allocation11 + $0x70] sm:$0xf]
            %v5018 = vld [vmem:[#allocation11 + $0x74] sm:$0xf]
            %v5019 = vld [vmem:[#allocation11 + $0x78] sm:$0xf]
            %v5020 = vld [vmem:[#allocation11 + $0x7c] sm:$0xf]
            %v5022 = vperm.slane %v4712, 0
            %v5056 = vunpack.c.l.b16 %v4989
            %v5057 = vunpack.c.l.b16 %v4990
            %v5058 = vunpack.c.l.b16 %v4991
            %v5059 = vunpack.c.l.b16 %v4992
            %v5060 = vunpack.c.l.b16 %v4993
            %v5061 = vunpack.c.l.b16 %v4994
            %v5062 = vunpack.c.l.b16 %v4995
            %v5063 = vunpack.c.l.b16 %v4996
            %v5064 = vunpack.c.l.b16 %v4997
            %v5065 = vunpack.c.l.b16 %v4998
            %v5066 = vunpack.c.l.b16 %v4999
            %v5067 = vunpack.c.l.b16 %v5000
            %v5068 = vunpack.c.l.b16 %v5001
            %v5069 = vunpack.c.l.b16 %v5002
            %v5070 = vunpack.c.l.b16 %v5003
            %v5071 = vunpack.c.l.b16 %v5004
            %v5072 = vunpack.c.l.b16 %v5005
            %v5073 = vunpack.c.l.b16 %v5006
            %v5074 = vunpack.c.l.b16 %v5007
            %v5075 = vunpack.c.l.b16 %v5008
            %v5076 = vunpack.c.l.b16 %v5009
            %v5077 = vunpack.c.l.b16 %v5010
            %v5078 = vunpack.c.l.b16 %v5011
            %v5079 = vunpack.c.l.b16 %v5012
            %v5080 = vunpack.c.l.b16 %v5013
            %v5081 = vunpack.c.l.b16 %v5014
            %v5082 = vunpack.c.l.b16 %v5015
            %v5083 = vunpack.c.l.b16 %v5016
            %v5084 = vunpack.c.l.b16 %v5017
            %v5085 = vunpack.c.l.b16 %v5018
            %v5086 = vunpack.c.l.b16 %v5019
            %v5087 = vunpack.c.l.b16 %v5020
            %v5088 = vpack.c.b16 %v5057, %v5056
            %v5089 = vpack.c.b16 %v5059, %v5058
            %v5090 = vpack.c.b16 %v5061, %v5060
            %v5091 = vpack.c.b16 %v5063, %v5062
            %v5092 = vpack.c.b16 %v5065, %v5064
            %v5093 = vpack.c.b16 %v5067, %v5066
            %v5094 = vpack.c.b16 %v5069, %v5068
            %v5095 = vpack.c.b16 %v5071, %v5070
            %v5096 = vpack.c.b16 %v5073, %v5072
            %v5097 = vpack.c.b16 %v5075, %v5074
            %v5098 = vpack.c.b16 %v5077, %v5076
            %v5099 = vpack.c.b16 %v5079, %v5078
            %v5100 = vpack.c.b16 %v5081, %v5080
            %v5101 = vpack.c.b16 %v5083, %v5082
            %v5102 = vpack.c.b16 %v5085, %v5084
            %v5103 = vpack.c.b16 %v5087, %v5086
            %5120 = vmatpush.bf16.msra.mxu0 %v5095
            %5121 = vmatpush.bf16.msra.mxu0 %v5094
            %5122 = vmatpush.bf16.msra.mxu0 %v5093
            %5123 = vmatpush.bf16.msra.mxu0 %v5092
            %5124 = vmatpush.bf16.msra.mxu0 %v5091
            %5125 = vmatpush.bf16.msra.mxu0 %v5090
            %5126 = vmatpush.bf16.msra.mxu0 %v5089
            %5127 = vmatpush.bf16.msra.mxu0 %v5088
            %5128 = vmatmul.bf16.gmra.mxu0 %v4987
            %v5129 = vpop.f32.mrf.mxu0
            %v5130 = vadd.f32 %v5022, %v5129
            %v5131 = vpop.f32.mrf.mxu0
            %5132 = vdwg.mxu0
            %5133 = vmatpush.bf16.msra.mxu0 %v5103
            %5134 = vmatpush.bf16.msra.mxu0 %v5102
            %5135 = vmatpush.bf16.msra.mxu0 %v5101
            %5136 = vmatpush.bf16.msra.mxu0 %v5100
            %5137 = vmatpush.bf16.msra.mxu0 %v5099
            %5138 = vmatpush.bf16.msra.mxu0 %v5098
            %5139 = vmatpush.bf16.msra.mxu0 %v5097
            %5140 = vmatpush.bf16.msra.mxu0 %v5096
            %5141 = vmatmul.bf16.gmra.mxu0 %v4988
            %v5142 = vpop.f32.mrf.mxu0
            %v5143 = vadd.f32 %v5130, %v5142
            %v5144 = vpop.f32.mrf.mxu0
            %5145 = vdwg.mxu0
            %v5146 = vmax.f32 %v5143, 0.0
            %v5147 = vand.u32 2147483647, %v5143
            %v5148 = vsub.f32 0.0, %v5147
            %v5149 = vmul.f32 %v5148, 1.442695
            %v5150 = vpow.pop %v5149
            %v5151 = vadd.f32 %v5150, 1.0
            %v5152 = vlog2.pop %v5151
            %v5153 = vmul.f32 %v5152, 0.6931472
            %v5154 = vmul.f32 -0.5, %v5150
            %v5155 = vadd.f32 %v5154, 1.0
            %v5156 = vmul.f32 %v5155, %v5150
            %v5157 = vand.u32 2147483647, %v5150
            %vm5158 = vcmp.lt.f32.partialorder %v5157, 0.0004427343
            %v5159 = vsel %vm5158, %v5156, %v5153
            %v5160 = vadd.f32 %v5146, %v5159
            %v5161 = vld [vmem:[#allocation7] sm:$0xff]
            %v5162 = vmul.f32 %v5160, 0.5
            %v5163 = vmul.f32 %v5162, 1.442695
            %v5164 = vpow.pop %v5163
            %5166 = vrot.lane.b32.xlu0 %v5164, 64
            %v5167 = vpop.permute.xlu0 %5166
            %v5169 = vmul.f32 %v5161, %v5167
            %v5170 = vadd.f32 %v5143, %v5169
            %v5171 = vpack.c.bf16 %v5170, %v5170
            %v5172 = vld [vmem:[#allocation13] sm:$0xff]
            %v5173 = vld [vmem:[#allocation13 + $0x8] sm:$0xff]
            %v5174 = vld [vmem:[#allocation13 + $0x10] sm:$0xff]
            %v5175 = vld [vmem:[#allocation13 + $0x18] sm:$0xff]
            %v5176 = vld [vmem:[#allocation13 + $0x20] sm:$0xff]
            %v5177 = vld [vmem:[#allocation13 + $0x28] sm:$0xff]
            %v5178 = vld [vmem:[#allocation13 + $0x30] sm:$0xff]
            %v5179 = vld [vmem:[#allocation13 + $0x38] sm:$0xff]
            %v5181 = vperm.slane %v4713, 0
            %v5182 = vperm.slane %v4713, 1
            %v5193 = vunpack.c.l.b16 %v5172
            %v5194 = vunpack.c.h.b16 %v5172
            %v5195 = vunpack.c.l.b16 %v5173
            %v5196 = vunpack.c.h.b16 %v5173
            %v5197 = vunpack.c.l.b16 %v5174
            %v5198 = vunpack.c.h.b16 %v5174
            %v5199 = vunpack.c.l.b16 %v5175
            %v5200 = vunpack.c.h.b16 %v5175
            %v5201 = vunpack.c.l.b16 %v5176
            %v5202 = vunpack.c.h.b16 %v5176
            %v5203 = vunpack.c.l.b16 %v5177
            %v5204 = vunpack.c.h.b16 %v5177
            %v5205 = vunpack.c.l.b16 %v5178
            %v5206 = vunpack.c.h.b16 %v5178
            %v5207 = vunpack.c.l.b16 %v5179
            %v5208 = vunpack.c.h.b16 %v5179
            %v5209 = vpack.c.b16 %v5195, %v5193
            %v5210 = vpack.c.b16 %v5196, %v5194
            %v5211 = vpack.c.b16 %v5199, %v5197
            %v5212 = vpack.c.b16 %v5200, %v5198
            %v5213 = vpack.c.b16 %v5203, %v5201
            %v5214 = vpack.c.b16 %v5204, %v5202
            %v5215 = vpack.c.b16 %v5207, %v5205
            %v5216 = vpack.c.b16 %v5208, %v5206
            %vm5225 = vcmask 523264
            %v5227 = vsel %vm5225, %v5171, 0
            %5229 = vmatpush.bf16.msra.mxu0 0
            %5230 = vmatpush.bf16.msra.mxu0 0
            %5231 = vmatpush.bf16.msra.mxu0 0
            %5232 = vmatpush.bf16.msra.mxu0 0
            %5233 = vmatpush.bf16.msra.mxu0 %v5215
            %5234 = vmatpush.bf16.msra.mxu0 %v5213
            %5235 = vmatpush.bf16.msra.mxu0 %v5211
            %5236 = vmatpush.bf16.msra.mxu0 %v5209
            %5237 = vmatmul.bf16.gmra.mxu0 %v5227
            %v5238 = vpop.f32.mrf.mxu0
            %v5239 = vadd.f32 %v5181, %v5238
            %v5240 = vpop.f32.mrf.mxu0
            %5241 = vdwg.mxu0
            %5242 = vmatpush.bf16.msra.mxu0 0
            %5243 = vmatpush.bf16.msra.mxu0 0
            %5244 = vmatpush.bf16.msra.mxu0 0
            %5245 = vmatpush.bf16.msra.mxu0 0
            %5246 = vmatpush.bf16.msra.mxu0 %v5216
            %5247 = vmatpush.bf16.msra.mxu0 %v5214
            %5248 = vmatpush.bf16.msra.mxu0 %v5212
            %5249 = vmatpush.bf16.msra.mxu0 %v5210
            %5250 = vmatmul.bf16.gmra.mxu0 %v5227
            %v5251 = vpop.f32.mrf.mxu0
            %v5252 = vadd.f32 %v5182, %v5251
            %v5253 = vpop.f32.mrf.mxu0
            %5254 = vdwg.mxu0
            %vm5255 = vcmp.ge.f32.partialorder %v5239, 0.0
            %vm5256 = vcmp.ge.f32.partialorder %v5252, 0.0
            %v5257 = vmul.f32 %v5239, 0.01
            %v5258 = vmul.f32 %v5252, 0.01
            %v5259 = vsel %vm5255, %v5239, %v5257
            %v5260 = vsel %vm5256, %v5252, %v5258
            %v5261 = vpack.c.bf16 %v5259, %v5259
            %v5262 = vpack.c.bf16 %v5260, %v5260
            %v5263 = vld [vmem:[#allocation14] sm:$0xff]
            %v5264 = vld [vmem:[#allocation14 + $0x8] sm:$0xff]
            %v5265 = vld [vmem:[#allocation14 + $0x10] sm:$0xff]
            %v5266 = vld [vmem:[#allocation14 + $0x18] sm:$0xff]
            %v5267 = vld [vmem:[#allocation14 + $0x20] sm:$0xff]
            %v5268 = vld [vmem:[#allocation14 + $0x28] sm:$0xff]
            %v5269 = vld [vmem:[#allocation14 + $0x30] sm:$0xff]
            %v5270 = vld [vmem:[#allocation14 + $0x38] sm:$0xff]
            %v5271 = vld [vmem:[#allocation14 + $0x40] sm:$0xff]
            %v5272 = vld [vmem:[#allocation14 + $0x48] sm:$0xff]
            %v5273 = vld [vmem:[#allocation14 + $0x50] sm:$0xff]
            %v5274 = vld [vmem:[#allocation14 + $0x58] sm:$0xff]
            %v5275 = vld [vmem:[#allocation14 + $0x60] sm:$0xff]
            %v5276 = vld [vmem:[#allocation14 + $0x68] sm:$0xff]
            %v5277 = vld [vmem:[#allocation14 + $0x70] sm:$0xff]
            %v5278 = vld [vmem:[#allocation14 + $0x78] sm:$0xff]
            %v5279 = vld [vmem:[#allocation14 + $0x80] sm:$0xff]
            %v5280 = vld [vmem:[#allocation14 + $0x88] sm:$0xff]
            %v5281 = vld [vmem:[#allocation14 + $0x90] sm:$0xff]
            %v5282 = vld [vmem:[#allocation14 + $0x98] sm:$0xff]
            %v5283 = vld [vmem:[#allocation14 + $0xa0] sm:$0xff]
            %v5284 = vld [vmem:[#allocation14 + $0xa8] sm:$0xff]
            %v5285 = vld [vmem:[#allocation14 + $0xb0] sm:$0xff]
            %v5286 = vld [vmem:[#allocation14 + $0xb8] sm:$0xff]
            %v5287 = vld [vmem:[#allocation14 + $0xc0] sm:$0xff]
            %v5288 = vld [vmem:[#allocation14 + $0xc8] sm:$0xff]
            %v5289 = vld [vmem:[#allocation14 + $0xd0] sm:$0xff]
            %v5290 = vld [vmem:[#allocation14 + $0xd8] sm:$0xff]
            %v5291 = vld [vmem:[#allocation14 + $0xe0] sm:$0xff]
            %v5292 = vld [vmem:[#allocation14 + $0xe8] sm:$0xff]
            %v5293 = vld [vmem:[#allocation14 + $0xf0] sm:$0xff]
            %v5294 = vld [vmem:[#allocation14 + $0xf8] sm:$0xff]
            %v5296 = vperm.slane %v4714, 0
            %v5297 = vperm.slane %v4714, 1
            %v5332 = vunpack.c.l.b16 %v5263
            %v5333 = vunpack.c.h.b16 %v5263
            %v5334 = vunpack.c.l.b16 %v5264
            %v5335 = vunpack.c.h.b16 %v5264
            %v5336 = vunpack.c.l.b16 %v5265
            %v5337 = vunpack.c.h.b16 %v5265
            %v5338 = vunpack.c.l.b16 %v5266
            %v5339 = vunpack.c.h.b16 %v5266
            %v5340 = vunpack.c.l.b16 %v5267
            %v5341 = vunpack.c.h.b16 %v5267
            %v5342 = vunpack.c.l.b16 %v5268
            %v5343 = vunpack.c.h.b16 %v5268
            %v5344 = vunpack.c.l.b16 %v5269
            %v5345 = vunpack.c.h.b16 %v5269
            %v5346 = vunpack.c.l.b16 %v5270
            %v5347 = vunpack.c.h.b16 %v5270
            %v5348 = vunpack.c.l.b16 %v5271
            %v5349 = vunpack.c.h.b16 %v5271
            %v5350 = vunpack.c.l.b16 %v5272
            %v5351 = vunpack.c.h.b16 %v5272
            %v5352 = vunpack.c.l.b16 %v5273
            %v5353 = vunpack.c.h.b16 %v5273
            %v5354 = vunpack.c.l.b16 %v5274
            %v5355 = vunpack.c.h.b16 %v5274
            %v5356 = vunpack.c.l.b16 %v5275
            %v5357 = vunpack.c.h.b16 %v5275
            %v5358 = vunpack.c.l.b16 %v5276
            %v5359 = vunpack.c.h.b16 %v5276
            %v5360 = vunpack.c.l.b16 %v5277
            %v5361 = vunpack.c.h.b16 %v5277
            %v5362 = vunpack.c.l.b16 %v5278
            %v5363 = vunpack.c.h.b16 %v5278
            %v5364 = vunpack.c.l.b16 %v5279
            %v5365 = vunpack.c.h.b16 %v5279
            %v5366 = vunpack.c.l.b16 %v5280
            %v5367 = vunpack.c.h.b16 %v5280
            %v5368 = vunpack.c.l.b16 %v5281
            %v5369 = vunpack.c.h.b16 %v5281
            %v5370 = vunpack.c.l.b16 %v5282
            %v5371 = vunpack.c.h.b16 %v5282
            %v5372 = vunpack.c.l.b16 %v5283
            %v5373 = vunpack.c.h.b16 %v5283
            %v5374 = vunpack.c.l.b16 %v5284
            %v5375 = vunpack.c.h.b16 %v5284
            %v5376 = vunpack.c.l.b16 %v5285
            %v5377 = vunpack.c.h.b16 %v5285
            %v5378 = vunpack.c.l.b16 %v5286
            %v5379 = vunpack.c.h.b16 %v5286
            %v5380 = vunpack.c.l.b16 %v5287
            %v5381 = vunpack.c.h.b16 %v5287
            %v5382 = vunpack.c.l.b16 %v5288
            %v5383 = vunpack.c.h.b16 %v5288
            %v5384 = vunpack.c.l.b16 %v5289
            %v5385 = vunpack.c.h.b16 %v5289
            %v5386 = vunpack.c.l.b16 %v5290
            %v5387 = vunpack.c.h.b16 %v5290
            %v5388 = vunpack.c.l.b16 %v5291
            %v5389 = vunpack.c.h.b16 %v5291
            %v5390 = vunpack.c.l.b16 %v5292
            %v5391 = vunpack.c.h.b16 %v5292
            %v5392 = vunpack.c.l.b16 %v5293
            %v5393 = vunpack.c.h.b16 %v5293
            %v5394 = vunpack.c.l.b16 %v5294
            %v5395 = vunpack.c.h.b16 %v5294
            %v5396 = vpack.c.b16 %v5334, %v5332
            %v5397 = vpack.c.b16 %v5335, %v5333
            %v5398 = vpack.c.b16 %v5338, %v5336
            %v5399 = vpack.c.b16 %v5339, %v5337
            %v5400 = vpack.c.b16 %v5342, %v5340
            %v5401 = vpack.c.b16 %v5343, %v5341
            %v5402 = vpack.c.b16 %v5346, %v5344
            %v5403 = vpack.c.b16 %v5347, %v5345
            %v5404 = vpack.c.b16 %v5350, %v5348
            %v5405 = vpack.c.b16 %v5351, %v5349
            %v5406 = vpack.c.b16 %v5354, %v5352
            %v5407 = vpack.c.b16 %v5355, %v5353
            %v5408 = vpack.c.b16 %v5358, %v5356
            %v5409 = vpack.c.b16 %v5359, %v5357
            %v5410 = vpack.c.b16 %v5362, %v5360
            %v5411 = vpack.c.b16 %v5363, %v5361
            %v5412 = vpack.c.b16 %v5366, %v5364
            %v5413 = vpack.c.b16 %v5367, %v5365
            %v5414 = vpack.c.b16 %v5370, %v5368
            %v5415 = vpack.c.b16 %v5371, %v5369
            %v5416 = vpack.c.b16 %v5374, %v5372
            %v5417 = vpack.c.b16 %v5375, %v5373
            %v5418 = vpack.c.b16 %v5378, %v5376
            %v5419 = vpack.c.b16 %v5379, %v5377
            %v5420 = vpack.c.b16 %v5382, %v5380
            %v5421 = vpack.c.b16 %v5383, %v5381
            %v5422 = vpack.c.b16 %v5386, %v5384
            %v5423 = vpack.c.b16 %v5387, %v5385
            %v5424 = vpack.c.b16 %v5390, %v5388
            %v5425 = vpack.c.b16 %v5391, %v5389
            %v5426 = vpack.c.b16 %v5394, %v5392
            %v5427 = vpack.c.b16 %v5395, %v5393
            %5460 = vmatpush.bf16.msra.mxu0 %v5410
            %5461 = vmatpush.bf16.msra.mxu0 %v5408
            %5462 = vmatpush.bf16.msra.mxu0 %v5406
            %5463 = vmatpush.bf16.msra.mxu0 %v5404
            %5464 = vmatpush.bf16.msra.mxu0 %v5402
            %5465 = vmatpush.bf16.msra.mxu0 %v5400
            %5466 = vmatpush.bf16.msra.mxu0 %v5398
            %5467 = vmatpush.bf16.msra.mxu0 %v5396
            %5468 = vmatmul.bf16.gmra.mxu0 %v5261
            %v5469 = vpop.f32.mrf.mxu0
            %v5470 = vadd.f32 %v5296, %v5469
            %v5471 = vpop.f32.mrf.mxu0
            %5472 = vdwg.mxu0
            %5473 = vmatpush.bf16.msra.mxu0 %v5426
            %5474 = vmatpush.bf16.msra.mxu0 %v5424
            %5475 = vmatpush.bf16.msra.mxu0 %v5422
            %5476 = vmatpush.bf16.msra.mxu0 %v5420
            %5477 = vmatpush.bf16.msra.mxu0 %v5418
            %5478 = vmatpush.bf16.msra.mxu0 %v5416
            %5479 = vmatpush.bf16.msra.mxu0 %v5414
            %5480 = vmatpush.bf16.msra.mxu0 %v5412
            %5481 = vmatmul.bf16.gmra.mxu0 %v5262
            %v5482 = vpop.f32.mrf.mxu0
            %v5483 = vadd.f32 %v5470, %v5482
            %v5484 = vpop.f32.mrf.mxu0
            %5485 = vdwg.mxu0
            %5486 = vmatpush.bf16.msra.mxu0 %v5411
            %5487 = vmatpush.bf16.msra.mxu0 %v5409
            %5488 = vmatpush.bf16.msra.mxu0 %v5407
            %5489 = vmatpush.bf16.msra.mxu0 %v5405
            %5490 = vmatpush.bf16.msra.mxu0 %v5403
            %5491 = vmatpush.bf16.msra.mxu0 %v5401
            %5492 = vmatpush.bf16.msra.mxu0 %v5399
            %5493 = vmatpush.bf16.msra.mxu0 %v5397
            %5494 = vmatmul.bf16.gmra.mxu0 %v5261
            %v5495 = vpop.f32.mrf.mxu0
            %v5496 = vadd.f32 %v5297, %v5495
            %v5497 = vpop.f32.mrf.mxu0
            %5498 = vdwg.mxu0
            %5499 = vmatpush.bf16.msra.mxu0 %v5427
            %5500 = vmatpush.bf16.msra.mxu0 %v5425
            %5501 = vmatpush.bf16.msra.mxu0 %v5423
            %5502 = vmatpush.bf16.msra.mxu0 %v5421
            %5503 = vmatpush.bf16.msra.mxu0 %v5419
            %5504 = vmatpush.bf16.msra.mxu0 %v5417
            %5505 = vmatpush.bf16.msra.mxu0 %v5415
            %5506 = vmatpush.bf16.msra.mxu0 %v5413
            %5507 = vmatmul.bf16.gmra.mxu0 %v5262
            %v5508 = vpop.f32.mrf.mxu0
            %v5509 = vadd.f32 %v5496, %v5508
            %v5510 = vpop.f32.mrf.mxu0
            %5511 = vdwg.mxu0
            %vm5512 = vcmp.ge.f32.partialorder %v5483, 0.0
            %vm5513 = vcmp.ge.f32.partialorder %v5509, 0.0
            %v5514 = vmul.f32 %v5483, 0.01
            %v5515 = vmul.f32 %v5509, 0.01
            %v5516 = vsel %vm5512, %v5483, %v5514
            %v5517 = vsel %vm5513, %v5509, %v5515
            %5518 = vst [vmem:[#allocation3] sm:$0xff] %v5516
            %5519 = vst [vmem:[#allocation3 + $0x8] sm:$0xff] %v5517
            %5520 = vst.msk [vmem:[#allocation20] sm:$0xff] %vm5225, %v5143
            %vm5521 = vcmask 1048064
            %5522 = vst.msk [vmem:[#allocation20] sm:$0xff] %vm5521, %v5160
          $region112: #{tpu_custom_call.1} parent=103 // pred_fallthru
            _
        $region104: #{tpu_custom_call.1} parent=59 // pred_fallthru
          _
        %p5523 = scmp.eq.s32.totalorder %s37, 1
        // Predicated region
        $region113: #{tpu_custom_call.1} parent=59 // pred_check
          %p5524 = pneg %p5523
        $region114: #{tpu_custom_call.1} parent=59 // pred_check_branch
          %5526 = sbr.rel (%p5524) target = $region116
        $region115: #{tpu_custom_call.1} parent=59 // pred_region
          %v5527 = vld [vmem:[#allocation3] sm:$0xff]
          %v5528 = vld [vmem:[#allocation3 + $0x8] sm:$0xff]
          %v5529 = vpack.c.bf16 %v5527, %v5527
          %v5530 = vpack.c.bf16 %v5528, %v5528
          %v5531 = vld [vmem:[%s576] sm:$0xff]
          %v5532 = vld [vmem:[%s576 + $0x8] sm:$0xff]
          %v5533 = vld [vmem:[%s576 + $0x10] sm:$0xff]
          %v5534 = vld [vmem:[%s576 + $0x18] sm:$0xff]
          %v5535 = vld [vmem:[%s576 + $0x20] sm:$0xff]
          %v5536 = vld [vmem:[%s576 + $0x28] sm:$0xff]
          %v5537 = vld [vmem:[%s576 + $0x30] sm:$0xff]
          %v5538 = vld [vmem:[%s576 + $0x38] sm:$0xff]
          %v5539 = vld [vmem:[%s576 + $0x40] sm:$0xff]
          %v5540 = vld [vmem:[%s576 + $0x48] sm:$0xff]
          %v5541 = vld [vmem:[%s576 + $0x50] sm:$0xff]
          %v5542 = vld [vmem:[%s576 + $0x58] sm:$0xff]
          %v5543 = vld [vmem:[%s576 + $0x60] sm:$0xff]
          %v5544 = vld [vmem:[%s576 + $0x68] sm:$0xff]
          %v5545 = vld [vmem:[%s576 + $0x70] sm:$0xff]
          %v5546 = vld [vmem:[%s576 + $0x78] sm:$0xff]
          %v5547 = vld [vmem:[%s576 + $0x80] sm:$0xff]
          %v5548 = vld [vmem:[%s576 + $0x88] sm:$0xff]
          %v5549 = vld [vmem:[%s576 + $0x90] sm:$0xff]
          %v5550 = vld [vmem:[%s576 + $0x98] sm:$0xff]
          %v5551 = vld [vmem:[%s576 + $0xa0] sm:$0xff]
          %v5552 = vld [vmem:[%s576 + $0xa8] sm:$0xff]
          %v5553 = vld [vmem:[%s576 + $0xb0] sm:$0xff]
          %v5554 = vld [vmem:[%s576 + $0xb8] sm:$0xff]
          %v5555 = vld [vmem:[%s576 + $0xc0] sm:$0xff]
          %v5556 = vld [vmem:[%s576 + $0xc8] sm:$0xff]
          %v5557 = vld [vmem:[%s576 + $0xd0] sm:$0xff]
          %v5558 = vld [vmem:[%s576 + $0xd8] sm:$0xff]
          %v5559 = vld [vmem:[%s576 + $0xe0] sm:$0xff]
          %v5560 = vld [vmem:[%s576 + $0xe8] sm:$0xff]
          %v5561 = vld [vmem:[%s576 + $0xf0] sm:$0xff]
          %v5562 = vld [vmem:[%s576 + $0xf8] sm:$0xff]
          %v5563 = vld [vmem:[%s576 + $0x100] sm:$0xff]
          %v5564 = vld [vmem:[%s576 + $0x108] sm:$0xff]
          %v5565 = vld [vmem:[%s576 + $0x110] sm:$0xff]
          %v5566 = vld [vmem:[%s576 + $0x118] sm:$0xff]
          %v5567 = vld [vmem:[%s576 + $0x120] sm:$0xff]
          %v5568 = vld [vmem:[%s576 + $0x128] sm:$0xff]
          %v5569 = vld [vmem:[%s576 + $0x130] sm:$0xff]
          %v5570 = vld [vmem:[%s576 + $0x138] sm:$0xff]
          %v5571 = vld [vmem:[%s576 + $0x140] sm:$0xff]
          %v5572 = vld [vmem:[%s576 + $0x148] sm:$0xff]
          %v5573 = vld [vmem:[%s576 + $0x150] sm:$0xff]
          %v5574 = vld [vmem:[%s576 + $0x158] sm:$0xff]
          %v5575 = vld [vmem:[%s576 + $0x160] sm:$0xff]
          %v5576 = vld [vmem:[%s576 + $0x168] sm:$0xff]
          %v5577 = vld [vmem:[%s576 + $0x170] sm:$0xff]
          %v5578 = vld [vmem:[%s576 + $0x178] sm:$0xff]
          %v5579 = vld [vmem:[%s576 + $0x180] sm:$0xff]
          %v5580 = vld [vmem:[%s576 + $0x188] sm:$0xff]
          %v5581 = vld [vmem:[%s576 + $0x190] sm:$0xff]
          %v5582 = vld [vmem:[%s576 + $0x198] sm:$0xff]
          %v5583 = vld [vmem:[%s576 + $0x1a0] sm:$0xff]
          %v5584 = vld [vmem:[%s576 + $0x1a8] sm:$0xff]
          %v5585 = vld [vmem:[%s576 + $0x1b0] sm:$0xff]
          %v5586 = vld [vmem:[%s576 + $0x1b8] sm:$0xff]
          %v5587 = vld [vmem:[%s576 + $0x1c0] sm:$0xff]
          %v5588 = vld [vmem:[%s576 + $0x1c8] sm:$0xff]
          %v5589 = vld [vmem:[%s576 + $0x1d0] sm:$0xff]
          %v5590 = vld [vmem:[%s576 + $0x1d8] sm:$0xff]
          %v5591 = vld [vmem:[%s576 + $0x1e0] sm:$0xff]
          %v5592 = vld [vmem:[%s576 + $0x1e8] sm:$0xff]
          %v5593 = vld [vmem:[%s576 + $0x1f0] sm:$0xff]
          %v5594 = vld [vmem:[%s576 + $0x1f8] sm:$0xff]
          %v5595 = vld [vmem:[%s576 + $0x200] sm:$0xff]
          %v5596 = vld [vmem:[%s576 + $0x208] sm:$0xff]
          %v5597 = vld [vmem:[%s576 + $0x210] sm:$0xff]
          %v5598 = vld [vmem:[%s576 + $0x218] sm:$0xff]
          %v5599 = vld [vmem:[%s576 + $0x220] sm:$0xff]
          %v5600 = vld [vmem:[%s576 + $0x228] sm:$0xff]
          %v5601 = vld [vmem:[%s576 + $0x230] sm:$0xff]
          %v5602 = vld [vmem:[%s576 + $0x238] sm:$0xff]
          %v5603 = vld [vmem:[%s576 + $0x240] sm:$0xff]
          %v5604 = vld [vmem:[%s576 + $0x248] sm:$0xff]
          %v5605 = vld [vmem:[%s576 + $0x250] sm:$0xff]
          %v5606 = vld [vmem:[%s576 + $0x258] sm:$0xff]
          %v5607 = vld [vmem:[%s576 + $0x260] sm:$0xff]
          %v5608 = vld [vmem:[%s576 + $0x268] sm:$0xff]
          %v5609 = vld [vmem:[%s576 + $0x270] sm:$0xff]
          %v5610 = vld [vmem:[%s576 + $0x278] sm:$0xff]
          %v5611 = vld [vmem:[%s576 + $0x280] sm:$0xff]
          %v5612 = vld [vmem:[%s576 + $0x288] sm:$0xff]
          %v5613 = vld [vmem:[%s576 + $0x290] sm:$0xff]
          %v5614 = vld [vmem:[%s576 + $0x298] sm:$0xff]
          %v5615 = vld [vmem:[%s576 + $0x2a0] sm:$0xff]
          %v5616 = vld [vmem:[%s576 + $0x2a8] sm:$0xff]
          %v5617 = vld [vmem:[%s576 + $0x2b0] sm:$0xff]
          %v5618 = vld [vmem:[%s576 + $0x2b8] sm:$0xff]
          %v5619 = vld [vmem:[%s576 + $0x2c0] sm:$0xff]
          %v5620 = vld [vmem:[%s576 + $0x2c8] sm:$0xff]
          %v5621 = vld [vmem:[%s576 + $0x2d0] sm:$0xff]
          %v5622 = vld [vmem:[%s576 + $0x2d8] sm:$0xff]
          %v5623 = vld [vmem:[%s576 + $0x2e0] sm:$0xff]
          %v5624 = vld [vmem:[%s576 + $0x2e8] sm:$0xff]
          %v5625 = vld [vmem:[%s576 + $0x2f0] sm:$0xff]
          %v5626 = vld [vmem:[%s576 + $0x2f8] sm:$0xff]
          %v5627 = vld [vmem:[%s576 + $0x300] sm:$0xff]
          %v5628 = vld [vmem:[%s576 + $0x308] sm:$0xff]
          %v5629 = vld [vmem:[%s576 + $0x310] sm:$0xff]
          %v5630 = vld [vmem:[%s576 + $0x318] sm:$0xff]
          %v5631 = vld [vmem:[%s576 + $0x320] sm:$0xff]
          %v5632 = vld [vmem:[%s576 + $0x328] sm:$0xff]
          %v5633 = vld [vmem:[%s576 + $0x330] sm:$0xff]
          %v5634 = vld [vmem:[%s576 + $0x338] sm:$0xff]
          %v5635 = vld [vmem:[%s576 + $0x340] sm:$0xff]
          %v5636 = vld [vmem:[%s576 + $0x348] sm:$0xff]
          %v5637 = vld [vmem:[%s576 + $0x350] sm:$0xff]
          %v5638 = vld [vmem:[%s576 + $0x358] sm:$0xff]
          %v5639 = vld [vmem:[%s576 + $0x360] sm:$0xff]
          %v5640 = vld [vmem:[%s576 + $0x368] sm:$0xff]
          %v5641 = vld [vmem:[%s576 + $0x370] sm:$0xff]
          %v5642 = vld [vmem:[%s576 + $0x378] sm:$0xff]
          %v5643 = vld [vmem:[%s576 + $0x380] sm:$0xff]
          %v5644 = vld [vmem:[%s576 + $0x388] sm:$0xff]
          %v5645 = vld [vmem:[%s576 + $0x390] sm:$0xff]
          %v5646 = vld [vmem:[%s576 + $0x398] sm:$0xff]
          %v5647 = vld [vmem:[%s576 + $0x3a0] sm:$0xff]
          %v5648 = vld [vmem:[%s576 + $0x3a8] sm:$0xff]
          %v5649 = vld [vmem:[%s576 + $0x3b0] sm:$0xff]
          %v5650 = vld [vmem:[%s576 + $0x3b8] sm:$0xff]
          %v5651 = vld [vmem:[%s576 + $0x3c0] sm:$0xff]
          %v5652 = vld [vmem:[%s576 + $0x3c8] sm:$0xff]
          %v5653 = vld [vmem:[%s576 + $0x3d0] sm:$0xff]
          %v5654 = vld [vmem:[%s576 + $0x3d8] sm:$0xff]
          %v5655 = vld [vmem:[%s576 + $0x3e0] sm:$0xff]
          %v5656 = vld [vmem:[%s576 + $0x3e8] sm:$0xff]
          %v5657 = vld [vmem:[%s576 + $0x3f0] sm:$0xff]
          %v5658 = vld [vmem:[%s576 + $0x3f8] sm:$0xff]
          %v5659 = vld [vmem:[%s576 + $0x400] sm:$0xff]
          %v5660 = vld [vmem:[%s576 + $0x408] sm:$0xff]
          %v5661 = vld [vmem:[%s576 + $0x410] sm:$0xff]
          %v5662 = vld [vmem:[%s576 + $0x418] sm:$0xff]
          %v5663 = vld [vmem:[%s576 + $0x420] sm:$0xff]
          %v5664 = vld [vmem:[%s576 + $0x428] sm:$0xff]
          %v5665 = vld [vmem:[%s576 + $0x430] sm:$0xff]
          %v5666 = vld [vmem:[%s576 + $0x438] sm:$0xff]
          %v5667 = vld [vmem:[%s576 + $0x440] sm:$0xff]
          %v5668 = vld [vmem:[%s576 + $0x448] sm:$0xff]
          %v5669 = vld [vmem:[%s576 + $0x450] sm:$0xff]
          %v5670 = vld [vmem:[%s576 + $0x458] sm:$0xff]
          %v5671 = vld [vmem:[%s576 + $0x460] sm:$0xff]
          %v5672 = vld [vmem:[%s576 + $0x468] sm:$0xff]
          %v5673 = vld [vmem:[%s576 + $0x470] sm:$0xff]
          %v5674 = vld [vmem:[%s576 + $0x478] sm:$0xff]
          %v5675 = vld [vmem:[%s576 + $0x480] sm:$0xff]
          %v5676 = vld [vmem:[%s576 + $0x488] sm:$0xff]
          %v5677 = vld [vmem:[%s576 + $0x490] sm:$0xff]
          %v5678 = vld [vmem:[%s576 + $0x498] sm:$0xff]
          %v5679 = vld [vmem:[%s576 + $0x4a0] sm:$0xff]
          %v5680 = vld [vmem:[%s576 + $0x4a8] sm:$0xff]
          %v5681 = vld [vmem:[%s576 + $0x4b0] sm:$0xff]
          %v5682 = vld [vmem:[%s576 + $0x4b8] sm:$0xff]
          %v5683 = vld [vmem:[%s576 + $0x4c0] sm:$0xff]
          %v5684 = vld [vmem:[%s576 + $0x4c8] sm:$0xff]
          %v5685 = vld [vmem:[%s576 + $0x4d0] sm:$0xff]
          %v5686 = vld [vmem:[%s576 + $0x4d8] sm:$0xff]
          %v5687 = vld [vmem:[%s576 + $0x4e0] sm:$0xff]
          %v5688 = vld [vmem:[%s576 + $0x4e8] sm:$0xff]
          %v5689 = vld [vmem:[%s576 + $0x4f0] sm:$0xff]
          %v5690 = vld [vmem:[%s576 + $0x4f8] sm:$0xff]
          %v5691 = vld [vmem:[%s576 + $0x500] sm:$0xff]
          %v5692 = vld [vmem:[%s576 + $0x508] sm:$0xff]
          %v5693 = vld [vmem:[%s576 + $0x510] sm:$0xff]
          %v5694 = vld [vmem:[%s576 + $0x518] sm:$0xff]
          %v5695 = vld [vmem:[%s576 + $0x520] sm:$0xff]
          %v5696 = vld [vmem:[%s576 + $0x528] sm:$0xff]
          %v5697 = vld [vmem:[%s576 + $0x530] sm:$0xff]
          %v5698 = vld [vmem:[%s576 + $0x538] sm:$0xff]
          %v5699 = vld [vmem:[%s576 + $0x540] sm:$0xff]
          %v5700 = vld [vmem:[%s576 + $0x548] sm:$0xff]
          %v5701 = vld [vmem:[%s576 + $0x550] sm:$0xff]
          %v5702 = vld [vmem:[%s576 + $0x558] sm:$0xff]
          %v5703 = vld [vmem:[%s576 + $0x560] sm:$0xff]
          %v5704 = vld [vmem:[%s576 + $0x568] sm:$0xff]
          %v5705 = vld [vmem:[%s576 + $0x570] sm:$0xff]
          %v5706 = vld [vmem:[%s576 + $0x578] sm:$0xff]
          %v5707 = vld [vmem:[%s576 + $0x580] sm:$0xff]
          %v5708 = vld [vmem:[%s576 + $0x588] sm:$0xff]
          %v5709 = vld [vmem:[%s576 + $0x590] sm:$0xff]
          %v5710 = vld [vmem:[%s576 + $0x598] sm:$0xff]
          %v5711 = vld [vmem:[%s576 + $0x5a0] sm:$0xff]
          %v5712 = vld [vmem:[%s576 + $0x5a8] sm:$0xff]
          %v5713 = vld [vmem:[%s576 + $0x5b0] sm:$0xff]
          %v5714 = vld [vmem:[%s576 + $0x5b8] sm:$0xff]
          %v5715 = vld [vmem:[%s576 + $0x5c0] sm:$0xff]
          %v5716 = vld [vmem:[%s576 + $0x5c8] sm:$0xff]
          %v5717 = vld [vmem:[%s576 + $0x5d0] sm:$0xff]
          %v5718 = vld [vmem:[%s576 + $0x5d8] sm:$0xff]
          %v5719 = vld [vmem:[%s576 + $0x5e0] sm:$0xff]
          %v5720 = vld [vmem:[%s576 + $0x5e8] sm:$0xff]
          %v5721 = vld [vmem:[%s576 + $0x5f0] sm:$0xff]
          %v5722 = vld [vmem:[%s576 + $0x5f8] sm:$0xff]
          %v5723 = vld [vmem:[%s576 + $0x600] sm:$0xff]
          %v5724 = vld [vmem:[%s576 + $0x608] sm:$0xff]
          %v5725 = vld [vmem:[%s576 + $0x610] sm:$0xff]
          %v5726 = vld [vmem:[%s576 + $0x618] sm:$0xff]
          %v5727 = vld [vmem:[%s576 + $0x620] sm:$0xff]
          %v5728 = vld [vmem:[%s576 + $0x628] sm:$0xff]
          %v5729 = vld [vmem:[%s576 + $0x630] sm:$0xff]
          %v5730 = vld [vmem:[%s576 + $0x638] sm:$0xff]
          %v5731 = vld [vmem:[%s576 + $0x640] sm:$0xff]
          %v5732 = vld [vmem:[%s576 + $0x648] sm:$0xff]
          %v5733 = vld [vmem:[%s576 + $0x650] sm:$0xff]
          %v5734 = vld [vmem:[%s576 + $0x658] sm:$0xff]
          %v5735 = vld [vmem:[%s576 + $0x660] sm:$0xff]
          %v5736 = vld [vmem:[%s576 + $0x668] sm:$0xff]
          %v5737 = vld [vmem:[%s576 + $0x670] sm:$0xff]
          %v5738 = vld [vmem:[%s576 + $0x678] sm:$0xff]
          %v5739 = vld [vmem:[%s576 + $0x680] sm:$0xff]
          %v5740 = vld [vmem:[%s576 + $0x688] sm:$0xff]
          %v5741 = vld [vmem:[%s576 + $0x690] sm:$0xff]
          %v5742 = vld [vmem:[%s576 + $0x698] sm:$0xff]
          %v5743 = vld [vmem:[%s576 + $0x6a0] sm:$0xff]
          %v5744 = vld [vmem:[%s576 + $0x6a8] sm:$0xff]
          %v5745 = vld [vmem:[%s576 + $0x6b0] sm:$0xff]
          %v5746 = vld [vmem:[%s576 + $0x6b8] sm:$0xff]
          %v5747 = vld [vmem:[%s576 + $0x6c0] sm:$0xff]
          %v5748 = vld [vmem:[%s576 + $0x6c8] sm:$0xff]
          %v5749 = vld [vmem:[%s576 + $0x6d0] sm:$0xff]
          %v5750 = vld [vmem:[%s576 + $0x6d8] sm:$0xff]
          %v5751 = vld [vmem:[%s576 + $0x6e0] sm:$0xff]
          %v5752 = vld [vmem:[%s576 + $0x6e8] sm:$0xff]
          %v5753 = vld [vmem:[%s576 + $0x6f0] sm:$0xff]
          %v5754 = vld [vmem:[%s576 + $0x6f8] sm:$0xff]
          %v5755 = vld [vmem:[%s576 + $0x700] sm:$0xff]
          %v5756 = vld [vmem:[%s576 + $0x708] sm:$0xff]
          %v5757 = vld [vmem:[%s576 + $0x710] sm:$0xff]
          %v5758 = vld [vmem:[%s576 + $0x718] sm:$0xff]
          %v5759 = vld [vmem:[%s576 + $0x720] sm:$0xff]
          %v5760 = vld [vmem:[%s576 + $0x728] sm:$0xff]
          %v5761 = vld [vmem:[%s576 + $0x730] sm:$0xff]
          %v5762 = vld [vmem:[%s576 + $0x738] sm:$0xff]
          %v5763 = vld [vmem:[%s576 + $0x740] sm:$0xff]
          %v5764 = vld [vmem:[%s576 + $0x748] sm:$0xff]
          %v5765 = vld [vmem:[%s576 + $0x750] sm:$0xff]
          %v5766 = vld [vmem:[%s576 + $0x758] sm:$0xff]
          %v5767 = vld [vmem:[%s576 + $0x760] sm:$0xff]
          %v5768 = vld [vmem:[%s576 + $0x768] sm:$0xff]
          %v5769 = vld [vmem:[%s576 + $0x770] sm:$0xff]
          %v5770 = vld [vmem:[%s576 + $0x778] sm:$0xff]
          %v5771 = vld [vmem:[%s576 + $0x780] sm:$0xff]
          %v5772 = vld [vmem:[%s576 + $0x788] sm:$0xff]
          %v5773 = vld [vmem:[%s576 + $0x790] sm:$0xff]
          %v5774 = vld [vmem:[%s576 + $0x798] sm:$0xff]
          %v5775 = vld [vmem:[%s576 + $0x7a0] sm:$0xff]
          %v5776 = vld [vmem:[%s576 + $0x7a8] sm:$0xff]
          %v5777 = vld [vmem:[%s576 + $0x7b0] sm:$0xff]
          %v5778 = vld [vmem:[%s576 + $0x7b8] sm:$0xff]
          %v5779 = vld [vmem:[%s576 + $0x7c0] sm:$0xff]
          %v5780 = vld [vmem:[%s576 + $0x7c8] sm:$0xff]
          %v5781 = vld [vmem:[%s576 + $0x7d0] sm:$0xff]
          %v5782 = vld [vmem:[%s576 + $0x7d8] sm:$0xff]
          %v5783 = vld [vmem:[%s576 + $0x7e0] sm:$0xff]
          %v5784 = vld [vmem:[%s576 + $0x7e8] sm:$0xff]
          %v5785 = vld [vmem:[%s576 + $0x7f0] sm:$0xff]
          %v5786 = vld [vmem:[%s576 + $0x7f8] sm:$0xff]
          %v5787 = vld [vmem:[%s576 + $0x800] sm:$0xff]
          %v5788 = vld [vmem:[%s576 + $0x808] sm:$0xff]
          %v5789 = vld [vmem:[%s576 + $0x810] sm:$0xff]
          %v5790 = vld [vmem:[%s576 + $0x818] sm:$0xff]
          %v5791 = vld [vmem:[%s576 + $0x820] sm:$0xff]
          %v5792 = vld [vmem:[%s576 + $0x828] sm:$0xff]
          %v5793 = vld [vmem:[%s576 + $0x830] sm:$0xff]
          %v5794 = vld [vmem:[%s576 + $0x838] sm:$0xff]
          %v5795 = vld [vmem:[%s576 + $0x840] sm:$0xff]
          %v5796 = vld [vmem:[%s576 + $0x848] sm:$0xff]
          %v5797 = vld [vmem:[%s576 + $0x850] sm:$0xff]
          %v5798 = vld [vmem:[%s576 + $0x858] sm:$0xff]
          %v5799 = vld [vmem:[%s576 + $0x860] sm:$0xff]
          %v5800 = vld [vmem:[%s576 + $0x868] sm:$0xff]
          %v5801 = vld [vmem:[%s576 + $0x870] sm:$0xff]
          %v5802 = vld [vmem:[%s576 + $0x878] sm:$0xff]
          %v5803 = vld [vmem:[%s576 + $0x880] sm:$0xff]
          %v5804 = vld [vmem:[%s576 + $0x888] sm:$0xff]
          %v5805 = vld [vmem:[%s576 + $0x890] sm:$0xff]
          %v5806 = vld [vmem:[%s576 + $0x898] sm:$0xff]
          %v5807 = vld [vmem:[%s576 + $0x8a0] sm:$0xff]
          %v5808 = vld [vmem:[%s576 + $0x8a8] sm:$0xff]
          %v5809 = vld [vmem:[%s576 + $0x8b0] sm:$0xff]
          %v5810 = vld [vmem:[%s576 + $0x8b8] sm:$0xff]
          %v5811 = vld [vmem:[%s576 + $0x8c0] sm:$0xff]
          %v5812 = vld [vmem:[%s576 + $0x8c8] sm:$0xff]
          %v5813 = vld [vmem:[%s576 + $0x8d0] sm:$0xff]
          %v5814 = vld [vmem:[%s576 + $0x8d8] sm:$0xff]
          %v5815 = vld [vmem:[%s576 + $0x8e0] sm:$0xff]
          %v5816 = vld [vmem:[%s576 + $0x8e8] sm:$0xff]
          %v5817 = vld [vmem:[%s576 + $0x8f0] sm:$0xff]
          %v5818 = vld [vmem:[%s576 + $0x8f8] sm:$0xff]
          %v5819 = vld [vmem:[%s576 + $0x900] sm:$0xff]
          %v5820 = vld [vmem:[%s576 + $0x908] sm:$0xff]
          %v5821 = vld [vmem:[%s576 + $0x910] sm:$0xff]
          %v5822 = vld [vmem:[%s576 + $0x918] sm:$0xff]
          %v5823 = vld [vmem:[%s576 + $0x920] sm:$0xff]
          %v5824 = vld [vmem:[%s576 + $0x928] sm:$0xff]
          %v5825 = vld [vmem:[%s576 + $0x930] sm:$0xff]
          %v5826 = vld [vmem:[%s576 + $0x938] sm:$0xff]
          %v5827 = vld [vmem:[%s576 + $0x940] sm:$0xff]
          %v5828 = vld [vmem:[%s576 + $0x948] sm:$0xff]
          %v5829 = vld [vmem:[%s576 + $0x950] sm:$0xff]
          %v5830 = vld [vmem:[%s576 + $0x958] sm:$0xff]
          %v5831 = vld [vmem:[%s576 + $0x960] sm:$0xff]
          %v5832 = vld [vmem:[%s576 + $0x968] sm:$0xff]
          %v5833 = vld [vmem:[%s576 + $0x970] sm:$0xff]
          %v5834 = vld [vmem:[%s576 + $0x978] sm:$0xff]
          %v5835 = vld [vmem:[%s576 + $0x980] sm:$0xff]
          %v5836 = vld [vmem:[%s576 + $0x988] sm:$0xff]
          %v5837 = vld [vmem:[%s576 + $0x990] sm:$0xff]
          %v5838 = vld [vmem:[%s576 + $0x998] sm:$0xff]
          %v5839 = vld [vmem:[%s576 + $0x9a0] sm:$0xff]
          %v5840 = vld [vmem:[%s576 + $0x9a8] sm:$0xff]
          %v5841 = vld [vmem:[%s576 + $0x9b0] sm:$0xff]
          %v5842 = vld [vmem:[%s576 + $0x9b8] sm:$0xff]
          %v5843 = vld [vmem:[%s576 + $0x9c0] sm:$0xff]
          %v5844 = vld [vmem:[%s576 + $0x9c8] sm:$0xff]
          %v5845 = vld [vmem:[%s576 + $0x9d0] sm:$0xff]
          %v5846 = vld [vmem:[%s576 + $0x9d8] sm:$0xff]
          %v5847 = vld [vmem:[%s576 + $0x9e0] sm:$0xff]
          %v5848 = vld [vmem:[%s576 + $0x9e8] sm:$0xff]
          %v5849 = vld [vmem:[%s576 + $0x9f0] sm:$0xff]
          %v5850 = vld [vmem:[%s576 + $0x9f8] sm:$0xff]
          %v5851 = vld [vmem:[%s576 + $0xa00] sm:$0xff]
          %v5852 = vld [vmem:[%s576 + $0xa08] sm:$0xff]
          %v5853 = vld [vmem:[%s576 + $0xa10] sm:$0xff]
          %v5854 = vld [vmem:[%s576 + $0xa18] sm:$0xff]
          %v5855 = vld [vmem:[%s576 + $0xa20] sm:$0xff]
          %v5856 = vld [vmem:[%s576 + $0xa28] sm:$0xff]
          %v5857 = vld [vmem:[%s576 + $0xa30] sm:$0xff]
          %v5858 = vld [vmem:[%s576 + $0xa38] sm:$0xff]
          %v5859 = vld [vmem:[%s576 + $0xa40] sm:$0xff]
          %v5860 = vld [vmem:[%s576 + $0xa48] sm:$0xff]
          %v5861 = vld [vmem:[%s576 + $0xa50] sm:$0xff]
          %v5862 = vld [vmem:[%s576 + $0xa58] sm:$0xff]
          %v5863 = vld [vmem:[%s576 + $0xa60] sm:$0xff]
          %v5864 = vld [vmem:[%s576 + $0xa68] sm:$0xff]
          %v5865 = vld [vmem:[%s576 + $0xa70] sm:$0xff]
          %v5866 = vld [vmem:[%s576 + $0xa78] sm:$0xff]
          %v5867 = vld [vmem:[%s576 + $0xa80] sm:$0xff]
          %v5868 = vld [vmem:[%s576 + $0xa88] sm:$0xff]
          %v5869 = vld [vmem:[%s576 + $0xa90] sm:$0xff]
          %v5870 = vld [vmem:[%s576 + $0xa98] sm:$0xff]
          %v5871 = vld [vmem:[%s576 + $0xaa0] sm:$0xff]
          %v5872 = vld [vmem:[%s576 + $0xaa8] sm:$0xff]
          %v5873 = vld [vmem:[%s576 + $0xab0] sm:$0xff]
          %v5874 = vld [vmem:[%s576 + $0xab8] sm:$0xff]
          %v5875 = vld [vmem:[%s576 + $0xac0] sm:$0xff]
          %v5876 = vld [vmem:[%s576 + $0xac8] sm:$0xff]
          %v5877 = vld [vmem:[%s576 + $0xad0] sm:$0xff]
          %v5878 = vld [vmem:[%s576 + $0xad8] sm:$0xff]
          %v5879 = vld [vmem:[%s576 + $0xae0] sm:$0xff]
          %v5880 = vld [vmem:[%s576 + $0xae8] sm:$0xff]
          %v5881 = vld [vmem:[%s576 + $0xaf0] sm:$0xff]
          %v5882 = vld [vmem:[%s576 + $0xaf8] sm:$0xff]
          %v5883 = vld [vmem:[%s576 + $0xb00] sm:$0xff]
          %v5884 = vld [vmem:[%s576 + $0xb08] sm:$0xff]
          %v5885 = vld [vmem:[%s576 + $0xb10] sm:$0xff]
          %v5886 = vld [vmem:[%s576 + $0xb18] sm:$0xff]
          %v5887 = vld [vmem:[%s576 + $0xb20] sm:$0xff]
          %v5888 = vld [vmem:[%s576 + $0xb28] sm:$0xff]
          %v5889 = vld [vmem:[%s576 + $0xb30] sm:$0xff]
          %v5890 = vld [vmem:[%s576 + $0xb38] sm:$0xff]
          %v5891 = vld [vmem:[%s576 + $0xb40] sm:$0xff]
          %v5892 = vld [vmem:[%s576 + $0xb48] sm:$0xff]
          %v5893 = vld [vmem:[%s576 + $0xb50] sm:$0xff]
          %v5894 = vld [vmem:[%s576 + $0xb58] sm:$0xff]
          %v5895 = vld [vmem:[%s576 + $0xb60] sm:$0xff]
          %v5896 = vld [vmem:[%s576 + $0xb68] sm:$0xff]
          %v5897 = vld [vmem:[%s576 + $0xb70] sm:$0xff]
          %v5898 = vld [vmem:[%s576 + $0xb78] sm:$0xff]
          %v5899 = vld [vmem:[%s576 + $0xb80] sm:$0xff]
          %v5900 = vld [vmem:[%s576 + $0xb88] sm:$0xff]
          %v5901 = vld [vmem:[%s576 + $0xb90] sm:$0xff]
          %v5902 = vld [vmem:[%s576 + $0xb98] sm:$0xff]
          %v5903 = vld [vmem:[%s576 + $0xba0] sm:$0xff]
          %v5904 = vld [vmem:[%s576 + $0xba8] sm:$0xff]
          %v5905 = vld [vmem:[%s576 + $0xbb0] sm:$0xff]
          %v5906 = vld [vmem:[%s576 + $0xbb8] sm:$0xff]
          %v5907 = vld [vmem:[%s576 + $0xbc0] sm:$0xff]
          %v5908 = vld [vmem:[%s576 + $0xbc8] sm:$0xff]
          %v5909 = vld [vmem:[%s576 + $0xbd0] sm:$0xff]
          %v5910 = vld [vmem:[%s576 + $0xbd8] sm:$0xff]
          %v5911 = vld [vmem:[%s576 + $0xbe0] sm:$0xff]
          %v5912 = vld [vmem:[%s576 + $0xbe8] sm:$0xff]
          %v5913 = vld [vmem:[%s576 + $0xbf0] sm:$0xff]
          %v5914 = vld [vmem:[%s576 + $0xbf8] sm:$0xff]
          %v5915 = vld [vmem:[%s576 + $0xc00] sm:$0xff]
          %v5916 = vld [vmem:[%s576 + $0xc08] sm:$0xff]
          %v5917 = vld [vmem:[%s576 + $0xc10] sm:$0xff]
          %v5918 = vld [vmem:[%s576 + $0xc18] sm:$0xff]
          %v5919 = vld [vmem:[%s576 + $0xc20] sm:$0xff]
          %v5920 = vld [vmem:[%s576 + $0xc28] sm:$0xff]
          %v5921 = vld [vmem:[%s576 + $0xc30] sm:$0xff]
          %v5922 = vld [vmem:[%s576 + $0xc38] sm:$0xff]
          %v5923 = vld [vmem:[%s576 + $0xc40] sm:$0xff]
          %v5924 = vld [vmem:[%s576 + $0xc48] sm:$0xff]
          %v5925 = vld [vmem:[%s576 + $0xc50] sm:$0xff]
          %v5926 = vld [vmem:[%s576 + $0xc58] sm:$0xff]
          %v5927 = vld [vmem:[%s576 + $0xc60] sm:$0xff]
          %v5928 = vld [vmem:[%s576 + $0xc68] sm:$0xff]
          %v5929 = vld [vmem:[%s576 + $0xc70] sm:$0xff]
          %v5930 = vld [vmem:[%s576 + $0xc78] sm:$0xff]
          %v5931 = vld [vmem:[%s576 + $0xc80] sm:$0xff]
          %v5932 = vld [vmem:[%s576 + $0xc88] sm:$0xff]
          %v5933 = vld [vmem:[%s576 + $0xc90] sm:$0xff]
          %v5934 = vld [vmem:[%s576 + $0xc98] sm:$0xff]
          %v5935 = vld [vmem:[%s576 + $0xca0] sm:$0xff]
          %v5936 = vld [vmem:[%s576 + $0xca8] sm:$0xff]
          %v5937 = vld [vmem:[%s576 + $0xcb0] sm:$0xff]
          %v5938 = vld [vmem:[%s576 + $0xcb8] sm:$0xff]
          %v5939 = vld [vmem:[%s576 + $0xcc0] sm:$0xff]
          %v5940 = vld [vmem:[%s576 + $0xcc8] sm:$0xff]
          %v5941 = vld [vmem:[%s576 + $0xcd0] sm:$0xff]
          %v5942 = vld [vmem:[%s576 + $0xcd8] sm:$0xff]
          %v5943 = vld [vmem:[%s576 + $0xce0] sm:$0xff]
          %v5944 = vld [vmem:[%s576 + $0xce8] sm:$0xff]
          %v5945 = vld [vmem:[%s576 + $0xcf0] sm:$0xff]
          %v5946 = vld [vmem:[%s576 + $0xcf8] sm:$0xff]
          %v5947 = vld [vmem:[%s576 + $0xd00] sm:$0xff]
          %v5948 = vld [vmem:[%s576 + $0xd08] sm:$0xff]
          %v5949 = vld [vmem:[%s576 + $0xd10] sm:$0xff]
          %v5950 = vld [vmem:[%s576 + $0xd18] sm:$0xff]
          %v5951 = vld [vmem:[%s576 + $0xd20] sm:$0xff]
          %v5952 = vld [vmem:[%s576 + $0xd28] sm:$0xff]
          %v5953 = vld [vmem:[%s576 + $0xd30] sm:$0xff]
          %v5954 = vld [vmem:[%s576 + $0xd38] sm:$0xff]
          %v5955 = vld [vmem:[%s576 + $0xd40] sm:$0xff]
          %v5956 = vld [vmem:[%s576 + $0xd48] sm:$0xff]
          %v5957 = vld [vmem:[%s576 + $0xd50] sm:$0xff]
          %v5958 = vld [vmem:[%s576 + $0xd58] sm:$0xff]
          %v5959 = vld [vmem:[%s576 + $0xd60] sm:$0xff]
          %v5960 = vld [vmem:[%s576 + $0xd68] sm:$0xff]
          %v5961 = vld [vmem:[%s576 + $0xd70] sm:$0xff]
          %v5962 = vld [vmem:[%s576 + $0xd78] sm:$0xff]
          %v5963 = vld [vmem:[%s576 + $0xd80] sm:$0xff]
          %v5964 = vld [vmem:[%s576 + $0xd88] sm:$0xff]
          %v5965 = vld [vmem:[%s576 + $0xd90] sm:$0xff]
          %v5966 = vld [vmem:[%s576 + $0xd98] sm:$0xff]
          %v5967 = vld [vmem:[%s576 + $0xda0] sm:$0xff]
          %v5968 = vld [vmem:[%s576 + $0xda8] sm:$0xff]
          %v5969 = vld [vmem:[%s576 + $0xdb0] sm:$0xff]
          %v5970 = vld [vmem:[%s576 + $0xdb8] sm:$0xff]
          %v5971 = vld [vmem:[%s576 + $0xdc0] sm:$0xff]
          %v5972 = vld [vmem:[%s576 + $0xdc8] sm:$0xff]
          %v5973 = vld [vmem:[%s576 + $0xdd0] sm:$0xff]
          %v5974 = vld [vmem:[%s576 + $0xdd8] sm:$0xff]
          %v5975 = vld [vmem:[%s576 + $0xde0] sm:$0xff]
          %v5976 = vld [vmem:[%s576 + $0xde8] sm:$0xff]
          %v5977 = vld [vmem:[%s576 + $0xdf0] sm:$0xff]
          %v5978 = vld [vmem:[%s576 + $0xdf8] sm:$0xff]
          %v5979 = vld [vmem:[%s576 + $0xe00] sm:$0xff]
          %v5980 = vld [vmem:[%s576 + $0xe08] sm:$0xff]
          %v5981 = vld [vmem:[%s576 + $0xe10] sm:$0xff]
          %v5982 = vld [vmem:[%s576 + $0xe18] sm:$0xff]
          %v5983 = vld [vmem:[%s576 + $0xe20] sm:$0xff]
          %v5984 = vld [vmem:[%s576 + $0xe28] sm:$0xff]
          %v5985 = vld [vmem:[%s576 + $0xe30] sm:$0xff]
          %v5986 = vld [vmem:[%s576 + $0xe38] sm:$0xff]
          %v5987 = vld [vmem:[%s576 + $0xe40] sm:$0xff]
          %v5988 = vld [vmem:[%s576 + $0xe48] sm:$0xff]
          %v5989 = vld [vmem:[%s576 + $0xe50] sm:$0xff]
          %v5990 = vld [vmem:[%s576 + $0xe58] sm:$0xff]
          %v5991 = vld [vmem:[%s576 + $0xe60] sm:$0xff]
          %v5992 = vld [vmem:[%s576 + $0xe68] sm:$0xff]
          %v5993 = vld [vmem:[%s576 + $0xe70] sm:$0xff]
          %v5994 = vld [vmem:[%s576 + $0xe78] sm:$0xff]
          %v5995 = vld [vmem:[%s576 + $0xe80] sm:$0xff]
          %v5996 = vld [vmem:[%s576 + $0xe88] sm:$0xff]
          %v5997 = vld [vmem:[%s576 + $0xe90] sm:$0xff]
          %v5998 = vld [vmem:[%s576 + $0xe98] sm:$0xff]
          %v5999 = vld [vmem:[%s576 + $0xea0] sm:$0xff]
          %v6000 = vld [vmem:[%s576 + $0xea8] sm:$0xff]
          %v6001 = vld [vmem:[%s576 + $0xeb0] sm:$0xff]
          %v6002 = vld [vmem:[%s576 + $0xeb8] sm:$0xff]
          %v6003 = vld [vmem:[%s576 + $0xec0] sm:$0xff]
          %v6004 = vld [vmem:[%s576 + $0xec8] sm:$0xff]
          %v6005 = vld [vmem:[%s576 + $0xed0] sm:$0xff]
          %v6006 = vld [vmem:[%s576 + $0xed8] sm:$0xff]
          %v6007 = vld [vmem:[%s576 + $0xee0] sm:$0xff]
          %v6008 = vld [vmem:[%s576 + $0xee8] sm:$0xff]
          %v6009 = vld [vmem:[%s576 + $0xef0] sm:$0xff]
          %v6010 = vld [vmem:[%s576 + $0xef8] sm:$0xff]
          %v6011 = vld [vmem:[%s576 + $0xf00] sm:$0xff]
          %v6012 = vld [vmem:[%s576 + $0xf08] sm:$0xff]
          %v6013 = vld [vmem:[%s576 + $0xf10] sm:$0xff]
          %v6014 = vld [vmem:[%s576 + $0xf18] sm:$0xff]
          %v6015 = vld [vmem:[%s576 + $0xf20] sm:$0xff]
          %v6016 = vld [vmem:[%s576 + $0xf28] sm:$0xff]
          %v6017 = vld [vmem:[%s576 + $0xf30] sm:$0xff]
          %v6018 = vld [vmem:[%s576 + $0xf38] sm:$0xff]
          %v6019 = vld [vmem:[%s576 + $0xf40] sm:$0xff]
          %v6020 = vld [vmem:[%s576 + $0xf48] sm:$0xff]
          %v6021 = vld [vmem:[%s576 + $0xf50] sm:$0xff]
          %v6022 = vld [vmem:[%s576 + $0xf58] sm:$0xff]
          %v6023 = vld [vmem:[%s576 + $0xf60] sm:$0xff]
          %v6024 = vld [vmem:[%s576 + $0xf68] sm:$0xff]
          %v6025 = vld [vmem:[%s576 + $0xf70] sm:$0xff]
          %v6026 = vld [vmem:[%s576 + $0xf78] sm:$0xff]
          %v6027 = vld [vmem:[%s576 + $0xf80] sm:$0xff]
          %v6028 = vld [vmem:[%s576 + $0xf88] sm:$0xff]
          %v6029 = vld [vmem:[%s576 + $0xf90] sm:$0xff]
          %v6030 = vld [vmem:[%s576 + $0xf98] sm:$0xff]
          %v6031 = vld [vmem:[%s576 + $0xfa0] sm:$0xff]
          %v6032 = vld [vmem:[%s576 + $0xfa8] sm:$0xff]
          %v6033 = vld [vmem:[%s576 + $0xfb0] sm:$0xff]
          %v6034 = vld [vmem:[%s576 + $0xfb8] sm:$0xff]
          %v6035 = vld [vmem:[%s576 + $0xfc0] sm:$0xff]
          %v6036 = vld [vmem:[%s576 + $0xfc8] sm:$0xff]
          %v6037 = vld [vmem:[%s576 + $0xfd0] sm:$0xff]
          %v6038 = vld [vmem:[%s576 + $0xfd8] sm:$0xff]
          %v6039 = vld [vmem:[%s576 + $0xfe0] sm:$0xff]
          %v6040 = vld [vmem:[%s576 + $0xfe8] sm:$0xff]
          %v6041 = vld [vmem:[%s576 + $0xff0] sm:$0xff]
          %v6042 = vld [vmem:[%s576 + $0xff8] sm:$0xff]
          %v6043 = vld [vmem:[%s591] sm:$0xff]
          %v6044 = vld [vmem:[%s591 + $0x8] sm:$0xff]
          %v6045 = vld [vmem:[%s591 + $0x10] sm:$0xff]
          %v6046 = vld [vmem:[%s591 + $0x18] sm:$0xff]
          %v6051 = vperm.slane %v6043, 0
          %v6052 = vperm.slane %v6043, 1
          %v6053 = vperm.slane %v6043, 2
          %v6054 = vperm.slane %v6043, 3
          %v6055 = vperm.slane %v6043, 4
          %v6056 = vperm.slane %v6043, 5
          %v6057 = vperm.slane %v6043, 6
          %v6058 = vperm.slane %v6043, 7
          %v6059 = vperm.slane %v6044, 0
          %v6060 = vperm.slane %v6044, 1
          %v6061 = vperm.slane %v6044, 2
          %v6062 = vperm.slane %v6044, 3
          %v6063 = vperm.slane %v6044, 4
          %v6064 = vperm.slane %v6044, 5
          %v6065 = vperm.slane %v6044, 6
          %v6066 = vperm.slane %v6044, 7
          %v6067 = vperm.slane %v6045, 0
          %v6068 = vperm.slane %v6045, 1
          %v6069 = vperm.slane %v6045, 2
          %v6070 = vperm.slane %v6045, 3
          %v6071 = vperm.slane %v6045, 4
          %v6072 = vperm.slane %v6045, 5
          %v6073 = vperm.slane %v6045, 6
          %v6074 = vperm.slane %v6045, 7
          %v6075 = vperm.slane %v6046, 0
          %v6076 = vperm.slane %v6046, 1
          %v6077 = vperm.slane %v6046, 2
          %v6078 = vperm.slane %v6046, 3
          %v6079 = vperm.slane %v6046, 4
          %v6080 = vperm.slane %v6046, 5
          %v6081 = vperm.slane %v6046, 6
          %v6082 = vperm.slane %v6046, 7
          %v6627 = vunpack.c.l.b16 %v5531
          %v6628 = vunpack.c.h.b16 %v5531
          %v6629 = vunpack.c.l.b16 %v5532
          %v6630 = vunpack.c.h.b16 %v5532
          %v6631 = vunpack.c.l.b16 %v5533
          %v6632 = vunpack.c.h.b16 %v5533
          %v6633 = vunpack.c.l.b16 %v5534
          %v6634 = vunpack.c.h.b16 %v5534
          %v6635 = vunpack.c.l.b16 %v5535
          %v6636 = vunpack.c.h.b16 %v5535
          %v6637 = vunpack.c.l.b16 %v5536
          %v6638 = vunpack.c.h.b16 %v5536
          %v6639 = vunpack.c.l.b16 %v5537
          %v6640 = vunpack.c.h.b16 %v5537
          %v6641 = vunpack.c.l.b16 %v5538
          %v6642 = vunpack.c.h.b16 %v5538
          %v6643 = vunpack.c.l.b16 %v5539
          %v6644 = vunpack.c.h.b16 %v5539
          %v6645 = vunpack.c.l.b16 %v5540
          %v6646 = vunpack.c.h.b16 %v5540
          %v6647 = vunpack.c.l.b16 %v5541
          %v6648 = vunpack.c.h.b16 %v5541
          %v6649 = vunpack.c.l.b16 %v5542
          %v6650 = vunpack.c.h.b16 %v5542
          %v6651 = vunpack.c.l.b16 %v5543
          %v6652 = vunpack.c.h.b16 %v5543
          %v6653 = vunpack.c.l.b16 %v5544
          %v6654 = vunpack.c.h.b16 %v5544
          %v6655 = vunpack.c.l.b16 %v5545
          %v6656 = vunpack.c.h.b16 %v5545
          %v6657 = vunpack.c.l.b16 %v5546
          %v6658 = vunpack.c.h.b16 %v5546
          %v6659 = vunpack.c.l.b16 %v5547
          %v6660 = vunpack.c.h.b16 %v5547
          %v6661 = vunpack.c.l.b16 %v5548
          %v6662 = vunpack.c.h.b16 %v5548
          %v6663 = vunpack.c.l.b16 %v5549
          %v6664 = vunpack.c.h.b16 %v5549
          %v6665 = vunpack.c.l.b16 %v5550
          %v6666 = vunpack.c.h.b16 %v5550
          %v6667 = vunpack.c.l.b16 %v5551
          %v6668 = vunpack.c.h.b16 %v5551
          %v6669 = vunpack.c.l.b16 %v5552
          %v6670 = vunpack.c.h.b16 %v5552
          %v6671 = vunpack.c.l.b16 %v5553
          %v6672 = vunpack.c.h.b16 %v5553
          %v6673 = vunpack.c.l.b16 %v5554
          %v6674 = vunpack.c.h.b16 %v5554
          %v6675 = vunpack.c.l.b16 %v5555
          %v6676 = vunpack.c.h.b16 %v5555
          %v6677 = vunpack.c.l.b16 %v5556
          %v6678 = vunpack.c.h.b16 %v5556
          %v6679 = vunpack.c.l.b16 %v5557
          %v6680 = vunpack.c.h.b16 %v5557
          %v6681 = vunpack.c.l.b16 %v5558
          %v6682 = vunpack.c.h.b16 %v5558
          %v6683 = vunpack.c.l.b16 %v5559
          %v6684 = vunpack.c.h.b16 %v5559
          %v6685 = vunpack.c.l.b16 %v5560
          %v6686 = vunpack.c.h.b16 %v5560
          %v6687 = vunpack.c.l.b16 %v5561
          %v6688 = vunpack.c.h.b16 %v5561
          %v6689 = vunpack.c.l.b16 %v5562
          %v6690 = vunpack.c.h.b16 %v5562
          %v6691 = vunpack.c.l.b16 %v5563
          %v6692 = vunpack.c.h.b16 %v5563
          %v6693 = vunpack.c.l.b16 %v5564
          %v6694 = vunpack.c.h.b16 %v5564
          %v6695 = vunpack.c.l.b16 %v5565
          %v6696 = vunpack.c.h.b16 %v5565
          %v6697 = vunpack.c.l.b16 %v5566
          %v6698 = vunpack.c.h.b16 %v5566
          %v6699 = vunpack.c.l.b16 %v5567
          %v6700 = vunpack.c.h.b16 %v5567
          %v6701 = vunpack.c.l.b16 %v5568
          %v6702 = vunpack.c.h.b16 %v5568
          %v6703 = vunpack.c.l.b16 %v5569
          %v6704 = vunpack.c.h.b16 %v5569
          %v6705 = vunpack.c.l.b16 %v5570
          %v6706 = vunpack.c.h.b16 %v5570
          %v6707 = vunpack.c.l.b16 %v5571
          %v6708 = vunpack.c.h.b16 %v5571
          %v6709 = vunpack.c.l.b16 %v5572
          %v6710 = vunpack.c.h.b16 %v5572
          %v6711 = vunpack.c.l.b16 %v5573
          %v6712 = vunpack.c.h.b16 %v5573
          %v6713 = vunpack.c.l.b16 %v5574
          %v6714 = vunpack.c.h.b16 %v5574
          %v6715 = vunpack.c.l.b16 %v5575
          %v6716 = vunpack.c.h.b16 %v5575
          %v6717 = vunpack.c.l.b16 %v5576
          %v6718 = vunpack.c.h.b16 %v5576
          %v6719 = vunpack.c.l.b16 %v5577
          %v6720 = vunpack.c.h.b16 %v5577
          %v6721 = vunpack.c.l.b16 %v5578
          %v6722 = vunpack.c.h.b16 %v5578
          %v6723 = vunpack.c.l.b16 %v5579
          %v6724 = vunpack.c.h.b16 %v5579
          %v6725 = vunpack.c.l.b16 %v5580
          %v6726 = vunpack.c.h.b16 %v5580
          %v6727 = vunpack.c.l.b16 %v5581
          %v6728 = vunpack.c.h.b16 %v5581
          %v6729 = vunpack.c.l.b16 %v5582
          %v6730 = vunpack.c.h.b16 %v5582
          %v6731 = vunpack.c.l.b16 %v5583
          %v6732 = vunpack.c.h.b16 %v5583
          %v6733 = vunpack.c.l.b16 %v5584
          %v6734 = vunpack.c.h.b16 %v5584
          %v6735 = vunpack.c.l.b16 %v5585
          %v6736 = vunpack.c.h.b16 %v5585
          %v6737 = vunpack.c.l.b16 %v5586
          %v6738 = vunpack.c.h.b16 %v5586
          %v6739 = vunpack.c.l.b16 %v5587
          %v6740 = vunpack.c.h.b16 %v5587
          %v6741 = vunpack.c.l.b16 %v5588
          %v6742 = vunpack.c.h.b16 %v5588
          %v6743 = vunpack.c.l.b16 %v5589
          %v6744 = vunpack.c.h.b16 %v5589
          %v6745 = vunpack.c.l.b16 %v5590
          %v6746 = vunpack.c.h.b16 %v5590
          %v6747 = vunpack.c.l.b16 %v5591
          %v6748 = vunpack.c.h.b16 %v5591
          %v6749 = vunpack.c.l.b16 %v5592
          %v6750 = vunpack.c.h.b16 %v5592
          %v6751 = vunpack.c.l.b16 %v5593
          %v6752 = vunpack.c.h.b16 %v5593
          %v6753 = vunpack.c.l.b16 %v5594
          %v6754 = vunpack.c.h.b16 %v5594
          %v6755 = vunpack.c.l.b16 %v5595
          %v6756 = vunpack.c.h.b16 %v5595
          %v6757 = vunpack.c.l.b16 %v5596
          %v6758 = vunpack.c.h.b16 %v5596
          %v6759 = vunpack.c.l.b16 %v5597
          %v6760 = vunpack.c.h.b16 %v5597
          %v6761 = vunpack.c.l.b16 %v5598
          %v6762 = vunpack.c.h.b16 %v5598
          %v6763 = vunpack.c.l.b16 %v5599
          %v6764 = vunpack.c.h.b16 %v5599
          %v6765 = vunpack.c.l.b16 %v5600
          %v6766 = vunpack.c.h.b16 %v5600
          %v6767 = vunpack.c.l.b16 %v5601
          %v6768 = vunpack.c.h.b16 %v5601
          %v6769 = vunpack.c.l.b16 %v5602
          %v6770 = vunpack.c.h.b16 %v5602
          %v6771 = vunpack.c.l.b16 %v5603
          %v6772 = vunpack.c.h.b16 %v5603
          %v6773 = vunpack.c.l.b16 %v5604
          %v6774 = vunpack.c.h.b16 %v5604
          %v6775 = vunpack.c.l.b16 %v5605
          %v6776 = vunpack.c.h.b16 %v5605
          %v6777 = vunpack.c.l.b16 %v5606
          %v6778 = vunpack.c.h.b16 %v5606
          %v6779 = vunpack.c.l.b16 %v5607
          %v6780 = vunpack.c.h.b16 %v5607
          %v6781 = vunpack.c.l.b16 %v5608
          %v6782 = vunpack.c.h.b16 %v5608
          %v6783 = vunpack.c.l.b16 %v5609
          %v6784 = vunpack.c.h.b16 %v5609
          %v6785 = vunpack.c.l.b16 %v5610
          %v6786 = vunpack.c.h.b16 %v5610
          %v6787 = vunpack.c.l.b16 %v5611
          %v6788 = vunpack.c.h.b16 %v5611
          %v6789 = vunpack.c.l.b16 %v5612
          %v6790 = vunpack.c.h.b16 %v5612
          %v6791 = vunpack.c.l.b16 %v5613
          %v6792 = vunpack.c.h.b16 %v5613
          %v6793 = vunpack.c.l.b16 %v5614
          %v6794 = vunpack.c.h.b16 %v5614
          %v6795 = vunpack.c.l.b16 %v5615
          %v6796 = vunpack.c.h.b16 %v5615
          %v6797 = vunpack.c.l.b16 %v5616
          %v6798 = vunpack.c.h.b16 %v5616
          %v6799 = vunpack.c.l.b16 %v5617
          %v6800 = vunpack.c.h.b16 %v5617
          %v6801 = vunpack.c.l.b16 %v5618
          %v6802 = vunpack.c.h.b16 %v5618
          %v6803 = vunpack.c.l.b16 %v5619
          %v6804 = vunpack.c.h.b16 %v5619
          %v6805 = vunpack.c.l.b16 %v5620
          %v6806 = vunpack.c.h.b16 %v5620
          %v6807 = vunpack.c.l.b16 %v5621
          %v6808 = vunpack.c.h.b16 %v5621
          %v6809 = vunpack.c.l.b16 %v5622
          %v6810 = vunpack.c.h.b16 %v5622
          %v6811 = vunpack.c.l.b16 %v5623
          %v6812 = vunpack.c.h.b16 %v5623
          %v6813 = vunpack.c.l.b16 %v5624
          %v6814 = vunpack.c.h.b16 %v5624
          %v6815 = vunpack.c.l.b16 %v5625
          %v6816 = vunpack.c.h.b16 %v5625
          %v6817 = vunpack.c.l.b16 %v5626
          %v6818 = vunpack.c.h.b16 %v5626
          %v6819 = vunpack.c.l.b16 %v5627
          %v6820 = vunpack.c.h.b16 %v5627
          %v6821 = vunpack.c.l.b16 %v5628
          %v6822 = vunpack.c.h.b16 %v5628
          %v6823 = vunpack.c.l.b16 %v5629
          %v6824 = vunpack.c.h.b16 %v5629
          %v6825 = vunpack.c.l.b16 %v5630
          %v6826 = vunpack.c.h.b16 %v5630
          %v6827 = vunpack.c.l.b16 %v5631
          %v6828 = vunpack.c.h.b16 %v5631
          %v6829 = vunpack.c.l.b16 %v5632
          %v6830 = vunpack.c.h.b16 %v5632
          %v6831 = vunpack.c.l.b16 %v5633
          %v6832 = vunpack.c.h.b16 %v5633
          %v6833 = vunpack.c.l.b16 %v5634
          %v6834 = vunpack.c.h.b16 %v5634
          %v6835 = vunpack.c.l.b16 %v5635
          %v6836 = vunpack.c.h.b16 %v5635
          %v6837 = vunpack.c.l.b16 %v5636
          %v6838 = vunpack.c.h.b16 %v5636
          %v6839 = vunpack.c.l.b16 %v5637
          %v6840 = vunpack.c.h.b16 %v5637
          %v6841 = vunpack.c.l.b16 %v5638
          %v6842 = vunpack.c.h.b16 %v5638
          %v6843 = vunpack.c.l.b16 %v5639
          %v6844 = vunpack.c.h.b16 %v5639
          %v6845 = vunpack.c.l.b16 %v5640
          %v6846 = vunpack.c.h.b16 %v5640
          %v6847 = vunpack.c.l.b16 %v5641
          %v6848 = vunpack.c.h.b16 %v5641
          %v6849 = vunpack.c.l.b16 %v5642
          %v6850 = vunpack.c.h.b16 %v5642
          %v6851 = vunpack.c.l.b16 %v5643
          %v6852 = vunpack.c.h.b16 %v5643
          %v6853 = vunpack.c.l.b16 %v5644
          %v6854 = vunpack.c.h.b16 %v5644
          %v6855 = vunpack.c.l.b16 %v5645
          %v6856 = vunpack.c.h.b16 %v5645
          %v6857 = vunpack.c.l.b16 %v5646
          %v6858 = vunpack.c.h.b16 %v5646
          %v6859 = vunpack.c.l.b16 %v5647
          %v6860 = vunpack.c.h.b16 %v5647
          %v6861 = vunpack.c.l.b16 %v5648
          %v6862 = vunpack.c.h.b16 %v5648
          %v6863 = vunpack.c.l.b16 %v5649
          %v6864 = vunpack.c.h.b16 %v5649
          %v6865 = vunpack.c.l.b16 %v5650
          %v6866 = vunpack.c.h.b16 %v5650
          %v6867 = vunpack.c.l.b16 %v5651
          %v6868 = vunpack.c.h.b16 %v5651
          %v6869 = vunpack.c.l.b16 %v5652
          %v6870 = vunpack.c.h.b16 %v5652
          %v6871 = vunpack.c.l.b16 %v5653
          %v6872 = vunpack.c.h.b16 %v5653
          %v6873 = vunpack.c.l.b16 %v5654
          %v6874 = vunpack.c.h.b16 %v5654
          %v6875 = vunpack.c.l.b16 %v5655
          %v6876 = vunpack.c.h.b16 %v5655
          %v6877 = vunpack.c.l.b16 %v5656
          %v6878 = vunpack.c.h.b16 %v5656
          %v6879 = vunpack.c.l.b16 %v5657
          %v6880 = vunpack.c.h.b16 %v5657
          %v6881 = vunpack.c.l.b16 %v5658
          %v6882 = vunpack.c.h.b16 %v5658
          %v6883 = vunpack.c.l.b16 %v5659
          %v6884 = vunpack.c.h.b16 %v5659
          %v6885 = vunpack.c.l.b16 %v5660
          %v6886 = vunpack.c.h.b16 %v5660
          %v6887 = vunpack.c.l.b16 %v5661
          %v6888 = vunpack.c.h.b16 %v5661
          %v6889 = vunpack.c.l.b16 %v5662
          %v6890 = vunpack.c.h.b16 %v5662
          %v6891 = vunpack.c.l.b16 %v5663
          %v6892 = vunpack.c.h.b16 %v5663
          %v6893 = vunpack.c.l.b16 %v5664
          %v6894 = vunpack.c.h.b16 %v5664
          %v6895 = vunpack.c.l.b16 %v5665
          %v6896 = vunpack.c.h.b16 %v5665
          %v6897 = vunpack.c.l.b16 %v5666
          %v6898 = vunpack.c.h.b16 %v5666
          %v6899 = vunpack.c.l.b16 %v5667
          %v6900 = vunpack.c.h.b16 %v5667
          %v6901 = vunpack.c.l.b16 %v5668
          %v6902 = vunpack.c.h.b16 %v5668
          %v6903 = vunpack.c.l.b16 %v5669
          %v6904 = vunpack.c.h.b16 %v5669
          %v6905 = vunpack.c.l.b16 %v5670
          %v6906 = vunpack.c.h.b16 %v5670
          %v6907 = vunpack.c.l.b16 %v5671
          %v6908 = vunpack.c.h.b16 %v5671
          %v6909 = vunpack.c.l.b16 %v5672
          %v6910 = vunpack.c.h.b16 %v5672
          %v6911 = vunpack.c.l.b16 %v5673
          %v6912 = vunpack.c.h.b16 %v5673
          %v6913 = vunpack.c.l.b16 %v5674
          %v6914 = vunpack.c.h.b16 %v5674
          %v6915 = vunpack.c.l.b16 %v5675
          %v6916 = vunpack.c.h.b16 %v5675
          %v6917 = vunpack.c.l.b16 %v5676
          %v6918 = vunpack.c.h.b16 %v5676
          %v6919 = vunpack.c.l.b16 %v5677
          %v6920 = vunpack.c.h.b16 %v5677
          %v6921 = vunpack.c.l.b16 %v5678
          %v6922 = vunpack.c.h.b16 %v5678
          %v6923 = vunpack.c.l.b16 %v5679
          %v6924 = vunpack.c.h.b16 %v5679
          %v6925 = vunpack.c.l.b16 %v5680
          %v6926 = vunpack.c.h.b16 %v5680
          %v6927 = vunpack.c.l.b16 %v5681
          %v6928 = vunpack.c.h.b16 %v5681
          %v6929 = vunpack.c.l.b16 %v5682
          %v6930 = vunpack.c.h.b16 %v5682
          %v6931 = vunpack.c.l.b16 %v5683
          %v6932 = vunpack.c.h.b16 %v5683
          %v6933 = vunpack.c.l.b16 %v5684
          %v6934 = vunpack.c.h.b16 %v5684
          %v6935 = vunpack.c.l.b16 %v5685
          %v6936 = vunpack.c.h.b16 %v5685
          %v6937 = vunpack.c.l.b16 %v5686
          %v6938 = vunpack.c.h.b16 %v5686
          %v6939 = vunpack.c.l.b16 %v5687
          %v6940 = vunpack.c.h.b16 %v5687
          %v6941 = vunpack.c.l.b16 %v5688
          %v6942 = vunpack.c.h.b16 %v5688
          %v6943 = vunpack.c.l.b16 %v5689
          %v6944 = vunpack.c.h.b16 %v5689
          %v6945 = vunpack.c.l.b16 %v5690
          %v6946 = vunpack.c.h.b16 %v5690
          %v6947 = vunpack.c.l.b16 %v5691
          %v6948 = vunpack.c.h.b16 %v5691
          %v6949 = vunpack.c.l.b16 %v5692
          %v6950 = vunpack.c.h.b16 %v5692
          %v6951 = vunpack.c.l.b16 %v5693
          %v6952 = vunpack.c.h.b16 %v5693
          %v6953 = vunpack.c.l.b16 %v5694
          %v6954 = vunpack.c.h.b16 %v5694
          %v6955 = vunpack.c.l.b16 %v5695
          %v6956 = vunpack.c.h.b16 %v5695
          %v6957 = vunpack.c.l.b16 %v5696
          %v6958 = vunpack.c.h.b16 %v5696
          %v6959 = vunpack.c.l.b16 %v5697
          %v6960 = vunpack.c.h.b16 %v5697
          %v6961 = vunpack.c.l.b16 %v5698
          %v6962 = vunpack.c.h.b16 %v5698
          %v6963 = vunpack.c.l.b16 %v5699
          %v6964 = vunpack.c.h.b16 %v5699
          %v6965 = vunpack.c.l.b16 %v5700
          %v6966 = vunpack.c.h.b16 %v5700
          %v6967 = vunpack.c.l.b16 %v5701
          %v6968 = vunpack.c.h.b16 %v5701
          %v6969 = vunpack.c.l.b16 %v5702
          %v6970 = vunpack.c.h.b16 %v5702
          %v6971 = vunpack.c.l.b16 %v5703
          %v6972 = vunpack.c.h.b16 %v5703
          %v6973 = vunpack.c.l.b16 %v5704
          %v6974 = vunpack.c.h.b16 %v5704
          %v6975 = vunpack.c.l.b16 %v5705
          %v6976 = vunpack.c.h.b16 %v5705
          %v6977 = vunpack.c.l.b16 %v5706
          %v6978 = vunpack.c.h.b16 %v5706
          %v6979 = vunpack.c.l.b16 %v5707
          %v6980 = vunpack.c.h.b16 %v5707
          %v6981 = vunpack.c.l.b16 %v5708
          %v6982 = vunpack.c.h.b16 %v5708
          %v6983 = vunpack.c.l.b16 %v5709
          %v6984 = vunpack.c.h.b16 %v5709
          %v6985 = vunpack.c.l.b16 %v5710
          %v6986 = vunpack.c.h.b16 %v5710
          %v6987 = vunpack.c.l.b16 %v5711
          %v6988 = vunpack.c.h.b16 %v5711
          %v6989 = vunpack.c.l.b16 %v5712
          %v6990 = vunpack.c.h.b16 %v5712
          %v6991 = vunpack.c.l.b16 %v5713
          %v6992 = vunpack.c.h.b16 %v5713
          %v6993 = vunpack.c.l.b16 %v5714
          %v6994 = vunpack.c.h.b16 %v5714
          %v6995 = vunpack.c.l.b16 %v5715
          %v6996 = vunpack.c.h.b16 %v5715
          %v6997 = vunpack.c.l.b16 %v5716
          %v6998 = vunpack.c.h.b16 %v5716
          %v6999 = vunpack.c.l.b16 %v5717
          %v7000 = vunpack.c.h.b16 %v5717
          %v7001 = vunpack.c.l.b16 %v5718
          %v7002 = vunpack.c.h.b16 %v5718
          %v7003 = vunpack.c.l.b16 %v5719
          %v7004 = vunpack.c.h.b16 %v5719
          %v7005 = vunpack.c.l.b16 %v5720
          %v7006 = vunpack.c.h.b16 %v5720
          %v7007 = vunpack.c.l.b16 %v5721
          %v7008 = vunpack.c.h.b16 %v5721
          %v7009 = vunpack.c.l.b16 %v5722
          %v7010 = vunpack.c.h.b16 %v5722
          %v7011 = vunpack.c.l.b16 %v5723
          %v7012 = vunpack.c.h.b16 %v5723
          %v7013 = vunpack.c.l.b16 %v5724
          %v7014 = vunpack.c.h.b16 %v5724
          %v7015 = vunpack.c.l.b16 %v5725
          %v7016 = vunpack.c.h.b16 %v5725
          %v7017 = vunpack.c.l.b16 %v5726
          %v7018 = vunpack.c.h.b16 %v5726
          %v7019 = vunpack.c.l.b16 %v5727
          %v7020 = vunpack.c.h.b16 %v5727
          %v7021 = vunpack.c.l.b16 %v5728
          %v7022 = vunpack.c.h.b16 %v5728
          %v7023 = vunpack.c.l.b16 %v5729
          %v7024 = vunpack.c.h.b16 %v5729
          %v7025 = vunpack.c.l.b16 %v5730
          %v7026 = vunpack.c.h.b16 %v5730
          %v7027 = vunpack.c.l.b16 %v5731
          %v7028 = vunpack.c.h.b16 %v5731
          %v7029 = vunpack.c.l.b16 %v5732
          %v7030 = vunpack.c.h.b16 %v5732
          %v7031 = vunpack.c.l.b16 %v5733
          %v7032 = vunpack.c.h.b16 %v5733
          %v7033 = vunpack.c.l.b16 %v5734
          %v7034 = vunpack.c.h.b16 %v5734
          %v7035 = vunpack.c.l.b16 %v5735
          %v7036 = vunpack.c.h.b16 %v5735
          %v7037 = vunpack.c.l.b16 %v5736
          %v7038 = vunpack.c.h.b16 %v5736
          %v7039 = vunpack.c.l.b16 %v5737
          %v7040 = vunpack.c.h.b16 %v5737
          %v7041 = vunpack.c.l.b16 %v5738
          %v7042 = vunpack.c.h.b16 %v5738
          %v7043 = vunpack.c.l.b16 %v5739
          %v7044 = vunpack.c.h.b16 %v5739
          %v7045 = vunpack.c.l.b16 %v5740
          %v7046 = vunpack.c.h.b16 %v5740
          %v7047 = vunpack.c.l.b16 %v5741
          %v7048 = vunpack.c.h.b16 %v5741
          %v7049 = vunpack.c.l.b16 %v5742
          %v7050 = vunpack.c.h.b16 %v5742
          %v7051 = vunpack.c.l.b16 %v5743
          %v7052 = vunpack.c.h.b16 %v5743
          %v7053 = vunpack.c.l.b16 %v5744
          %v7054 = vunpack.c.h.b16 %v5744
          %v7055 = vunpack.c.l.b16 %v5745
          %v7056 = vunpack.c.h.b16 %v5745
          %v7057 = vunpack.c.l.b16 %v5746
          %v7058 = vunpack.c.h.b16 %v5746
          %v7059 = vunpack.c.l.b16 %v5747
          %v7060 = vunpack.c.h.b16 %v5747
          %v7061 = vunpack.c.l.b16 %v5748
          %v7062 = vunpack.c.h.b16 %v5748
          %v7063 = vunpack.c.l.b16 %v5749
          %v7064 = vunpack.c.h.b16 %v5749
          %v7065 = vunpack.c.l.b16 %v5750
          %v7066 = vunpack.c.h.b16 %v5750
          %v7067 = vunpack.c.l.b16 %v5751
          %v7068 = vunpack.c.h.b16 %v5751
          %v7069 = vunpack.c.l.b16 %v5752
          %v7070 = vunpack.c.h.b16 %v5752
          %v7071 = vunpack.c.l.b16 %v5753
          %v7072 = vunpack.c.h.b16 %v5753
          %v7073 = vunpack.c.l.b16 %v5754
          %v7074 = vunpack.c.h.b16 %v5754
          %v7075 = vunpack.c.l.b16 %v5755
          %v7076 = vunpack.c.h.b16 %v5755
          %v7077 = vunpack.c.l.b16 %v5756
          %v7078 = vunpack.c.h.b16 %v5756
          %v7079 = vunpack.c.l.b16 %v5757
          %v7080 = vunpack.c.h.b16 %v5757
          %v7081 = vunpack.c.l.b16 %v5758
          %v7082 = vunpack.c.h.b16 %v5758
          %v7083 = vunpack.c.l.b16 %v5759
          %v7084 = vunpack.c.h.b16 %v5759
          %v7085 = vunpack.c.l.b16 %v5760
          %v7086 = vunpack.c.h.b16 %v5760
          %v7087 = vunpack.c.l.b16 %v5761
          %v7088 = vunpack.c.h.b16 %v5761
          %v7089 = vunpack.c.l.b16 %v5762
          %v7090 = vunpack.c.h.b16 %v5762
          %v7091 = vunpack.c.l.b16 %v5763
          %v7092 = vunpack.c.h.b16 %v5763
          %v7093 = vunpack.c.l.b16 %v5764
          %v7094 = vunpack.c.h.b16 %v5764
          %v7095 = vunpack.c.l.b16 %v5765
          %v7096 = vunpack.c.h.b16 %v5765
          %v7097 = vunpack.c.l.b16 %v5766
          %v7098 = vunpack.c.h.b16 %v5766
          %v7099 = vunpack.c.l.b16 %v5767
          %v7100 = vunpack.c.h.b16 %v5767
          %v7101 = vunpack.c.l.b16 %v5768
          %v7102 = vunpack.c.h.b16 %v5768
          %v7103 = vunpack.c.l.b16 %v5769
          %v7104 = vunpack.c.h.b16 %v5769
          %v7105 = vunpack.c.l.b16 %v5770
          %v7106 = vunpack.c.h.b16 %v5770
          %v7107 = vunpack.c.l.b16 %v5771
          %v7108 = vunpack.c.h.b16 %v5771
          %v7109 = vunpack.c.l.b16 %v5772
          %v7110 = vunpack.c.h.b16 %v5772
          %v7111 = vunpack.c.l.b16 %v5773
          %v7112 = vunpack.c.h.b16 %v5773
          %v7113 = vunpack.c.l.b16 %v5774
          %v7114 = vunpack.c.h.b16 %v5774
          %v7115 = vunpack.c.l.b16 %v5775
          %v7116 = vunpack.c.h.b16 %v5775
          %v7117 = vunpack.c.l.b16 %v5776
          %v7118 = vunpack.c.h.b16 %v5776
          %v7119 = vunpack.c.l.b16 %v5777
          %v7120 = vunpack.c.h.b16 %v5777
          %v7121 = vunpack.c.l.b16 %v5778
          %v7122 = vunpack.c.h.b16 %v5778
          %v7123 = vunpack.c.l.b16 %v5779
          %v7124 = vunpack.c.h.b16 %v5779
          %v7125 = vunpack.c.l.b16 %v5780
          %v7126 = vunpack.c.h.b16 %v5780
          %v7127 = vunpack.c.l.b16 %v5781
          %v7128 = vunpack.c.h.b16 %v5781
          %v7129 = vunpack.c.l.b16 %v5782
          %v7130 = vunpack.c.h.b16 %v5782
          %v7131 = vunpack.c.l.b16 %v5783
          %v7132 = vunpack.c.h.b16 %v5783
          %v7133 = vunpack.c.l.b16 %v5784
          %v7134 = vunpack.c.h.b16 %v5784
          %v7135 = vunpack.c.l.b16 %v5785
          %v7136 = vunpack.c.h.b16 %v5785
          %v7137 = vunpack.c.l.b16 %v5786
          %v7138 = vunpack.c.h.b16 %v5786
          %v7139 = vunpack.c.l.b16 %v5787
          %v7140 = vunpack.c.h.b16 %v5787
          %v7141 = vunpack.c.l.b16 %v5788
          %v7142 = vunpack.c.h.b16 %v5788
          %v7143 = vunpack.c.l.b16 %v5789
          %v7144 = vunpack.c.h.b16 %v5789
          %v7145 = vunpack.c.l.b16 %v5790
          %v7146 = vunpack.c.h.b16 %v5790
          %v7147 = vunpack.c.l.b16 %v5791
          %v7148 = vunpack.c.h.b16 %v5791
          %v7149 = vunpack.c.l.b16 %v5792
          %v7150 = vunpack.c.h.b16 %v5792
          %v7151 = vunpack.c.l.b16 %v5793
          %v7152 = vunpack.c.h.b16 %v5793
          %v7153 = vunpack.c.l.b16 %v5794
          %v7154 = vunpack.c.h.b16 %v5794
          %v7155 = vunpack.c.l.b16 %v5795
          %v7156 = vunpack.c.h.b16 %v5795
          %v7157 = vunpack.c.l.b16 %v5796
          %v7158 = vunpack.c.h.b16 %v5796
          %v7159 = vunpack.c.l.b16 %v5797
          %v7160 = vunpack.c.h.b16 %v5797
          %v7161 = vunpack.c.l.b16 %v5798
          %v7162 = vunpack.c.h.b16 %v5798
          %v7163 = vunpack.c.l.b16 %v5799
          %v7164 = vunpack.c.h.b16 %v5799
          %v7165 = vunpack.c.l.b16 %v5800
          %v7166 = vunpack.c.h.b16 %v5800
          %v7167 = vunpack.c.l.b16 %v5801
          %v7168 = vunpack.c.h.b16 %v5801
          %v7169 = vunpack.c.l.b16 %v5802
          %v7170 = vunpack.c.h.b16 %v5802
          %v7171 = vunpack.c.l.b16 %v5803
          %v7172 = vunpack.c.h.b16 %v5803
          %v7173 = vunpack.c.l.b16 %v5804
          %v7174 = vunpack.c.h.b16 %v5804
          %v7175 = vunpack.c.l.b16 %v5805
          %v7176 = vunpack.c.h.b16 %v5805
          %v7177 = vunpack.c.l.b16 %v5806
          %v7178 = vunpack.c.h.b16 %v5806
          %v7179 = vunpack.c.l.b16 %v5807
          %v7180 = vunpack.c.h.b16 %v5807
          %v7181 = vunpack.c.l.b16 %v5808
          %v7182 = vunpack.c.h.b16 %v5808
          %v7183 = vunpack.c.l.b16 %v5809
          %v7184 = vunpack.c.h.b16 %v5809
          %v7185 = vunpack.c.l.b16 %v5810
          %v7186 = vunpack.c.h.b16 %v5810
          %v7187 = vunpack.c.l.b16 %v5811
          %v7188 = vunpack.c.h.b16 %v5811
          %v7189 = vunpack.c.l.b16 %v5812
          %v7190 = vunpack.c.h.b16 %v5812
          %v7191 = vunpack.c.l.b16 %v5813
          %v7192 = vunpack.c.h.b16 %v5813
          %v7193 = vunpack.c.l.b16 %v5814
          %v7194 = vunpack.c.h.b16 %v5814
          %v7195 = vunpack.c.l.b16 %v5815
          %v7196 = vunpack.c.h.b16 %v5815
          %v7197 = vunpack.c.l.b16 %v5816
          %v7198 = vunpack.c.h.b16 %v5816
          %v7199 = vunpack.c.l.b16 %v5817
          %v7200 = vunpack.c.h.b16 %v5817
          %v7201 = vunpack.c.l.b16 %v5818
          %v7202 = vunpack.c.h.b16 %v5818
          %v7203 = vunpack.c.l.b16 %v5819
          %v7204 = vunpack.c.h.b16 %v5819
          %v7205 = vunpack.c.l.b16 %v5820
          %v7206 = vunpack.c.h.b16 %v5820
          %v7207 = vunpack.c.l.b16 %v5821
          %v7208 = vunpack.c.h.b16 %v5821
          %v7209 = vunpack.c.l.b16 %v5822
          %v7210 = vunpack.c.h.b16 %v5822
          %v7211 = vunpack.c.l.b16 %v5823
          %v7212 = vunpack.c.h.b16 %v5823
          %v7213 = vunpack.c.l.b16 %v5824
          %v7214 = vunpack.c.h.b16 %v5824
          %v7215 = vunpack.c.l.b16 %v5825
          %v7216 = vunpack.c.h.b16 %v5825
          %v7217 = vunpack.c.l.b16 %v5826
          %v7218 = vunpack.c.h.b16 %v5826
          %v7219 = vunpack.c.l.b16 %v5827
          %v7220 = vunpack.c.h.b16 %v5827
          %v7221 = vunpack.c.l.b16 %v5828
          %v7222 = vunpack.c.h.b16 %v5828
          %v7223 = vunpack.c.l.b16 %v5829
          %v7224 = vunpack.c.h.b16 %v5829
          %v7225 = vunpack.c.l.b16 %v5830
          %v7226 = vunpack.c.h.b16 %v5830
          %v7227 = vunpack.c.l.b16 %v5831
          %v7228 = vunpack.c.h.b16 %v5831
          %v7229 = vunpack.c.l.b16 %v5832
          %v7230 = vunpack.c.h.b16 %v5832
          %v7231 = vunpack.c.l.b16 %v5833
          %v7232 = vunpack.c.h.b16 %v5833
          %v7233 = vunpack.c.l.b16 %v5834
          %v7234 = vunpack.c.h.b16 %v5834
          %v7235 = vunpack.c.l.b16 %v5835
          %v7236 = vunpack.c.h.b16 %v5835
          %v7237 = vunpack.c.l.b16 %v5836
          %v7238 = vunpack.c.h.b16 %v5836
          %v7239 = vunpack.c.l.b16 %v5837
          %v7240 = vunpack.c.h.b16 %v5837
          %v7241 = vunpack.c.l.b16 %v5838
          %v7242 = vunpack.c.h.b16 %v5838
          %v7243 = vunpack.c.l.b16 %v5839
          %v7244 = vunpack.c.h.b16 %v5839
          %v7245 = vunpack.c.l.b16 %v5840
          %v7246 = vunpack.c.h.b16 %v5840
          %v7247 = vunpack.c.l.b16 %v5841
          %v7248 = vunpack.c.h.b16 %v5841
          %v7249 = vunpack.c.l.b16 %v5842
          %v7250 = vunpack.c.h.b16 %v5842
          %v7251 = vunpack.c.l.b16 %v5843
          %v7252 = vunpack.c.h.b16 %v5843
          %v7253 = vunpack.c.l.b16 %v5844
          %v7254 = vunpack.c.h.b16 %v5844
          %v7255 = vunpack.c.l.b16 %v5845
          %v7256 = vunpack.c.h.b16 %v5845
          %v7257 = vunpack.c.l.b16 %v5846
          %v7258 = vunpack.c.h.b16 %v5846
          %v7259 = vunpack.c.l.b16 %v5847
          %v7260 = vunpack.c.h.b16 %v5847
          %v7261 = vunpack.c.l.b16 %v5848
          %v7262 = vunpack.c.h.b16 %v5848
          %v7263 = vunpack.c.l.b16 %v5849
          %v7264 = vunpack.c.h.b16 %v5849
          %v7265 = vunpack.c.l.b16 %v5850
          %v7266 = vunpack.c.h.b16 %v5850
          %v7267 = vunpack.c.l.b16 %v5851
          %v7268 = vunpack.c.h.b16 %v5851
          %v7269 = vunpack.c.l.b16 %v5852
          %v7270 = vunpack.c.h.b16 %v5852
          %v7271 = vunpack.c.l.b16 %v5853
          %v7272 = vunpack.c.h.b16 %v5853
          %v7273 = vunpack.c.l.b16 %v5854
          %v7274 = vunpack.c.h.b16 %v5854
          %v7275 = vunpack.c.l.b16 %v5855
          %v7276 = vunpack.c.h.b16 %v5855
          %v7277 = vunpack.c.l.b16 %v5856
          %v7278 = vunpack.c.h.b16 %v5856
          %v7279 = vunpack.c.l.b16 %v5857
          %v7280 = vunpack.c.h.b16 %v5857
          %v7281 = vunpack.c.l.b16 %v5858
          %v7282 = vunpack.c.h.b16 %v5858
          %v7283 = vunpack.c.l.b16 %v5859
          %v7284 = vunpack.c.h.b16 %v5859
          %v7285 = vunpack.c.l.b16 %v5860
          %v7286 = vunpack.c.h.b16 %v5860
          %v7287 = vunpack.c.l.b16 %v5861
          %v7288 = vunpack.c.h.b16 %v5861
          %v7289 = vunpack.c.l.b16 %v5862
          %v7290 = vunpack.c.h.b16 %v5862
          %v7291 = vunpack.c.l.b16 %v5863
          %v7292 = vunpack.c.h.b16 %v5863
          %v7293 = vunpack.c.l.b16 %v5864
          %v7294 = vunpack.c.h.b16 %v5864
          %v7295 = vunpack.c.l.b16 %v5865
          %v7296 = vunpack.c.h.b16 %v5865
          %v7297 = vunpack.c.l.b16 %v5866
          %v7298 = vunpack.c.h.b16 %v5866
          %v7299 = vunpack.c.l.b16 %v5867
          %v7300 = vunpack.c.h.b16 %v5867
          %v7301 = vunpack.c.l.b16 %v5868
          %v7302 = vunpack.c.h.b16 %v5868
          %v7303 = vunpack.c.l.b16 %v5869
          %v7304 = vunpack.c.h.b16 %v5869
          %v7305 = vunpack.c.l.b16 %v5870
          %v7306 = vunpack.c.h.b16 %v5870
          %v7307 = vunpack.c.l.b16 %v5871
          %v7308 = vunpack.c.h.b16 %v5871
          %v7309 = vunpack.c.l.b16 %v5872
          %v7310 = vunpack.c.h.b16 %v5872
          %v7311 = vunpack.c.l.b16 %v5873
          %v7312 = vunpack.c.h.b16 %v5873
          %v7313 = vunpack.c.l.b16 %v5874
          %v7314 = vunpack.c.h.b16 %v5874
          %v7315 = vunpack.c.l.b16 %v5875
          %v7316 = vunpack.c.h.b16 %v5875
          %v7317 = vunpack.c.l.b16 %v5876
          %v7318 = vunpack.c.h.b16 %v5876
          %v7319 = vunpack.c.l.b16 %v5877
          %v7320 = vunpack.c.h.b16 %v5877
          %v7321 = vunpack.c.l.b16 %v5878
          %v7322 = vunpack.c.h.b16 %v5878
          %v7323 = vunpack.c.l.b16 %v5879
          %v7324 = vunpack.c.h.b16 %v5879
          %v7325 = vunpack.c.l.b16 %v5880
          %v7326 = vunpack.c.h.b16 %v5880
          %v7327 = vunpack.c.l.b16 %v5881
          %v7328 = vunpack.c.h.b16 %v5881
          %v7329 = vunpack.c.l.b16 %v5882
          %v7330 = vunpack.c.h.b16 %v5882
          %v7331 = vunpack.c.l.b16 %v5883
          %v7332 = vunpack.c.h.b16 %v5883
          %v7333 = vunpack.c.l.b16 %v5884
          %v7334 = vunpack.c.h.b16 %v5884
          %v7335 = vunpack.c.l.b16 %v5885
          %v7336 = vunpack.c.h.b16 %v5885
          %v7337 = vunpack.c.l.b16 %v5886
          %v7338 = vunpack.c.h.b16 %v5886
          %v7339 = vunpack.c.l.b16 %v5887
          %v7340 = vunpack.c.h.b16 %v5887
          %v7341 = vunpack.c.l.b16 %v5888
          %v7342 = vunpack.c.h.b16 %v5888
          %v7343 = vunpack.c.l.b16 %v5889
          %v7344 = vunpack.c.h.b16 %v5889
          %v7345 = vunpack.c.l.b16 %v5890
          %v7346 = vunpack.c.h.b16 %v5890
          %v7347 = vunpack.c.l.b16 %v5891
          %v7348 = vunpack.c.h.b16 %v5891
          %v7349 = vunpack.c.l.b16 %v5892
          %v7350 = vunpack.c.h.b16 %v5892
          %v7351 = vunpack.c.l.b16 %v5893
          %v7352 = vunpack.c.h.b16 %v5893
          %v7353 = vunpack.c.l.b16 %v5894
          %v7354 = vunpack.c.h.b16 %v5894
          %v7355 = vunpack.c.l.b16 %v5895
          %v7356 = vunpack.c.h.b16 %v5895
          %v7357 = vunpack.c.l.b16 %v5896
          %v7358 = vunpack.c.h.b16 %v5896
          %v7359 = vunpack.c.l.b16 %v5897
          %v7360 = vunpack.c.h.b16 %v5897
          %v7361 = vunpack.c.l.b16 %v5898
          %v7362 = vunpack.c.h.b16 %v5898
          %v7363 = vunpack.c.l.b16 %v5899
          %v7364 = vunpack.c.h.b16 %v5899
          %v7365 = vunpack.c.l.b16 %v5900
          %v7366 = vunpack.c.h.b16 %v5900
          %v7367 = vunpack.c.l.b16 %v5901
          %v7368 = vunpack.c.h.b16 %v5901
          %v7369 = vunpack.c.l.b16 %v5902
          %v7370 = vunpack.c.h.b16 %v5902
          %v7371 = vunpack.c.l.b16 %v5903
          %v7372 = vunpack.c.h.b16 %v5903
          %v7373 = vunpack.c.l.b16 %v5904
          %v7374 = vunpack.c.h.b16 %v5904
          %v7375 = vunpack.c.l.b16 %v5905
          %v7376 = vunpack.c.h.b16 %v5905
          %v7377 = vunpack.c.l.b16 %v5906
          %v7378 = vunpack.c.h.b16 %v5906
          %v7379 = vunpack.c.l.b16 %v5907
          %v7380 = vunpack.c.h.b16 %v5907
          %v7381 = vunpack.c.l.b16 %v5908
          %v7382 = vunpack.c.h.b16 %v5908
          %v7383 = vunpack.c.l.b16 %v5909
          %v7384 = vunpack.c.h.b16 %v5909
          %v7385 = vunpack.c.l.b16 %v5910
          %v7386 = vunpack.c.h.b16 %v5910
          %v7387 = vunpack.c.l.b16 %v5911
          %v7388 = vunpack.c.h.b16 %v5911
          %v7389 = vunpack.c.l.b16 %v5912
          %v7390 = vunpack.c.h.b16 %v5912
          %v7391 = vunpack.c.l.b16 %v5913
          %v7392 = vunpack.c.h.b16 %v5913
          %v7393 = vunpack.c.l.b16 %v5914
          %v7394 = vunpack.c.h.b16 %v5914
          %v7395 = vunpack.c.l.b16 %v5915
          %v7396 = vunpack.c.h.b16 %v5915
          %v7397 = vunpack.c.l.b16 %v5916
          %v7398 = vunpack.c.h.b16 %v5916
          %v7399 = vunpack.c.l.b16 %v5917
          %v7400 = vunpack.c.h.b16 %v5917
          %v7401 = vunpack.c.l.b16 %v5918
          %v7402 = vunpack.c.h.b16 %v5918
          %v7403 = vunpack.c.l.b16 %v5919
          %v7404 = vunpack.c.h.b16 %v5919
          %v7405 = vunpack.c.l.b16 %v5920
          %v7406 = vunpack.c.h.b16 %v5920
          %v7407 = vunpack.c.l.b16 %v5921
          %v7408 = vunpack.c.h.b16 %v5921
          %v7409 = vunpack.c.l.b16 %v5922
          %v7410 = vunpack.c.h.b16 %v5922
          %v7411 = vunpack.c.l.b16 %v5923
          %v7412 = vunpack.c.h.b16 %v5923
          %v7413 = vunpack.c.l.b16 %v5924
          %v7414 = vunpack.c.h.b16 %v5924
          %v7415 = vunpack.c.l.b16 %v5925
          %v7416 = vunpack.c.h.b16 %v5925
          %v7417 = vunpack.c.l.b16 %v5926
          %v7418 = vunpack.c.h.b16 %v5926
          %v7419 = vunpack.c.l.b16 %v5927
          %v7420 = vunpack.c.h.b16 %v5927
          %v7421 = vunpack.c.l.b16 %v5928
          %v7422 = vunpack.c.h.b16 %v5928
          %v7423 = vunpack.c.l.b16 %v5929
          %v7424 = vunpack.c.h.b16 %v5929
          %v7425 = vunpack.c.l.b16 %v5930
          %v7426 = vunpack.c.h.b16 %v5930
          %v7427 = vunpack.c.l.b16 %v5931
          %v7428 = vunpack.c.h.b16 %v5931
          %v7429 = vunpack.c.l.b16 %v5932
          %v7430 = vunpack.c.h.b16 %v5932
          %v7431 = vunpack.c.l.b16 %v5933
          %v7432 = vunpack.c.h.b16 %v5933
          %v7433 = vunpack.c.l.b16 %v5934
          %v7434 = vunpack.c.h.b16 %v5934
          %v7435 = vunpack.c.l.b16 %v5935
          %v7436 = vunpack.c.h.b16 %v5935
          %v7437 = vunpack.c.l.b16 %v5936
          %v7438 = vunpack.c.h.b16 %v5936
          %v7439 = vunpack.c.l.b16 %v5937
          %v7440 = vunpack.c.h.b16 %v5937
          %v7441 = vunpack.c.l.b16 %v5938
          %v7442 = vunpack.c.h.b16 %v5938
          %v7443 = vunpack.c.l.b16 %v5939
          %v7444 = vunpack.c.h.b16 %v5939
          %v7445 = vunpack.c.l.b16 %v5940
          %v7446 = vunpack.c.h.b16 %v5940
          %v7447 = vunpack.c.l.b16 %v5941
          %v7448 = vunpack.c.h.b16 %v5941
          %v7449 = vunpack.c.l.b16 %v5942
          %v7450 = vunpack.c.h.b16 %v5942
          %v7451 = vunpack.c.l.b16 %v5943
          %v7452 = vunpack.c.h.b16 %v5943
          %v7453 = vunpack.c.l.b16 %v5944
          %v7454 = vunpack.c.h.b16 %v5944
          %v7455 = vunpack.c.l.b16 %v5945
          %v7456 = vunpack.c.h.b16 %v5945
          %v7457 = vunpack.c.l.b16 %v5946
          %v7458 = vunpack.c.h.b16 %v5946
          %v7459 = vunpack.c.l.b16 %v5947
          %v7460 = vunpack.c.h.b16 %v5947
          %v7461 = vunpack.c.l.b16 %v5948
          %v7462 = vunpack.c.h.b16 %v5948
          %v7463 = vunpack.c.l.b16 %v5949
          %v7464 = vunpack.c.h.b16 %v5949
          %v7465 = vunpack.c.l.b16 %v5950
          %v7466 = vunpack.c.h.b16 %v5950
          %v7467 = vunpack.c.l.b16 %v5951
          %v7468 = vunpack.c.h.b16 %v5951
          %v7469 = vunpack.c.l.b16 %v5952
          %v7470 = vunpack.c.h.b16 %v5952
          %v7471 = vunpack.c.l.b16 %v5953
          %v7472 = vunpack.c.h.b16 %v5953
          %v7473 = vunpack.c.l.b16 %v5954
          %v7474 = vunpack.c.h.b16 %v5954
          %v7475 = vunpack.c.l.b16 %v5955
          %v7476 = vunpack.c.h.b16 %v5955
          %v7477 = vunpack.c.l.b16 %v5956
          %v7478 = vunpack.c.h.b16 %v5956
          %v7479 = vunpack.c.l.b16 %v5957
          %v7480 = vunpack.c.h.b16 %v5957
          %v7481 = vunpack.c.l.b16 %v5958
          %v7482 = vunpack.c.h.b16 %v5958
          %v7483 = vunpack.c.l.b16 %v5959
          %v7484 = vunpack.c.h.b16 %v5959
          %v7485 = vunpack.c.l.b16 %v5960
          %v7486 = vunpack.c.h.b16 %v5960
          %v7487 = vunpack.c.l.b16 %v5961
          %v7488 = vunpack.c.h.b16 %v5961
          %v7489 = vunpack.c.l.b16 %v5962
          %v7490 = vunpack.c.h.b16 %v5962
          %v7491 = vunpack.c.l.b16 %v5963
          %v7492 = vunpack.c.h.b16 %v5963
          %v7493 = vunpack.c.l.b16 %v5964
          %v7494 = vunpack.c.h.b16 %v5964
          %v7495 = vunpack.c.l.b16 %v5965
          %v7496 = vunpack.c.h.b16 %v5965
          %v7497 = vunpack.c.l.b16 %v5966
          %v7498 = vunpack.c.h.b16 %v5966
          %v7499 = vunpack.c.l.b16 %v5967
          %v7500 = vunpack.c.h.b16 %v5967
          %v7501 = vunpack.c.l.b16 %v5968
          %v7502 = vunpack.c.h.b16 %v5968
          %v7503 = vunpack.c.l.b16 %v5969
          %v7504 = vunpack.c.h.b16 %v5969
          %v7505 = vunpack.c.l.b16 %v5970
          %v7506 = vunpack.c.h.b16 %v5970
          %v7507 = vunpack.c.l.b16 %v5971
          %v7508 = vunpack.c.h.b16 %v5971
          %v7509 = vunpack.c.l.b16 %v5972
          %v7510 = vunpack.c.h.b16 %v5972
          %v7511 = vunpack.c.l.b16 %v5973
          %v7512 = vunpack.c.h.b16 %v5973
          %v7513 = vunpack.c.l.b16 %v5974
          %v7514 = vunpack.c.h.b16 %v5974
          %v7515 = vunpack.c.l.b16 %v5975
          %v7516 = vunpack.c.h.b16 %v5975
          %v7517 = vunpack.c.l.b16 %v5976
          %v7518 = vunpack.c.h.b16 %v5976
          %v7519 = vunpack.c.l.b16 %v5977
          %v7520 = vunpack.c.h.b16 %v5977
          %v7521 = vunpack.c.l.b16 %v5978
          %v7522 = vunpack.c.h.b16 %v5978
          %v7523 = vunpack.c.l.b16 %v5979
          %v7524 = vunpack.c.h.b16 %v5979
          %v7525 = vunpack.c.l.b16 %v5980
          %v7526 = vunpack.c.h.b16 %v5980
          %v7527 = vunpack.c.l.b16 %v5981
          %v7528 = vunpack.c.h.b16 %v5981
          %v7529 = vunpack.c.l.b16 %v5982
          %v7530 = vunpack.c.h.b16 %v5982
          %v7531 = vunpack.c.l.b16 %v5983
          %v7532 = vunpack.c.h.b16 %v5983
          %v7533 = vunpack.c.l.b16 %v5984
          %v7534 = vunpack.c.h.b16 %v5984
          %v7535 = vunpack.c.l.b16 %v5985
          %v7536 = vunpack.c.h.b16 %v5985
          %v7537 = vunpack.c.l.b16 %v5986
          %v7538 = vunpack.c.h.b16 %v5986
          %v7539 = vunpack.c.l.b16 %v5987
          %v7540 = vunpack.c.h.b16 %v5987
          %v7541 = vunpack.c.l.b16 %v5988
          %v7542 = vunpack.c.h.b16 %v5988
          %v7543 = vunpack.c.l.b16 %v5989
          %v7544 = vunpack.c.h.b16 %v5989
          %v7545 = vunpack.c.l.b16 %v5990
          %v7546 = vunpack.c.h.b16 %v5990
          %v7547 = vunpack.c.l.b16 %v5991
          %v7548 = vunpack.c.h.b16 %v5991
          %v7549 = vunpack.c.l.b16 %v5992
          %v7550 = vunpack.c.h.b16 %v5992
          %v7551 = vunpack.c.l.b16 %v5993
          %v7552 = vunpack.c.h.b16 %v5993
          %v7553 = vunpack.c.l.b16 %v5994
          %v7554 = vunpack.c.h.b16 %v5994
          %v7555 = vunpack.c.l.b16 %v5995
          %v7556 = vunpack.c.h.b16 %v5995
          %v7557 = vunpack.c.l.b16 %v5996
          %v7558 = vunpack.c.h.b16 %v5996
          %v7559 = vunpack.c.l.b16 %v5997
          %v7560 = vunpack.c.h.b16 %v5997
          %v7561 = vunpack.c.l.b16 %v5998
          %v7562 = vunpack.c.h.b16 %v5998
          %v7563 = vunpack.c.l.b16 %v5999
          %v7564 = vunpack.c.h.b16 %v5999
          %v7565 = vunpack.c.l.b16 %v6000
          %v7566 = vunpack.c.h.b16 %v6000
          %v7567 = vunpack.c.l.b16 %v6001
          %v7568 = vunpack.c.h.b16 %v6001
          %v7569 = vunpack.c.l.b16 %v6002
          %v7570 = vunpack.c.h.b16 %v6002
          %v7571 = vunpack.c.l.b16 %v6003
          %v7572 = vunpack.c.h.b16 %v6003
          %v7573 = vunpack.c.l.b16 %v6004
          %v7574 = vunpack.c.h.b16 %v6004
          %v7575 = vunpack.c.l.b16 %v6005
          %v7576 = vunpack.c.h.b16 %v6005
          %v7577 = vunpack.c.l.b16 %v6006
          %v7578 = vunpack.c.h.b16 %v6006
          %v7579 = vunpack.c.l.b16 %v6007
          %v7580 = vunpack.c.h.b16 %v6007
          %v7581 = vunpack.c.l.b16 %v6008
          %v7582 = vunpack.c.h.b16 %v6008
          %v7583 = vunpack.c.l.b16 %v6009
          %v7584 = vunpack.c.h.b16 %v6009
          %v7585 = vunpack.c.l.b16 %v6010
          %v7586 = vunpack.c.h.b16 %v6010
          %v7587 = vunpack.c.l.b16 %v6011
          %v7588 = vunpack.c.h.b16 %v6011
          %v7589 = vunpack.c.l.b16 %v6012
          %v7590 = vunpack.c.h.b16 %v6012
          %v7591 = vunpack.c.l.b16 %v6013
          %v7592 = vunpack.c.h.b16 %v6013
          %v7593 = vunpack.c.l.b16 %v6014
          %v7594 = vunpack.c.h.b16 %v6014
          %v7595 = vunpack.c.l.b16 %v6015
          %v7596 = vunpack.c.h.b16 %v6015
          %v7597 = vunpack.c.l.b16 %v6016
          %v7598 = vunpack.c.h.b16 %v6016
          %v7599 = vunpack.c.l.b16 %v6017
          %v7600 = vunpack.c.h.b16 %v6017
          %v7601 = vunpack.c.l.b16 %v6018
          %v7602 = vunpack.c.h.b16 %v6018
          %v7603 = vunpack.c.l.b16 %v6019
          %v7604 = vunpack.c.h.b16 %v6019
          %v7605 = vunpack.c.l.b16 %v6020
          %v7606 = vunpack.c.h.b16 %v6020
          %v7607 = vunpack.c.l.b16 %v6021
          %v7608 = vunpack.c.h.b16 %v6021
          %v7609 = vunpack.c.l.b16 %v6022
          %v7610 = vunpack.c.h.b16 %v6022
          %v7611 = vunpack.c.l.b16 %v6023
          %v7612 = vunpack.c.h.b16 %v6023
          %v7613 = vunpack.c.l.b16 %v6024
          %v7614 = vunpack.c.h.b16 %v6024
          %v7615 = vunpack.c.l.b16 %v6025
          %v7616 = vunpack.c.h.b16 %v6025
          %v7617 = vunpack.c.l.b16 %v6026
          %v7618 = vunpack.c.h.b16 %v6026
          %v7619 = vunpack.c.l.b16 %v6027
          %v7620 = vunpack.c.h.b16 %v6027
          %v7621 = vunpack.c.l.b16 %v6028
          %v7622 = vunpack.c.h.b16 %v6028
          %v7623 = vunpack.c.l.b16 %v6029
          %v7624 = vunpack.c.h.b16 %v6029
          %v7625 = vunpack.c.l.b16 %v6030
          %v7626 = vunpack.c.h.b16 %v6030
          %v7627 = vunpack.c.l.b16 %v6031
          %v7628 = vunpack.c.h.b16 %v6031
          %v7629 = vunpack.c.l.b16 %v6032
          %v7630 = vunpack.c.h.b16 %v6032
          %v7631 = vunpack.c.l.b16 %v6033
          %v7632 = vunpack.c.h.b16 %v6033
          %v7633 = vunpack.c.l.b16 %v6034
          %v7634 = vunpack.c.h.b16 %v6034
          %v7635 = vunpack.c.l.b16 %v6035
          %v7636 = vunpack.c.h.b16 %v6035
          %v7637 = vunpack.c.l.b16 %v6036
          %v7638 = vunpack.c.h.b16 %v6036
          %v7639 = vunpack.c.l.b16 %v6037
          %v7640 = vunpack.c.h.b16 %v6037
          %v7641 = vunpack.c.l.b16 %v6038
          %v7642 = vunpack.c.h.b16 %v6038
          %v7643 = vunpack.c.l.b16 %v6039
          %v7644 = vunpack.c.h.b16 %v6039
          %v7645 = vunpack.c.l.b16 %v6040
          %v7646 = vunpack.c.h.b16 %v6040
          %v7647 = vunpack.c.l.b16 %v6041
          %v7648 = vunpack.c.h.b16 %v6041
          %v7649 = vunpack.c.l.b16 %v6042
          %v7650 = vunpack.c.h.b16 %v6042
          %v7651 = vpack.c.b16 %v6659, %v6627
          %v7652 = vpack.c.b16 %v6660, %v6628
          %v7653 = vpack.c.b16 %v6661, %v6629
          %v7654 = vpack.c.b16 %v6662, %v6630
          %v7655 = vpack.c.b16 %v6663, %v6631
          %v7656 = vpack.c.b16 %v6664, %v6632
          %v7657 = vpack.c.b16 %v6665, %v6633
          %v7658 = vpack.c.b16 %v6666, %v6634
          %v7659 = vpack.c.b16 %v6667, %v6635
          %v7660 = vpack.c.b16 %v6668, %v6636
          %v7661 = vpack.c.b16 %v6669, %v6637
          %v7662 = vpack.c.b16 %v6670, %v6638
          %v7663 = vpack.c.b16 %v6671, %v6639
          %v7664 = vpack.c.b16 %v6672, %v6640
          %v7665 = vpack.c.b16 %v6673, %v6641
          %v7666 = vpack.c.b16 %v6674, %v6642
          %v7667 = vpack.c.b16 %v6675, %v6643
          %v7668 = vpack.c.b16 %v6676, %v6644
          %v7669 = vpack.c.b16 %v6677, %v6645
          %v7670 = vpack.c.b16 %v6678, %v6646
          %v7671 = vpack.c.b16 %v6679, %v6647
          %v7672 = vpack.c.b16 %v6680, %v6648
          %v7673 = vpack.c.b16 %v6681, %v6649
          %v7674 = vpack.c.b16 %v6682, %v6650
          %v7675 = vpack.c.b16 %v6683, %v6651
          %v7676 = vpack.c.b16 %v6684, %v6652
          %v7677 = vpack.c.b16 %v6685, %v6653
          %v7678 = vpack.c.b16 %v6686, %v6654
          %v7679 = vpack.c.b16 %v6687, %v6655
          %v7680 = vpack.c.b16 %v6688, %v6656
          %v7681 = vpack.c.b16 %v6689, %v6657
          %v7682 = vpack.c.b16 %v6690, %v6658
          %v7683 = vpack.c.b16 %v6723, %v6691
          %v7684 = vpack.c.b16 %v6724, %v6692
          %v7685 = vpack.c.b16 %v6725, %v6693
          %v7686 = vpack.c.b16 %v6726, %v6694
          %v7687 = vpack.c.b16 %v6727, %v6695
          %v7688 = vpack.c.b16 %v6728, %v6696
          %v7689 = vpack.c.b16 %v6729, %v6697
          %v7690 = vpack.c.b16 %v6730, %v6698
          %v7691 = vpack.c.b16 %v6731, %v6699
          %v7692 = vpack.c.b16 %v6732, %v6700
          %v7693 = vpack.c.b16 %v6733, %v6701
          %v7694 = vpack.c.b16 %v6734, %v6702
          %v7695 = vpack.c.b16 %v6735, %v6703
          %v7696 = vpack.c.b16 %v6736, %v6704
          %v7697 = vpack.c.b16 %v6737, %v6705
          %v7698 = vpack.c.b16 %v6738, %v6706
          %v7699 = vpack.c.b16 %v6739, %v6707
          %v7700 = vpack.c.b16 %v6740, %v6708
          %v7701 = vpack.c.b16 %v6741, %v6709
          %v7702 = vpack.c.b16 %v6742, %v6710
          %v7703 = vpack.c.b16 %v6743, %v6711
          %v7704 = vpack.c.b16 %v6744, %v6712
          %v7705 = vpack.c.b16 %v6745, %v6713
          %v7706 = vpack.c.b16 %v6746, %v6714
          %v7707 = vpack.c.b16 %v6747, %v6715
          %v7708 = vpack.c.b16 %v6748, %v6716
          %v7709 = vpack.c.b16 %v6749, %v6717
          %v7710 = vpack.c.b16 %v6750, %v6718
          %v7711 = vpack.c.b16 %v6751, %v6719
          %v7712 = vpack.c.b16 %v6752, %v6720
          %v7713 = vpack.c.b16 %v6753, %v6721
          %v7714 = vpack.c.b16 %v6754, %v6722
          %v7715 = vpack.c.b16 %v6787, %v6755
          %v7716 = vpack.c.b16 %v6788, %v6756
          %v7717 = vpack.c.b16 %v6789, %v6757
          %v7718 = vpack.c.b16 %v6790, %v6758
          %v7719 = vpack.c.b16 %v6791, %v6759
          %v7720 = vpack.c.b16 %v6792, %v6760
          %v7721 = vpack.c.b16 %v6793, %v6761
          %v7722 = vpack.c.b16 %v6794, %v6762
          %v7723 = vpack.c.b16 %v6795, %v6763
          %v7724 = vpack.c.b16 %v6796, %v6764
          %v7725 = vpack.c.b16 %v6797, %v6765
          %v7726 = vpack.c.b16 %v6798, %v6766
          %v7727 = vpack.c.b16 %v6799, %v6767
          %v7728 = vpack.c.b16 %v6800, %v6768
          %v7729 = vpack.c.b16 %v6801, %v6769
          %v7730 = vpack.c.b16 %v6802, %v6770
          %v7731 = vpack.c.b16 %v6803, %v6771
          %v7732 = vpack.c.b16 %v6804, %v6772
          %v7733 = vpack.c.b16 %v6805, %v6773
          %v7734 = vpack.c.b16 %v6806, %v6774
          %v7735 = vpack.c.b16 %v6807, %v6775
          %v7736 = vpack.c.b16 %v6808, %v6776
          %v7737 = vpack.c.b16 %v6809, %v6777
          %v7738 = vpack.c.b16 %v6810, %v6778
          %v7739 = vpack.c.b16 %v6811, %v6779
          %v7740 = vpack.c.b16 %v6812, %v6780
          %v7741 = vpack.c.b16 %v6813, %v6781
          %v7742 = vpack.c.b16 %v6814, %v6782
          %v7743 = vpack.c.b16 %v6815, %v6783
          %v7744 = vpack.c.b16 %v6816, %v6784
          %v7745 = vpack.c.b16 %v6817, %v6785
          %v7746 = vpack.c.b16 %v6818, %v6786
          %v7747 = vpack.c.b16 %v6851, %v6819
          %v7748 = vpack.c.b16 %v6852, %v6820
          %v7749 = vpack.c.b16 %v6853, %v6821
          %v7750 = vpack.c.b16 %v6854, %v6822
          %v7751 = vpack.c.b16 %v6855, %v6823
          %v7752 = vpack.c.b16 %v6856, %v6824
          %v7753 = vpack.c.b16 %v6857, %v6825
          %v7754 = vpack.c.b16 %v6858, %v6826
          %v7755 = vpack.c.b16 %v6859, %v6827
          %v7756 = vpack.c.b16 %v6860, %v6828
          %v7757 = vpack.c.b16 %v6861, %v6829
          %v7758 = vpack.c.b16 %v6862, %v6830
          %v7759 = vpack.c.b16 %v6863, %v6831
          %v7760 = vpack.c.b16 %v6864, %v6832
          %v7761 = vpack.c.b16 %v6865, %v6833
          %v7762 = vpack.c.b16 %v6866, %v6834
          %v7763 = vpack.c.b16 %v6867, %v6835
          %v7764 = vpack.c.b16 %v6868, %v6836
          %v7765 = vpack.c.b16 %v6869, %v6837
          %v7766 = vpack.c.b16 %v6870, %v6838
          %v7767 = vpack.c.b16 %v6871, %v6839
          %v7768 = vpack.c.b16 %v6872, %v6840
          %v7769 = vpack.c.b16 %v6873, %v6841
          %v7770 = vpack.c.b16 %v6874, %v6842
          %v7771 = vpack.c.b16 %v6875, %v6843
          %v7772 = vpack.c.b16 %v6876, %v6844
          %v7773 = vpack.c.b16 %v6877, %v6845
          %v7774 = vpack.c.b16 %v6878, %v6846
          %v7775 = vpack.c.b16 %v6879, %v6847
          %v7776 = vpack.c.b16 %v6880, %v6848
          %v7777 = vpack.c.b16 %v6881, %v6849
          %v7778 = vpack.c.b16 %v6882, %v6850
          %v7779 = vpack.c.b16 %v6915, %v6883
          %v7780 = vpack.c.b16 %v6916, %v6884
          %v7781 = vpack.c.b16 %v6917, %v6885
          %v7782 = vpack.c.b16 %v6918, %v6886
          %v7783 = vpack.c.b16 %v6919, %v6887
          %v7784 = vpack.c.b16 %v6920, %v6888
          %v7785 = vpack.c.b16 %v6921, %v6889
          %v7786 = vpack.c.b16 %v6922, %v6890
          %v7787 = vpack.c.b16 %v6923, %v6891
          %v7788 = vpack.c.b16 %v6924, %v6892
          %v7789 = vpack.c.b16 %v6925, %v6893
          %v7790 = vpack.c.b16 %v6926, %v6894
          %v7791 = vpack.c.b16 %v6927, %v6895
          %v7792 = vpack.c.b16 %v6928, %v6896
          %v7793 = vpack.c.b16 %v6929, %v6897
          %v7794 = vpack.c.b16 %v6930, %v6898
          %v7795 = vpack.c.b16 %v6931, %v6899
          %v7796 = vpack.c.b16 %v6932, %v6900
          %v7797 = vpack.c.b16 %v6933, %v6901
          %v7798 = vpack.c.b16 %v6934, %v6902
          %v7799 = vpack.c.b16 %v6935, %v6903
          %v7800 = vpack.c.b16 %v6936, %v6904
          %v7801 = vpack.c.b16 %v6937, %v6905
          %v7802 = vpack.c.b16 %v6938, %v6906
          %v7803 = vpack.c.b16 %v6939, %v6907
          %v7804 = vpack.c.b16 %v6940, %v6908
          %v7805 = vpack.c.b16 %v6941, %v6909
          %v7806 = vpack.c.b16 %v6942, %v6910
          %v7807 = vpack.c.b16 %v6943, %v6911
          %v7808 = vpack.c.b16 %v6944, %v6912
          %v7809 = vpack.c.b16 %v6945, %v6913
          %v7810 = vpack.c.b16 %v6946, %v6914
          %v7811 = vpack.c.b16 %v6979, %v6947
          %v7812 = vpack.c.b16 %v6980, %v6948
          %v7813 = vpack.c.b16 %v6981, %v6949
          %v7814 = vpack.c.b16 %v6982, %v6950
          %v7815 = vpack.c.b16 %v6983, %v6951
          %v7816 = vpack.c.b16 %v6984, %v6952
          %v7817 = vpack.c.b16 %v6985, %v6953
          %v7818 = vpack.c.b16 %v6986, %v6954
          %v7819 = vpack.c.b16 %v6987, %v6955
          %v7820 = vpack.c.b16 %v6988, %v6956
          %v7821 = vpack.c.b16 %v6989, %v6957
          %v7822 = vpack.c.b16 %v6990, %v6958
          %v7823 = vpack.c.b16 %v6991, %v6959
          %v7824 = vpack.c.b16 %v6992, %v6960
          %v7825 = vpack.c.b16 %v6993, %v6961
          %v7826 = vpack.c.b16 %v6994, %v6962
          %v7827 = vpack.c.b16 %v6995, %v6963
          %v7828 = vpack.c.b16 %v6996, %v6964
          %v7829 = vpack.c.b16 %v6997, %v6965
          %v7830 = vpack.c.b16 %v6998, %v6966
          %v7831 = vpack.c.b16 %v6999, %v6967
          %v7832 = vpack.c.b16 %v7000, %v6968
          %v7833 = vpack.c.b16 %v7001, %v6969
          %v7834 = vpack.c.b16 %v7002, %v6970
          %v7835 = vpack.c.b16 %v7003, %v6971
          %v7836 = vpack.c.b16 %v7004, %v6972
          %v7837 = vpack.c.b16 %v7005, %v6973
          %v7838 = vpack.c.b16 %v7006, %v6974
          %v7839 = vpack.c.b16 %v7007, %v6975
          %v7840 = vpack.c.b16 %v7008, %v6976
          %v7841 = vpack.c.b16 %v7009, %v6977
          %v7842 = vpack.c.b16 %v7010, %v6978
          %v7843 = vpack.c.b16 %v7043, %v7011
          %v7844 = vpack.c.b16 %v7044, %v7012
          %v7845 = vpack.c.b16 %v7045, %v7013
          %v7846 = vpack.c.b16 %v7046, %v7014
          %v7847 = vpack.c.b16 %v7047, %v7015
          %v7848 = vpack.c.b16 %v7048, %v7016
          %v7849 = vpack.c.b16 %v7049, %v7017
          %v7850 = vpack.c.b16 %v7050, %v7018
          %v7851 = vpack.c.b16 %v7051, %v7019
          %v7852 = vpack.c.b16 %v7052, %v7020
          %v7853 = vpack.c.b16 %v7053, %v7021
          %v7854 = vpack.c.b16 %v7054, %v7022
          %v7855 = vpack.c.b16 %v7055, %v7023
          %v7856 = vpack.c.b16 %v7056, %v7024
          %v7857 = vpack.c.b16 %v7057, %v7025
          %v7858 = vpack.c.b16 %v7058, %v7026
          %v7859 = vpack.c.b16 %v7059, %v7027
          %v7860 = vpack.c.b16 %v7060, %v7028
          %v7861 = vpack.c.b16 %v7061, %v7029
          %v7862 = vpack.c.b16 %v7062, %v7030
          %v7863 = vpack.c.b16 %v7063, %v7031
          %v7864 = vpack.c.b16 %v7064, %v7032
          %v7865 = vpack.c.b16 %v7065, %v7033
          %v7866 = vpack.c.b16 %v7066, %v7034
          %v7867 = vpack.c.b16 %v7067, %v7035
          %v7868 = vpack.c.b16 %v7068, %v7036
          %v7869 = vpack.c.b16 %v7069, %v7037
          %v7870 = vpack.c.b16 %v7070, %v7038
          %v7871 = vpack.c.b16 %v7071, %v7039
          %v7872 = vpack.c.b16 %v7072, %v7040
          %v7873 = vpack.c.b16 %v7073, %v7041
          %v7874 = vpack.c.b16 %v7074, %v7042
          %v7875 = vpack.c.b16 %v7107, %v7075
          %v7876 = vpack.c.b16 %v7108, %v7076
          %v7877 = vpack.c.b16 %v7109, %v7077
          %v7878 = vpack.c.b16 %v7110, %v7078
          %v7879 = vpack.c.b16 %v7111, %v7079
          %v7880 = vpack.c.b16 %v7112, %v7080
          %v7881 = vpack.c.b16 %v7113, %v7081
          %v7882 = vpack.c.b16 %v7114, %v7082
          %v7883 = vpack.c.b16 %v7115, %v7083
          %v7884 = vpack.c.b16 %v7116, %v7084
          %v7885 = vpack.c.b16 %v7117, %v7085
          %v7886 = vpack.c.b16 %v7118, %v7086
          %v7887 = vpack.c.b16 %v7119, %v7087
          %v7888 = vpack.c.b16 %v7120, %v7088
          %v7889 = vpack.c.b16 %v7121, %v7089
          %v7890 = vpack.c.b16 %v7122, %v7090
          %v7891 = vpack.c.b16 %v7123, %v7091
          %v7892 = vpack.c.b16 %v7124, %v7092
          %v7893 = vpack.c.b16 %v7125, %v7093
          %v7894 = vpack.c.b16 %v7126, %v7094
          %v7895 = vpack.c.b16 %v7127, %v7095
          %v7896 = vpack.c.b16 %v7128, %v7096
          %v7897 = vpack.c.b16 %v7129, %v7097
          %v7898 = vpack.c.b16 %v7130, %v7098
          %v7899 = vpack.c.b16 %v7131, %v7099
          %v7900 = vpack.c.b16 %v7132, %v7100
          %v7901 = vpack.c.b16 %v7133, %v7101
          %v7902 = vpack.c.b16 %v7134, %v7102
          %v7903 = vpack.c.b16 %v7135, %v7103
          %v7904 = vpack.c.b16 %v7136, %v7104
          %v7905 = vpack.c.b16 %v7137, %v7105
          %v7906 = vpack.c.b16 %v7138, %v7106
          %v7907 = vpack.c.b16 %v7171, %v7139
          %v7908 = vpack.c.b16 %v7172, %v7140
          %v7909 = vpack.c.b16 %v7173, %v7141
          %v7910 = vpack.c.b16 %v7174, %v7142
          %v7911 = vpack.c.b16 %v7175, %v7143
          %v7912 = vpack.c.b16 %v7176, %v7144
          %v7913 = vpack.c.b16 %v7177, %v7145
          %v7914 = vpack.c.b16 %v7178, %v7146
          %v7915 = vpack.c.b16 %v7179, %v7147
          %v7916 = vpack.c.b16 %v7180, %v7148
          %v7917 = vpack.c.b16 %v7181, %v7149
          %v7918 = vpack.c.b16 %v7182, %v7150
          %v7919 = vpack.c.b16 %v7183, %v7151
          %v7920 = vpack.c.b16 %v7184, %v7152
          %v7921 = vpack.c.b16 %v7185, %v7153
          %v7922 = vpack.c.b16 %v7186, %v7154
          %v7923 = vpack.c.b16 %v7187, %v7155
          %v7924 = vpack.c.b16 %v7188, %v7156
          %v7925 = vpack.c.b16 %v7189, %v7157
          %v7926 = vpack.c.b16 %v7190, %v7158
          %v7927 = vpack.c.b16 %v7191, %v7159
          %v7928 = vpack.c.b16 %v7192, %v7160
          %v7929 = vpack.c.b16 %v7193, %v7161
          %v7930 = vpack.c.b16 %v7194, %v7162
          %v7931 = vpack.c.b16 %v7195, %v7163
          %v7932 = vpack.c.b16 %v7196, %v7164
          %v7933 = vpack.c.b16 %v7197, %v7165
          %v7934 = vpack.c.b16 %v7198, %v7166
          %v7935 = vpack.c.b16 %v7199, %v7167
          %v7936 = vpack.c.b16 %v7200, %v7168
          %v7937 = vpack.c.b16 %v7201, %v7169
          %v7938 = vpack.c.b16 %v7202, %v7170
          %v7939 = vpack.c.b16 %v7235, %v7203
          %v7940 = vpack.c.b16 %v7236, %v7204
          %v7941 = vpack.c.b16 %v7237, %v7205
          %v7942 = vpack.c.b16 %v7238, %v7206
          %v7943 = vpack.c.b16 %v7239, %v7207
          %v7944 = vpack.c.b16 %v7240, %v7208
          %v7945 = vpack.c.b16 %v7241, %v7209
          %v7946 = vpack.c.b16 %v7242, %v7210
          %v7947 = vpack.c.b16 %v7243, %v7211
          %v7948 = vpack.c.b16 %v7244, %v7212
          %v7949 = vpack.c.b16 %v7245, %v7213
          %v7950 = vpack.c.b16 %v7246, %v7214
          %v7951 = vpack.c.b16 %v7247, %v7215
          %v7952 = vpack.c.b16 %v7248, %v7216
          %v7953 = vpack.c.b16 %v7249, %v7217
          %v7954 = vpack.c.b16 %v7250, %v7218
          %v7955 = vpack.c.b16 %v7251, %v7219
          %v7956 = vpack.c.b16 %v7252, %v7220
          %v7957 = vpack.c.b16 %v7253, %v7221
          %v7958 = vpack.c.b16 %v7254, %v7222
          %v7959 = vpack.c.b16 %v7255, %v7223
          %v7960 = vpack.c.b16 %v7256, %v7224
          %v7961 = vpack.c.b16 %v7257, %v7225
          %v7962 = vpack.c.b16 %v7258, %v7226
          %v7963 = vpack.c.b16 %v7259, %v7227
          %v7964 = vpack.c.b16 %v7260, %v7228
          %v7965 = vpack.c.b16 %v7261, %v7229
          %v7966 = vpack.c.b16 %v7262, %v7230
          %v7967 = vpack.c.b16 %v7263, %v7231
          %v7968 = vpack.c.b16 %v7264, %v7232
          %v7969 = vpack.c.b16 %v7265, %v7233
          %v7970 = vpack.c.b16 %v7266, %v7234
          %v7971 = vpack.c.b16 %v7299, %v7267
          %v7972 = vpack.c.b16 %v7300, %v7268
          %v7973 = vpack.c.b16 %v7301, %v7269
          %v7974 = vpack.c.b16 %v7302, %v7270
          %v7975 = vpack.c.b16 %v7303, %v7271
          %v7976 = vpack.c.b16 %v7304, %v7272
          %v7977 = vpack.c.b16 %v7305, %v7273
          %v7978 = vpack.c.b16 %v7306, %v7274
          %v7979 = vpack.c.b16 %v7307, %v7275
          %v7980 = vpack.c.b16 %v7308, %v7276
          %v7981 = vpack.c.b16 %v7309, %v7277
          %v7982 = vpack.c.b16 %v7310, %v7278
          %v7983 = vpack.c.b16 %v7311, %v7279
          %v7984 = vpack.c.b16 %v7312, %v7280
          %v7985 = vpack.c.b16 %v7313, %v7281
          %v7986 = vpack.c.b16 %v7314, %v7282
          %v7987 = vpack.c.b16 %v7315, %v7283
          %v7988 = vpack.c.b16 %v7316, %v7284
          %v7989 = vpack.c.b16 %v7317, %v7285
          %v7990 = vpack.c.b16 %v7318, %v7286
          %v7991 = vpack.c.b16 %v7319, %v7287
          %v7992 = vpack.c.b16 %v7320, %v7288
          %v7993 = vpack.c.b16 %v7321, %v7289
          %v7994 = vpack.c.b16 %v7322, %v7290
          %v7995 = vpack.c.b16 %v7323, %v7291
          %v7996 = vpack.c.b16 %v7324, %v7292
          %v7997 = vpack.c.b16 %v7325, %v7293
          %v7998 = vpack.c.b16 %v7326, %v7294
          %v7999 = vpack.c.b16 %v7327, %v7295
          %v8000 = vpack.c.b16 %v7328, %v7296
          %v8001 = vpack.c.b16 %v7329, %v7297
          %v8002 = vpack.c.b16 %v7330, %v7298
          %v8003 = vpack.c.b16 %v7363, %v7331
          %v8004 = vpack.c.b16 %v7364, %v7332
          %v8005 = vpack.c.b16 %v7365, %v7333
          %v8006 = vpack.c.b16 %v7366, %v7334
          %v8007 = vpack.c.b16 %v7367, %v7335
          %v8008 = vpack.c.b16 %v7368, %v7336
          %v8009 = vpack.c.b16 %v7369, %v7337
          %v8010 = vpack.c.b16 %v7370, %v7338
          %v8011 = vpack.c.b16 %v7371, %v7339
          %v8012 = vpack.c.b16 %v7372, %v7340
          %v8013 = vpack.c.b16 %v7373, %v7341
          %v8014 = vpack.c.b16 %v7374, %v7342
          %v8015 = vpack.c.b16 %v7375, %v7343
          %v8016 = vpack.c.b16 %v7376, %v7344
          %v8017 = vpack.c.b16 %v7377, %v7345
          %v8018 = vpack.c.b16 %v7378, %v7346
          %v8019 = vpack.c.b16 %v7379, %v7347
          %v8020 = vpack.c.b16 %v7380, %v7348
          %v8021 = vpack.c.b16 %v7381, %v7349
          %v8022 = vpack.c.b16 %v7382, %v7350
          %v8023 = vpack.c.b16 %v7383, %v7351
          %v8024 = vpack.c.b16 %v7384, %v7352
          %v8025 = vpack.c.b16 %v7385, %v7353
          %v8026 = vpack.c.b16 %v7386, %v7354
          %v8027 = vpack.c.b16 %v7387, %v7355
          %v8028 = vpack.c.b16 %v7388, %v7356
          %v8029 = vpack.c.b16 %v7389, %v7357
          %v8030 = vpack.c.b16 %v7390, %v7358
          %v8031 = vpack.c.b16 %v7391, %v7359
          %v8032 = vpack.c.b16 %v7392, %v7360
          %v8033 = vpack.c.b16 %v7393, %v7361
          %v8034 = vpack.c.b16 %v7394, %v7362
          %v8035 = vpack.c.b16 %v7427, %v7395
          %v8036 = vpack.c.b16 %v7428, %v7396
          %v8037 = vpack.c.b16 %v7429, %v7397
          %v8038 = vpack.c.b16 %v7430, %v7398
          %v8039 = vpack.c.b16 %v7431, %v7399
          %v8040 = vpack.c.b16 %v7432, %v7400
          %v8041 = vpack.c.b16 %v7433, %v7401
          %v8042 = vpack.c.b16 %v7434, %v7402
          %v8043 = vpack.c.b16 %v7435, %v7403
          %v8044 = vpack.c.b16 %v7436, %v7404
          %v8045 = vpack.c.b16 %v7437, %v7405
          %v8046 = vpack.c.b16 %v7438, %v7406
          %v8047 = vpack.c.b16 %v7439, %v7407
          %v8048 = vpack.c.b16 %v7440, %v7408
          %v8049 = vpack.c.b16 %v7441, %v7409
          %v8050 = vpack.c.b16 %v7442, %v7410
          %v8051 = vpack.c.b16 %v7443, %v7411
          %v8052 = vpack.c.b16 %v7444, %v7412
          %v8053 = vpack.c.b16 %v7445, %v7413
          %v8054 = vpack.c.b16 %v7446, %v7414
          %v8055 = vpack.c.b16 %v7447, %v7415
          %v8056 = vpack.c.b16 %v7448, %v7416
          %v8057 = vpack.c.b16 %v7449, %v7417
          %v8058 = vpack.c.b16 %v7450, %v7418
          %v8059 = vpack.c.b16 %v7451, %v7419
          %v8060 = vpack.c.b16 %v7452, %v7420
          %v8061 = vpack.c.b16 %v7453, %v7421
          %v8062 = vpack.c.b16 %v7454, %v7422
          %v8063 = vpack.c.b16 %v7455, %v7423
          %v8064 = vpack.c.b16 %v7456, %v7424
          %v8065 = vpack.c.b16 %v7457, %v7425
          %v8066 = vpack.c.b16 %v7458, %v7426
          %v8067 = vpack.c.b16 %v7491, %v7459
          %v8068 = vpack.c.b16 %v7492, %v7460
          %v8069 = vpack.c.b16 %v7493, %v7461
          %v8070 = vpack.c.b16 %v7494, %v7462
          %v8071 = vpack.c.b16 %v7495, %v7463
          %v8072 = vpack.c.b16 %v7496, %v7464
          %v8073 = vpack.c.b16 %v7497, %v7465
          %v8074 = vpack.c.b16 %v7498, %v7466
          %v8075 = vpack.c.b16 %v7499, %v7467
          %v8076 = vpack.c.b16 %v7500, %v7468
          %v8077 = vpack.c.b16 %v7501, %v7469
          %v8078 = vpack.c.b16 %v7502, %v7470
          %v8079 = vpack.c.b16 %v7503, %v7471
          %v8080 = vpack.c.b16 %v7504, %v7472
          %v8081 = vpack.c.b16 %v7505, %v7473
          %v8082 = vpack.c.b16 %v7506, %v7474
          %v8083 = vpack.c.b16 %v7507, %v7475
          %v8084 = vpack.c.b16 %v7508, %v7476
          %v8085 = vpack.c.b16 %v7509, %v7477
          %v8086 = vpack.c.b16 %v7510, %v7478
          %v8087 = vpack.c.b16 %v7511, %v7479
          %v8088 = vpack.c.b16 %v7512, %v7480
          %v8089 = vpack.c.b16 %v7513, %v7481
          %v8090 = vpack.c.b16 %v7514, %v7482
          %v8091 = vpack.c.b16 %v7515, %v7483
          %v8092 = vpack.c.b16 %v7516, %v7484
          %v8093 = vpack.c.b16 %v7517, %v7485
          %v8094 = vpack.c.b16 %v7518, %v7486
          %v8095 = vpack.c.b16 %v7519, %v7487
          %v8096 = vpack.c.b16 %v7520, %v7488
          %v8097 = vpack.c.b16 %v7521, %v7489
          %v8098 = vpack.c.b16 %v7522, %v7490
          %v8099 = vpack.c.b16 %v7555, %v7523
          %v8100 = vpack.c.b16 %v7556, %v7524
          %v8101 = vpack.c.b16 %v7557, %v7525
          %v8102 = vpack.c.b16 %v7558, %v7526
          %v8103 = vpack.c.b16 %v7559, %v7527
          %v8104 = vpack.c.b16 %v7560, %v7528
          %v8105 = vpack.c.b16 %v7561, %v7529
          %v8106 = vpack.c.b16 %v7562, %v7530
          %v8107 = vpack.c.b16 %v7563, %v7531
          %v8108 = vpack.c.b16 %v7564, %v7532
          %v8109 = vpack.c.b16 %v7565, %v7533
          %v8110 = vpack.c.b16 %v7566, %v7534
          %v8111 = vpack.c.b16 %v7567, %v7535
          %v8112 = vpack.c.b16 %v7568, %v7536
          %v8113 = vpack.c.b16 %v7569, %v7537
          %v8114 = vpack.c.b16 %v7570, %v7538
          %v8115 = vpack.c.b16 %v7571, %v7539
          %v8116 = vpack.c.b16 %v7572, %v7540
          %v8117 = vpack.c.b16 %v7573, %v7541
          %v8118 = vpack.c.b16 %v7574, %v7542
          %v8119 = vpack.c.b16 %v7575, %v7543
          %v8120 = vpack.c.b16 %v7576, %v7544
          %v8121 = vpack.c.b16 %v7577, %v7545
          %v8122 = vpack.c.b16 %v7578, %v7546
          %v8123 = vpack.c.b16 %v7579, %v7547
          %v8124 = vpack.c.b16 %v7580, %v7548
          %v8125 = vpack.c.b16 %v7581, %v7549
          %v8126 = vpack.c.b16 %v7582, %v7550
          %v8127 = vpack.c.b16 %v7583, %v7551
          %v8128 = vpack.c.b16 %v7584, %v7552
          %v8129 = vpack.c.b16 %v7585, %v7553
          %v8130 = vpack.c.b16 %v7586, %v7554
          %v8131 = vpack.c.b16 %v7619, %v7587
          %v8132 = vpack.c.b16 %v7620, %v7588
          %v8133 = vpack.c.b16 %v7621, %v7589
          %v8134 = vpack.c.b16 %v7622, %v7590
          %v8135 = vpack.c.b16 %v7623, %v7591
          %v8136 = vpack.c.b16 %v7624, %v7592
          %v8137 = vpack.c.b16 %v7625, %v7593
          %v8138 = vpack.c.b16 %v7626, %v7594
          %v8139 = vpack.c.b16 %v7627, %v7595
          %v8140 = vpack.c.b16 %v7628, %v7596
          %v8141 = vpack.c.b16 %v7629, %v7597
          %v8142 = vpack.c.b16 %v7630, %v7598
          %v8143 = vpack.c.b16 %v7631, %v7599
          %v8144 = vpack.c.b16 %v7632, %v7600
          %v8145 = vpack.c.b16 %v7633, %v7601
          %v8146 = vpack.c.b16 %v7634, %v7602
          %v8147 = vpack.c.b16 %v7635, %v7603
          %v8148 = vpack.c.b16 %v7636, %v7604
          %v8149 = vpack.c.b16 %v7637, %v7605
          %v8150 = vpack.c.b16 %v7638, %v7606
          %v8151 = vpack.c.b16 %v7639, %v7607
          %v8152 = vpack.c.b16 %v7640, %v7608
          %v8153 = vpack.c.b16 %v7641, %v7609
          %v8154 = vpack.c.b16 %v7642, %v7610
          %v8155 = vpack.c.b16 %v7643, %v7611
          %v8156 = vpack.c.b16 %v7644, %v7612
          %v8157 = vpack.c.b16 %v7645, %v7613
          %v8158 = vpack.c.b16 %v7646, %v7614
          %v8159 = vpack.c.b16 %v7647, %v7615
          %v8160 = vpack.c.b16 %v7648, %v7616
          %v8161 = vpack.c.b16 %v7649, %v7617
          %v8162 = vpack.c.b16 %v7650, %v7618
          %8675 = vmatpush.bf16.msra.mxu0 %v7875
          %8676 = vmatpush.bf16.msra.mxu0 %v7843
          %8677 = vmatpush.bf16.msra.mxu0 %v7811
          %8678 = vmatpush.bf16.msra.mxu0 %v7779
          %8679 = vmatpush.bf16.msra.mxu0 %v7747
          %8680 = vmatpush.bf16.msra.mxu0 %v7715
          %8681 = vmatpush.bf16.msra.mxu0 %v7683
          %8682 = vmatpush.bf16.msra.mxu0 %v7651
          %8683 = vmatmul.bf16.gmra.mxu0 %v5529
          %v8684 = vpop.f32.mrf.mxu0
          %v8685 = vadd.f32 %v6051, %v8684
          %v8686 = vpop.f32.mrf.mxu0
          %8687 = vdwg.mxu0
          %8688 = vmatpush.bf16.msra.mxu0 %v8131
          %8689 = vmatpush.bf16.msra.mxu0 %v8099
          %8690 = vmatpush.bf16.msra.mxu0 %v8067
          %8691 = vmatpush.bf16.msra.mxu0 %v8035
          %8692 = vmatpush.bf16.msra.mxu0 %v8003
          %8693 = vmatpush.bf16.msra.mxu0 %v7971
          %8694 = vmatpush.bf16.msra.mxu0 %v7939
          %8695 = vmatpush.bf16.msra.mxu0 %v7907
          %8696 = vmatmul.bf16.gmra.mxu0 %v5530
          %v8697 = vpop.f32.mrf.mxu0
          %v8698 = vadd.f32 %v8685, %v8697
          %v8699 = vpop.f32.mrf.mxu0
          %8700 = vdwg.mxu0
          %8701 = vmatpush.bf16.msra.mxu0 %v7876
          %8702 = vmatpush.bf16.msra.mxu0 %v7844
          %8703 = vmatpush.bf16.msra.mxu0 %v7812
          %8704 = vmatpush.bf16.msra.mxu0 %v7780
          %8705 = vmatpush.bf16.msra.mxu0 %v7748
          %8706 = vmatpush.bf16.msra.mxu0 %v7716
          %8707 = vmatpush.bf16.msra.mxu0 %v7684
          %8708 = vmatpush.bf16.msra.mxu0 %v7652
          %8709 = vmatmul.bf16.gmra.mxu0 %v5529
          %v8710 = vpop.f32.mrf.mxu0
          %v8711 = vadd.f32 %v6052, %v8710
          %v8712 = vpop.f32.mrf.mxu0
          %8713 = vdwg.mxu0
          %8714 = vmatpush.bf16.msra.mxu0 %v8132
          %8715 = vmatpush.bf16.msra.mxu0 %v8100
          %8716 = vmatpush.bf16.msra.mxu0 %v8068
          %8717 = vmatpush.bf16.msra.mxu0 %v8036
          %8718 = vmatpush.bf16.msra.mxu0 %v8004
          %8719 = vmatpush.bf16.msra.mxu0 %v7972
          %8720 = vmatpush.bf16.msra.mxu0 %v7940
          %8721 = vmatpush.bf16.msra.mxu0 %v7908
          %8722 = vmatmul.bf16.gmra.mxu0 %v5530
          %v8723 = vpop.f32.mrf.mxu0
          %v8724 = vadd.f32 %v8711, %v8723
          %v8725 = vpop.f32.mrf.mxu0
          %8726 = vdwg.mxu0
          %8727 = vmatpush.bf16.msra.mxu0 %v7877
          %8728 = vmatpush.bf16.msra.mxu0 %v7845
          %8729 = vmatpush.bf16.msra.mxu0 %v7813
          %8730 = vmatpush.bf16.msra.mxu0 %v7781
          %8731 = vmatpush.bf16.msra.mxu0 %v7749
          %8732 = vmatpush.bf16.msra.mxu0 %v7717
          %8733 = vmatpush.bf16.msra.mxu0 %v7685
          %8734 = vmatpush.bf16.msra.mxu0 %v7653
          %8735 = vmatmul.bf16.gmra.mxu0 %v5529
          %v8736 = vpop.f32.mrf.mxu0
          %v8737 = vadd.f32 %v6053, %v8736
          %v8738 = vpop.f32.mrf.mxu0
          %8739 = vdwg.mxu0
          %8740 = vmatpush.bf16.msra.mxu0 %v8133
          %8741 = vmatpush.bf16.msra.mxu0 %v8101
          %8742 = vmatpush.bf16.msra.mxu0 %v8069
          %8743 = vmatpush.bf16.msra.mxu0 %v8037
          %8744 = vmatpush.bf16.msra.mxu0 %v8005
          %8745 = vmatpush.bf16.msra.mxu0 %v7973
          %8746 = vmatpush.bf16.msra.mxu0 %v7941
          %8747 = vmatpush.bf16.msra.mxu0 %v7909
          %8748 = vmatmul.bf16.gmra.mxu0 %v5530
          %v8749 = vpop.f32.mrf.mxu0
          %v8750 = vadd.f32 %v8737, %v8749
          %v8751 = vpop.f32.mrf.mxu0
          %8752 = vdwg.mxu0
          %8753 = vmatpush.bf16.msra.mxu0 %v7878
          %8754 = vmatpush.bf16.msra.mxu0 %v7846
          %8755 = vmatpush.bf16.msra.mxu0 %v7814
          %8756 = vmatpush.bf16.msra.mxu0 %v7782
          %8757 = vmatpush.bf16.msra.mxu0 %v7750
          %8758 = vmatpush.bf16.msra.mxu0 %v7718
          %8759 = vmatpush.bf16.msra.mxu0 %v7686
          %8760 = vmatpush.bf16.msra.mxu0 %v7654
          %8761 = vmatmul.bf16.gmra.mxu0 %v5529
          %v8762 = vpop.f32.mrf.mxu0
          %v8763 = vadd.f32 %v6054, %v8762
          %v8764 = vpop.f32.mrf.mxu0
          %8765 = vdwg.mxu0
          %8766 = vmatpush.bf16.msra.mxu0 %v8134
          %8767 = vmatpush.bf16.msra.mxu0 %v8102
          %8768 = vmatpush.bf16.msra.mxu0 %v8070
          %8769 = vmatpush.bf16.msra.mxu0 %v8038
          %8770 = vmatpush.bf16.msra.mxu0 %v8006
          %8771 = vmatpush.bf16.msra.mxu0 %v7974
          %8772 = vmatpush.bf16.msra.mxu0 %v7942
          %8773 = vmatpush.bf16.msra.mxu0 %v7910
          %8774 = vmatmul.bf16.gmra.mxu0 %v5530
          %v8775 = vpop.f32.mrf.mxu0
          %v8776 = vadd.f32 %v8763, %v8775
          %v8777 = vpop.f32.mrf.mxu0
          %8778 = vdwg.mxu0
          %8779 = vmatpush.bf16.msra.mxu0 %v7879
          %8780 = vmatpush.bf16.msra.mxu0 %v7847
          %8781 = vmatpush.bf16.msra.mxu0 %v7815
          %8782 = vmatpush.bf16.msra.mxu0 %v7783
          %8783 = vmatpush.bf16.msra.mxu0 %v7751
          %8784 = vmatpush.bf16.msra.mxu0 %v7719
          %8785 = vmatpush.bf16.msra.mxu0 %v7687
          %8786 = vmatpush.bf16.msra.mxu0 %v7655
          %8787 = vmatmul.bf16.gmra.mxu0 %v5529
          %v8788 = vpop.f32.mrf.mxu0
          %v8789 = vadd.f32 %v6055, %v8788
          %v8790 = vpop.f32.mrf.mxu0
          %8791 = vdwg.mxu0
          %8792 = vmatpush.bf16.msra.mxu0 %v8135
          %8793 = vmatpush.bf16.msra.mxu0 %v8103
          %8794 = vmatpush.bf16.msra.mxu0 %v8071
          %8795 = vmatpush.bf16.msra.mxu0 %v8039
          %8796 = vmatpush.bf16.msra.mxu0 %v8007
          %8797 = vmatpush.bf16.msra.mxu0 %v7975
          %8798 = vmatpush.bf16.msra.mxu0 %v7943
          %8799 = vmatpush.bf16.msra.mxu0 %v7911
          %8800 = vmatmul.bf16.gmra.mxu0 %v5530
          %v8801 = vpop.f32.mrf.mxu0
          %v8802 = vadd.f32 %v8789, %v8801
          %v8803 = vpop.f32.mrf.mxu0
          %8804 = vdwg.mxu0
          %8805 = vmatpush.bf16.msra.mxu0 %v7880
          %8806 = vmatpush.bf16.msra.mxu0 %v7848
          %8807 = vmatpush.bf16.msra.mxu0 %v7816
          %8808 = vmatpush.bf16.msra.mxu0 %v7784
          %8809 = vmatpush.bf16.msra.mxu0 %v7752
          %8810 = vmatpush.bf16.msra.mxu0 %v7720
          %8811 = vmatpush.bf16.msra.mxu0 %v7688
          %8812 = vmatpush.bf16.msra.mxu0 %v7656
          %8813 = vmatmul.bf16.gmra.mxu0 %v5529
          %v8814 = vpop.f32.mrf.mxu0
          %v8815 = vadd.f32 %v6056, %v8814
          %v8816 = vpop.f32.mrf.mxu0
          %8817 = vdwg.mxu0
          %8818 = vmatpush.bf16.msra.mxu0 %v8136
          %8819 = vmatpush.bf16.msra.mxu0 %v8104
          %8820 = vmatpush.bf16.msra.mxu0 %v8072
          %8821 = vmatpush.bf16.msra.mxu0 %v8040
          %8822 = vmatpush.bf16.msra.mxu0 %v8008
          %8823 = vmatpush.bf16.msra.mxu0 %v7976
          %8824 = vmatpush.bf16.msra.mxu0 %v7944
          %8825 = vmatpush.bf16.msra.mxu0 %v7912
          %8826 = vmatmul.bf16.gmra.mxu0 %v5530
          %v8827 = vpop.f32.mrf.mxu0
          %v8828 = vadd.f32 %v8815, %v8827
          %v8829 = vpop.f32.mrf.mxu0
          %8830 = vdwg.mxu0
          %8831 = vmatpush.bf16.msra.mxu0 %v7881
          %8832 = vmatpush.bf16.msra.mxu0 %v7849
          %8833 = vmatpush.bf16.msra.mxu0 %v7817
          %8834 = vmatpush.bf16.msra.mxu0 %v7785
          %8835 = vmatpush.bf16.msra.mxu0 %v7753
          %8836 = vmatpush.bf16.msra.mxu0 %v7721
          %8837 = vmatpush.bf16.msra.mxu0 %v7689
          %8838 = vmatpush.bf16.msra.mxu0 %v7657
          %8839 = vmatmul.bf16.gmra.mxu0 %v5529
          %v8840 = vpop.f32.mrf.mxu0
          %v8841 = vadd.f32 %v6057, %v8840
          %v8842 = vpop.f32.mrf.mxu0
          %8843 = vdwg.mxu0
          %8844 = vmatpush.bf16.msra.mxu0 %v8137
          %8845 = vmatpush.bf16.msra.mxu0 %v8105
          %8846 = vmatpush.bf16.msra.mxu0 %v8073
          %8847 = vmatpush.bf16.msra.mxu0 %v8041
          %8848 = vmatpush.bf16.msra.mxu0 %v8009
          %8849 = vmatpush.bf16.msra.mxu0 %v7977
          %8850 = vmatpush.bf16.msra.mxu0 %v7945
          %8851 = vmatpush.bf16.msra.mxu0 %v7913
          %8852 = vmatmul.bf16.gmra.mxu0 %v5530
          %v8853 = vpop.f32.mrf.mxu0
          %v8854 = vadd.f32 %v8841, %v8853
          %v8855 = vpop.f32.mrf.mxu0
          %8856 = vdwg.mxu0
          %8857 = vmatpush.bf16.msra.mxu0 %v7882
          %8858 = vmatpush.bf16.msra.mxu0 %v7850
          %8859 = vmatpush.bf16.msra.mxu0 %v7818
          %8860 = vmatpush.bf16.msra.mxu0 %v7786
          %8861 = vmatpush.bf16.msra.mxu0 %v7754
          %8862 = vmatpush.bf16.msra.mxu0 %v7722
          %8863 = vmatpush.bf16.msra.mxu0 %v7690
          %8864 = vmatpush.bf16.msra.mxu0 %v7658
          %8865 = vmatmul.bf16.gmra.mxu0 %v5529
          %v8866 = vpop.f32.mrf.mxu0
          %v8867 = vadd.f32 %v6058, %v8866
          %v8868 = vpop.f32.mrf.mxu0
          %8869 = vdwg.mxu0
          %8870 = vmatpush.bf16.msra.mxu0 %v8138
          %8871 = vmatpush.bf16.msra.mxu0 %v8106
          %8872 = vmatpush.bf16.msra.mxu0 %v8074
          %8873 = vmatpush.bf16.msra.mxu0 %v8042
          %8874 = vmatpush.bf16.msra.mxu0 %v8010
          %8875 = vmatpush.bf16.msra.mxu0 %v7978
          %8876 = vmatpush.bf16.msra.mxu0 %v7946
          %8877 = vmatpush.bf16.msra.mxu0 %v7914
          %8878 = vmatmul.bf16.gmra.mxu0 %v5530
          %v8879 = vpop.f32.mrf.mxu0
          %v8880 = vadd.f32 %v8867, %v8879
          %v8881 = vpop.f32.mrf.mxu0
          %8882 = vdwg.mxu0
          %8883 = vmatpush.bf16.msra.mxu0 %v7883
          %8884 = vmatpush.bf16.msra.mxu0 %v7851
          %8885 = vmatpush.bf16.msra.mxu0 %v7819
          %8886 = vmatpush.bf16.msra.mxu0 %v7787
          %8887 = vmatpush.bf16.msra.mxu0 %v7755
          %8888 = vmatpush.bf16.msra.mxu0 %v7723
          %8889 = vmatpush.bf16.msra.mxu0 %v7691
          %8890 = vmatpush.bf16.msra.mxu0 %v7659
          %8891 = vmatmul.bf16.gmra.mxu0 %v5529
          %v8892 = vpop.f32.mrf.mxu0
          %v8893 = vadd.f32 %v6059, %v8892
          %v8894 = vpop.f32.mrf.mxu0
          %8895 = vdwg.mxu0
          %8896 = vmatpush.bf16.msra.mxu0 %v8139
          %8897 = vmatpush.bf16.msra.mxu0 %v8107
          %8898 = vmatpush.bf16.msra.mxu0 %v8075
          %8899 = vmatpush.bf16.msra.mxu0 %v8043
          %8900 = vmatpush.bf16.msra.mxu0 %v8011
          %8901 = vmatpush.bf16.msra.mxu0 %v7979
          %8902 = vmatpush.bf16.msra.mxu0 %v7947
          %8903 = vmatpush.bf16.msra.mxu0 %v7915
          %8904 = vmatmul.bf16.gmra.mxu0 %v5530
          %v8905 = vpop.f32.mrf.mxu0
          %v8906 = vadd.f32 %v8893, %v8905
          %v8907 = vpop.f32.mrf.mxu0
          %8908 = vdwg.mxu0
          %8909 = vmatpush.bf16.msra.mxu0 %v7884
          %8910 = vmatpush.bf16.msra.mxu0 %v7852
          %8911 = vmatpush.bf16.msra.mxu0 %v7820
          %8912 = vmatpush.bf16.msra.mxu0 %v7788
          %8913 = vmatpush.bf16.msra.mxu0 %v7756
          %8914 = vmatpush.bf16.msra.mxu0 %v7724
          %8915 = vmatpush.bf16.msra.mxu0 %v7692
          %8916 = vmatpush.bf16.msra.mxu0 %v7660
          %8917 = vmatmul.bf16.gmra.mxu0 %v5529
          %v8918 = vpop.f32.mrf.mxu0
          %v8919 = vadd.f32 %v6060, %v8918
          %v8920 = vpop.f32.mrf.mxu0
          %8921 = vdwg.mxu0
          %8922 = vmatpush.bf16.msra.mxu0 %v8140
          %8923 = vmatpush.bf16.msra.mxu0 %v8108
          %8924 = vmatpush.bf16.msra.mxu0 %v8076
          %8925 = vmatpush.bf16.msra.mxu0 %v8044
          %8926 = vmatpush.bf16.msra.mxu0 %v8012
          %8927 = vmatpush.bf16.msra.mxu0 %v7980
          %8928 = vmatpush.bf16.msra.mxu0 %v7948
          %8929 = vmatpush.bf16.msra.mxu0 %v7916
          %8930 = vmatmul.bf16.gmra.mxu0 %v5530
          %v8931 = vpop.f32.mrf.mxu0
          %v8932 = vadd.f32 %v8919, %v8931
          %v8933 = vpop.f32.mrf.mxu0
          %8934 = vdwg.mxu0
          %8935 = vmatpush.bf16.msra.mxu0 %v7885
          %8936 = vmatpush.bf16.msra.mxu0 %v7853
          %8937 = vmatpush.bf16.msra.mxu0 %v7821
          %8938 = vmatpush.bf16.msra.mxu0 %v7789
          %8939 = vmatpush.bf16.msra.mxu0 %v7757
          %8940 = vmatpush.bf16.msra.mxu0 %v7725
          %8941 = vmatpush.bf16.msra.mxu0 %v7693
          %8942 = vmatpush.bf16.msra.mxu0 %v7661
          %8943 = vmatmul.bf16.gmra.mxu0 %v5529
          %v8944 = vpop.f32.mrf.mxu0
          %v8945 = vadd.f32 %v6061, %v8944
          %v8946 = vpop.f32.mrf.mxu0
          %8947 = vdwg.mxu0
          %8948 = vmatpush.bf16.msra.mxu0 %v8141
          %8949 = vmatpush.bf16.msra.mxu0 %v8109
          %8950 = vmatpush.bf16.msra.mxu0 %v8077
          %8951 = vmatpush.bf16.msra.mxu0 %v8045
          %8952 = vmatpush.bf16.msra.mxu0 %v8013
          %8953 = vmatpush.bf16.msra.mxu0 %v7981
          %8954 = vmatpush.bf16.msra.mxu0 %v7949
          %8955 = vmatpush.bf16.msra.mxu0 %v7917
          %8956 = vmatmul.bf16.gmra.mxu0 %v5530
          %v8957 = vpop.f32.mrf.mxu0
          %v8958 = vadd.f32 %v8945, %v8957
          %v8959 = vpop.f32.mrf.mxu0
          %8960 = vdwg.mxu0
          %8961 = vmatpush.bf16.msra.mxu0 %v7886
          %8962 = vmatpush.bf16.msra.mxu0 %v7854
          %8963 = vmatpush.bf16.msra.mxu0 %v7822
          %8964 = vmatpush.bf16.msra.mxu0 %v7790
          %8965 = vmatpush.bf16.msra.mxu0 %v7758
          %8966 = vmatpush.bf16.msra.mxu0 %v7726
          %8967 = vmatpush.bf16.msra.mxu0 %v7694
          %8968 = vmatpush.bf16.msra.mxu0 %v7662
          %8969 = vmatmul.bf16.gmra.mxu0 %v5529
          %v8970 = vpop.f32.mrf.mxu0
          %v8971 = vadd.f32 %v6062, %v8970
          %v8972 = vpop.f32.mrf.mxu0
          %8973 = vdwg.mxu0
          %8974 = vmatpush.bf16.msra.mxu0 %v8142
          %8975 = vmatpush.bf16.msra.mxu0 %v8110
          %8976 = vmatpush.bf16.msra.mxu0 %v8078
          %8977 = vmatpush.bf16.msra.mxu0 %v8046
          %8978 = vmatpush.bf16.msra.mxu0 %v8014
          %8979 = vmatpush.bf16.msra.mxu0 %v7982
          %8980 = vmatpush.bf16.msra.mxu0 %v7950
          %8981 = vmatpush.bf16.msra.mxu0 %v7918
          %8982 = vmatmul.bf16.gmra.mxu0 %v5530
          %v8983 = vpop.f32.mrf.mxu0
          %v8984 = vadd.f32 %v8971, %v8983
          %v8985 = vpop.f32.mrf.mxu0
          %8986 = vdwg.mxu0
          %8987 = vmatpush.bf16.msra.mxu0 %v7887
          %8988 = vmatpush.bf16.msra.mxu0 %v7855
          %8989 = vmatpush.bf16.msra.mxu0 %v7823
          %8990 = vmatpush.bf16.msra.mxu0 %v7791
          %8991 = vmatpush.bf16.msra.mxu0 %v7759
          %8992 = vmatpush.bf16.msra.mxu0 %v7727
          %8993 = vmatpush.bf16.msra.mxu0 %v7695
          %8994 = vmatpush.bf16.msra.mxu0 %v7663
          %8995 = vmatmul.bf16.gmra.mxu0 %v5529
          %v8996 = vpop.f32.mrf.mxu0
          %v8997 = vadd.f32 %v6063, %v8996
          %v8998 = vpop.f32.mrf.mxu0
          %8999 = vdwg.mxu0
          %9000 = vmatpush.bf16.msra.mxu0 %v8143
          %9001 = vmatpush.bf16.msra.mxu0 %v8111
          %9002 = vmatpush.bf16.msra.mxu0 %v8079
          %9003 = vmatpush.bf16.msra.mxu0 %v8047
          %9004 = vmatpush.bf16.msra.mxu0 %v8015
          %9005 = vmatpush.bf16.msra.mxu0 %v7983
          %9006 = vmatpush.bf16.msra.mxu0 %v7951
          %9007 = vmatpush.bf16.msra.mxu0 %v7919
          %9008 = vmatmul.bf16.gmra.mxu0 %v5530
          %v9009 = vpop.f32.mrf.mxu0
          %v9010 = vadd.f32 %v8997, %v9009
          %v9011 = vpop.f32.mrf.mxu0
          %9012 = vdwg.mxu0
          %9013 = vmatpush.bf16.msra.mxu0 %v7888
          %9014 = vmatpush.bf16.msra.mxu0 %v7856
          %9015 = vmatpush.bf16.msra.mxu0 %v7824
          %9016 = vmatpush.bf16.msra.mxu0 %v7792
          %9017 = vmatpush.bf16.msra.mxu0 %v7760
          %9018 = vmatpush.bf16.msra.mxu0 %v7728
          %9019 = vmatpush.bf16.msra.mxu0 %v7696
          %9020 = vmatpush.bf16.msra.mxu0 %v7664
          %9021 = vmatmul.bf16.gmra.mxu0 %v5529
          %v9022 = vpop.f32.mrf.mxu0
          %v9023 = vadd.f32 %v6064, %v9022
          %v9024 = vpop.f32.mrf.mxu0
          %9025 = vdwg.mxu0
          %9026 = vmatpush.bf16.msra.mxu0 %v8144
          %9027 = vmatpush.bf16.msra.mxu0 %v8112
          %9028 = vmatpush.bf16.msra.mxu0 %v8080
          %9029 = vmatpush.bf16.msra.mxu0 %v8048
          %9030 = vmatpush.bf16.msra.mxu0 %v8016
          %9031 = vmatpush.bf16.msra.mxu0 %v7984
          %9032 = vmatpush.bf16.msra.mxu0 %v7952
          %9033 = vmatpush.bf16.msra.mxu0 %v7920
          %9034 = vmatmul.bf16.gmra.mxu0 %v5530
          %v9035 = vpop.f32.mrf.mxu0
          %v9036 = vadd.f32 %v9023, %v9035
          %v9037 = vpop.f32.mrf.mxu0
          %9038 = vdwg.mxu0
          %9039 = vmatpush.bf16.msra.mxu0 %v7889
          %9040 = vmatpush.bf16.msra.mxu0 %v7857
          %9041 = vmatpush.bf16.msra.mxu0 %v7825
          %9042 = vmatpush.bf16.msra.mxu0 %v7793
          %9043 = vmatpush.bf16.msra.mxu0 %v7761
          %9044 = vmatpush.bf16.msra.mxu0 %v7729
          %9045 = vmatpush.bf16.msra.mxu0 %v7697
          %9046 = vmatpush.bf16.msra.mxu0 %v7665
          %9047 = vmatmul.bf16.gmra.mxu0 %v5529
          %v9048 = vpop.f32.mrf.mxu0
          %v9049 = vadd.f32 %v6065, %v9048
          %v9050 = vpop.f32.mrf.mxu0
          %9051 = vdwg.mxu0
          %9052 = vmatpush.bf16.msra.mxu0 %v8145
          %9053 = vmatpush.bf16.msra.mxu0 %v8113
          %9054 = vmatpush.bf16.msra.mxu0 %v8081
          %9055 = vmatpush.bf16.msra.mxu0 %v8049
          %9056 = vmatpush.bf16.msra.mxu0 %v8017
          %9057 = vmatpush.bf16.msra.mxu0 %v7985
          %9058 = vmatpush.bf16.msra.mxu0 %v7953
          %9059 = vmatpush.bf16.msra.mxu0 %v7921
          %9060 = vmatmul.bf16.gmra.mxu0 %v5530
          %v9061 = vpop.f32.mrf.mxu0
          %v9062 = vadd.f32 %v9049, %v9061
          %v9063 = vpop.f32.mrf.mxu0
          %9064 = vdwg.mxu0
          %9065 = vmatpush.bf16.msra.mxu0 %v7890
          %9066 = vmatpush.bf16.msra.mxu0 %v7858
          %9067 = vmatpush.bf16.msra.mxu0 %v7826
          %9068 = vmatpush.bf16.msra.mxu0 %v7794
          %9069 = vmatpush.bf16.msra.mxu0 %v7762
          %9070 = vmatpush.bf16.msra.mxu0 %v7730
          %9071 = vmatpush.bf16.msra.mxu0 %v7698
          %9072 = vmatpush.bf16.msra.mxu0 %v7666
          %9073 = vmatmul.bf16.gmra.mxu0 %v5529
          %v9074 = vpop.f32.mrf.mxu0
          %v9075 = vadd.f32 %v6066, %v9074
          %v9076 = vpop.f32.mrf.mxu0
          %9077 = vdwg.mxu0
          %9078 = vmatpush.bf16.msra.mxu0 %v8146
          %9079 = vmatpush.bf16.msra.mxu0 %v8114
          %9080 = vmatpush.bf16.msra.mxu0 %v8082
          %9081 = vmatpush.bf16.msra.mxu0 %v8050
          %9082 = vmatpush.bf16.msra.mxu0 %v8018
          %9083 = vmatpush.bf16.msra.mxu0 %v7986
          %9084 = vmatpush.bf16.msra.mxu0 %v7954
          %9085 = vmatpush.bf16.msra.mxu0 %v7922
          %9086 = vmatmul.bf16.gmra.mxu0 %v5530
          %v9087 = vpop.f32.mrf.mxu0
          %v9088 = vadd.f32 %v9075, %v9087
          %v9089 = vpop.f32.mrf.mxu0
          %9090 = vdwg.mxu0
          %9091 = vmatpush.bf16.msra.mxu0 %v7891
          %9092 = vmatpush.bf16.msra.mxu0 %v7859
          %9093 = vmatpush.bf16.msra.mxu0 %v7827
          %9094 = vmatpush.bf16.msra.mxu0 %v7795
          %9095 = vmatpush.bf16.msra.mxu0 %v7763
          %9096 = vmatpush.bf16.msra.mxu0 %v7731
          %9097 = vmatpush.bf16.msra.mxu0 %v7699
          %9098 = vmatpush.bf16.msra.mxu0 %v7667
          %9099 = vmatmul.bf16.gmra.mxu0 %v5529
          %v9100 = vpop.f32.mrf.mxu0
          %v9101 = vadd.f32 %v6067, %v9100
          %v9102 = vpop.f32.mrf.mxu0
          %9103 = vdwg.mxu0
          %9104 = vmatpush.bf16.msra.mxu0 %v8147
          %9105 = vmatpush.bf16.msra.mxu0 %v8115
          %9106 = vmatpush.bf16.msra.mxu0 %v8083
          %9107 = vmatpush.bf16.msra.mxu0 %v8051
          %9108 = vmatpush.bf16.msra.mxu0 %v8019
          %9109 = vmatpush.bf16.msra.mxu0 %v7987
          %9110 = vmatpush.bf16.msra.mxu0 %v7955
          %9111 = vmatpush.bf16.msra.mxu0 %v7923
          %9112 = vmatmul.bf16.gmra.mxu0 %v5530
          %v9113 = vpop.f32.mrf.mxu0
          %v9114 = vadd.f32 %v9101, %v9113
          %v9115 = vpop.f32.mrf.mxu0
          %9116 = vdwg.mxu0
          %9117 = vmatpush.bf16.msra.mxu0 %v7892
          %9118 = vmatpush.bf16.msra.mxu0 %v7860
          %9119 = vmatpush.bf16.msra.mxu0 %v7828
          %9120 = vmatpush.bf16.msra.mxu0 %v7796
          %9121 = vmatpush.bf16.msra.mxu0 %v7764
          %9122 = vmatpush.bf16.msra.mxu0 %v7732
          %9123 = vmatpush.bf16.msra.mxu0 %v7700
          %9124 = vmatpush.bf16.msra.mxu0 %v7668
          %9125 = vmatmul.bf16.gmra.mxu0 %v5529
          %v9126 = vpop.f32.mrf.mxu0
          %v9127 = vadd.f32 %v6068, %v9126
          %v9128 = vpop.f32.mrf.mxu0
          %9129 = vdwg.mxu0
          %9130 = vmatpush.bf16.msra.mxu0 %v8148
          %9131 = vmatpush.bf16.msra.mxu0 %v8116
          %9132 = vmatpush.bf16.msra.mxu0 %v8084
          %9133 = vmatpush.bf16.msra.mxu0 %v8052
          %9134 = vmatpush.bf16.msra.mxu0 %v8020
          %9135 = vmatpush.bf16.msra.mxu0 %v7988
          %9136 = vmatpush.bf16.msra.mxu0 %v7956
          %9137 = vmatpush.bf16.msra.mxu0 %v7924
          %9138 = vmatmul.bf16.gmra.mxu0 %v5530
          %v9139 = vpop.f32.mrf.mxu0
          %v9140 = vadd.f32 %v9127, %v9139
          %v9141 = vpop.f32.mrf.mxu0
          %9142 = vdwg.mxu0
          %9143 = vmatpush.bf16.msra.mxu0 %v7893
          %9144 = vmatpush.bf16.msra.mxu0 %v7861
          %9145 = vmatpush.bf16.msra.mxu0 %v7829
          %9146 = vmatpush.bf16.msra.mxu0 %v7797
          %9147 = vmatpush.bf16.msra.mxu0 %v7765
          %9148 = vmatpush.bf16.msra.mxu0 %v7733
          %9149 = vmatpush.bf16.msra.mxu0 %v7701
          %9150 = vmatpush.bf16.msra.mxu0 %v7669
          %9151 = vmatmul.bf16.gmra.mxu0 %v5529
          %v9152 = vpop.f32.mrf.mxu0
          %v9153 = vadd.f32 %v6069, %v9152
          %v9154 = vpop.f32.mrf.mxu0
          %9155 = vdwg.mxu0
          %9156 = vmatpush.bf16.msra.mxu0 %v8149
          %9157 = vmatpush.bf16.msra.mxu0 %v8117
          %9158 = vmatpush.bf16.msra.mxu0 %v8085
          %9159 = vmatpush.bf16.msra.mxu0 %v8053
          %9160 = vmatpush.bf16.msra.mxu0 %v8021
          %9161 = vmatpush.bf16.msra.mxu0 %v7989
          %9162 = vmatpush.bf16.msra.mxu0 %v7957
          %9163 = vmatpush.bf16.msra.mxu0 %v7925
          %9164 = vmatmul.bf16.gmra.mxu0 %v5530
          %v9165 = vpop.f32.mrf.mxu0
          %v9166 = vadd.f32 %v9153, %v9165
          %v9167 = vpop.f32.mrf.mxu0
          %9168 = vdwg.mxu0
          %9169 = vmatpush.bf16.msra.mxu0 %v7894
          %9170 = vmatpush.bf16.msra.mxu0 %v7862
          %9171 = vmatpush.bf16.msra.mxu0 %v7830
          %9172 = vmatpush.bf16.msra.mxu0 %v7798
          %9173 = vmatpush.bf16.msra.mxu0 %v7766
          %9174 = vmatpush.bf16.msra.mxu0 %v7734
          %9175 = vmatpush.bf16.msra.mxu0 %v7702
          %9176 = vmatpush.bf16.msra.mxu0 %v7670
          %9177 = vmatmul.bf16.gmra.mxu0 %v5529
          %v9178 = vpop.f32.mrf.mxu0
          %v9179 = vadd.f32 %v6070, %v9178
          %v9180 = vpop.f32.mrf.mxu0
          %9181 = vdwg.mxu0
          %9182 = vmatpush.bf16.msra.mxu0 %v8150
          %9183 = vmatpush.bf16.msra.mxu0 %v8118
          %9184 = vmatpush.bf16.msra.mxu0 %v8086
          %9185 = vmatpush.bf16.msra.mxu0 %v8054
          %9186 = vmatpush.bf16.msra.mxu0 %v8022
          %9187 = vmatpush.bf16.msra.mxu0 %v7990
          %9188 = vmatpush.bf16.msra.mxu0 %v7958
          %9189 = vmatpush.bf16.msra.mxu0 %v7926
          %9190 = vmatmul.bf16.gmra.mxu0 %v5530
          %v9191 = vpop.f32.mrf.mxu0
          %v9192 = vadd.f32 %v9179, %v9191
          %v9193 = vpop.f32.mrf.mxu0
          %9194 = vdwg.mxu0
          %9195 = vmatpush.bf16.msra.mxu0 %v7895
          %9196 = vmatpush.bf16.msra.mxu0 %v7863
          %9197 = vmatpush.bf16.msra.mxu0 %v7831
          %9198 = vmatpush.bf16.msra.mxu0 %v7799
          %9199 = vmatpush.bf16.msra.mxu0 %v7767
          %9200 = vmatpush.bf16.msra.mxu0 %v7735
          %9201 = vmatpush.bf16.msra.mxu0 %v7703
          %9202 = vmatpush.bf16.msra.mxu0 %v7671
          %9203 = vmatmul.bf16.gmra.mxu0 %v5529
          %v9204 = vpop.f32.mrf.mxu0
          %v9205 = vadd.f32 %v6071, %v9204
          %v9206 = vpop.f32.mrf.mxu0
          %9207 = vdwg.mxu0
          %9208 = vmatpush.bf16.msra.mxu0 %v8151
          %9209 = vmatpush.bf16.msra.mxu0 %v8119
          %9210 = vmatpush.bf16.msra.mxu0 %v8087
          %9211 = vmatpush.bf16.msra.mxu0 %v8055
          %9212 = vmatpush.bf16.msra.mxu0 %v8023
          %9213 = vmatpush.bf16.msra.mxu0 %v7991
          %9214 = vmatpush.bf16.msra.mxu0 %v7959
          %9215 = vmatpush.bf16.msra.mxu0 %v7927
          %9216 = vmatmul.bf16.gmra.mxu0 %v5530
          %v9217 = vpop.f32.mrf.mxu0
          %v9218 = vadd.f32 %v9205, %v9217
          %v9219 = vpop.f32.mrf.mxu0
          %9220 = vdwg.mxu0
          %9221 = vmatpush.bf16.msra.mxu0 %v7896
          %9222 = vmatpush.bf16.msra.mxu0 %v7864
          %9223 = vmatpush.bf16.msra.mxu0 %v7832
          %9224 = vmatpush.bf16.msra.mxu0 %v7800
          %9225 = vmatpush.bf16.msra.mxu0 %v7768
          %9226 = vmatpush.bf16.msra.mxu0 %v7736
          %9227 = vmatpush.bf16.msra.mxu0 %v7704
          %9228 = vmatpush.bf16.msra.mxu0 %v7672
          %9229 = vmatmul.bf16.gmra.mxu0 %v5529
          %v9230 = vpop.f32.mrf.mxu0
          %v9231 = vadd.f32 %v6072, %v9230
          %v9232 = vpop.f32.mrf.mxu0
          %9233 = vdwg.mxu0
          %9234 = vmatpush.bf16.msra.mxu0 %v8152
          %9235 = vmatpush.bf16.msra.mxu0 %v8120
          %9236 = vmatpush.bf16.msra.mxu0 %v8088
          %9237 = vmatpush.bf16.msra.mxu0 %v8056
          %9238 = vmatpush.bf16.msra.mxu0 %v8024
          %9239 = vmatpush.bf16.msra.mxu0 %v7992
          %9240 = vmatpush.bf16.msra.mxu0 %v7960
          %9241 = vmatpush.bf16.msra.mxu0 %v7928
          %9242 = vmatmul.bf16.gmra.mxu0 %v5530
          %v9243 = vpop.f32.mrf.mxu0
          %v9244 = vadd.f32 %v9231, %v9243
          %v9245 = vpop.f32.mrf.mxu0
          %9246 = vdwg.mxu0
          %9247 = vmatpush.bf16.msra.mxu0 %v7897
          %9248 = vmatpush.bf16.msra.mxu0 %v7865
          %9249 = vmatpush.bf16.msra.mxu0 %v7833
          %9250 = vmatpush.bf16.msra.mxu0 %v7801
          %9251 = vmatpush.bf16.msra.mxu0 %v7769
          %9252 = vmatpush.bf16.msra.mxu0 %v7737
          %9253 = vmatpush.bf16.msra.mxu0 %v7705
          %9254 = vmatpush.bf16.msra.mxu0 %v7673
          %9255 = vmatmul.bf16.gmra.mxu0 %v5529
          %v9256 = vpop.f32.mrf.mxu0
          %v9257 = vadd.f32 %v6073, %v9256
          %v9258 = vpop.f32.mrf.mxu0
          %9259 = vdwg.mxu0
          %9260 = vmatpush.bf16.msra.mxu0 %v8153
          %9261 = vmatpush.bf16.msra.mxu0 %v8121
          %9262 = vmatpush.bf16.msra.mxu0 %v8089
          %9263 = vmatpush.bf16.msra.mxu0 %v8057
          %9264 = vmatpush.bf16.msra.mxu0 %v8025
          %9265 = vmatpush.bf16.msra.mxu0 %v7993
          %9266 = vmatpush.bf16.msra.mxu0 %v7961
          %9267 = vmatpush.bf16.msra.mxu0 %v7929
          %9268 = vmatmul.bf16.gmra.mxu0 %v5530
          %v9269 = vpop.f32.mrf.mxu0
          %v9270 = vadd.f32 %v9257, %v9269
          %v9271 = vpop.f32.mrf.mxu0
          %9272 = vdwg.mxu0
          %9273 = vmatpush.bf16.msra.mxu0 %v7898
          %9274 = vmatpush.bf16.msra.mxu0 %v7866
          %9275 = vmatpush.bf16.msra.mxu0 %v7834
          %9276 = vmatpush.bf16.msra.mxu0 %v7802
          %9277 = vmatpush.bf16.msra.mxu0 %v7770
          %9278 = vmatpush.bf16.msra.mxu0 %v7738
          %9279 = vmatpush.bf16.msra.mxu0 %v7706
          %9280 = vmatpush.bf16.msra.mxu0 %v7674
          %9281 = vmatmul.bf16.gmra.mxu0 %v5529
          %v9282 = vpop.f32.mrf.mxu0
          %v9283 = vadd.f32 %v6074, %v9282
          %v9284 = vpop.f32.mrf.mxu0
          %9285 = vdwg.mxu0
          %9286 = vmatpush.bf16.msra.mxu0 %v8154
          %9287 = vmatpush.bf16.msra.mxu0 %v8122
          %9288 = vmatpush.bf16.msra.mxu0 %v8090
          %9289 = vmatpush.bf16.msra.mxu0 %v8058
          %9290 = vmatpush.bf16.msra.mxu0 %v8026
          %9291 = vmatpush.bf16.msra.mxu0 %v7994
          %9292 = vmatpush.bf16.msra.mxu0 %v7962
          %9293 = vmatpush.bf16.msra.mxu0 %v7930
          %9294 = vmatmul.bf16.gmra.mxu0 %v5530
          %v9295 = vpop.f32.mrf.mxu0
          %v9296 = vadd.f32 %v9283, %v9295
          %v9297 = vpop.f32.mrf.mxu0
          %9298 = vdwg.mxu0
          %9299 = vmatpush.bf16.msra.mxu0 %v7899
          %9300 = vmatpush.bf16.msra.mxu0 %v7867
          %9301 = vmatpush.bf16.msra.mxu0 %v7835
          %9302 = vmatpush.bf16.msra.mxu0 %v7803
          %9303 = vmatpush.bf16.msra.mxu0 %v7771
          %9304 = vmatpush.bf16.msra.mxu0 %v7739
          %9305 = vmatpush.bf16.msra.mxu0 %v7707
          %9306 = vmatpush.bf16.msra.mxu0 %v7675
          %9307 = vmatmul.bf16.gmra.mxu0 %v5529
          %v9308 = vpop.f32.mrf.mxu0
          %v9309 = vadd.f32 %v6075, %v9308
          %v9310 = vpop.f32.mrf.mxu0
          %9311 = vdwg.mxu0
          %9312 = vmatpush.bf16.msra.mxu0 %v8155
          %9313 = vmatpush.bf16.msra.mxu0 %v8123
          %9314 = vmatpush.bf16.msra.mxu0 %v8091
          %9315 = vmatpush.bf16.msra.mxu0 %v8059
          %9316 = vmatpush.bf16.msra.mxu0 %v8027
          %9317 = vmatpush.bf16.msra.mxu0 %v7995
          %9318 = vmatpush.bf16.msra.mxu0 %v7963
          %9319 = vmatpush.bf16.msra.mxu0 %v7931
          %9320 = vmatmul.bf16.gmra.mxu0 %v5530
          %v9321 = vpop.f32.mrf.mxu0
          %v9322 = vadd.f32 %v9309, %v9321
          %v9323 = vpop.f32.mrf.mxu0
          %9324 = vdwg.mxu0
          %9325 = vmatpush.bf16.msra.mxu0 %v7900
          %9326 = vmatpush.bf16.msra.mxu0 %v7868
          %9327 = vmatpush.bf16.msra.mxu0 %v7836
          %9328 = vmatpush.bf16.msra.mxu0 %v7804
          %9329 = vmatpush.bf16.msra.mxu0 %v7772
          %9330 = vmatpush.bf16.msra.mxu0 %v7740
          %9331 = vmatpush.bf16.msra.mxu0 %v7708
          %9332 = vmatpush.bf16.msra.mxu0 %v7676
          %9333 = vmatmul.bf16.gmra.mxu0 %v5529
          %v9334 = vpop.f32.mrf.mxu0
          %v9335 = vadd.f32 %v6076, %v9334
          %v9336 = vpop.f32.mrf.mxu0
          %9337 = vdwg.mxu0
          %9338 = vmatpush.bf16.msra.mxu0 %v8156
          %9339 = vmatpush.bf16.msra.mxu0 %v8124
          %9340 = vmatpush.bf16.msra.mxu0 %v8092
          %9341 = vmatpush.bf16.msra.mxu0 %v8060
          %9342 = vmatpush.bf16.msra.mxu0 %v8028
          %9343 = vmatpush.bf16.msra.mxu0 %v7996
          %9344 = vmatpush.bf16.msra.mxu0 %v7964
          %9345 = vmatpush.bf16.msra.mxu0 %v7932
          %9346 = vmatmul.bf16.gmra.mxu0 %v5530
          %v9347 = vpop.f32.mrf.mxu0
          %v9348 = vadd.f32 %v9335, %v9347
          %v9349 = vpop.f32.mrf.mxu0
          %9350 = vdwg.mxu0
          %9351 = vmatpush.bf16.msra.mxu0 %v7901
          %9352 = vmatpush.bf16.msra.mxu0 %v7869
          %9353 = vmatpush.bf16.msra.mxu0 %v7837
          %9354 = vmatpush.bf16.msra.mxu0 %v7805
          %9355 = vmatpush.bf16.msra.mxu0 %v7773
          %9356 = vmatpush.bf16.msra.mxu0 %v7741
          %9357 = vmatpush.bf16.msra.mxu0 %v7709
          %9358 = vmatpush.bf16.msra.mxu0 %v7677
          %9359 = vmatmul.bf16.gmra.mxu0 %v5529
          %v9360 = vpop.f32.mrf.mxu0
          %v9361 = vadd.f32 %v6077, %v9360
          %v9362 = vpop.f32.mrf.mxu0
          %9363 = vdwg.mxu0
          %9364 = vmatpush.bf16.msra.mxu0 %v8157
          %9365 = vmatpush.bf16.msra.mxu0 %v8125
          %9366 = vmatpush.bf16.msra.mxu0 %v8093
          %9367 = vmatpush.bf16.msra.mxu0 %v8061
          %9368 = vmatpush.bf16.msra.mxu0 %v8029
          %9369 = vmatpush.bf16.msra.mxu0 %v7997
          %9370 = vmatpush.bf16.msra.mxu0 %v7965
          %9371 = vmatpush.bf16.msra.mxu0 %v7933
          %9372 = vmatmul.bf16.gmra.mxu0 %v5530
          %v9373 = vpop.f32.mrf.mxu0
          %v9374 = vadd.f32 %v9361, %v9373
          %v9375 = vpop.f32.mrf.mxu0
          %9376 = vdwg.mxu0
          %9377 = vmatpush.bf16.msra.mxu0 %v7902
          %9378 = vmatpush.bf16.msra.mxu0 %v7870
          %9379 = vmatpush.bf16.msra.mxu0 %v7838
          %9380 = vmatpush.bf16.msra.mxu0 %v7806
          %9381 = vmatpush.bf16.msra.mxu0 %v7774
          %9382 = vmatpush.bf16.msra.mxu0 %v7742
          %9383 = vmatpush.bf16.msra.mxu0 %v7710
          %9384 = vmatpush.bf16.msra.mxu0 %v7678
          %9385 = vmatmul.bf16.gmra.mxu0 %v5529
          %v9386 = vpop.f32.mrf.mxu0
          %v9387 = vadd.f32 %v6078, %v9386
          %v9388 = vpop.f32.mrf.mxu0
          %9389 = vdwg.mxu0
          %9390 = vmatpush.bf16.msra.mxu0 %v8158
          %9391 = vmatpush.bf16.msra.mxu0 %v8126
          %9392 = vmatpush.bf16.msra.mxu0 %v8094
          %9393 = vmatpush.bf16.msra.mxu0 %v8062
          %9394 = vmatpush.bf16.msra.mxu0 %v8030
          %9395 = vmatpush.bf16.msra.mxu0 %v7998
          %9396 = vmatpush.bf16.msra.mxu0 %v7966
          %9397 = vmatpush.bf16.msra.mxu0 %v7934
          %9398 = vmatmul.bf16.gmra.mxu0 %v5530
          %v9399 = vpop.f32.mrf.mxu0
          %v9400 = vadd.f32 %v9387, %v9399
          %v9401 = vpop.f32.mrf.mxu0
          %9402 = vdwg.mxu0
          %9403 = vmatpush.bf16.msra.mxu0 %v7903
          %9404 = vmatpush.bf16.msra.mxu0 %v7871
          %9405 = vmatpush.bf16.msra.mxu0 %v7839
          %9406 = vmatpush.bf16.msra.mxu0 %v7807
          %9407 = vmatpush.bf16.msra.mxu0 %v7775
          %9408 = vmatpush.bf16.msra.mxu0 %v7743
          %9409 = vmatpush.bf16.msra.mxu0 %v7711
          %9410 = vmatpush.bf16.msra.mxu0 %v7679
          %9411 = vmatmul.bf16.gmra.mxu0 %v5529
          %v9412 = vpop.f32.mrf.mxu0
          %v9413 = vadd.f32 %v6079, %v9412
          %v9414 = vpop.f32.mrf.mxu0
          %9415 = vdwg.mxu0
          %9416 = vmatpush.bf16.msra.mxu0 %v8159
          %9417 = vmatpush.bf16.msra.mxu0 %v8127
          %9418 = vmatpush.bf16.msra.mxu0 %v8095
          %9419 = vmatpush.bf16.msra.mxu0 %v8063
          %9420 = vmatpush.bf16.msra.mxu0 %v8031
          %9421 = vmatpush.bf16.msra.mxu0 %v7999
          %9422 = vmatpush.bf16.msra.mxu0 %v7967
          %9423 = vmatpush.bf16.msra.mxu0 %v7935
          %9424 = vmatmul.bf16.gmra.mxu0 %v5530
          %v9425 = vpop.f32.mrf.mxu0
          %v9426 = vadd.f32 %v9413, %v9425
          %v9427 = vpop.f32.mrf.mxu0
          %9428 = vdwg.mxu0
          %9429 = vmatpush.bf16.msra.mxu0 %v7904
          %9430 = vmatpush.bf16.msra.mxu0 %v7872
          %9431 = vmatpush.bf16.msra.mxu0 %v7840
          %9432 = vmatpush.bf16.msra.mxu0 %v7808
          %9433 = vmatpush.bf16.msra.mxu0 %v7776
          %9434 = vmatpush.bf16.msra.mxu0 %v7744
          %9435 = vmatpush.bf16.msra.mxu0 %v7712
          %9436 = vmatpush.bf16.msra.mxu0 %v7680
          %9437 = vmatmul.bf16.gmra.mxu0 %v5529
          %v9438 = vpop.f32.mrf.mxu0
          %v9439 = vadd.f32 %v6080, %v9438
          %v9440 = vpop.f32.mrf.mxu0
          %9441 = vdwg.mxu0
          %9442 = vmatpush.bf16.msra.mxu0 %v8160
          %9443 = vmatpush.bf16.msra.mxu0 %v8128
          %9444 = vmatpush.bf16.msra.mxu0 %v8096
          %9445 = vmatpush.bf16.msra.mxu0 %v8064
          %9446 = vmatpush.bf16.msra.mxu0 %v8032
          %9447 = vmatpush.bf16.msra.mxu0 %v8000
          %9448 = vmatpush.bf16.msra.mxu0 %v7968
          %9449 = vmatpush.bf16.msra.mxu0 %v7936
          %9450 = vmatmul.bf16.gmra.mxu0 %v5530
          %v9451 = vpop.f32.mrf.mxu0
          %v9452 = vadd.f32 %v9439, %v9451
          %v9453 = vpop.f32.mrf.mxu0
          %9454 = vdwg.mxu0
          %9455 = vmatpush.bf16.msra.mxu0 %v7905
          %9456 = vmatpush.bf16.msra.mxu0 %v7873
          %9457 = vmatpush.bf16.msra.mxu0 %v7841
          %9458 = vmatpush.bf16.msra.mxu0 %v7809
          %9459 = vmatpush.bf16.msra.mxu0 %v7777
          %9460 = vmatpush.bf16.msra.mxu0 %v7745
          %9461 = vmatpush.bf16.msra.mxu0 %v7713
          %9462 = vmatpush.bf16.msra.mxu0 %v7681
          %9463 = vmatmul.bf16.gmra.mxu0 %v5529
          %v9464 = vpop.f32.mrf.mxu0
          %v9465 = vadd.f32 %v6081, %v9464
          %v9466 = vpop.f32.mrf.mxu0
          %9467 = vdwg.mxu0
          %9468 = vmatpush.bf16.msra.mxu0 %v8161
          %9469 = vmatpush.bf16.msra.mxu0 %v8129
          %9470 = vmatpush.bf16.msra.mxu0 %v8097
          %9471 = vmatpush.bf16.msra.mxu0 %v8065
          %9472 = vmatpush.bf16.msra.mxu0 %v8033
          %9473 = vmatpush.bf16.msra.mxu0 %v8001
          %9474 = vmatpush.bf16.msra.mxu0 %v7969
          %9475 = vmatpush.bf16.msra.mxu0 %v7937
          %9476 = vmatmul.bf16.gmra.mxu0 %v5530
          %v9477 = vpop.f32.mrf.mxu0
          %v9478 = vadd.f32 %v9465, %v9477
          %v9479 = vpop.f32.mrf.mxu0
          %9480 = vdwg.mxu0
          %9481 = vmatpush.bf16.msra.mxu0 %v7906
          %9482 = vmatpush.bf16.msra.mxu0 %v7874
          %9483 = vmatpush.bf16.msra.mxu0 %v7842
          %9484 = vmatpush.bf16.msra.mxu0 %v7810
          %9485 = vmatpush.bf16.msra.mxu0 %v7778
          %9486 = vmatpush.bf16.msra.mxu0 %v7746
          %9487 = vmatpush.bf16.msra.mxu0 %v7714
          %9488 = vmatpush.bf16.msra.mxu0 %v7682
          %9489 = vmatmul.bf16.gmra.mxu0 %v5529
          %v9490 = vpop.f32.mrf.mxu0
          %v9491 = vadd.f32 %v6082, %v9490
          %v9492 = vpop.f32.mrf.mxu0
          %9493 = vdwg.mxu0
          %9494 = vmatpush.bf16.msra.mxu0 %v8162
          %9495 = vmatpush.bf16.msra.mxu0 %v8130
          %9496 = vmatpush.bf16.msra.mxu0 %v8098
          %9497 = vmatpush.bf16.msra.mxu0 %v8066
          %9498 = vmatpush.bf16.msra.mxu0 %v8034
          %9499 = vmatpush.bf16.msra.mxu0 %v8002
          %9500 = vmatpush.bf16.msra.mxu0 %v7970
          %9501 = vmatpush.bf16.msra.mxu0 %v7938
          %9502 = vmatmul.bf16.gmra.mxu0 %v5530
          %v9503 = vpop.f32.mrf.mxu0
          %v9504 = vadd.f32 %v9491, %v9503
          %v9505 = vpop.f32.mrf.mxu0
          %9506 = vdwg.mxu0
          %9507 = vst [vmem:[%s643] sm:$0xff] %v8698
          %9508 = vst [vmem:[%s643 + $0x8] sm:$0xff] %v8724
          %9509 = vst [vmem:[%s643 + $0x10] sm:$0xff] %v8750
          %9510 = vst [vmem:[%s643 + $0x18] sm:$0xff] %v8776
          %9511 = vst [vmem:[%s643 + $0x20] sm:$0xff] %v8802
          %9512 = vst [vmem:[%s643 + $0x28] sm:$0xff] %v8828
          %9513 = vst [vmem:[%s643 + $0x30] sm:$0xff] %v8854
          %9514 = vst [vmem:[%s643 + $0x38] sm:$0xff] %v8880
          %9515 = vst [vmem:[%s643 + $0x40] sm:$0xff] %v8906
          %9516 = vst [vmem:[%s643 + $0x48] sm:$0xff] %v8932
          %9517 = vst [vmem:[%s643 + $0x50] sm:$0xff] %v8958
          %9518 = vst [vmem:[%s643 + $0x58] sm:$0xff] %v8984
          %9519 = vst [vmem:[%s643 + $0x60] sm:$0xff] %v9010
          %9520 = vst [vmem:[%s643 + $0x68] sm:$0xff] %v9036
          %9521 = vst [vmem:[%s643 + $0x70] sm:$0xff] %v9062
          %9522 = vst [vmem:[%s643 + $0x78] sm:$0xff] %v9088
          %9523 = vst [vmem:[%s643 + $0x80] sm:$0xff] %v9114
          %9524 = vst [vmem:[%s643 + $0x88] sm:$0xff] %v9140
          %9525 = vst [vmem:[%s643 + $0x90] sm:$0xff] %v9166
          %9526 = vst [vmem:[%s643 + $0x98] sm:$0xff] %v9192
          %9527 = vst [vmem:[%s643 + $0xa0] sm:$0xff] %v9218
          %9528 = vst [vmem:[%s643 + $0xa8] sm:$0xff] %v9244
          %9529 = vst [vmem:[%s643 + $0xb0] sm:$0xff] %v9270
          %9530 = vst [vmem:[%s643 + $0xb8] sm:$0xff] %v9296
          %9531 = vst [vmem:[%s643 + $0xc0] sm:$0xff] %v9322
          %9532 = vst [vmem:[%s643 + $0xc8] sm:$0xff] %v9348
          %9533 = vst [vmem:[%s643 + $0xd0] sm:$0xff] %v9374
          %9534 = vst [vmem:[%s643 + $0xd8] sm:$0xff] %v9400
          %9535 = vst [vmem:[%s643 + $0xe0] sm:$0xff] %v9426
          %9536 = vst [vmem:[%s643 + $0xe8] sm:$0xff] %v9452
          %9537 = vst [vmem:[%s643 + $0xf0] sm:$0xff] %v9478
          %9538 = vst [vmem:[%s643 + $0xf8] sm:$0xff] %v9504
        $region116: #{tpu_custom_call.1} parent=59 // pred_fallthru
          _
        %s9539 = sand.u32 %s297, 1
        %s9540 = scalar_lea.sflag [#allocation6], %s9539
        %s9541 = sand.u32 %s297, 1
        %s9542 = smul.addr %s9541, 256
        %s9543 = scalar_lea.vmem [#allocation19], %s9542
        // Predicated region
        $region117: #{tpu_custom_call.1} parent=59 // pred_check
          %p9544 = pneg %p307
        $region118: #{tpu_custom_call.1} parent=59 // pred_check_branch
          %9546 = sbr.rel (%p9544) target = $region120
        $region119: #{tpu_custom_call.1} parent=59 // pred_region
          %s9547 = smul.u32 %s38, %s37
          %s9548 = smul.u32 32, %s9547
          %9550 = vsyncadd %s9540, 0
          %s9551 = smul.addr %s9548, 8
          %s9552 = scalar_lea.hbm %s10, %s9551
          %s9554 = sshll.u32 %s9543, 4
          %s9555 = int_to_ptr.vmem [resolvable:$true] %s9554
          %s9556 = sshll.u32 %s9552, 4
          %s9557 = int_to_ptr.hbm [resolvable:$true] %s9556
          %9559 = dma.vmem_to_hbm [thread:$0]  %s9555, 4096, %s9557, %s9540
        $region120: #{tpu_custom_call.1} parent=59 // pred_fallthru
          _
        // Predicated region
        $region121: #{tpu_custom_call.1} parent=59 // pred_check
          %p9560 = pneg %p328
        $region122: #{tpu_custom_call.1} parent=59 // pred_check_branch
          %9562 = sbr.rel (%p9560) target = $region124
        $region123: #{tpu_custom_call.1} parent=59 // pred_region
          %9564 = vsyncadd [#allocation21], 0
          %s9566 = sshll.u32 [#allocation20], 4
          %s9567 = int_to_ptr.vmem [resolvable:$true] %s9566
          %s9568 = sshll.u32 %s11, 4
          %s9569 = int_to_ptr.hbm [resolvable:$true] %s9568
          %9571 = dma.vmem_to_hbm [thread:$0]  %s9567, 128, %s9569, [#allocation21]
        $region124: #{tpu_custom_call.1} parent=59 // pred_fallthru
          _
        // Predicated region
        $region125: #{tpu_custom_call.1} parent=59 // pred_check
          %p9572 = pneg %p328
        $region126: #{tpu_custom_call.1} parent=59 // pred_check_branch
          %9574 = sbr.rel (%p9572) target = $region128
        $region127: #{tpu_custom_call.1} parent=59 // pred_region
          %9576 = dma.done [#allocation21], 128
        $region128: #{tpu_custom_call.1} parent=59 // pred_fallthru
          _
      $region60: #{tpu_custom_call.1} parent=5 // pred_fallthru
        _
      %p9577 = scmp.le.s32.totalorder 2, %s28
      // Predicated region
      $region129: #{tpu_custom_call.1} parent=5 // pred_check
        %p9578 = pneg %p9577
      $region130: #{tpu_custom_call.1} parent=5 // pred_check_branch
        %9580 = sbr.rel (%p9578) target = $region132
      $region131: #{tpu_custom_call.1} parent=5 // pred_region
        %s9581 = ssub.s32 %s28, 2
        // Predicated region
        $region133: #{tpu_custom_call.1} parent=131 // pred_check
          %p9582 = pneg %p313
        $region134: #{tpu_custom_call.1} parent=131 // pred_check_branch
          %9584 = sbr.rel (%p9582) target = $region136
        $region135: #{tpu_custom_call.1} parent=131 // pred_region
          %s9585 = sand.u32 %s298, 1
          %s9586 = scalar_lea.sflag [#allocation6], %s9585
          %s9587 = sand.u32 %s298, 1
          %s9588 = smul.addr %s9587, 256
          %s9589 = scalar_lea.vmem [#allocation19], %s9588
          %9591 = dma.done %s9586, 4096
        $region136: #{tpu_custom_call.1} parent=131 // pred_fallthru
          _
      $region132: #{tpu_custom_call.1} parent=5 // pred_fallthru
        _
    $region6: #{tpu_custom_call.1} parent=1 // loop_footer
      %s32 = sadd.s32 1, %s28
    $region7: #{tpu_custom_call.1} parent=1 // loop_footer_branch
      %27 = sbr.rel target = $region3
    $region8: #{tpu_custom_call.1} parent=1 // loop_exit
      _
    %9592 = vsyncpa [#allocation5], 1
    %s9593 = scalar_lea.sflag [#allocation5], 1
    %9594 = vsyncpa %s9593, 1
    %9595 = vsyncpa [#allocation8], 1
    %9596 = vsyncpa [#allocation12], 1
    %9597 = vsyncpa [#allocation15], 1
    %9598 = vsyncpa [#allocation6], 1
    %s9599 = scalar_lea.sflag [#allocation6], 1
    %9600 = vsyncpa %s9599, 1
    %9601 = vsyncpa [#allocation21], 1

</llo_original>
